<compile_context>
chip_gen: v7x
topology: tpu7x:2x2x1
jax: 0.10.0
libtpu: 0.0.40
codegen_flags: <defaults>
</compile_context>

<pallas_src>
import math
from functools import partial

import jax
import jax.numpy as jnp
from jax.experimental import pallas as pl
from jax.experimental.pallas import tpu as pltpu


MAX_DEPTH = 5          # UNet1D default depth
BN_EPS = 1e-5
NEG_SLOPE = 0.2        # LeakyReLU(0.2)


# ----------------------------------------------------------------------------
# Fused kernel: whole MineGAN2_G forward for one block of batch elements.
# ----------------------------------------------------------------------------
def _minegan_kernel(x_ref, up_e_ref,
                    enc_w_ref, enc_s_ref,
                    pre_w_ref, pre_s_ref,
                    down_w_ref, down_s_ref,
                    up_w_ref, up_s_ref,
                    dec_w_ref, dec_s_ref,
                    o_ref, *, C, depth, T):
    f32, bf16 = jnp.float32, jnp.bfloat16

    def affine_lrelu(acc, ss):
        # folded Conv1d bias + BatchNorm1d(eval):  y = acc*scale + shift, then
        # LeakyReLU(0.2).  f32 epilogue on the accumulator, ONE cast to bf16.
        y = acc * ss[0:1, :] + ss[1:2, :]
        y = jnp.where(y > 0.0, y, NEG_SLOPE * y)
        return y.astype(bf16)

    def row_iota(m):
        return jax.lax.broadcasted_iota(jnp.int32, (m, 1), 0)

    def tap_prev(x, w, t_per):
        # contribution of tap x[t-1] @ w.  Shift done with pltpu.roll on the
        # f32 dot result (XLU slot, no sublane concatenates); rows at each
        # element start are zeroed (conv zero padding across batch boundaries).
        p = jnp.dot(x, w, preferred_element_type=f32)
        p = pltpu.roll(p, shift=1, axis=0)
        return jnp.where(row_iota(p.shape[0]) % t_per == 0, 0.0, p)

    def tap_next(x, w, t_per):
        # contribution of tap x[t+1] @ w; rows at each element end are zeroed.
        m = x.shape[0]
        p = jnp.dot(x, w, preferred_element_type=f32)
        p = pltpu.roll(p, shift=m - 1, axis=0)
        return jnp.where(row_iota(m) % t_per == t_per - 1, 0.0, p)

    def conv3(x, w_ref, s_ref, i, t_per):
        # Conv1d(k=3, s=1, p=1) as 3 accumulated (M,C)@(C,C) bf16 dots
        # (no im2col patch, no wide f32 intermediates).
        acc = jnp.dot(x, w_ref[3 * i + 1], preferred_element_type=f32)
        acc += tap_prev(x, w_ref[3 * i + 0], t_per)
        acc += tap_next(x, w_ref[3 * i + 2], t_per)
        return affine_lrelu(acc, s_ref[i])

    def conv4s2(x, w_ref, s_ref, i, t_per):
        # Conv1d(k=4, s=2, p=1) as 4 accumulated (M/2,C)@(C,C) bf16 dots.
        # Even/odd deinterleave at 32-bit width (packed-bf16 sublane reshapes
        # can force a relayout); phases cast back to bf16 for the MXU.
        # TODO(synk): if the bundle still shows a relayout here, stage x in a
        # VMEM scratch and read the phases with strided pl.ds loads.
        m = x.shape[0]
        xr = x.astype(f32).reshape(m // 2, 2, C)
        x_even = xr[:, 0, :].astype(bf16)                  # x[2t]
        x_odd = xr[:, 1, :].astype(bf16)                   # x[2t+1]
        half = t_per // 2
        acc = jnp.dot(x_even, w_ref[4 * i + 1], preferred_element_type=f32)
        acc += jnp.dot(x_odd, w_ref[4 * i + 2], preferred_element_type=f32)
        acc += tap_prev(x_odd, w_ref[4 * i + 0], half)     # x[2t-1]
        acc += tap_next(x_even, w_ref[4 * i + 3], half)    # x[2t+2]
        return affine_lrelu(acc, s_ref[i])

    def upsample2(x):
        # nearest-x2 along (flattened) time: exact 0/1 bf16 MXU matmul with a
        # host-precomputed expansion matrix, sliced per pyramid level.
        m = x.shape[0]
        return jnp.dot(up_e_ref[0:2 * m, 0:m], x, preferred_element_type=f32)

    # ---- G.forward_enc (frozen pretrained generator) -------------------------
    # TODO(synk): real pretrained G.forward_enc (label / noise conditioning)
    # lives in an external checkpoint; stubbed as a pointwise conv.
    acc = jnp.dot(x_ref[...].astype(bf16), enc_w_ref[...],
                  preferred_element_type=f32)
    h = affine_lrelu(acc, enc_s_ref[...])                  # (B*T, C) bf16

    # ---- UNet1D miner (bf16-resident activations / residuals) ----------------
    t_per = T
    for i in range(2):                                     # pre convs (k3 s1 p1)
        h = conv3(h, pre_w_ref, pre_s_ref, i, t_per)

    residuals = [h]
    for i in range(depth):                                 # encoder (k4 s2 p1)
        h = conv4s2(h, down_w_ref, down_s_ref, i, t_per)
        t_per //= 2
        if i < depth - 1:
            residuals.append(h)

    for i in range(depth):                                 # decoder
        up = upsample2(h)                                  # (2m, C) f32
        t_per *= 2
        h = (up + residuals[depth - 1 - i]).astype(bf16)   # nearest x2 + skip add
        h = conv3(h, up_w_ref, up_s_ref, i, t_per)

    # ---- G.forward_dec (frozen pretrained generator) --------------------------
    # TODO(synk): real pretrained G.forward_dec (noise path, label conditioning)
    # is external; stubbed as a pointwise conv to lane-padded pose features.
    acc = jnp.dot(h, dec_w_ref[...], preferred_element_type=f32)
    out = acc * dec_s_ref[0:1, :] + dec_s_ref[1:2, :]
    o_ref[...] = out.astype(o_ref.dtype)


# ----------------------------------------------------------------------------
# Wrapper: one fused pallas_call for the whole network.
# ----------------------------------------------------------------------------
def _expand_matrix(rows):
    # E[s, t] = 1 iff s // 2 == t : nearest-x2 upsample as an MXU operand.
    r = jnp.arange(rows)[:, None] // 2
    c = jnp.arange(rows // 2)[None, :]
    return (r == c).astype(jnp.bfloat16)


def minegan_forward(x, p, *, C, out_feats, depth=MAX_DEPTH, block_batch=None):
    """x: (N, T, F_in) f32  ->  (N, T, out_feats) f32.  One fused pallas_call."""
    N, T, F_in = x.shape
    assert T % (2 ** depth) == 0, "time dim must be a multiple of 2**max_depth"
    if block_batch is None:
        block_batch = max(1, min(N, max(1, 128 // T)))     # aim for M >= 128 rows
    B = block_batch
    assert N % B == 0, "batch must divide evenly into batch blocks"
    M = B * T                                              # matmul rows per grid step
    out_pad = p["dec_w"].shape[-1]

    x_flat = x.reshape(N * T, F_in)                        # fold batch into M
    up_e = _expand_matrix(M)                               # (M, M//2) bf16

    # Advisory cost estimate so XLA can schedule neighbors around the call.
    flops = 2 * N * T * (F_in * C + C * out_pad) + 2 * N * T * 2 * 3 * C * C
    t = T
    for _ in range(depth):
        flops += 2 * N * (t // 2) * 4 * C * C
        t //= 2
    for _ in range(depth):
        t *= 2
        flops += 2 * (N // B) * (B * t) * (B * t // 2) * C     # upsample matmul
        flops += 2 * N * t * 3 * C * C
    bytes_accessed = (x_flat.size * 4 + N * T * out_pad * 4 + up_e.size * 2
                      + sum(int(v.size) * v.dtype.itemsize for v in p.values()))
    cost = pl.CostEstimate(flops=int(flops), transcendentals=0,
                           bytes_accessed=int(bytes_accessed))

    kernel = partial(_minegan_kernel, C=C, depth=depth, T=T)
    const2 = lambda n: (0, 0)
    const3 = lambda n: (0, 0, 0)

    out_flat = pl.pallas_call(
        kernel,
        out_shape=jax.ShapeDtypeStruct((N * T, out_pad), jnp.float32),
        grid=(N // B,),
        in_specs=[
            pl.BlockSpec((M, F_in), lambda n: (n, 0)),     # x (B batch rows folded)
            pl.BlockSpec((M, M // 2), const2),             # nearest-x2 expansion matrix
            pl.BlockSpec((F_in, C), const2),               # enc stub weight (bf16)
            pl.BlockSpec((2, C), const2),                  # enc scale/shift
            pl.BlockSpec((2 * 3, C, C), const3),           # 2 pre convs, per-tap weights
            pl.BlockSpec((2, 2, C), const3),
            pl.BlockSpec((depth * 4, C, C), const3),       # down convs, per-tap weights
            pl.BlockSpec((depth, 2, C), const3),
            pl.BlockSpec((depth * 3, C, C), const3),       # up convs, per-tap weights
            pl.BlockSpec((depth, 2, C), const3),
            pl.BlockSpec((C, out_pad), const2),            # dec stub weight (lane padded)
            pl.BlockSpec((2, out_pad), const2),
        ],
        out_specs=pl.BlockSpec((M, out_pad), lambda n: (n, 0)),
        compiler_params=pltpu.CompilerParams(
            dimension_semantics=("parallel",)),            # batch blocks -> TCs on v7x
        cost_estimate=cost,
    )(x_flat, up_e, p["enc_w"], p["enc_s"], p["pre_w"], p["pre_s"],
      p["down_w"], p["down_s"], p["up_w"], p["up_s"], p["dec_w"], p["dec_s"])

    return out_flat.reshape(N, T, out_pad)[..., :out_feats]


# ----------------------------------------------------------------------------
# Deterministic parameter construction (host side): conv bias + eval-mode BN
# folded into (scale, shift); per-tap conv weights kept as (K, Cin, Cout) bf16.
# ----------------------------------------------------------------------------
def _conv_init(key, K, cin, cout):
    kw, kb = jax.random.split(key)
    w = jax.random.normal(kw, (K, cin, cout), jnp.float32) * math.sqrt(2.0 / (K * cin))
    b = jax.random.normal(kb, (cout,), jnp.float32) * 0.01
    gamma = jnp.ones((cout,), jnp.float32)     # fresh BatchNorm1d (eval mode)
    beta = jnp.zeros((cout,), jnp.float32)
    mean = jnp.zeros((cout,), jnp.float32)
    var = jnp.ones((cout,), jnp.float32)
    return w, b, gamma, beta, mean, var


def _fold(w, b, gamma, beta, mean, var):
    scale = gamma / jnp.sqrt(var + BN_EPS)
    shift = beta + (b - mean) * scale
    return w.astype(jnp.bfloat16), jnp.stack([scale, shift], 0).astype(jnp.float32)


class MineGAN2G:
    """MineGAN2_G: frozen pretrained G (enc/dec stubs) + UNet1D miner in the latent."""

    def __init__(self, key, *, in_feats, in_channels, out_feats, max_depth=MAX_DEPTH):
        self.C = in_channels
        self.out_feats = out_feats
        self.depth = max_depth
        out_pad = ((out_feats + 127) // 128) * 128         # lane-dense decoder head
        ks = iter(jax.random.split(key, 4 + 2 * max_depth))
        enc_w, enc_s = _fold(*_conv_init(next(ks), 1, in_feats, in_channels))
        dec_w, dec_s = _fold(*_conv_init(next(ks), 1, in_channels, out_feats))
        pre = [_fold(*_conv_init(next(ks), 3, in_channels, in_channels)) for _ in range(2)]
        down = [_fold(*_conv_init(next(ks), 4, in_channels, in_channels))
                for _ in range(max_depth)]
        up = [_fold(*_conv_init(next(ks), 3, in_channels, in_channels))
              for _ in range(max_depth)]
        dec_w_p = jnp.zeros((in_channels, out_pad), jnp.bfloat16).at[:, :out_feats].set(dec_w[0])
        dec_s_p = jnp.zeros((2, out_pad), jnp.float32).at[:, :out_feats].set(dec_s)
        cat = lambda xs: jnp.concatenate(xs, axis=0)
        self.params = dict(
            enc_w=enc_w[0], enc_s=enc_s, dec_w=dec_w_p, dec_s=dec_s_p,
            pre_w=cat([w for w, _ in pre]), pre_s=jnp.stack([s for _, s in pre]),
            down_w=cat([w for w, _ in down]), down_s=jnp.stack([s for _, s in down]),
            up_w=cat([w for w, _ in up]), up_s=jnp.stack([s for _, s in up]),
        )

    def __call__(self, x, y, noise=None):
        # labels y / noise pass through the frozen-G stubs; no internal losses here.
        out = minegan_forward(x, self.params, C=self.C,
                              out_feats=self.out_feats, depth=self.depth)
        internal_losses = []
        return out, internal_losses


# ----------------------------------------------------------------------------
if __name__ == "__main__":
    # Small shapes consistent with the module defaults: time_steps=64,
    # out_feats=104; latent channels kept lane-dense at 128; batch=4 so the
    # batch-folded grid has 2 parallel steps (one per v7x TensorCore).
    N, T, F_IN, C, OUT = 4, 64, 64, 128, 104

    key = jax.random.PRNGKey(0)
    k_model, k_x, k_y = jax.random.split(key, 3)

    model = MineGAN2G(k_model, in_feats=F_IN, in_channels=C, out_feats=OUT)

    x = jax.random.normal(k_x, (N, T, F_IN), jnp.float32)    # audio/text features
    y = jax.random.randint(k_y, (N,), 0, 8)                  # labels (passed through)

    out, internal_losses = model(x, y)
    out = jax.block_until_ready(out)

    assert out.shape == (N, T, OUT), out.shape
    assert bool(jnp.all(jnp.isfinite(out)))
    print("KERNEL_OK")
</pallas_src>

<mosaic_0001>
module attributes {stable_mosaic.version = 11 : i64} {
  func.func @_minegan_kernel(%arg0: i32, %arg1: memref<128x64xf32, #tpu.memory_space<vmem>>, %arg2: memref<128x64xbf16, #tpu.memory_space<vmem>>, %arg3: memref<64x128xbf16, #tpu.memory_space<vmem>>, %arg4: memref<2x128xf32, #tpu.memory_space<vmem>>, %arg5: memref<6x128x128xbf16, #tpu.memory_space<vmem>>, %arg6: memref<2x2x128xf32, #tpu.memory_space<vmem>>, %arg7: memref<20x128x128xbf16, #tpu.memory_space<vmem>>, %arg8: memref<5x2x128xf32, #tpu.memory_space<vmem>>, %arg9: memref<15x128x128xbf16, #tpu.memory_space<vmem>>, %arg10: memref<5x2x128xf32, #tpu.memory_space<vmem>>, %arg11: memref<128x128xbf16, #tpu.memory_space<vmem>>, %arg12: memref<2x128xf32, #tpu.memory_space<vmem>>, %arg13: memref<128x128xf32, #tpu.memory_space<vmem>>) attributes {dimension_semantics = [#tpu.dimension_semantics<parallel>], iteration_bounds = array<i64: 2>, scalar_prefetch = 0 : i64, scratch_operands = 0 : i64, tpu.core_type = #tpu.core_type<tc>, window_params = [{transform_indices = @transform_0, window_bounds = array<i64: 128, 64>}, {pipeline_mode = #tpu.pipeline_mode<synchronous>, transform_indices = @transform_1, window_bounds = array<i64: 128, 64>}, {pipeline_mode = #tpu.pipeline_mode<synchronous>, transform_indices = @transform_2, window_bounds = array<i64: 64, 128>}, {pipeline_mode = #tpu.pipeline_mode<synchronous>, transform_indices = @transform_3, window_bounds = array<i64: 2, 128>}, {pipeline_mode = #tpu.pipeline_mode<synchronous>, transform_indices = @transform_4, window_bounds = array<i64: 6, 128, 128>}, {pipeline_mode = #tpu.pipeline_mode<synchronous>, transform_indices = @transform_5, window_bounds = array<i64: 2, 2, 128>}, {pipeline_mode = #tpu.pipeline_mode<synchronous>, transform_indices = @transform_6, window_bounds = array<i64: 20, 128, 128>}, {pipeline_mode = #tpu.pipeline_mode<synchronous>, transform_indices = @transform_7, window_bounds = array<i64: 5, 2, 128>}, {pipeline_mode = #tpu.pipeline_mode<synchronous>, transform_indices = @transform_8, window_bounds = array<i64: 15, 128, 128>}, {pipeline_mode = #tpu.pipeline_mode<synchronous>, transform_indices = @transform_9, window_bounds = array<i64: 5, 2, 128>}, {pipeline_mode = #tpu.pipeline_mode<synchronous>, transform_indices = @transform_10, window_bounds = array<i64: 128, 128>}, {pipeline_mode = #tpu.pipeline_mode<synchronous>, transform_indices = @transform_11, window_bounds = array<i64: 2, 128>}, {transform_indices = @transform_12, window_bounds = array<i64: 128, 128>}]} {
    %c0 = arith.constant 0 : index
    %c0_0 = arith.constant 0 : index
    %0 = vector.load %arg1[%c0, %c0_0] : memref<128x64xf32, #tpu.memory_space<vmem>>, vector<128x64xf32>
    %1 = arith.truncf %0 : vector<128x64xf32> to vector<128x64xbf16>
    %c0_1 = arith.constant 0 : index
    %c0_2 = arith.constant 0 : index
    %2 = vector.load %arg3[%c0_1, %c0_2] : memref<64x128xbf16, #tpu.memory_space<vmem>>, vector<64x128xbf16>
    %cst = arith.constant dense<0.000000e+00> : vector<128x128xf32>
    %3 = tpu.matmul %1, %2, %cst {dimension_numbers = #tpu.dot_dimension_numbers<[1], [0], [0], [1], [0, 0, 1, 1], [], []>} : vector<128x64xbf16>, vector<64x128xbf16>, vector<128x128xf32> -> vector<128x128xf32>
    %c0_3 = arith.constant 0 : index
    %c0_4 = arith.constant 0 : index
    %4 = vector.load %arg4[%c0_3, %c0_4] : memref<2x128xf32, #tpu.memory_space<vmem>>, vector<2x128xf32>
    %5 = vector.extract_strided_slice %4 {offsets = [0, 0], sizes = [1, 128], strides = [1, 1]} : vector<2x128xf32> to vector<1x128xf32>
    %6 = vector.broadcast %5 : vector<1x128xf32> to vector<128x128xf32>
    %7 = arith.mulf %3, %6 : vector<128x128xf32>
    %8 = vector.extract_strided_slice %4 {offsets = [1, 0], sizes = [1, 128], strides = [1, 1]} : vector<2x128xf32> to vector<1x128xf32>
    %9 = vector.broadcast %8 : vector<1x128xf32> to vector<128x128xf32>
    %10 = arith.addf %7, %9 : vector<128x128xf32>
    %cst_5 = arith.constant 0.000000e+00 : f32
    %11 = vector.broadcast %cst_5 : f32 to vector<128x128xf32>
    %12 = arith.cmpf ogt, %10, %11 : vector<128x128xf32>
    %cst_6 = arith.constant 2.000000e-01 : f32
    %13 = vector.broadcast %cst_6 : f32 to vector<128x128xf32>
    %14 = arith.mulf %13, %10 : vector<128x128xf32>
    %15 = arith.select %12, %10, %14 : vector<128x128xi1>, vector<128x128xf32>
    %16 = arith.truncf %15 : vector<128x128xf32> to vector<128x128xbf16>
    %c1 = arith.constant 1 : index
    %c0_7 = arith.constant 0 : index
    %c0_8 = arith.constant 0 : index
    %17 = vector.load %arg5[%c1, %c0_7, %c0_8] : memref<6x128x128xbf16, #tpu.memory_space<vmem>>, vector<1x128x128xbf16>
    %18 = vector.shape_cast %17 : vector<1x128x128xbf16> to vector<128x128xbf16>
    %cst_9 = arith.constant dense<0.000000e+00> : vector<128x128xf32>
    %19 = tpu.matmul %16, %18, %cst_9 {dimension_numbers = #tpu.dot_dimension_numbers<[1], [0], [0], [1], [0, 0, 1, 1], [], []>} : vector<128x128xbf16>, vector<128x128xbf16>, vector<128x128xf32> -> vector<128x128xf32>
    %c0_10 = arith.constant 0 : index
    %c0_11 = arith.constant 0 : index
    %c0_12 = arith.constant 0 : index
    %20 = vector.load %arg5[%c0_10, %c0_11, %c0_12] : memref<6x128x128xbf16, #tpu.memory_space<vmem>>, vector<1x128x128xbf16>
    %21 = vector.shape_cast %20 : vector<1x128x128xbf16> to vector<128x128xbf16>
    %cst_13 = arith.constant dense<0.000000e+00> : vector<128x128xf32>
    %22 = tpu.matmul %16, %21, %cst_13 {dimension_numbers = #tpu.dot_dimension_numbers<[1], [0], [0], [1], [0, 0, 1, 1], [], []>} : vector<128x128xbf16>, vector<128x128xbf16>, vector<128x128xf32> -> vector<128x128xf32>
    %c1_i32 = arith.constant 1 : i32
    %23 = tpu.dynamic_rotate %22 by %c1_i32 dim 0 : vector<128x128xf32>, i32 -> vector<128x128xf32>
    %24 = tpu.iota {dimensions = array<i32: 0>} : vector<128x1xi32>
    %c64_i32 = arith.constant 64 : i32
    %c0_i32 = arith.constant 0 : i32
    %25 = arith.cmpi eq, %c64_i32, %c0_i32 : i32
    %c1_i32_14 = arith.constant 1 : i32
    %26 = arith.select %25, %c1_i32_14, %c64_i32 : i32
    %27 = vector.broadcast %26 : i32 to vector<128x1xi32>
    %28 = arith.remsi %24, %27 : vector<128x1xi32>
    %c0_i32_15 = arith.constant 0 : i32
    %29 = vector.broadcast %c0_i32_15 : i32 to vector<128x1xi32>
    %30 = arith.cmpi ne, %28, %29 : vector<128x1xi32>
    %c0_i32_16 = arith.constant 0 : i32
    %31 = vector.broadcast %c0_i32_16 : i32 to vector<128x1xi32>
    %32 = arith.cmpi slt, %28, %31 : vector<128x1xi32>
    %c0_i32_17 = arith.constant 0 : i32
    %33 = arith.cmpi slt, %26, %c0_i32_17 : i32
    %34 = vector.broadcast %33 : i1 to vector<128x1xi1>
    %35 = vector.broadcast %34 : vector<128x1xi1> to vector<128x1xi1>
    %36 = arith.xori %32, %35 : vector<128x1xi1>
    %37 = arith.andi %36, %30 : vector<128x1xi1>
    %38 = vector.broadcast %26 : i32 to vector<128x1xi32>
    %39 = arith.addi %28, %38 : vector<128x1xi32>
    %40 = arith.select %37, %39, %28 : vector<128x1xi1>, vector<128x1xi32>
    %c0_i32_18 = arith.constant 0 : i32
    %41 = vector.broadcast %c0_i32_18 : i32 to vector<128x1xi32>
    %42 = arith.cmpi eq, %40, %41 : vector<128x1xi32>
    %cst_19 = arith.constant 0.000000e+00 : f32
    %43 = vector.shape_cast %42 : vector<128x1xi1> to vector<128x1xi1>
    %44 = vector.broadcast %43 : vector<128x1xi1> to vector<128x128xi1>
    %45 = vector.broadcast %cst_19 : f32 to vector<128x128xf32>
    %46 = arith.select %44, %45, %23 : vector<128x128xi1>, vector<128x128xf32>
    %47 = arith.addf %19, %46 : vector<128x128xf32>
    %c2 = arith.constant 2 : index
    %c0_20 = arith.constant 0 : index
    %c0_21 = arith.constant 0 : index
    %48 = vector.load %arg5[%c2, %c0_20, %c0_21] : memref<6x128x128xbf16, #tpu.memory_space<vmem>>, vector<1x128x128xbf16>
    %49 = vector.shape_cast %48 : vector<1x128x128xbf16> to vector<128x128xbf16>
    %cst_22 = arith.constant dense<0.000000e+00> : vector<128x128xf32>
    %50 = tpu.matmul %16, %49, %cst_22 {dimension_numbers = #tpu.dot_dimension_numbers<[1], [0], [0], [1], [0, 0, 1, 1], [], []>} : vector<128x128xbf16>, vector<128x128xbf16>, vector<128x128xf32> -> vector<128x128xf32>
    %c127_i32 = arith.constant 127 : i32
    %51 = tpu.dynamic_rotate %50 by %c127_i32 dim 0 : vector<128x128xf32>, i32 -> vector<128x128xf32>
    %52 = tpu.iota {dimensions = array<i32: 0>} : vector<128x1xi32>
    %c64_i32_23 = arith.constant 64 : i32
    %c0_i32_24 = arith.constant 0 : i32
    %53 = arith.cmpi eq, %c64_i32_23, %c0_i32_24 : i32
    %c1_i32_25 = arith.constant 1 : i32
    %54 = arith.select %53, %c1_i32_25, %c64_i32_23 : i32
    %55 = vector.broadcast %54 : i32 to vector<128x1xi32>
    %56 = arith.remsi %52, %55 : vector<128x1xi32>
    %c0_i32_26 = arith.constant 0 : i32
    %57 = vector.broadcast %c0_i32_26 : i32 to vector<128x1xi32>
    %58 = arith.cmpi ne, %56, %57 : vector<128x1xi32>
    %c0_i32_27 = arith.constant 0 : i32
    %59 = vector.broadcast %c0_i32_27 : i32 to vector<128x1xi32>
    %60 = arith.cmpi slt, %56, %59 : vector<128x1xi32>
    %c0_i32_28 = arith.constant 0 : i32
    %61 = arith.cmpi slt, %54, %c0_i32_28 : i32
    %62 = vector.broadcast %61 : i1 to vector<128x1xi1>
    %63 = vector.broadcast %62 : vector<128x1xi1> to vector<128x1xi1>
    %64 = arith.xori %60, %63 : vector<128x1xi1>
    %65 = arith.andi %64, %58 : vector<128x1xi1>
    %66 = vector.broadcast %54 : i32 to vector<128x1xi32>
    %67 = arith.addi %56, %66 : vector<128x1xi32>
    %68 = arith.select %65, %67, %56 : vector<128x1xi1>, vector<128x1xi32>
    %c63_i32 = arith.constant 63 : i32
    %69 = vector.broadcast %c63_i32 : i32 to vector<128x1xi32>
    %70 = arith.cmpi eq, %68, %69 : vector<128x1xi32>
    %cst_29 = arith.constant 0.000000e+00 : f32
    %71 = vector.shape_cast %70 : vector<128x1xi1> to vector<128x1xi1>
    %72 = vector.broadcast %71 : vector<128x1xi1> to vector<128x128xi1>
    %73 = vector.broadcast %cst_29 : f32 to vector<128x128xf32>
    %74 = arith.select %72, %73, %51 : vector<128x128xi1>, vector<128x128xf32>
    %75 = arith.addf %47, %74 : vector<128x128xf32>
    %c0_30 = arith.constant 0 : index
    %c0_31 = arith.constant 0 : index
    %c0_32 = arith.constant 0 : index
    %76 = vector.load %arg6[%c0_30, %c0_31, %c0_32] : memref<2x2x128xf32, #tpu.memory_space<vmem>>, vector<1x2x128xf32>
    %77 = vector.shape_cast %76 : vector<1x2x128xf32> to vector<2x128xf32>
    %78 = vector.extract_strided_slice %77 {offsets = [0, 0], sizes = [1, 128], strides = [1, 1]} : vector<2x128xf32> to vector<1x128xf32>
    %79 = vector.broadcast %78 : vector<1x128xf32> to vector<128x128xf32>
    %80 = arith.mulf %75, %79 : vector<128x128xf32>
    %81 = vector.extract_strided_slice %77 {offsets = [1, 0], sizes = [1, 128], strides = [1, 1]} : vector<2x128xf32> to vector<1x128xf32>
    %82 = vector.broadcast %81 : vector<1x128xf32> to vector<128x128xf32>
    %83 = arith.addf %80, %82 : vector<128x128xf32>
    %cst_33 = arith.constant 0.000000e+00 : f32
    %84 = vector.broadcast %cst_33 : f32 to vector<128x128xf32>
    %85 = arith.cmpf ogt, %83, %84 : vector<128x128xf32>
    %cst_34 = arith.constant 2.000000e-01 : f32
    %86 = vector.broadcast %cst_34 : f32 to vector<128x128xf32>
    %87 = arith.mulf %86, %83 : vector<128x128xf32>
    %88 = arith.select %85, %83, %87 : vector<128x128xi1>, vector<128x128xf32>
    %89 = arith.truncf %88 : vector<128x128xf32> to vector<128x128xbf16>
    %c4 = arith.constant 4 : index
    %c0_35 = arith.constant 0 : index
    %c0_36 = arith.constant 0 : index
    %90 = vector.load %arg5[%c4, %c0_35, %c0_36] : memref<6x128x128xbf16, #tpu.memory_space<vmem>>, vector<1x128x128xbf16>
    %91 = vector.shape_cast %90 : vector<1x128x128xbf16> to vector<128x128xbf16>
    %cst_37 = arith.constant dense<0.000000e+00> : vector<128x128xf32>
    %92 = tpu.matmul %89, %91, %cst_37 {dimension_numbers = #tpu.dot_dimension_numbers<[1], [0], [0], [1], [0, 0, 1, 1], [], []>} : vector<128x128xbf16>, vector<128x128xbf16>, vector<128x128xf32> -> vector<128x128xf32>
    %c3 = arith.constant 3 : index
    %c0_38 = arith.constant 0 : index
    %c0_39 = arith.constant 0 : index
    %93 = vector.load %arg5[%c3, %c0_38, %c0_39] : memref<6x128x128xbf16, #tpu.memory_space<vmem>>, vector<1x128x128xbf16>
    %94 = vector.shape_cast %93 : vector<1x128x128xbf16> to vector<128x128xbf16>
    %cst_40 = arith.constant dense<0.000000e+00> : vector<128x128xf32>
    %95 = tpu.matmul %89, %94, %cst_40 {dimension_numbers = #tpu.dot_dimension_numbers<[1], [0], [0], [1], [0, 0, 1, 1], [], []>} : vector<128x128xbf16>, vector<128x128xbf16>, vector<128x128xf32> -> vector<128x128xf32>
    %c1_i32_41 = arith.constant 1 : i32
    %96 = tpu.dynamic_rotate %95 by %c1_i32_41 dim 0 : vector<128x128xf32>, i32 -> vector<128x128xf32>
    %97 = tpu.iota {dimensions = array<i32: 0>} : vector<128x1xi32>
    %c64_i32_42 = arith.constant 64 : i32
    %c0_i32_43 = arith.constant 0 : i32
    %98 = arith.cmpi eq, %c64_i32_42, %c0_i32_43 : i32
    %c1_i32_44 = arith.constant 1 : i32
    %99 = arith.select %98, %c1_i32_44, %c64_i32_42 : i32
    %100 = vector.broadcast %99 : i32 to vector<128x1xi32>
    %101 = arith.remsi %97, %100 : vector<128x1xi32>
    %c0_i32_45 = arith.constant 0 : i32
    %102 = vector.broadcast %c0_i32_45 : i32 to vector<128x1xi32>
    %103 = arith.cmpi ne, %101, %102 : vector<128x1xi32>
    %c0_i32_46 = arith.constant 0 : i32
    %104 = vector.broadcast %c0_i32_46 : i32 to vector<128x1xi32>
    %105 = arith.cmpi slt, %101, %104 : vector<128x1xi32>
    %c0_i32_47 = arith.constant 0 : i32
    %106 = arith.cmpi slt, %99, %c0_i32_47 : i32
    %107 = vector.broadcast %106 : i1 to vector<128x1xi1>
    %108 = vector.broadcast %107 : vector<128x1xi1> to vector<128x1xi1>
    %109 = arith.xori %105, %108 : vector<128x1xi1>
    %110 = arith.andi %109, %103 : vector<128x1xi1>
    %111 = vector.broadcast %99 : i32 to vector<128x1xi32>
    %112 = arith.addi %101, %111 : vector<128x1xi32>
    %113 = arith.select %110, %112, %101 : vector<128x1xi1>, vector<128x1xi32>
    %c0_i32_48 = arith.constant 0 : i32
    %114 = vector.broadcast %c0_i32_48 : i32 to vector<128x1xi32>
    %115 = arith.cmpi eq, %113, %114 : vector<128x1xi32>
    %cst_49 = arith.constant 0.000000e+00 : f32
    %116 = vector.shape_cast %115 : vector<128x1xi1> to vector<128x1xi1>
    %117 = vector.broadcast %116 : vector<128x1xi1> to vector<128x128xi1>
    %118 = vector.broadcast %cst_49 : f32 to vector<128x128xf32>
    %119 = arith.select %117, %118, %96 : vector<128x128xi1>, vector<128x128xf32>
    %120 = arith.addf %92, %119 : vector<128x128xf32>
    %c5 = arith.constant 5 : index
    %c0_50 = arith.constant 0 : index
    %c0_51 = arith.constant 0 : index
    %121 = vector.load %arg5[%c5, %c0_50, %c0_51] : memref<6x128x128xbf16, #tpu.memory_space<vmem>>, vector<1x128x128xbf16>
    %122 = vector.shape_cast %121 : vector<1x128x128xbf16> to vector<128x128xbf16>
    %cst_52 = arith.constant dense<0.000000e+00> : vector<128x128xf32>
    %123 = tpu.matmul %89, %122, %cst_52 {dimension_numbers = #tpu.dot_dimension_numbers<[1], [0], [0], [1], [0, 0, 1, 1], [], []>} : vector<128x128xbf16>, vector<128x128xbf16>, vector<128x128xf32> -> vector<128x128xf32>
    %c127_i32_53 = arith.constant 127 : i32
    %124 = tpu.dynamic_rotate %123 by %c127_i32_53 dim 0 : vector<128x128xf32>, i32 -> vector<128x128xf32>
    %125 = tpu.iota {dimensions = array<i32: 0>} : vector<128x1xi32>
    %c64_i32_54 = arith.constant 64 : i32
    %c0_i32_55 = arith.constant 0 : i32
    %126 = arith.cmpi eq, %c64_i32_54, %c0_i32_55 : i32
    %c1_i32_56 = arith.constant 1 : i32
    %127 = arith.select %126, %c1_i32_56, %c64_i32_54 : i32
    %128 = vector.broadcast %127 : i32 to vector<128x1xi32>
    %129 = arith.remsi %125, %128 : vector<128x1xi32>
    %c0_i32_57 = arith.constant 0 : i32
    %130 = vector.broadcast %c0_i32_57 : i32 to vector<128x1xi32>
    %131 = arith.cmpi ne, %129, %130 : vector<128x1xi32>
    %c0_i32_58 = arith.constant 0 : i32
    %132 = vector.broadcast %c0_i32_58 : i32 to vector<128x1xi32>
    %133 = arith.cmpi slt, %129, %132 : vector<128x1xi32>
    %c0_i32_59 = arith.constant 0 : i32
    %134 = arith.cmpi slt, %127, %c0_i32_59 : i32
    %135 = vector.broadcast %134 : i1 to vector<128x1xi1>
    %136 = vector.broadcast %135 : vector<128x1xi1> to vector<128x1xi1>
    %137 = arith.xori %133, %136 : vector<128x1xi1>
    %138 = arith.andi %137, %131 : vector<128x1xi1>
    %139 = vector.broadcast %127 : i32 to vector<128x1xi32>
    %140 = arith.addi %129, %139 : vector<128x1xi32>
    %141 = arith.select %138, %140, %129 : vector<128x1xi1>, vector<128x1xi32>
    %c63_i32_60 = arith.constant 63 : i32
    %142 = vector.broadcast %c63_i32_60 : i32 to vector<128x1xi32>
    %143 = arith.cmpi eq, %141, %142 : vector<128x1xi32>
    %cst_61 = arith.constant 0.000000e+00 : f32
    %144 = vector.shape_cast %143 : vector<128x1xi1> to vector<128x1xi1>
    %145 = vector.broadcast %144 : vector<128x1xi1> to vector<128x128xi1>
    %146 = vector.broadcast %cst_61 : f32 to vector<128x128xf32>
    %147 = arith.select %145, %146, %124 : vector<128x128xi1>, vector<128x128xf32>
    %148 = arith.addf %120, %147 : vector<128x128xf32>
    %c1_62 = arith.constant 1 : index
    %c0_63 = arith.constant 0 : index
    %c0_64 = arith.constant 0 : index
    %149 = vector.load %arg6[%c1_62, %c0_63, %c0_64] : memref<2x2x128xf32, #tpu.memory_space<vmem>>, vector<1x2x128xf32>
    %150 = vector.shape_cast %149 : vector<1x2x128xf32> to vector<2x128xf32>
    %151 = vector.extract_strided_slice %150 {offsets = [0, 0], sizes = [1, 128], strides = [1, 1]} : vector<2x128xf32> to vector<1x128xf32>
    %152 = vector.broadcast %151 : vector<1x128xf32> to vector<128x128xf32>
    %153 = arith.mulf %148, %152 : vector<128x128xf32>
    %154 = vector.extract_strided_slice %150 {offsets = [1, 0], sizes = [1, 128], strides = [1, 1]} : vector<2x128xf32> to vector<1x128xf32>
    %155 = vector.broadcast %154 : vector<1x128xf32> to vector<128x128xf32>
    %156 = arith.addf %153, %155 : vector<128x128xf32>
    %cst_65 = arith.constant 0.000000e+00 : f32
    %157 = vector.broadcast %cst_65 : f32 to vector<128x128xf32>
    %158 = arith.cmpf ogt, %156, %157 : vector<128x128xf32>
    %cst_66 = arith.constant 2.000000e-01 : f32
    %159 = vector.broadcast %cst_66 : f32 to vector<128x128xf32>
    %160 = arith.mulf %159, %156 : vector<128x128xf32>
    %161 = arith.select %158, %156, %160 : vector<128x128xi1>, vector<128x128xf32>
    %162 = arith.truncf %161 : vector<128x128xf32> to vector<128x128xbf16>
    %163 = arith.extf %162 : vector<128x128xbf16> to vector<128x128xf32>
    %164 = vector.shape_cast %163 : vector<128x128xf32> to vector<64x2x128xf32>
    %165 = vector.extract_strided_slice %164 {offsets = [0, 0, 0], sizes = [64, 1, 128], strides = [1, 1, 1]} : vector<64x2x128xf32> to vector<64x1x128xf32>
    %166 = vector.shape_cast %165 : vector<64x1x128xf32> to vector<64x128xf32>
    %167 = arith.truncf %166 : vector<64x128xf32> to vector<64x128xbf16>
    %168 = vector.extract_strided_slice %164 {offsets = [0, 1, 0], sizes = [64, 1, 128], strides = [1, 1, 1]} : vector<64x2x128xf32> to vector<64x1x128xf32>
    %169 = vector.shape_cast %168 : vector<64x1x128xf32> to vector<64x128xf32>
    %170 = arith.truncf %169 : vector<64x128xf32> to vector<64x128xbf16>
    %c1_67 = arith.constant 1 : index
    %c0_68 = arith.constant 0 : index
    %c0_69 = arith.constant 0 : index
    %171 = vector.load %arg7[%c1_67, %c0_68, %c0_69] : memref<20x128x128xbf16, #tpu.memory_space<vmem>>, vector<1x128x128xbf16>
    %172 = vector.shape_cast %171 : vector<1x128x128xbf16> to vector<128x128xbf16>
    %cst_70 = arith.constant dense<0.000000e+00> : vector<64x128xf32>
    %173 = tpu.matmul %167, %172, %cst_70 {dimension_numbers = #tpu.dot_dimension_numbers<[1], [0], [0], [1], [0, 0, 1, 1], [], []>} : vector<64x128xbf16>, vector<128x128xbf16>, vector<64x128xf32> -> vector<64x128xf32>
    %c2_71 = arith.constant 2 : index
    %c0_72 = arith.constant 0 : index
    %c0_73 = arith.constant 0 : index
    %174 = vector.load %arg7[%c2_71, %c0_72, %c0_73] : memref<20x128x128xbf16, #tpu.memory_space<vmem>>, vector<1x128x128xbf16>
    %175 = vector.shape_cast %174 : vector<1x128x128xbf16> to vector<128x128xbf16>
    %cst_74 = arith.constant dense<0.000000e+00> : vector<64x128xf32>
    %176 = tpu.matmul %170, %175, %cst_74 {dimension_numbers = #tpu.dot_dimension_numbers<[1], [0], [0], [1], [0, 0, 1, 1], [], []>} : vector<64x128xbf16>, vector<128x128xbf16>, vector<64x128xf32> -> vector<64x128xf32>
    %177 = arith.addf %173, %176 : vector<64x128xf32>
    %c0_75 = arith.constant 0 : index
    %c0_76 = arith.constant 0 : index
    %c0_77 = arith.constant 0 : index
    %178 = vector.load %arg7[%c0_75, %c0_76, %c0_77] : memref<20x128x128xbf16, #tpu.memory_space<vmem>>, vector<1x128x128xbf16>
    %179 = vector.shape_cast %178 : vector<1x128x128xbf16> to vector<128x128xbf16>
    %cst_78 = arith.constant dense<0.000000e+00> : vector<64x128xf32>
    %180 = tpu.matmul %170, %179, %cst_78 {dimension_numbers = #tpu.dot_dimension_numbers<[1], [0], [0], [1], [0, 0, 1, 1], [], []>} : vector<64x128xbf16>, vector<128x128xbf16>, vector<64x128xf32> -> vector<64x128xf32>
    %c1_i32_79 = arith.constant 1 : i32
    %181 = tpu.dynamic_rotate %180 by %c1_i32_79 dim 0 : vector<64x128xf32>, i32 -> vector<64x128xf32>
    %182 = tpu.iota {dimensions = array<i32: 0>} : vector<64x1xi32>
    %c32_i32 = arith.constant 32 : i32
    %c0_i32_80 = arith.constant 0 : i32
    %183 = arith.cmpi eq, %c32_i32, %c0_i32_80 : i32
    %c1_i32_81 = arith.constant 1 : i32
    %184 = arith.select %183, %c1_i32_81, %c32_i32 : i32
    %185 = vector.broadcast %184 : i32 to vector<64x1xi32>
    %186 = arith.remsi %182, %185 : vector<64x1xi32>
    %c0_i32_82 = arith.constant 0 : i32
    %187 = vector.broadcast %c0_i32_82 : i32 to vector<64x1xi32>
    %188 = arith.cmpi ne, %186, %187 : vector<64x1xi32>
    %c0_i32_83 = arith.constant 0 : i32
    %189 = vector.broadcast %c0_i32_83 : i32 to vector<64x1xi32>
    %190 = arith.cmpi slt, %186, %189 : vector<64x1xi32>
    %c0_i32_84 = arith.constant 0 : i32
    %191 = arith.cmpi slt, %184, %c0_i32_84 : i32
    %192 = vector.broadcast %191 : i1 to vector<64x1xi1>
    %193 = vector.broadcast %192 : vector<64x1xi1> to vector<64x1xi1>
    %194 = arith.xori %190, %193 : vector<64x1xi1>
    %195 = arith.andi %194, %188 : vector<64x1xi1>
    %196 = vector.broadcast %184 : i32 to vector<64x1xi32>
    %197 = arith.addi %186, %196 : vector<64x1xi32>
    %198 = arith.select %195, %197, %186 : vector<64x1xi1>, vector<64x1xi32>
    %c0_i32_85 = arith.constant 0 : i32
    %199 = vector.broadcast %c0_i32_85 : i32 to vector<64x1xi32>
    %200 = arith.cmpi eq, %198, %199 : vector<64x1xi32>
    %cst_86 = arith.constant 0.000000e+00 : f32
    %201 = vector.shape_cast %200 : vector<64x1xi1> to vector<64x1xi1>
    %202 = vector.broadcast %201 : vector<64x1xi1> to vector<64x128xi1>
    %203 = vector.broadcast %cst_86 : f32 to vector<64x128xf32>
    %204 = arith.select %202, %203, %181 : vector<64x128xi1>, vector<64x128xf32>
    %205 = arith.addf %177, %204 : vector<64x128xf32>
    %c3_87 = arith.constant 3 : index
    %c0_88 = arith.constant 0 : index
    %c0_89 = arith.constant 0 : index
    %206 = vector.load %arg7[%c3_87, %c0_88, %c0_89] : memref<20x128x128xbf16, #tpu.memory_space<vmem>>, vector<1x128x128xbf16>
    %207 = vector.shape_cast %206 : vector<1x128x128xbf16> to vector<128x128xbf16>
    %cst_90 = arith.constant dense<0.000000e+00> : vector<64x128xf32>
    %208 = tpu.matmul %167, %207, %cst_90 {dimension_numbers = #tpu.dot_dimension_numbers<[1], [0], [0], [1], [0, 0, 1, 1], [], []>} : vector<64x128xbf16>, vector<128x128xbf16>, vector<64x128xf32> -> vector<64x128xf32>
    %c63_i32_91 = arith.constant 63 : i32
    %209 = tpu.dynamic_rotate %208 by %c63_i32_91 dim 0 : vector<64x128xf32>, i32 -> vector<64x128xf32>
    %210 = tpu.iota {dimensions = array<i32: 0>} : vector<64x1xi32>
    %c32_i32_92 = arith.constant 32 : i32
    %c0_i32_93 = arith.constant 0 : i32
    %211 = arith.cmpi eq, %c32_i32_92, %c0_i32_93 : i32
    %c1_i32_94 = arith.constant 1 : i32
    %212 = arith.select %211, %c1_i32_94, %c32_i32_92 : i32
    %213 = vector.broadcast %212 : i32 to vector<64x1xi32>
    %214 = arith.remsi %210, %213 : vector<64x1xi32>
    %c0_i32_95 = arith.constant 0 : i32
    %215 = vector.broadcast %c0_i32_95 : i32 to vector<64x1xi32>
    %216 = arith.cmpi ne, %214, %215 : vector<64x1xi32>
    %c0_i32_96 = arith.constant 0 : i32
    %217 = vector.broadcast %c0_i32_96 : i32 to vector<64x1xi32>
    %218 = arith.cmpi slt, %214, %217 : vector<64x1xi32>
    %c0_i32_97 = arith.constant 0 : i32
    %219 = arith.cmpi slt, %212, %c0_i32_97 : i32
    %220 = vector.broadcast %219 : i1 to vector<64x1xi1>
    %221 = vector.broadcast %220 : vector<64x1xi1> to vector<64x1xi1>
    %222 = arith.xori %218, %221 : vector<64x1xi1>
    %223 = arith.andi %222, %216 : vector<64x1xi1>
    %224 = vector.broadcast %212 : i32 to vector<64x1xi32>
    %225 = arith.addi %214, %224 : vector<64x1xi32>
    %226 = arith.select %223, %225, %214 : vector<64x1xi1>, vector<64x1xi32>
    %c31_i32 = arith.constant 31 : i32
    %227 = vector.broadcast %c31_i32 : i32 to vector<64x1xi32>
    %228 = arith.cmpi eq, %226, %227 : vector<64x1xi32>
    %cst_98 = arith.constant 0.000000e+00 : f32
    %229 = vector.shape_cast %228 : vector<64x1xi1> to vector<64x1xi1>
    %230 = vector.broadcast %229 : vector<64x1xi1> to vector<64x128xi1>
    %231 = vector.broadcast %cst_98 : f32 to vector<64x128xf32>
    %232 = arith.select %230, %231, %209 : vector<64x128xi1>, vector<64x128xf32>
    %233 = arith.addf %205, %232 : vector<64x128xf32>
    %c0_99 = arith.constant 0 : index
    %c0_100 = arith.constant 0 : index
    %c0_101 = arith.constant 0 : index
    %234 = vector.load %arg8[%c0_99, %c0_100, %c0_101] : memref<5x2x128xf32, #tpu.memory_space<vmem>>, vector<1x2x128xf32>
    %235 = vector.shape_cast %234 : vector<1x2x128xf32> to vector<2x128xf32>
    %236 = vector.extract_strided_slice %235 {offsets = [0, 0], sizes = [1, 128], strides = [1, 1]} : vector<2x128xf32> to vector<1x128xf32>
    %237 = vector.broadcast %236 : vector<1x128xf32> to vector<64x128xf32>
    %238 = arith.mulf %233, %237 : vector<64x128xf32>
    %239 = vector.extract_strided_slice %235 {offsets = [1, 0], sizes = [1, 128], strides = [1, 1]} : vector<2x128xf32> to vector<1x128xf32>
    %240 = vector.broadcast %239 : vector<1x128xf32> to vector<64x128xf32>
    %241 = arith.addf %238, %240 : vector<64x128xf32>
    %cst_102 = arith.constant 0.000000e+00 : f32
    %242 = vector.broadcast %cst_102 : f32 to vector<64x128xf32>
    %243 = arith.cmpf ogt, %241, %242 : vector<64x128xf32>
    %cst_103 = arith.constant 2.000000e-01 : f32
    %244 = vector.broadcast %cst_103 : f32 to vector<64x128xf32>
    %245 = arith.mulf %244, %241 : vector<64x128xf32>
    %246 = arith.select %243, %241, %245 : vector<64x128xi1>, vector<64x128xf32>
    %247 = arith.truncf %246 : vector<64x128xf32> to vector<64x128xbf16>
    %248 = arith.extf %247 : vector<64x128xbf16> to vector<64x128xf32>
    %249 = vector.shape_cast %248 : vector<64x128xf32> to vector<32x2x128xf32>
    %250 = vector.extract_strided_slice %249 {offsets = [0, 0, 0], sizes = [32, 1, 128], strides = [1, 1, 1]} : vector<32x2x128xf32> to vector<32x1x128xf32>
    %251 = vector.shape_cast %250 : vector<32x1x128xf32> to vector<32x128xf32>
    %252 = arith.truncf %251 : vector<32x128xf32> to vector<32x128xbf16>
    %253 = vector.extract_strided_slice %249 {offsets = [0, 1, 0], sizes = [32, 1, 128], strides = [1, 1, 1]} : vector<32x2x128xf32> to vector<32x1x128xf32>
    %254 = vector.shape_cast %253 : vector<32x1x128xf32> to vector<32x128xf32>
    %255 = arith.truncf %254 : vector<32x128xf32> to vector<32x128xbf16>
    %c5_104 = arith.constant 5 : index
    %c0_105 = arith.constant 0 : index
    %c0_106 = arith.constant 0 : index
    %256 = vector.load %arg7[%c5_104, %c0_105, %c0_106] : memref<20x128x128xbf16, #tpu.memory_space<vmem>>, vector<1x128x128xbf16>
    %257 = vector.shape_cast %256 : vector<1x128x128xbf16> to vector<128x128xbf16>
    %cst_107 = arith.constant dense<0.000000e+00> : vector<32x128xf32>
    %258 = tpu.matmul %252, %257, %cst_107 {dimension_numbers = #tpu.dot_dimension_numbers<[1], [0], [0], [1], [0, 0, 1, 1], [], []>} : vector<32x128xbf16>, vector<128x128xbf16>, vector<32x128xf32> -> vector<32x128xf32>
    %c6 = arith.constant 6 : index
    %c0_108 = arith.constant 0 : index
    %c0_109 = arith.constant 0 : index
    %259 = vector.load %arg7[%c6, %c0_108, %c0_109] : memref<20x128x128xbf16, #tpu.memory_space<vmem>>, vector<1x128x128xbf16>
    %260 = vector.shape_cast %259 : vector<1x128x128xbf16> to vector<128x128xbf16>
    %cst_110 = arith.constant dense<0.000000e+00> : vector<32x128xf32>
    %261 = tpu.matmul %255, %260, %cst_110 {dimension_numbers = #tpu.dot_dimension_numbers<[1], [0], [0], [1], [0, 0, 1, 1], [], []>} : vector<32x128xbf16>, vector<128x128xbf16>, vector<32x128xf32> -> vector<32x128xf32>
    %262 = arith.addf %258, %261 : vector<32x128xf32>
    %c4_111 = arith.constant 4 : index
    %c0_112 = arith.constant 0 : index
    %c0_113 = arith.constant 0 : index
    %263 = vector.load %arg7[%c4_111, %c0_112, %c0_113] : memref<20x128x128xbf16, #tpu.memory_space<vmem>>, vector<1x128x128xbf16>
    %264 = vector.shape_cast %263 : vector<1x128x128xbf16> to vector<128x128xbf16>
    %cst_114 = arith.constant dense<0.000000e+00> : vector<32x128xf32>
    %265 = tpu.matmul %255, %264, %cst_114 {dimension_numbers = #tpu.dot_dimension_numbers<[1], [0], [0], [1], [0, 0, 1, 1], [], []>} : vector<32x128xbf16>, vector<128x128xbf16>, vector<32x128xf32> -> vector<32x128xf32>
    %c1_i32_115 = arith.constant 1 : i32
    %266 = tpu.dynamic_rotate %265 by %c1_i32_115 dim 0 : vector<32x128xf32>, i32 -> vector<32x128xf32>
    %267 = tpu.iota {dimensions = array<i32: 0>} : vector<32x1xi32>
    %c16_i32 = arith.constant 16 : i32
    %c0_i32_116 = arith.constant 0 : i32
    %268 = arith.cmpi eq, %c16_i32, %c0_i32_116 : i32
    %c1_i32_117 = arith.constant 1 : i32
    %269 = arith.select %268, %c1_i32_117, %c16_i32 : i32
    %270 = vector.broadcast %269 : i32 to vector<32x1xi32>
    %271 = arith.remsi %267, %270 : vector<32x1xi32>
    %c0_i32_118 = arith.constant 0 : i32
    %272 = vector.broadcast %c0_i32_118 : i32 to vector<32x1xi32>
    %273 = arith.cmpi ne, %271, %272 : vector<32x1xi32>
    %c0_i32_119 = arith.constant 0 : i32
    %274 = vector.broadcast %c0_i32_119 : i32 to vector<32x1xi32>
    %275 = arith.cmpi slt, %271, %274 : vector<32x1xi32>
    %c0_i32_120 = arith.constant 0 : i32
    %276 = arith.cmpi slt, %269, %c0_i32_120 : i32
    %277 = vector.broadcast %276 : i1 to vector<32x1xi1>
    %278 = vector.broadcast %277 : vector<32x1xi1> to vector<32x1xi1>
    %279 = arith.xori %275, %278 : vector<32x1xi1>
    %280 = arith.andi %279, %273 : vector<32x1xi1>
    %281 = vector.broadcast %269 : i32 to vector<32x1xi32>
    %282 = arith.addi %271, %281 : vector<32x1xi32>
    %283 = arith.select %280, %282, %271 : vector<32x1xi1>, vector<32x1xi32>
    %c0_i32_121 = arith.constant 0 : i32
    %284 = vector.broadcast %c0_i32_121 : i32 to vector<32x1xi32>
    %285 = arith.cmpi eq, %283, %284 : vector<32x1xi32>
    %cst_122 = arith.constant 0.000000e+00 : f32
    %286 = vector.shape_cast %285 : vector<32x1xi1> to vector<32x1xi1>
    %287 = vector.broadcast %286 : vector<32x1xi1> to vector<32x128xi1>
    %288 = vector.broadcast %cst_122 : f32 to vector<32x128xf32>
    %289 = arith.select %287, %288, %266 : vector<32x128xi1>, vector<32x128xf32>
    %290 = arith.addf %262, %289 : vector<32x128xf32>
    %c7 = arith.constant 7 : index
    %c0_123 = arith.constant 0 : index
    %c0_124 = arith.constant 0 : index
    %291 = vector.load %arg7[%c7, %c0_123, %c0_124] : memref<20x128x128xbf16, #tpu.memory_space<vmem>>, vector<1x128x128xbf16>
    %292 = vector.shape_cast %291 : vector<1x128x128xbf16> to vector<128x128xbf16>
    %cst_125 = arith.constant dense<0.000000e+00> : vector<32x128xf32>
    %293 = tpu.matmul %252, %292, %cst_125 {dimension_numbers = #tpu.dot_dimension_numbers<[1], [0], [0], [1], [0, 0, 1, 1], [], []>} : vector<32x128xbf16>, vector<128x128xbf16>, vector<32x128xf32> -> vector<32x128xf32>
    %c31_i32_126 = arith.constant 31 : i32
    %294 = tpu.dynamic_rotate %293 by %c31_i32_126 dim 0 : vector<32x128xf32>, i32 -> vector<32x128xf32>
    %295 = tpu.iota {dimensions = array<i32: 0>} : vector<32x1xi32>
    %c16_i32_127 = arith.constant 16 : i32
    %c0_i32_128 = arith.constant 0 : i32
    %296 = arith.cmpi eq, %c16_i32_127, %c0_i32_128 : i32
    %c1_i32_129 = arith.constant 1 : i32
    %297 = arith.select %296, %c1_i32_129, %c16_i32_127 : i32
    %298 = vector.broadcast %297 : i32 to vector<32x1xi32>
    %299 = arith.remsi %295, %298 : vector<32x1xi32>
    %c0_i32_130 = arith.constant 0 : i32
    %300 = vector.broadcast %c0_i32_130 : i32 to vector<32x1xi32>
    %301 = arith.cmpi ne, %299, %300 : vector<32x1xi32>
    %c0_i32_131 = arith.constant 0 : i32
    %302 = vector.broadcast %c0_i32_131 : i32 to vector<32x1xi32>
    %303 = arith.cmpi slt, %299, %302 : vector<32x1xi32>
    %c0_i32_132 = arith.constant 0 : i32
    %304 = arith.cmpi slt, %297, %c0_i32_132 : i32
    %305 = vector.broadcast %304 : i1 to vector<32x1xi1>
    %306 = vector.broadcast %305 : vector<32x1xi1> to vector<32x1xi1>
    %307 = arith.xori %303, %306 : vector<32x1xi1>
    %308 = arith.andi %307, %301 : vector<32x1xi1>
    %309 = vector.broadcast %297 : i32 to vector<32x1xi32>
    %310 = arith.addi %299, %309 : vector<32x1xi32>
    %311 = arith.select %308, %310, %299 : vector<32x1xi1>, vector<32x1xi32>
    %c15_i32 = arith.constant 15 : i32
    %312 = vector.broadcast %c15_i32 : i32 to vector<32x1xi32>
    %313 = arith.cmpi eq, %311, %312 : vector<32x1xi32>
    %cst_133 = arith.constant 0.000000e+00 : f32
    %314 = vector.shape_cast %313 : vector<32x1xi1> to vector<32x1xi1>
    %315 = vector.broadcast %314 : vector<32x1xi1> to vector<32x128xi1>
    %316 = vector.broadcast %cst_133 : f32 to vector<32x128xf32>
    %317 = arith.select %315, %316, %294 : vector<32x128xi1>, vector<32x128xf32>
    %318 = arith.addf %290, %317 : vector<32x128xf32>
    %c1_134 = arith.constant 1 : index
    %c0_135 = arith.constant 0 : index
    %c0_136 = arith.constant 0 : index
    %319 = vector.load %arg8[%c1_134, %c0_135, %c0_136] : memref<5x2x128xf32, #tpu.memory_space<vmem>>, vector<1x2x128xf32>
    %320 = vector.shape_cast %319 : vector<1x2x128xf32> to vector<2x128xf32>
    %321 = vector.extract_strided_slice %320 {offsets = [0, 0], sizes = [1, 128], strides = [1, 1]} : vector<2x128xf32> to vector<1x128xf32>
    %322 = vector.broadcast %321 : vector<1x128xf32> to vector<32x128xf32>
    %323 = arith.mulf %318, %322 : vector<32x128xf32>
    %324 = vector.extract_strided_slice %320 {offsets = [1, 0], sizes = [1, 128], strides = [1, 1]} : vector<2x128xf32> to vector<1x128xf32>
    %325 = vector.broadcast %324 : vector<1x128xf32> to vector<32x128xf32>
    %326 = arith.addf %323, %325 : vector<32x128xf32>
    %cst_137 = arith.constant 0.000000e+00 : f32
    %327 = vector.broadcast %cst_137 : f32 to vector<32x128xf32>
    %328 = arith.cmpf ogt, %326, %327 : vector<32x128xf32>
    %cst_138 = arith.constant 2.000000e-01 : f32
    %329 = vector.broadcast %cst_138 : f32 to vector<32x128xf32>
    %330 = arith.mulf %329, %326 : vector<32x128xf32>
    %331 = arith.select %328, %326, %330 : vector<32x128xi1>, vector<32x128xf32>
    %332 = arith.truncf %331 : vector<32x128xf32> to vector<32x128xbf16>
    %333 = arith.extf %332 : vector<32x128xbf16> to vector<32x128xf32>
    %334 = vector.shape_cast %333 : vector<32x128xf32> to vector<16x2x128xf32>
    %335 = vector.extract_strided_slice %334 {offsets = [0, 0, 0], sizes = [16, 1, 128], strides = [1, 1, 1]} : vector<16x2x128xf32> to vector<16x1x128xf32>
    %336 = vector.shape_cast %335 : vector<16x1x128xf32> to vector<16x128xf32>
    %337 = arith.truncf %336 : vector<16x128xf32> to vector<16x128xbf16>
    %338 = vector.extract_strided_slice %334 {offsets = [0, 1, 0], sizes = [16, 1, 128], strides = [1, 1, 1]} : vector<16x2x128xf32> to vector<16x1x128xf32>
    %339 = vector.shape_cast %338 : vector<16x1x128xf32> to vector<16x128xf32>
    %340 = arith.truncf %339 : vector<16x128xf32> to vector<16x128xbf16>
    %c9 = arith.constant 9 : index
    %c0_139 = arith.constant 0 : index
    %c0_140 = arith.constant 0 : index
    %341 = vector.load %arg7[%c9, %c0_139, %c0_140] : memref<20x128x128xbf16, #tpu.memory_space<vmem>>, vector<1x128x128xbf16>
    %342 = vector.shape_cast %341 : vector<1x128x128xbf16> to vector<128x128xbf16>
    %cst_141 = arith.constant dense<0.000000e+00> : vector<16x128xf32>
    %343 = tpu.matmul %337, %342, %cst_141 {dimension_numbers = #tpu.dot_dimension_numbers<[1], [0], [0], [1], [0, 0, 1, 1], [], []>} : vector<16x128xbf16>, vector<128x128xbf16>, vector<16x128xf32> -> vector<16x128xf32>
    %c10 = arith.constant 10 : index
    %c0_142 = arith.constant 0 : index
    %c0_143 = arith.constant 0 : index
    %344 = vector.load %arg7[%c10, %c0_142, %c0_143] : memref<20x128x128xbf16, #tpu.memory_space<vmem>>, vector<1x128x128xbf16>
    %345 = vector.shape_cast %344 : vector<1x128x128xbf16> to vector<128x128xbf16>
    %cst_144 = arith.constant dense<0.000000e+00> : vector<16x128xf32>
    %346 = tpu.matmul %340, %345, %cst_144 {dimension_numbers = #tpu.dot_dimension_numbers<[1], [0], [0], [1], [0, 0, 1, 1], [], []>} : vector<16x128xbf16>, vector<128x128xbf16>, vector<16x128xf32> -> vector<16x128xf32>
    %347 = arith.addf %343, %346 : vector<16x128xf32>
    %c8 = arith.constant 8 : index
    %c0_145 = arith.constant 0 : index
    %c0_146 = arith.constant 0 : index
    %348 = vector.load %arg7[%c8, %c0_145, %c0_146] : memref<20x128x128xbf16, #tpu.memory_space<vmem>>, vector<1x128x128xbf16>
    %349 = vector.shape_cast %348 : vector<1x128x128xbf16> to vector<128x128xbf16>
    %cst_147 = arith.constant dense<0.000000e+00> : vector<16x128xf32>
    %350 = tpu.matmul %340, %349, %cst_147 {dimension_numbers = #tpu.dot_dimension_numbers<[1], [0], [0], [1], [0, 0, 1, 1], [], []>} : vector<16x128xbf16>, vector<128x128xbf16>, vector<16x128xf32> -> vector<16x128xf32>
    %c1_i32_148 = arith.constant 1 : i32
    %351 = tpu.dynamic_rotate %350 by %c1_i32_148 dim 0 : vector<16x128xf32>, i32 -> vector<16x128xf32>
    %352 = tpu.iota {dimensions = array<i32: 0>} : vector<16x1xi32>
    %c8_i32 = arith.constant 8 : i32
    %c0_i32_149 = arith.constant 0 : i32
    %353 = arith.cmpi eq, %c8_i32, %c0_i32_149 : i32
    %c1_i32_150 = arith.constant 1 : i32
    %354 = arith.select %353, %c1_i32_150, %c8_i32 : i32
    %355 = vector.broadcast %354 : i32 to vector<16x1xi32>
    %356 = arith.remsi %352, %355 : vector<16x1xi32>
    %c0_i32_151 = arith.constant 0 : i32
    %357 = vector.broadcast %c0_i32_151 : i32 to vector<16x1xi32>
    %358 = arith.cmpi ne, %356, %357 : vector<16x1xi32>
    %c0_i32_152 = arith.constant 0 : i32
    %359 = vector.broadcast %c0_i32_152 : i32 to vector<16x1xi32>
    %360 = arith.cmpi slt, %356, %359 : vector<16x1xi32>
    %c0_i32_153 = arith.constant 0 : i32
    %361 = arith.cmpi slt, %354, %c0_i32_153 : i32
    %362 = vector.broadcast %361 : i1 to vector<16x1xi1>
    %363 = vector.broadcast %362 : vector<16x1xi1> to vector<16x1xi1>
    %364 = arith.xori %360, %363 : vector<16x1xi1>
    %365 = arith.andi %364, %358 : vector<16x1xi1>
    %366 = vector.broadcast %354 : i32 to vector<16x1xi32>
    %367 = arith.addi %356, %366 : vector<16x1xi32>
    %368 = arith.select %365, %367, %356 : vector<16x1xi1>, vector<16x1xi32>
    %c0_i32_154 = arith.constant 0 : i32
    %369 = vector.broadcast %c0_i32_154 : i32 to vector<16x1xi32>
    %370 = arith.cmpi eq, %368, %369 : vector<16x1xi32>
    %cst_155 = arith.constant 0.000000e+00 : f32
    %371 = vector.shape_cast %370 : vector<16x1xi1> to vector<16x1xi1>
    %372 = vector.broadcast %371 : vector<16x1xi1> to vector<16x128xi1>
    %373 = vector.broadcast %cst_155 : f32 to vector<16x128xf32>
    %374 = arith.select %372, %373, %351 : vector<16x128xi1>, vector<16x128xf32>
    %375 = arith.addf %347, %374 : vector<16x128xf32>
    %c11 = arith.constant 11 : index
    %c0_156 = arith.constant 0 : index
    %c0_157 = arith.constant 0 : index
    %376 = vector.load %arg7[%c11, %c0_156, %c0_157] : memref<20x128x128xbf16, #tpu.memory_space<vmem>>, vector<1x128x128xbf16>
    %377 = vector.shape_cast %376 : vector<1x128x128xbf16> to vector<128x128xbf16>
    %cst_158 = arith.constant dense<0.000000e+00> : vector<16x128xf32>
    %378 = tpu.matmul %337, %377, %cst_158 {dimension_numbers = #tpu.dot_dimension_numbers<[1], [0], [0], [1], [0, 0, 1, 1], [], []>} : vector<16x128xbf16>, vector<128x128xbf16>, vector<16x128xf32> -> vector<16x128xf32>
    %c15_i32_159 = arith.constant 15 : i32
    %379 = tpu.dynamic_rotate %378 by %c15_i32_159 dim 0 : vector<16x128xf32>, i32 -> vector<16x128xf32>
    %380 = tpu.iota {dimensions = array<i32: 0>} : vector<16x1xi32>
    %c8_i32_160 = arith.constant 8 : i32
    %c0_i32_161 = arith.constant 0 : i32
    %381 = arith.cmpi eq, %c8_i32_160, %c0_i32_161 : i32
    %c1_i32_162 = arith.constant 1 : i32
    %382 = arith.select %381, %c1_i32_162, %c8_i32_160 : i32
    %383 = vector.broadcast %382 : i32 to vector<16x1xi32>
    %384 = arith.remsi %380, %383 : vector<16x1xi32>
    %c0_i32_163 = arith.constant 0 : i32
    %385 = vector.broadcast %c0_i32_163 : i32 to vector<16x1xi32>
    %386 = arith.cmpi ne, %384, %385 : vector<16x1xi32>
    %c0_i32_164 = arith.constant 0 : i32
    %387 = vector.broadcast %c0_i32_164 : i32 to vector<16x1xi32>
    %388 = arith.cmpi slt, %384, %387 : vector<16x1xi32>
    %c0_i32_165 = arith.constant 0 : i32
    %389 = arith.cmpi slt, %382, %c0_i32_165 : i32
    %390 = vector.broadcast %389 : i1 to vector<16x1xi1>
    %391 = vector.broadcast %390 : vector<16x1xi1> to vector<16x1xi1>
    %392 = arith.xori %388, %391 : vector<16x1xi1>
    %393 = arith.andi %392, %386 : vector<16x1xi1>
    %394 = vector.broadcast %382 : i32 to vector<16x1xi32>
    %395 = arith.addi %384, %394 : vector<16x1xi32>
    %396 = arith.select %393, %395, %384 : vector<16x1xi1>, vector<16x1xi32>
    %c7_i32 = arith.constant 7 : i32
    %397 = vector.broadcast %c7_i32 : i32 to vector<16x1xi32>
    %398 = arith.cmpi eq, %396, %397 : vector<16x1xi32>
    %cst_166 = arith.constant 0.000000e+00 : f32
    %399 = vector.shape_cast %398 : vector<16x1xi1> to vector<16x1xi1>
    %400 = vector.broadcast %399 : vector<16x1xi1> to vector<16x128xi1>
    %401 = vector.broadcast %cst_166 : f32 to vector<16x128xf32>
    %402 = arith.select %400, %401, %379 : vector<16x128xi1>, vector<16x128xf32>
    %403 = arith.addf %375, %402 : vector<16x128xf32>
    %c2_167 = arith.constant 2 : index
    %c0_168 = arith.constant 0 : index
    %c0_169 = arith.constant 0 : index
    %404 = vector.load %arg8[%c2_167, %c0_168, %c0_169] : memref<5x2x128xf32, #tpu.memory_space<vmem>>, vector<1x2x128xf32>
    %405 = vector.shape_cast %404 : vector<1x2x128xf32> to vector<2x128xf32>
    %406 = vector.extract_strided_slice %405 {offsets = [0, 0], sizes = [1, 128], strides = [1, 1]} : vector<2x128xf32> to vector<1x128xf32>
    %407 = vector.broadcast %406 : vector<1x128xf32> to vector<16x128xf32>
    %408 = arith.mulf %403, %407 : vector<16x128xf32>
    %409 = vector.extract_strided_slice %405 {offsets = [1, 0], sizes = [1, 128], strides = [1, 1]} : vector<2x128xf32> to vector<1x128xf32>
    %410 = vector.broadcast %409 : vector<1x128xf32> to vector<16x128xf32>
    %411 = arith.addf %408, %410 : vector<16x128xf32>
    %cst_170 = arith.constant 0.000000e+00 : f32
    %412 = vector.broadcast %cst_170 : f32 to vector<16x128xf32>
    %413 = arith.cmpf ogt, %411, %412 : vector<16x128xf32>
    %cst_171 = arith.constant 2.000000e-01 : f32
    %414 = vector.broadcast %cst_171 : f32 to vector<16x128xf32>
    %415 = arith.mulf %414, %411 : vector<16x128xf32>
    %416 = arith.select %413, %411, %415 : vector<16x128xi1>, vector<16x128xf32>
    %417 = arith.truncf %416 : vector<16x128xf32> to vector<16x128xbf16>
    %418 = arith.extf %417 : vector<16x128xbf16> to vector<16x128xf32>
    %419 = vector.shape_cast %418 : vector<16x128xf32> to vector<8x2x128xf32>
    %420 = vector.extract_strided_slice %419 {offsets = [0, 0, 0], sizes = [8, 1, 128], strides = [1, 1, 1]} : vector<8x2x128xf32> to vector<8x1x128xf32>
    %421 = vector.shape_cast %420 : vector<8x1x128xf32> to vector<8x128xf32>
    %422 = arith.truncf %421 : vector<8x128xf32> to vector<8x128xbf16>
    %423 = vector.extract_strided_slice %419 {offsets = [0, 1, 0], sizes = [8, 1, 128], strides = [1, 1, 1]} : vector<8x2x128xf32> to vector<8x1x128xf32>
    %424 = vector.shape_cast %423 : vector<8x1x128xf32> to vector<8x128xf32>
    %425 = arith.truncf %424 : vector<8x128xf32> to vector<8x128xbf16>
    %c13 = arith.constant 13 : index
    %c0_172 = arith.constant 0 : index
    %c0_173 = arith.constant 0 : index
    %426 = vector.load %arg7[%c13, %c0_172, %c0_173] : memref<20x128x128xbf16, #tpu.memory_space<vmem>>, vector<1x128x128xbf16>
    %427 = vector.shape_cast %426 : vector<1x128x128xbf16> to vector<128x128xbf16>
    %cst_174 = arith.constant dense<0.000000e+00> : vector<8x128xf32>
    %428 = tpu.matmul %422, %427, %cst_174 {dimension_numbers = #tpu.dot_dimension_numbers<[1], [0], [0], [1], [0, 0, 1, 1], [], []>} : vector<8x128xbf16>, vector<128x128xbf16>, vector<8x128xf32> -> vector<8x128xf32>
    %c14 = arith.constant 14 : index
    %c0_175 = arith.constant 0 : index
    %c0_176 = arith.constant 0 : index
    %429 = vector.load %arg7[%c14, %c0_175, %c0_176] : memref<20x128x128xbf16, #tpu.memory_space<vmem>>, vector<1x128x128xbf16>
    %430 = vector.shape_cast %429 : vector<1x128x128xbf16> to vector<128x128xbf16>
    %cst_177 = arith.constant dense<0.000000e+00> : vector<8x128xf32>
    %431 = tpu.matmul %425, %430, %cst_177 {dimension_numbers = #tpu.dot_dimension_numbers<[1], [0], [0], [1], [0, 0, 1, 1], [], []>} : vector<8x128xbf16>, vector<128x128xbf16>, vector<8x128xf32> -> vector<8x128xf32>
    %432 = arith.addf %428, %431 : vector<8x128xf32>
    %c12 = arith.constant 12 : index
    %c0_178 = arith.constant 0 : index
    %c0_179 = arith.constant 0 : index
    %433 = vector.load %arg7[%c12, %c0_178, %c0_179] : memref<20x128x128xbf16, #tpu.memory_space<vmem>>, vector<1x128x128xbf16>
    %434 = vector.shape_cast %433 : vector<1x128x128xbf16> to vector<128x128xbf16>
    %cst_180 = arith.constant dense<0.000000e+00> : vector<8x128xf32>
    %435 = tpu.matmul %425, %434, %cst_180 {dimension_numbers = #tpu.dot_dimension_numbers<[1], [0], [0], [1], [0, 0, 1, 1], [], []>} : vector<8x128xbf16>, vector<128x128xbf16>, vector<8x128xf32> -> vector<8x128xf32>
    %c1_i32_181 = arith.constant 1 : i32
    %436 = tpu.dynamic_rotate %435 by %c1_i32_181 dim 0 : vector<8x128xf32>, i32 -> vector<8x128xf32>
    %437 = tpu.iota {dimensions = array<i32: 0>} : vector<8x1xi32>
    %c4_i32 = arith.constant 4 : i32
    %c0_i32_182 = arith.constant 0 : i32
    %438 = arith.cmpi eq, %c4_i32, %c0_i32_182 : i32
    %c1_i32_183 = arith.constant 1 : i32
    %439 = arith.select %438, %c1_i32_183, %c4_i32 : i32
    %440 = vector.broadcast %439 : i32 to vector<8x1xi32>
    %441 = arith.remsi %437, %440 : vector<8x1xi32>
    %c0_i32_184 = arith.constant 0 : i32
    %442 = vector.broadcast %c0_i32_184 : i32 to vector<8x1xi32>
    %443 = arith.cmpi ne, %441, %442 : vector<8x1xi32>
    %c0_i32_185 = arith.constant 0 : i32
    %444 = vector.broadcast %c0_i32_185 : i32 to vector<8x1xi32>
    %445 = arith.cmpi slt, %441, %444 : vector<8x1xi32>
    %c0_i32_186 = arith.constant 0 : i32
    %446 = arith.cmpi slt, %439, %c0_i32_186 : i32
    %447 = vector.broadcast %446 : i1 to vector<8x1xi1>
    %448 = vector.broadcast %447 : vector<8x1xi1> to vector<8x1xi1>
    %449 = arith.xori %445, %448 : vector<8x1xi1>
    %450 = arith.andi %449, %443 : vector<8x1xi1>
    %451 = vector.broadcast %439 : i32 to vector<8x1xi32>
    %452 = arith.addi %441, %451 : vector<8x1xi32>
    %453 = arith.select %450, %452, %441 : vector<8x1xi1>, vector<8x1xi32>
    %c0_i32_187 = arith.constant 0 : i32
    %454 = vector.broadcast %c0_i32_187 : i32 to vector<8x1xi32>
    %455 = arith.cmpi eq, %453, %454 : vector<8x1xi32>
    %cst_188 = arith.constant 0.000000e+00 : f32
    %456 = vector.shape_cast %455 : vector<8x1xi1> to vector<8x1xi1>
    %457 = vector.broadcast %456 : vector<8x1xi1> to vector<8x128xi1>
    %458 = vector.broadcast %cst_188 : f32 to vector<8x128xf32>
    %459 = arith.select %457, %458, %436 : vector<8x128xi1>, vector<8x128xf32>
    %460 = arith.addf %432, %459 : vector<8x128xf32>
    %c15 = arith.constant 15 : index
    %c0_189 = arith.constant 0 : index
    %c0_190 = arith.constant 0 : index
    %461 = vector.load %arg7[%c15, %c0_189, %c0_190] : memref<20x128x128xbf16, #tpu.memory_space<vmem>>, vector<1x128x128xbf16>
    %462 = vector.shape_cast %461 : vector<1x128x128xbf16> to vector<128x128xbf16>
    %cst_191 = arith.constant dense<0.000000e+00> : vector<8x128xf32>
    %463 = tpu.matmul %422, %462, %cst_191 {dimension_numbers = #tpu.dot_dimension_numbers<[1], [0], [0], [1], [0, 0, 1, 1], [], []>} : vector<8x128xbf16>, vector<128x128xbf16>, vector<8x128xf32> -> vector<8x128xf32>
    %c7_i32_192 = arith.constant 7 : i32
    %464 = tpu.dynamic_rotate %463 by %c7_i32_192 dim 0 : vector<8x128xf32>, i32 -> vector<8x128xf32>
    %465 = tpu.iota {dimensions = array<i32: 0>} : vector<8x1xi32>
    %c4_i32_193 = arith.constant 4 : i32
    %c0_i32_194 = arith.constant 0 : i32
    %466 = arith.cmpi eq, %c4_i32_193, %c0_i32_194 : i32
    %c1_i32_195 = arith.constant 1 : i32
    %467 = arith.select %466, %c1_i32_195, %c4_i32_193 : i32
    %468 = vector.broadcast %467 : i32 to vector<8x1xi32>
    %469 = arith.remsi %465, %468 : vector<8x1xi32>
    %c0_i32_196 = arith.constant 0 : i32
    %470 = vector.broadcast %c0_i32_196 : i32 to vector<8x1xi32>
    %471 = arith.cmpi ne, %469, %470 : vector<8x1xi32>
    %c0_i32_197 = arith.constant 0 : i32
    %472 = vector.broadcast %c0_i32_197 : i32 to vector<8x1xi32>
    %473 = arith.cmpi slt, %469, %472 : vector<8x1xi32>
    %c0_i32_198 = arith.constant 0 : i32
    %474 = arith.cmpi slt, %467, %c0_i32_198 : i32
    %475 = vector.broadcast %474 : i1 to vector<8x1xi1>
    %476 = vector.broadcast %475 : vector<8x1xi1> to vector<8x1xi1>
    %477 = arith.xori %473, %476 : vector<8x1xi1>
    %478 = arith.andi %477, %471 : vector<8x1xi1>
    %479 = vector.broadcast %467 : i32 to vector<8x1xi32>
    %480 = arith.addi %469, %479 : vector<8x1xi32>
    %481 = arith.select %478, %480, %469 : vector<8x1xi1>, vector<8x1xi32>
    %c3_i32 = arith.constant 3 : i32
    %482 = vector.broadcast %c3_i32 : i32 to vector<8x1xi32>
    %483 = arith.cmpi eq, %481, %482 : vector<8x1xi32>
    %cst_199 = arith.constant 0.000000e+00 : f32
    %484 = vector.shape_cast %483 : vector<8x1xi1> to vector<8x1xi1>
    %485 = vector.broadcast %484 : vector<8x1xi1> to vector<8x128xi1>
    %486 = vector.broadcast %cst_199 : f32 to vector<8x128xf32>
    %487 = arith.select %485, %486, %464 : vector<8x128xi1>, vector<8x128xf32>
    %488 = arith.addf %460, %487 : vector<8x128xf32>
    %c3_200 = arith.constant 3 : index
    %c0_201 = arith.constant 0 : index
    %c0_202 = arith.constant 0 : index
    %489 = vector.load %arg8[%c3_200, %c0_201, %c0_202] : memref<5x2x128xf32, #tpu.memory_space<vmem>>, vector<1x2x128xf32>
    %490 = vector.shape_cast %489 : vector<1x2x128xf32> to vector<2x128xf32>
    %491 = vector.extract_strided_slice %490 {offsets = [0, 0], sizes = [1, 128], strides = [1, 1]} : vector<2x128xf32> to vector<1x128xf32>
    %492 = vector.broadcast %491 : vector<1x128xf32> to vector<8x128xf32>
    %493 = arith.mulf %488, %492 : vector<8x128xf32>
    %494 = vector.extract_strided_slice %490 {offsets = [1, 0], sizes = [1, 128], strides = [1, 1]} : vector<2x128xf32> to vector<1x128xf32>
    %495 = vector.broadcast %494 : vector<1x128xf32> to vector<8x128xf32>
    %496 = arith.addf %493, %495 : vector<8x128xf32>
    %cst_203 = arith.constant 0.000000e+00 : f32
    %497 = vector.broadcast %cst_203 : f32 to vector<8x128xf32>
    %498 = arith.cmpf ogt, %496, %497 : vector<8x128xf32>
    %cst_204 = arith.constant 2.000000e-01 : f32
    %499 = vector.broadcast %cst_204 : f32 to vector<8x128xf32>
    %500 = arith.mulf %499, %496 : vector<8x128xf32>
    %501 = arith.select %498, %496, %500 : vector<8x128xi1>, vector<8x128xf32>
    %502 = arith.truncf %501 : vector<8x128xf32> to vector<8x128xbf16>
    %503 = arith.extf %502 : vector<8x128xbf16> to vector<8x128xf32>
    %504 = vector.shape_cast %503 : vector<8x128xf32> to vector<4x2x128xf32>
    %505 = vector.extract_strided_slice %504 {offsets = [0, 0, 0], sizes = [4, 1, 128], strides = [1, 1, 1]} : vector<4x2x128xf32> to vector<4x1x128xf32>
    %506 = vector.shape_cast %505 : vector<4x1x128xf32> to vector<4x128xf32>
    %507 = arith.truncf %506 : vector<4x128xf32> to vector<4x128xbf16>
    %508 = vector.extract_strided_slice %504 {offsets = [0, 1, 0], sizes = [4, 1, 128], strides = [1, 1, 1]} : vector<4x2x128xf32> to vector<4x1x128xf32>
    %509 = vector.shape_cast %508 : vector<4x1x128xf32> to vector<4x128xf32>
    %510 = arith.truncf %509 : vector<4x128xf32> to vector<4x128xbf16>
    %c17 = arith.constant 17 : index
    %c0_205 = arith.constant 0 : index
    %c0_206 = arith.constant 0 : index
    %511 = vector.load %arg7[%c17, %c0_205, %c0_206] : memref<20x128x128xbf16, #tpu.memory_space<vmem>>, vector<1x128x128xbf16>
    %512 = vector.shape_cast %511 : vector<1x128x128xbf16> to vector<128x128xbf16>
    %cst_207 = arith.constant dense<0.000000e+00> : vector<4x128xf32>
    %513 = tpu.matmul %507, %512, %cst_207 {dimension_numbers = #tpu.dot_dimension_numbers<[1], [0], [0], [1], [0, 0, 1, 1], [], []>} : vector<4x128xbf16>, vector<128x128xbf16>, vector<4x128xf32> -> vector<4x128xf32>
    %c18 = arith.constant 18 : index
    %c0_208 = arith.constant 0 : index
    %c0_209 = arith.constant 0 : index
    %514 = vector.load %arg7[%c18, %c0_208, %c0_209] : memref<20x128x128xbf16, #tpu.memory_space<vmem>>, vector<1x128x128xbf16>
    %515 = vector.shape_cast %514 : vector<1x128x128xbf16> to vector<128x128xbf16>
    %cst_210 = arith.constant dense<0.000000e+00> : vector<4x128xf32>
    %516 = tpu.matmul %510, %515, %cst_210 {dimension_numbers = #tpu.dot_dimension_numbers<[1], [0], [0], [1], [0, 0, 1, 1], [], []>} : vector<4x128xbf16>, vector<128x128xbf16>, vector<4x128xf32> -> vector<4x128xf32>
    %517 = arith.addf %513, %516 : vector<4x128xf32>
    %c16 = arith.constant 16 : index
    %c0_211 = arith.constant 0 : index
    %c0_212 = arith.constant 0 : index
    %518 = vector.load %arg7[%c16, %c0_211, %c0_212] : memref<20x128x128xbf16, #tpu.memory_space<vmem>>, vector<1x128x128xbf16>
    %519 = vector.shape_cast %518 : vector<1x128x128xbf16> to vector<128x128xbf16>
    %cst_213 = arith.constant dense<0.000000e+00> : vector<4x128xf32>
    %520 = tpu.matmul %510, %519, %cst_213 {dimension_numbers = #tpu.dot_dimension_numbers<[1], [0], [0], [1], [0, 0, 1, 1], [], []>} : vector<4x128xbf16>, vector<128x128xbf16>, vector<4x128xf32> -> vector<4x128xf32>
    %c1_i32_214 = arith.constant 1 : i32
    %521 = tpu.dynamic_rotate %520 by %c1_i32_214 dim 0 : vector<4x128xf32>, i32 -> vector<4x128xf32>
    %522 = tpu.iota {dimensions = array<i32: 0>} : vector<4x1xi32>
    %c2_i32 = arith.constant 2 : i32
    %c0_i32_215 = arith.constant 0 : i32
    %523 = arith.cmpi eq, %c2_i32, %c0_i32_215 : i32
    %c1_i32_216 = arith.constant 1 : i32
    %524 = arith.select %523, %c1_i32_216, %c2_i32 : i32
    %525 = vector.broadcast %524 : i32 to vector<4x1xi32>
    %526 = arith.remsi %522, %525 : vector<4x1xi32>
    %c0_i32_217 = arith.constant 0 : i32
    %527 = vector.broadcast %c0_i32_217 : i32 to vector<4x1xi32>
    %528 = arith.cmpi ne, %526, %527 : vector<4x1xi32>
    %c0_i32_218 = arith.constant 0 : i32
    %529 = vector.broadcast %c0_i32_218 : i32 to vector<4x1xi32>
    %530 = arith.cmpi slt, %526, %529 : vector<4x1xi32>
    %c0_i32_219 = arith.constant 0 : i32
    %531 = arith.cmpi slt, %524, %c0_i32_219 : i32
    %532 = vector.broadcast %531 : i1 to vector<4x1xi1>
    %533 = vector.broadcast %532 : vector<4x1xi1> to vector<4x1xi1>
    %534 = arith.xori %530, %533 : vector<4x1xi1>
    %535 = arith.andi %534, %528 : vector<4x1xi1>
    %536 = vector.broadcast %524 : i32 to vector<4x1xi32>
    %537 = arith.addi %526, %536 : vector<4x1xi32>
    %538 = arith.select %535, %537, %526 : vector<4x1xi1>, vector<4x1xi32>
    %c0_i32_220 = arith.constant 0 : i32
    %539 = vector.broadcast %c0_i32_220 : i32 to vector<4x1xi32>
    %540 = arith.cmpi eq, %538, %539 : vector<4x1xi32>
    %cst_221 = arith.constant 0.000000e+00 : f32
    %541 = vector.shape_cast %540 : vector<4x1xi1> to vector<4x1xi1>
    %542 = vector.broadcast %541 : vector<4x1xi1> to vector<4x128xi1>
    %543 = vector.broadcast %cst_221 : f32 to vector<4x128xf32>
    %544 = arith.select %542, %543, %521 : vector<4x128xi1>, vector<4x128xf32>
    %545 = arith.addf %517, %544 : vector<4x128xf32>
    %c19 = arith.constant 19 : index
    %c0_222 = arith.constant 0 : index
    %c0_223 = arith.constant 0 : index
    %546 = vector.load %arg7[%c19, %c0_222, %c0_223] : memref<20x128x128xbf16, #tpu.memory_space<vmem>>, vector<1x128x128xbf16>
    %547 = vector.shape_cast %546 : vector<1x128x128xbf16> to vector<128x128xbf16>
    %cst_224 = arith.constant dense<0.000000e+00> : vector<4x128xf32>
    %548 = tpu.matmul %507, %547, %cst_224 {dimension_numbers = #tpu.dot_dimension_numbers<[1], [0], [0], [1], [0, 0, 1, 1], [], []>} : vector<4x128xbf16>, vector<128x128xbf16>, vector<4x128xf32> -> vector<4x128xf32>
    %c3_i32_225 = arith.constant 3 : i32
    %549 = tpu.dynamic_rotate %548 by %c3_i32_225 dim 0 : vector<4x128xf32>, i32 -> vector<4x128xf32>
    %550 = tpu.iota {dimensions = array<i32: 0>} : vector<4x1xi32>
    %c2_i32_226 = arith.constant 2 : i32
    %c0_i32_227 = arith.constant 0 : i32
    %551 = arith.cmpi eq, %c2_i32_226, %c0_i32_227 : i32
    %c1_i32_228 = arith.constant 1 : i32
    %552 = arith.select %551, %c1_i32_228, %c2_i32_226 : i32
    %553 = vector.broadcast %552 : i32 to vector<4x1xi32>
    %554 = arith.remsi %550, %553 : vector<4x1xi32>
    %c0_i32_229 = arith.constant 0 : i32
    %555 = vector.broadcast %c0_i32_229 : i32 to vector<4x1xi32>
    %556 = arith.cmpi ne, %554, %555 : vector<4x1xi32>
    %c0_i32_230 = arith.constant 0 : i32
    %557 = vector.broadcast %c0_i32_230 : i32 to vector<4x1xi32>
    %558 = arith.cmpi slt, %554, %557 : vector<4x1xi32>
    %c0_i32_231 = arith.constant 0 : i32
    %559 = arith.cmpi slt, %552, %c0_i32_231 : i32
    %560 = vector.broadcast %559 : i1 to vector<4x1xi1>
    %561 = vector.broadcast %560 : vector<4x1xi1> to vector<4x1xi1>
    %562 = arith.xori %558, %561 : vector<4x1xi1>
    %563 = arith.andi %562, %556 : vector<4x1xi1>
    %564 = vector.broadcast %552 : i32 to vector<4x1xi32>
    %565 = arith.addi %554, %564 : vector<4x1xi32>
    %566 = arith.select %563, %565, %554 : vector<4x1xi1>, vector<4x1xi32>
    %c1_i32_232 = arith.constant 1 : i32
    %567 = vector.broadcast %c1_i32_232 : i32 to vector<4x1xi32>
    %568 = arith.cmpi eq, %566, %567 : vector<4x1xi32>
    %cst_233 = arith.constant 0.000000e+00 : f32
    %569 = vector.shape_cast %568 : vector<4x1xi1> to vector<4x1xi1>
    %570 = vector.broadcast %569 : vector<4x1xi1> to vector<4x128xi1>
    %571 = vector.broadcast %cst_233 : f32 to vector<4x128xf32>
    %572 = arith.select %570, %571, %549 : vector<4x128xi1>, vector<4x128xf32>
    %573 = arith.addf %545, %572 : vector<4x128xf32>
    %c4_234 = arith.constant 4 : index
    %c0_235 = arith.constant 0 : index
    %c0_236 = arith.constant 0 : index
    %574 = vector.load %arg8[%c4_234, %c0_235, %c0_236] : memref<5x2x128xf32, #tpu.memory_space<vmem>>, vector<1x2x128xf32>
    %575 = vector.shape_cast %574 : vector<1x2x128xf32> to vector<2x128xf32>
    %576 = vector.extract_strided_slice %575 {offsets = [0, 0], sizes = [1, 128], strides = [1, 1]} : vector<2x128xf32> to vector<1x128xf32>
    %577 = vector.broadcast %576 : vector<1x128xf32> to vector<4x128xf32>
    %578 = arith.mulf %573, %577 : vector<4x128xf32>
    %579 = vector.extract_strided_slice %575 {offsets = [1, 0], sizes = [1, 128], strides = [1, 1]} : vector<2x128xf32> to vector<1x128xf32>
    %580 = vector.broadcast %579 : vector<1x128xf32> to vector<4x128xf32>
    %581 = arith.addf %578, %580 : vector<4x128xf32>
    %cst_237 = arith.constant 0.000000e+00 : f32
    %582 = vector.broadcast %cst_237 : f32 to vector<4x128xf32>
    %583 = arith.cmpf ogt, %581, %582 : vector<4x128xf32>
    %cst_238 = arith.constant 2.000000e-01 : f32
    %584 = vector.broadcast %cst_238 : f32 to vector<4x128xf32>
    %585 = arith.mulf %584, %581 : vector<4x128xf32>
    %586 = arith.select %583, %581, %585 : vector<4x128xi1>, vector<4x128xf32>
    %587 = arith.truncf %586 : vector<4x128xf32> to vector<4x128xbf16>
    %c0_239 = arith.constant 0 : index
    %c0_240 = arith.constant 0 : index
    %588 = vector.load %arg2[%c0_239, %c0_240] : memref<128x64xbf16, #tpu.memory_space<vmem>>, vector<8x4xbf16>
    %cst_241 = arith.constant dense<0.000000e+00> : vector<8x128xf32>
    %589 = tpu.matmul %588, %587, %cst_241 {dimension_numbers = #tpu.dot_dimension_numbers<[1], [0], [0], [1], [0, 0, 1, 1], [], []>} : vector<8x4xbf16>, vector<4x128xbf16>, vector<8x128xf32> -> vector<8x128xf32>
    %590 = arith.extf %502 : vector<8x128xbf16> to vector<8x128xf32>
    %591 = arith.addf %589, %590 : vector<8x128xf32>
    %592 = arith.truncf %591 : vector<8x128xf32> to vector<8x128xbf16>
    %c1_242 = arith.constant 1 : index
    %c0_243 = arith.constant 0 : index
    %c0_244 = arith.constant 0 : index
    %593 = vector.load %arg9[%c1_242, %c0_243, %c0_244] : memref<15x128x128xbf16, #tpu.memory_space<vmem>>, vector<1x128x128xbf16>
    %594 = vector.shape_cast %593 : vector<1x128x128xbf16> to vector<128x128xbf16>
    %cst_245 = arith.constant dense<0.000000e+00> : vector<8x128xf32>
    %595 = tpu.matmul %592, %594, %cst_245 {dimension_numbers = #tpu.dot_dimension_numbers<[1], [0], [0], [1], [0, 0, 1, 1], [], []>} : vector<8x128xbf16>, vector<128x128xbf16>, vector<8x128xf32> -> vector<8x128xf32>
    %c0_246 = arith.constant 0 : index
    %c0_247 = arith.constant 0 : index
    %c0_248 = arith.constant 0 : index
    %596 = vector.load %arg9[%c0_246, %c0_247, %c0_248] : memref<15x128x128xbf16, #tpu.memory_space<vmem>>, vector<1x128x128xbf16>
    %597 = vector.shape_cast %596 : vector<1x128x128xbf16> to vector<128x128xbf16>
    %cst_249 = arith.constant dense<0.000000e+00> : vector<8x128xf32>
    %598 = tpu.matmul %592, %597, %cst_249 {dimension_numbers = #tpu.dot_dimension_numbers<[1], [0], [0], [1], [0, 0, 1, 1], [], []>} : vector<8x128xbf16>, vector<128x128xbf16>, vector<8x128xf32> -> vector<8x128xf32>
    %c1_i32_250 = arith.constant 1 : i32
    %599 = tpu.dynamic_rotate %598 by %c1_i32_250 dim 0 : vector<8x128xf32>, i32 -> vector<8x128xf32>
    %600 = tpu.iota {dimensions = array<i32: 0>} : vector<8x1xi32>
    %c4_i32_251 = arith.constant 4 : i32
    %c0_i32_252 = arith.constant 0 : i32
    %601 = arith.cmpi eq, %c4_i32_251, %c0_i32_252 : i32
    %c1_i32_253 = arith.constant 1 : i32
    %602 = arith.select %601, %c1_i32_253, %c4_i32_251 : i32
    %603 = vector.broadcast %602 : i32 to vector<8x1xi32>
    %604 = arith.remsi %600, %603 : vector<8x1xi32>
    %c0_i32_254 = arith.constant 0 : i32
    %605 = vector.broadcast %c0_i32_254 : i32 to vector<8x1xi32>
    %606 = arith.cmpi ne, %604, %605 : vector<8x1xi32>
    %c0_i32_255 = arith.constant 0 : i32
    %607 = vector.broadcast %c0_i32_255 : i32 to vector<8x1xi32>
    %608 = arith.cmpi slt, %604, %607 : vector<8x1xi32>
    %c0_i32_256 = arith.constant 0 : i32
    %609 = arith.cmpi slt, %602, %c0_i32_256 : i32
    %610 = vector.broadcast %609 : i1 to vector<8x1xi1>
    %611 = vector.broadcast %610 : vector<8x1xi1> to vector<8x1xi1>
    %612 = arith.xori %608, %611 : vector<8x1xi1>
    %613 = arith.andi %612, %606 : vector<8x1xi1>
    %614 = vector.broadcast %602 : i32 to vector<8x1xi32>
    %615 = arith.addi %604, %614 : vector<8x1xi32>
    %616 = arith.select %613, %615, %604 : vector<8x1xi1>, vector<8x1xi32>
    %c0_i32_257 = arith.constant 0 : i32
    %617 = vector.broadcast %c0_i32_257 : i32 to vector<8x1xi32>
    %618 = arith.cmpi eq, %616, %617 : vector<8x1xi32>
    %cst_258 = arith.constant 0.000000e+00 : f32
    %619 = vector.shape_cast %618 : vector<8x1xi1> to vector<8x1xi1>
    %620 = vector.broadcast %619 : vector<8x1xi1> to vector<8x128xi1>
    %621 = vector.broadcast %cst_258 : f32 to vector<8x128xf32>
    %622 = arith.select %620, %621, %599 : vector<8x128xi1>, vector<8x128xf32>
    %623 = arith.addf %595, %622 : vector<8x128xf32>
    %c2_259 = arith.constant 2 : index
    %c0_260 = arith.constant 0 : index
    %c0_261 = arith.constant 0 : index
    %624 = vector.load %arg9[%c2_259, %c0_260, %c0_261] : memref<15x128x128xbf16, #tpu.memory_space<vmem>>, vector<1x128x128xbf16>
    %625 = vector.shape_cast %624 : vector<1x128x128xbf16> to vector<128x128xbf16>
    %cst_262 = arith.constant dense<0.000000e+00> : vector<8x128xf32>
    %626 = tpu.matmul %592, %625, %cst_262 {dimension_numbers = #tpu.dot_dimension_numbers<[1], [0], [0], [1], [0, 0, 1, 1], [], []>} : vector<8x128xbf16>, vector<128x128xbf16>, vector<8x128xf32> -> vector<8x128xf32>
    %c7_i32_263 = arith.constant 7 : i32
    %627 = tpu.dynamic_rotate %626 by %c7_i32_263 dim 0 : vector<8x128xf32>, i32 -> vector<8x128xf32>
    %628 = tpu.iota {dimensions = array<i32: 0>} : vector<8x1xi32>
    %c4_i32_264 = arith.constant 4 : i32
    %c0_i32_265 = arith.constant 0 : i32
    %629 = arith.cmpi eq, %c4_i32_264, %c0_i32_265 : i32
    %c1_i32_266 = arith.constant 1 : i32
    %630 = arith.select %629, %c1_i32_266, %c4_i32_264 : i32
    %631 = vector.broadcast %630 : i32 to vector<8x1xi32>
    %632 = arith.remsi %628, %631 : vector<8x1xi32>
    %c0_i32_267 = arith.constant 0 : i32
    %633 = vector.broadcast %c0_i32_267 : i32 to vector<8x1xi32>
    %634 = arith.cmpi ne, %632, %633 : vector<8x1xi32>
    %c0_i32_268 = arith.constant 0 : i32
    %635 = vector.broadcast %c0_i32_268 : i32 to vector<8x1xi32>
    %636 = arith.cmpi slt, %632, %635 : vector<8x1xi32>
    %c0_i32_269 = arith.constant 0 : i32
    %637 = arith.cmpi slt, %630, %c0_i32_269 : i32
    %638 = vector.broadcast %637 : i1 to vector<8x1xi1>
    %639 = vector.broadcast %638 : vector<8x1xi1> to vector<8x1xi1>
    %640 = arith.xori %636, %639 : vector<8x1xi1>
    %641 = arith.andi %640, %634 : vector<8x1xi1>
    %642 = vector.broadcast %630 : i32 to vector<8x1xi32>
    %643 = arith.addi %632, %642 : vector<8x1xi32>
    %644 = arith.select %641, %643, %632 : vector<8x1xi1>, vector<8x1xi32>
    %c3_i32_270 = arith.constant 3 : i32
    %645 = vector.broadcast %c3_i32_270 : i32 to vector<8x1xi32>
    %646 = arith.cmpi eq, %644, %645 : vector<8x1xi32>
    %cst_271 = arith.constant 0.000000e+00 : f32
    %647 = vector.shape_cast %646 : vector<8x1xi1> to vector<8x1xi1>
    %648 = vector.broadcast %647 : vector<8x1xi1> to vector<8x128xi1>
    %649 = vector.broadcast %cst_271 : f32 to vector<8x128xf32>
    %650 = arith.select %648, %649, %627 : vector<8x128xi1>, vector<8x128xf32>
    %651 = arith.addf %623, %650 : vector<8x128xf32>
    %c0_272 = arith.constant 0 : index
    %c0_273 = arith.constant 0 : index
    %c0_274 = arith.constant 0 : index
    %652 = vector.load %arg10[%c0_272, %c0_273, %c0_274] : memref<5x2x128xf32, #tpu.memory_space<vmem>>, vector<1x2x128xf32>
    %653 = vector.shape_cast %652 : vector<1x2x128xf32> to vector<2x128xf32>
    %654 = vector.extract_strided_slice %653 {offsets = [0, 0], sizes = [1, 128], strides = [1, 1]} : vector<2x128xf32> to vector<1x128xf32>
    %655 = vector.broadcast %654 : vector<1x128xf32> to vector<8x128xf32>
    %656 = arith.mulf %651, %655 : vector<8x128xf32>
    %657 = vector.extract_strided_slice %653 {offsets = [1, 0], sizes = [1, 128], strides = [1, 1]} : vector<2x128xf32> to vector<1x128xf32>
    %658 = vector.broadcast %657 : vector<1x128xf32> to vector<8x128xf32>
    %659 = arith.addf %656, %658 : vector<8x128xf32>
    %cst_275 = arith.constant 0.000000e+00 : f32
    %660 = vector.broadcast %cst_275 : f32 to vector<8x128xf32>
    %661 = arith.cmpf ogt, %659, %660 : vector<8x128xf32>
    %cst_276 = arith.constant 2.000000e-01 : f32
    %662 = vector.broadcast %cst_276 : f32 to vector<8x128xf32>
    %663 = arith.mulf %662, %659 : vector<8x128xf32>
    %664 = arith.select %661, %659, %663 : vector<8x128xi1>, vector<8x128xf32>
    %665 = arith.truncf %664 : vector<8x128xf32> to vector<8x128xbf16>
    %c0_277 = arith.constant 0 : index
    %c0_278 = arith.constant 0 : index
    %666 = vector.load %arg2[%c0_277, %c0_278] : memref<128x64xbf16, #tpu.memory_space<vmem>>, vector<16x8xbf16>
    %cst_279 = arith.constant dense<0.000000e+00> : vector<16x128xf32>
    %667 = tpu.matmul %666, %665, %cst_279 {dimension_numbers = #tpu.dot_dimension_numbers<[1], [0], [0], [1], [0, 0, 1, 1], [], []>} : vector<16x8xbf16>, vector<8x128xbf16>, vector<16x128xf32> -> vector<16x128xf32>
    %668 = arith.extf %417 : vector<16x128xbf16> to vector<16x128xf32>
    %669 = arith.addf %667, %668 : vector<16x128xf32>
    %670 = arith.truncf %669 : vector<16x128xf32> to vector<16x128xbf16>
    %c4_280 = arith.constant 4 : index
    %c0_281 = arith.constant 0 : index
    %c0_282 = arith.constant 0 : index
    %671 = vector.load %arg9[%c4_280, %c0_281, %c0_282] : memref<15x128x128xbf16, #tpu.memory_space<vmem>>, vector<1x128x128xbf16>
    %672 = vector.shape_cast %671 : vector<1x128x128xbf16> to vector<128x128xbf16>
    %cst_283 = arith.constant dense<0.000000e+00> : vector<16x128xf32>
    %673 = tpu.matmul %670, %672, %cst_283 {dimension_numbers = #tpu.dot_dimension_numbers<[1], [0], [0], [1], [0, 0, 1, 1], [], []>} : vector<16x128xbf16>, vector<128x128xbf16>, vector<16x128xf32> -> vector<16x128xf32>
    %c3_284 = arith.constant 3 : index
    %c0_285 = arith.constant 0 : index
    %c0_286 = arith.constant 0 : index
    %674 = vector.load %arg9[%c3_284, %c0_285, %c0_286] : memref<15x128x128xbf16, #tpu.memory_space<vmem>>, vector<1x128x128xbf16>
    %675 = vector.shape_cast %674 : vector<1x128x128xbf16> to vector<128x128xbf16>
    %cst_287 = arith.constant dense<0.000000e+00> : vector<16x128xf32>
    %676 = tpu.matmul %670, %675, %cst_287 {dimension_numbers = #tpu.dot_dimension_numbers<[1], [0], [0], [1], [0, 0, 1, 1], [], []>} : vector<16x128xbf16>, vector<128x128xbf16>, vector<16x128xf32> -> vector<16x128xf32>
    %c1_i32_288 = arith.constant 1 : i32
    %677 = tpu.dynamic_rotate %676 by %c1_i32_288 dim 0 : vector<16x128xf32>, i32 -> vector<16x128xf32>
    %678 = tpu.iota {dimensions = array<i32: 0>} : vector<16x1xi32>
    %c8_i32_289 = arith.constant 8 : i32
    %c0_i32_290 = arith.constant 0 : i32
    %679 = arith.cmpi eq, %c8_i32_289, %c0_i32_290 : i32
    %c1_i32_291 = arith.constant 1 : i32
    %680 = arith.select %679, %c1_i32_291, %c8_i32_289 : i32
    %681 = vector.broadcast %680 : i32 to vector<16x1xi32>
    %682 = arith.remsi %678, %681 : vector<16x1xi32>
    %c0_i32_292 = arith.constant 0 : i32
    %683 = vector.broadcast %c0_i32_292 : i32 to vector<16x1xi32>
    %684 = arith.cmpi ne, %682, %683 : vector<16x1xi32>
    %c0_i32_293 = arith.constant 0 : i32
    %685 = vector.broadcast %c0_i32_293 : i32 to vector<16x1xi32>
    %686 = arith.cmpi slt, %682, %685 : vector<16x1xi32>
    %c0_i32_294 = arith.constant 0 : i32
    %687 = arith.cmpi slt, %680, %c0_i32_294 : i32
    %688 = vector.broadcast %687 : i1 to vector<16x1xi1>
    %689 = vector.broadcast %688 : vector<16x1xi1> to vector<16x1xi1>
    %690 = arith.xori %686, %689 : vector<16x1xi1>
    %691 = arith.andi %690, %684 : vector<16x1xi1>
    %692 = vector.broadcast %680 : i32 to vector<16x1xi32>
    %693 = arith.addi %682, %692 : vector<16x1xi32>
    %694 = arith.select %691, %693, %682 : vector<16x1xi1>, vector<16x1xi32>
    %c0_i32_295 = arith.constant 0 : i32
    %695 = vector.broadcast %c0_i32_295 : i32 to vector<16x1xi32>
    %696 = arith.cmpi eq, %694, %695 : vector<16x1xi32>
    %cst_296 = arith.constant 0.000000e+00 : f32
    %697 = vector.shape_cast %696 : vector<16x1xi1> to vector<16x1xi1>
    %698 = vector.broadcast %697 : vector<16x1xi1> to vector<16x128xi1>
    %699 = vector.broadcast %cst_296 : f32 to vector<16x128xf32>
    %700 = arith.select %698, %699, %677 : vector<16x128xi1>, vector<16x128xf32>
    %701 = arith.addf %673, %700 : vector<16x128xf32>
    %c5_297 = arith.constant 5 : index
    %c0_298 = arith.constant 0 : index
    %c0_299 = arith.constant 0 : index
    %702 = vector.load %arg9[%c5_297, %c0_298, %c0_299] : memref<15x128x128xbf16, #tpu.memory_space<vmem>>, vector<1x128x128xbf16>
    %703 = vector.shape_cast %702 : vector<1x128x128xbf16> to vector<128x128xbf16>
    %cst_300 = arith.constant dense<0.000000e+00> : vector<16x128xf32>
    %704 = tpu.matmul %670, %703, %cst_300 {dimension_numbers = #tpu.dot_dimension_numbers<[1], [0], [0], [1], [0, 0, 1, 1], [], []>} : vector<16x128xbf16>, vector<128x128xbf16>, vector<16x128xf32> -> vector<16x128xf32>
    %c15_i32_301 = arith.constant 15 : i32
    %705 = tpu.dynamic_rotate %704 by %c15_i32_301 dim 0 : vector<16x128xf32>, i32 -> vector<16x128xf32>
    %706 = tpu.iota {dimensions = array<i32: 0>} : vector<16x1xi32>
    %c8_i32_302 = arith.constant 8 : i32
    %c0_i32_303 = arith.constant 0 : i32
    %707 = arith.cmpi eq, %c8_i32_302, %c0_i32_303 : i32
    %c1_i32_304 = arith.constant 1 : i32
    %708 = arith.select %707, %c1_i32_304, %c8_i32_302 : i32
    %709 = vector.broadcast %708 : i32 to vector<16x1xi32>
    %710 = arith.remsi %706, %709 : vector<16x1xi32>
    %c0_i32_305 = arith.constant 0 : i32
    %711 = vector.broadcast %c0_i32_305 : i32 to vector<16x1xi32>
    %712 = arith.cmpi ne, %710, %711 : vector<16x1xi32>
    %c0_i32_306 = arith.constant 0 : i32
    %713 = vector.broadcast %c0_i32_306 : i32 to vector<16x1xi32>
    %714 = arith.cmpi slt, %710, %713 : vector<16x1xi32>
    %c0_i32_307 = arith.constant 0 : i32
    %715 = arith.cmpi slt, %708, %c0_i32_307 : i32
    %716 = vector.broadcast %715 : i1 to vector<16x1xi1>
    %717 = vector.broadcast %716 : vector<16x1xi1> to vector<16x1xi1>
    %718 = arith.xori %714, %717 : vector<16x1xi1>
    %719 = arith.andi %718, %712 : vector<16x1xi1>
    %720 = vector.broadcast %708 : i32 to vector<16x1xi32>
    %721 = arith.addi %710, %720 : vector<16x1xi32>
    %722 = arith.select %719, %721, %710 : vector<16x1xi1>, vector<16x1xi32>
    %c7_i32_308 = arith.constant 7 : i32
    %723 = vector.broadcast %c7_i32_308 : i32 to vector<16x1xi32>
    %724 = arith.cmpi eq, %722, %723 : vector<16x1xi32>
    %cst_309 = arith.constant 0.000000e+00 : f32
    %725 = vector.shape_cast %724 : vector<16x1xi1> to vector<16x1xi1>
    %726 = vector.broadcast %725 : vector<16x1xi1> to vector<16x128xi1>
    %727 = vector.broadcast %cst_309 : f32 to vector<16x128xf32>
    %728 = arith.select %726, %727, %705 : vector<16x128xi1>, vector<16x128xf32>
    %729 = arith.addf %701, %728 : vector<16x128xf32>
    %c1_310 = arith.constant 1 : index
    %c0_311 = arith.constant 0 : index
    %c0_312 = arith.constant 0 : index
    %730 = vector.load %arg10[%c1_310, %c0_311, %c0_312] : memref<5x2x128xf32, #tpu.memory_space<vmem>>, vector<1x2x128xf32>
    %731 = vector.shape_cast %730 : vector<1x2x128xf32> to vector<2x128xf32>
    %732 = vector.extract_strided_slice %731 {offsets = [0, 0], sizes = [1, 128], strides = [1, 1]} : vector<2x128xf32> to vector<1x128xf32>
    %733 = vector.broadcast %732 : vector<1x128xf32> to vector<16x128xf32>
    %734 = arith.mulf %729, %733 : vector<16x128xf32>
    %735 = vector.extract_strided_slice %731 {offsets = [1, 0], sizes = [1, 128], strides = [1, 1]} : vector<2x128xf32> to vector<1x128xf32>
    %736 = vector.broadcast %735 : vector<1x128xf32> to vector<16x128xf32>
    %737 = arith.addf %734, %736 : vector<16x128xf32>
    %cst_313 = arith.constant 0.000000e+00 : f32
    %738 = vector.broadcast %cst_313 : f32 to vector<16x128xf32>
    %739 = arith.cmpf ogt, %737, %738 : vector<16x128xf32>
    %cst_314 = arith.constant 2.000000e-01 : f32
    %740 = vector.broadcast %cst_314 : f32 to vector<16x128xf32>
    %741 = arith.mulf %740, %737 : vector<16x128xf32>
    %742 = arith.select %739, %737, %741 : vector<16x128xi1>, vector<16x128xf32>
    %743 = arith.truncf %742 : vector<16x128xf32> to vector<16x128xbf16>
    %c0_315 = arith.constant 0 : index
    %c0_316 = arith.constant 0 : index
    %744 = vector.load %arg2[%c0_315, %c0_316] : memref<128x64xbf16, #tpu.memory_space<vmem>>, vector<32x16xbf16>
    %cst_317 = arith.constant dense<0.000000e+00> : vector<32x128xf32>
    %745 = tpu.matmul %744, %743, %cst_317 {dimension_numbers = #tpu.dot_dimension_numbers<[1], [0], [0], [1], [0, 0, 1, 1], [], []>} : vector<32x16xbf16>, vector<16x128xbf16>, vector<32x128xf32> -> vector<32x128xf32>
    %746 = arith.extf %332 : vector<32x128xbf16> to vector<32x128xf32>
    %747 = arith.addf %745, %746 : vector<32x128xf32>
    %748 = arith.truncf %747 : vector<32x128xf32> to vector<32x128xbf16>
    %c7_318 = arith.constant 7 : index
    %c0_319 = arith.constant 0 : index
    %c0_320 = arith.constant 0 : index
    %749 = vector.load %arg9[%c7_318, %c0_319, %c0_320] : memref<15x128x128xbf16, #tpu.memory_space<vmem>>, vector<1x128x128xbf16>
    %750 = vector.shape_cast %749 : vector<1x128x128xbf16> to vector<128x128xbf16>
    %cst_321 = arith.constant dense<0.000000e+00> : vector<32x128xf32>
    %751 = tpu.matmul %748, %750, %cst_321 {dimension_numbers = #tpu.dot_dimension_numbers<[1], [0], [0], [1], [0, 0, 1, 1], [], []>} : vector<32x128xbf16>, vector<128x128xbf16>, vector<32x128xf32> -> vector<32x128xf32>
    %c6_322 = arith.constant 6 : index
    %c0_323 = arith.constant 0 : index
    %c0_324 = arith.constant 0 : index
    %752 = vector.load %arg9[%c6_322, %c0_323, %c0_324] : memref<15x128x128xbf16, #tpu.memory_space<vmem>>, vector<1x128x128xbf16>
    %753 = vector.shape_cast %752 : vector<1x128x128xbf16> to vector<128x128xbf16>
    %cst_325 = arith.constant dense<0.000000e+00> : vector<32x128xf32>
    %754 = tpu.matmul %748, %753, %cst_325 {dimension_numbers = #tpu.dot_dimension_numbers<[1], [0], [0], [1], [0, 0, 1, 1], [], []>} : vector<32x128xbf16>, vector<128x128xbf16>, vector<32x128xf32> -> vector<32x128xf32>
    %c1_i32_326 = arith.constant 1 : i32
    %755 = tpu.dynamic_rotate %754 by %c1_i32_326 dim 0 : vector<32x128xf32>, i32 -> vector<32x128xf32>
    %756 = tpu.iota {dimensions = array<i32: 0>} : vector<32x1xi32>
    %c16_i32_327 = arith.constant 16 : i32
    %c0_i32_328 = arith.constant 0 : i32
    %757 = arith.cmpi eq, %c16_i32_327, %c0_i32_328 : i32
    %c1_i32_329 = arith.constant 1 : i32
    %758 = arith.select %757, %c1_i32_329, %c16_i32_327 : i32
    %759 = vector.broadcast %758 : i32 to vector<32x1xi32>
    %760 = arith.remsi %756, %759 : vector<32x1xi32>
    %c0_i32_330 = arith.constant 0 : i32
    %761 = vector.broadcast %c0_i32_330 : i32 to vector<32x1xi32>
    %762 = arith.cmpi ne, %760, %761 : vector<32x1xi32>
    %c0_i32_331 = arith.constant 0 : i32
    %763 = vector.broadcast %c0_i32_331 : i32 to vector<32x1xi32>
    %764 = arith.cmpi slt, %760, %763 : vector<32x1xi32>
    %c0_i32_332 = arith.constant 0 : i32
    %765 = arith.cmpi slt, %758, %c0_i32_332 : i32
    %766 = vector.broadcast %765 : i1 to vector<32x1xi1>
    %767 = vector.broadcast %766 : vector<32x1xi1> to vector<32x1xi1>
    %768 = arith.xori %764, %767 : vector<32x1xi1>
    %769 = arith.andi %768, %762 : vector<32x1xi1>
    %770 = vector.broadcast %758 : i32 to vector<32x1xi32>
    %771 = arith.addi %760, %770 : vector<32x1xi32>
    %772 = arith.select %769, %771, %760 : vector<32x1xi1>, vector<32x1xi32>
    %c0_i32_333 = arith.constant 0 : i32
    %773 = vector.broadcast %c0_i32_333 : i32 to vector<32x1xi32>
    %774 = arith.cmpi eq, %772, %773 : vector<32x1xi32>
    %cst_334 = arith.constant 0.000000e+00 : f32
    %775 = vector.shape_cast %774 : vector<32x1xi1> to vector<32x1xi1>
    %776 = vector.broadcast %775 : vector<32x1xi1> to vector<32x128xi1>
    %777 = vector.broadcast %cst_334 : f32 to vector<32x128xf32>
    %778 = arith.select %776, %777, %755 : vector<32x128xi1>, vector<32x128xf32>
    %779 = arith.addf %751, %778 : vector<32x128xf32>
    %c8_335 = arith.constant 8 : index
    %c0_336 = arith.constant 0 : index
    %c0_337 = arith.constant 0 : index
    %780 = vector.load %arg9[%c8_335, %c0_336, %c0_337] : memref<15x128x128xbf16, #tpu.memory_space<vmem>>, vector<1x128x128xbf16>
    %781 = vector.shape_cast %780 : vector<1x128x128xbf16> to vector<128x128xbf16>
    %cst_338 = arith.constant dense<0.000000e+00> : vector<32x128xf32>
    %782 = tpu.matmul %748, %781, %cst_338 {dimension_numbers = #tpu.dot_dimension_numbers<[1], [0], [0], [1], [0, 0, 1, 1], [], []>} : vector<32x128xbf16>, vector<128x128xbf16>, vector<32x128xf32> -> vector<32x128xf32>
    %c31_i32_339 = arith.constant 31 : i32
    %783 = tpu.dynamic_rotate %782 by %c31_i32_339 dim 0 : vector<32x128xf32>, i32 -> vector<32x128xf32>
    %784 = tpu.iota {dimensions = array<i32: 0>} : vector<32x1xi32>
    %c16_i32_340 = arith.constant 16 : i32
    %c0_i32_341 = arith.constant 0 : i32
    %785 = arith.cmpi eq, %c16_i32_340, %c0_i32_341 : i32
    %c1_i32_342 = arith.constant 1 : i32
    %786 = arith.select %785, %c1_i32_342, %c16_i32_340 : i32
    %787 = vector.broadcast %786 : i32 to vector<32x1xi32>
    %788 = arith.remsi %784, %787 : vector<32x1xi32>
    %c0_i32_343 = arith.constant 0 : i32
    %789 = vector.broadcast %c0_i32_343 : i32 to vector<32x1xi32>
    %790 = arith.cmpi ne, %788, %789 : vector<32x1xi32>
    %c0_i32_344 = arith.constant 0 : i32
    %791 = vector.broadcast %c0_i32_344 : i32 to vector<32x1xi32>
    %792 = arith.cmpi slt, %788, %791 : vector<32x1xi32>
    %c0_i32_345 = arith.constant 0 : i32
    %793 = arith.cmpi slt, %786, %c0_i32_345 : i32
    %794 = vector.broadcast %793 : i1 to vector<32x1xi1>
    %795 = vector.broadcast %794 : vector<32x1xi1> to vector<32x1xi1>
    %796 = arith.xori %792, %795 : vector<32x1xi1>
    %797 = arith.andi %796, %790 : vector<32x1xi1>
    %798 = vector.broadcast %786 : i32 to vector<32x1xi32>
    %799 = arith.addi %788, %798 : vector<32x1xi32>
    %800 = arith.select %797, %799, %788 : vector<32x1xi1>, vector<32x1xi32>
    %c15_i32_346 = arith.constant 15 : i32
    %801 = vector.broadcast %c15_i32_346 : i32 to vector<32x1xi32>
    %802 = arith.cmpi eq, %800, %801 : vector<32x1xi32>
    %cst_347 = arith.constant 0.000000e+00 : f32
    %803 = vector.shape_cast %802 : vector<32x1xi1> to vector<32x1xi1>
    %804 = vector.broadcast %803 : vector<32x1xi1> to vector<32x128xi1>
    %805 = vector.broadcast %cst_347 : f32 to vector<32x128xf32>
    %806 = arith.select %804, %805, %783 : vector<32x128xi1>, vector<32x128xf32>
    %807 = arith.addf %779, %806 : vector<32x128xf32>
    %c2_348 = arith.constant 2 : index
    %c0_349 = arith.constant 0 : index
    %c0_350 = arith.constant 0 : index
    %808 = vector.load %arg10[%c2_348, %c0_349, %c0_350] : memref<5x2x128xf32, #tpu.memory_space<vmem>>, vector<1x2x128xf32>
    %809 = vector.shape_cast %808 : vector<1x2x128xf32> to vector<2x128xf32>
    %810 = vector.extract_strided_slice %809 {offsets = [0, 0], sizes = [1, 128], strides = [1, 1]} : vector<2x128xf32> to vector<1x128xf32>
    %811 = vector.broadcast %810 : vector<1x128xf32> to vector<32x128xf32>
    %812 = arith.mulf %807, %811 : vector<32x128xf32>
    %813 = vector.extract_strided_slice %809 {offsets = [1, 0], sizes = [1, 128], strides = [1, 1]} : vector<2x128xf32> to vector<1x128xf32>
    %814 = vector.broadcast %813 : vector<1x128xf32> to vector<32x128xf32>
    %815 = arith.addf %812, %814 : vector<32x128xf32>
    %cst_351 = arith.constant 0.000000e+00 : f32
    %816 = vector.broadcast %cst_351 : f32 to vector<32x128xf32>
    %817 = arith.cmpf ogt, %815, %816 : vector<32x128xf32>
    %cst_352 = arith.constant 2.000000e-01 : f32
    %818 = vector.broadcast %cst_352 : f32 to vector<32x128xf32>
    %819 = arith.mulf %818, %815 : vector<32x128xf32>
    %820 = arith.select %817, %815, %819 : vector<32x128xi1>, vector<32x128xf32>
    %821 = arith.truncf %820 : vector<32x128xf32> to vector<32x128xbf16>
    %c0_353 = arith.constant 0 : index
    %c0_354 = arith.constant 0 : index
    %822 = vector.load %arg2[%c0_353, %c0_354] : memref<128x64xbf16, #tpu.memory_space<vmem>>, vector<64x32xbf16>
    %cst_355 = arith.constant dense<0.000000e+00> : vector<64x128xf32>
    %823 = tpu.matmul %822, %821, %cst_355 {dimension_numbers = #tpu.dot_dimension_numbers<[1], [0], [0], [1], [0, 0, 1, 1], [], []>} : vector<64x32xbf16>, vector<32x128xbf16>, vector<64x128xf32> -> vector<64x128xf32>
    %824 = arith.extf %247 : vector<64x128xbf16> to vector<64x128xf32>
    %825 = arith.addf %823, %824 : vector<64x128xf32>
    %826 = arith.truncf %825 : vector<64x128xf32> to vector<64x128xbf16>
    %c10_356 = arith.constant 10 : index
    %c0_357 = arith.constant 0 : index
    %c0_358 = arith.constant 0 : index
    %827 = vector.load %arg9[%c10_356, %c0_357, %c0_358] : memref<15x128x128xbf16, #tpu.memory_space<vmem>>, vector<1x128x128xbf16>
    %828 = vector.shape_cast %827 : vector<1x128x128xbf16> to vector<128x128xbf16>
    %cst_359 = arith.constant dense<0.000000e+00> : vector<64x128xf32>
    %829 = tpu.matmul %826, %828, %cst_359 {dimension_numbers = #tpu.dot_dimension_numbers<[1], [0], [0], [1], [0, 0, 1, 1], [], []>} : vector<64x128xbf16>, vector<128x128xbf16>, vector<64x128xf32> -> vector<64x128xf32>
    %c9_360 = arith.constant 9 : index
    %c0_361 = arith.constant 0 : index
    %c0_362 = arith.constant 0 : index
    %830 = vector.load %arg9[%c9_360, %c0_361, %c0_362] : memref<15x128x128xbf16, #tpu.memory_space<vmem>>, vector<1x128x128xbf16>
    %831 = vector.shape_cast %830 : vector<1x128x128xbf16> to vector<128x128xbf16>
    %cst_363 = arith.constant dense<0.000000e+00> : vector<64x128xf32>
    %832 = tpu.matmul %826, %831, %cst_363 {dimension_numbers = #tpu.dot_dimension_numbers<[1], [0], [0], [1], [0, 0, 1, 1], [], []>} : vector<64x128xbf16>, vector<128x128xbf16>, vector<64x128xf32> -> vector<64x128xf32>
    %c1_i32_364 = arith.constant 1 : i32
    %833 = tpu.dynamic_rotate %832 by %c1_i32_364 dim 0 : vector<64x128xf32>, i32 -> vector<64x128xf32>
    %834 = tpu.iota {dimensions = array<i32: 0>} : vector<64x1xi32>
    %c32_i32_365 = arith.constant 32 : i32
    %c0_i32_366 = arith.constant 0 : i32
    %835 = arith.cmpi eq, %c32_i32_365, %c0_i32_366 : i32
    %c1_i32_367 = arith.constant 1 : i32
    %836 = arith.select %835, %c1_i32_367, %c32_i32_365 : i32
    %837 = vector.broadcast %836 : i32 to vector<64x1xi32>
    %838 = arith.remsi %834, %837 : vector<64x1xi32>
    %c0_i32_368 = arith.constant 0 : i32
    %839 = vector.broadcast %c0_i32_368 : i32 to vector<64x1xi32>
    %840 = arith.cmpi ne, %838, %839 : vector<64x1xi32>
    %c0_i32_369 = arith.constant 0 : i32
    %841 = vector.broadcast %c0_i32_369 : i32 to vector<64x1xi32>
    %842 = arith.cmpi slt, %838, %841 : vector<64x1xi32>
    %c0_i32_370 = arith.constant 0 : i32
    %843 = arith.cmpi slt, %836, %c0_i32_370 : i32
    %844 = vector.broadcast %843 : i1 to vector<64x1xi1>
    %845 = vector.broadcast %844 : vector<64x1xi1> to vector<64x1xi1>
    %846 = arith.xori %842, %845 : vector<64x1xi1>
    %847 = arith.andi %846, %840 : vector<64x1xi1>
    %848 = vector.broadcast %836 : i32 to vector<64x1xi32>
    %849 = arith.addi %838, %848 : vector<64x1xi32>
    %850 = arith.select %847, %849, %838 : vector<64x1xi1>, vector<64x1xi32>
    %c0_i32_371 = arith.constant 0 : i32
    %851 = vector.broadcast %c0_i32_371 : i32 to vector<64x1xi32>
    %852 = arith.cmpi eq, %850, %851 : vector<64x1xi32>
    %cst_372 = arith.constant 0.000000e+00 : f32
    %853 = vector.shape_cast %852 : vector<64x1xi1> to vector<64x1xi1>
    %854 = vector.broadcast %853 : vector<64x1xi1> to vector<64x128xi1>
    %855 = vector.broadcast %cst_372 : f32 to vector<64x128xf32>
    %856 = arith.select %854, %855, %833 : vector<64x128xi1>, vector<64x128xf32>
    %857 = arith.addf %829, %856 : vector<64x128xf32>
    %c11_373 = arith.constant 11 : index
    %c0_374 = arith.constant 0 : index
    %c0_375 = arith.constant 0 : index
    %858 = vector.load %arg9[%c11_373, %c0_374, %c0_375] : memref<15x128x128xbf16, #tpu.memory_space<vmem>>, vector<1x128x128xbf16>
    %859 = vector.shape_cast %858 : vector<1x128x128xbf16> to vector<128x128xbf16>
    %cst_376 = arith.constant dense<0.000000e+00> : vector<64x128xf32>
    %860 = tpu.matmul %826, %859, %cst_376 {dimension_numbers = #tpu.dot_dimension_numbers<[1], [0], [0], [1], [0, 0, 1, 1], [], []>} : vector<64x128xbf16>, vector<128x128xbf16>, vector<64x128xf32> -> vector<64x128xf32>
    %c63_i32_377 = arith.constant 63 : i32
    %861 = tpu.dynamic_rotate %860 by %c63_i32_377 dim 0 : vector<64x128xf32>, i32 -> vector<64x128xf32>
    %862 = tpu.iota {dimensions = array<i32: 0>} : vector<64x1xi32>
    %c32_i32_378 = arith.constant 32 : i32
    %c0_i32_379 = arith.constant 0 : i32
    %863 = arith.cmpi eq, %c32_i32_378, %c0_i32_379 : i32
    %c1_i32_380 = arith.constant 1 : i32
    %864 = arith.select %863, %c1_i32_380, %c32_i32_378 : i32
    %865 = vector.broadcast %864 : i32 to vector<64x1xi32>
    %866 = arith.remsi %862, %865 : vector<64x1xi32>
    %c0_i32_381 = arith.constant 0 : i32
    %867 = vector.broadcast %c0_i32_381 : i32 to vector<64x1xi32>
    %868 = arith.cmpi ne, %866, %867 : vector<64x1xi32>
    %c0_i32_382 = arith.constant 0 : i32
    %869 = vector.broadcast %c0_i32_382 : i32 to vector<64x1xi32>
    %870 = arith.cmpi slt, %866, %869 : vector<64x1xi32>
    %c0_i32_383 = arith.constant 0 : i32
    %871 = arith.cmpi slt, %864, %c0_i32_383 : i32
    %872 = vector.broadcast %871 : i1 to vector<64x1xi1>
    %873 = vector.broadcast %872 : vector<64x1xi1> to vector<64x1xi1>
    %874 = arith.xori %870, %873 : vector<64x1xi1>
    %875 = arith.andi %874, %868 : vector<64x1xi1>
    %876 = vector.broadcast %864 : i32 to vector<64x1xi32>
    %877 = arith.addi %866, %876 : vector<64x1xi32>
    %878 = arith.select %875, %877, %866 : vector<64x1xi1>, vector<64x1xi32>
    %c31_i32_384 = arith.constant 31 : i32
    %879 = vector.broadcast %c31_i32_384 : i32 to vector<64x1xi32>
    %880 = arith.cmpi eq, %878, %879 : vector<64x1xi32>
    %cst_385 = arith.constant 0.000000e+00 : f32
    %881 = vector.shape_cast %880 : vector<64x1xi1> to vector<64x1xi1>
    %882 = vector.broadcast %881 : vector<64x1xi1> to vector<64x128xi1>
    %883 = vector.broadcast %cst_385 : f32 to vector<64x128xf32>
    %884 = arith.select %882, %883, %861 : vector<64x128xi1>, vector<64x128xf32>
    %885 = arith.addf %857, %884 : vector<64x128xf32>
    %c3_386 = arith.constant 3 : index
    %c0_387 = arith.constant 0 : index
    %c0_388 = arith.constant 0 : index
    %886 = vector.load %arg10[%c3_386, %c0_387, %c0_388] : memref<5x2x128xf32, #tpu.memory_space<vmem>>, vector<1x2x128xf32>
    %887 = vector.shape_cast %886 : vector<1x2x128xf32> to vector<2x128xf32>
    %888 = vector.extract_strided_slice %887 {offsets = [0, 0], sizes = [1, 128], strides = [1, 1]} : vector<2x128xf32> to vector<1x128xf32>
    %889 = vector.broadcast %888 : vector<1x128xf32> to vector<64x128xf32>
    %890 = arith.mulf %885, %889 : vector<64x128xf32>
    %891 = vector.extract_strided_slice %887 {offsets = [1, 0], sizes = [1, 128], strides = [1, 1]} : vector<2x128xf32> to vector<1x128xf32>
    %892 = vector.broadcast %891 : vector<1x128xf32> to vector<64x128xf32>
    %893 = arith.addf %890, %892 : vector<64x128xf32>
    %cst_389 = arith.constant 0.000000e+00 : f32
    %894 = vector.broadcast %cst_389 : f32 to vector<64x128xf32>
    %895 = arith.cmpf ogt, %893, %894 : vector<64x128xf32>
    %cst_390 = arith.constant 2.000000e-01 : f32
    %896 = vector.broadcast %cst_390 : f32 to vector<64x128xf32>
    %897 = arith.mulf %896, %893 : vector<64x128xf32>
    %898 = arith.select %895, %893, %897 : vector<64x128xi1>, vector<64x128xf32>
    %899 = arith.truncf %898 : vector<64x128xf32> to vector<64x128xbf16>
    %c0_391 = arith.constant 0 : index
    %c0_392 = arith.constant 0 : index
    %900 = vector.load %arg2[%c0_391, %c0_392] : memref<128x64xbf16, #tpu.memory_space<vmem>>, vector<128x64xbf16>
    %cst_393 = arith.constant dense<0.000000e+00> : vector<128x128xf32>
    %901 = tpu.matmul %900, %899, %cst_393 {dimension_numbers = #tpu.dot_dimension_numbers<[1], [0], [0], [1], [0, 0, 1, 1], [], []>} : vector<128x64xbf16>, vector<64x128xbf16>, vector<128x128xf32> -> vector<128x128xf32>
    %902 = arith.extf %162 : vector<128x128xbf16> to vector<128x128xf32>
    %903 = arith.addf %901, %902 : vector<128x128xf32>
    %904 = arith.truncf %903 : vector<128x128xf32> to vector<128x128xbf16>
    %c13_394 = arith.constant 13 : index
    %c0_395 = arith.constant 0 : index
    %c0_396 = arith.constant 0 : index
    %905 = vector.load %arg9[%c13_394, %c0_395, %c0_396] : memref<15x128x128xbf16, #tpu.memory_space<vmem>>, vector<1x128x128xbf16>
    %906 = vector.shape_cast %905 : vector<1x128x128xbf16> to vector<128x128xbf16>
    %cst_397 = arith.constant dense<0.000000e+00> : vector<128x128xf32>
    %907 = tpu.matmul %904, %906, %cst_397 {dimension_numbers = #tpu.dot_dimension_numbers<[1], [0], [0], [1], [0, 0, 1, 1], [], []>} : vector<128x128xbf16>, vector<128x128xbf16>, vector<128x128xf32> -> vector<128x128xf32>
    %c12_398 = arith.constant 12 : index
    %c0_399 = arith.constant 0 : index
    %c0_400 = arith.constant 0 : index
    %908 = vector.load %arg9[%c12_398, %c0_399, %c0_400] : memref<15x128x128xbf16, #tpu.memory_space<vmem>>, vector<1x128x128xbf16>
    %909 = vector.shape_cast %908 : vector<1x128x128xbf16> to vector<128x128xbf16>
    %cst_401 = arith.constant dense<0.000000e+00> : vector<128x128xf32>
    %910 = tpu.matmul %904, %909, %cst_401 {dimension_numbers = #tpu.dot_dimension_numbers<[1], [0], [0], [1], [0, 0, 1, 1], [], []>} : vector<128x128xbf16>, vector<128x128xbf16>, vector<128x128xf32> -> vector<128x128xf32>
    %c1_i32_402 = arith.constant 1 : i32
    %911 = tpu.dynamic_rotate %910 by %c1_i32_402 dim 0 : vector<128x128xf32>, i32 -> vector<128x128xf32>
    %912 = tpu.iota {dimensions = array<i32: 0>} : vector<128x1xi32>
    %c64_i32_403 = arith.constant 64 : i32
    %c0_i32_404 = arith.constant 0 : i32
    %913 = arith.cmpi eq, %c64_i32_403, %c0_i32_404 : i32
    %c1_i32_405 = arith.constant 1 : i32
    %914 = arith.select %913, %c1_i32_405, %c64_i32_403 : i32
    %915 = vector.broadcast %914 : i32 to vector<128x1xi32>
    %916 = arith.remsi %912, %915 : vector<128x1xi32>
    %c0_i32_406 = arith.constant 0 : i32
    %917 = vector.broadcast %c0_i32_406 : i32 to vector<128x1xi32>
    %918 = arith.cmpi ne, %916, %917 : vector<128x1xi32>
    %c0_i32_407 = arith.constant 0 : i32
    %919 = vector.broadcast %c0_i32_407 : i32 to vector<128x1xi32>
    %920 = arith.cmpi slt, %916, %919 : vector<128x1xi32>
    %c0_i32_408 = arith.constant 0 : i32
    %921 = arith.cmpi slt, %914, %c0_i32_408 : i32
    %922 = vector.broadcast %921 : i1 to vector<128x1xi1>
    %923 = vector.broadcast %922 : vector<128x1xi1> to vector<128x1xi1>
    %924 = arith.xori %920, %923 : vector<128x1xi1>
    %925 = arith.andi %924, %918 : vector<128x1xi1>
    %926 = vector.broadcast %914 : i32 to vector<128x1xi32>
    %927 = arith.addi %916, %926 : vector<128x1xi32>
    %928 = arith.select %925, %927, %916 : vector<128x1xi1>, vector<128x1xi32>
    %c0_i32_409 = arith.constant 0 : i32
    %929 = vector.broadcast %c0_i32_409 : i32 to vector<128x1xi32>
    %930 = arith.cmpi eq, %928, %929 : vector<128x1xi32>
    %cst_410 = arith.constant 0.000000e+00 : f32
    %931 = vector.shape_cast %930 : vector<128x1xi1> to vector<128x1xi1>
    %932 = vector.broadcast %931 : vector<128x1xi1> to vector<128x128xi1>
    %933 = vector.broadcast %cst_410 : f32 to vector<128x128xf32>
    %934 = arith.select %932, %933, %911 : vector<128x128xi1>, vector<128x128xf32>
    %935 = arith.addf %907, %934 : vector<128x128xf32>
    %c14_411 = arith.constant 14 : index
    %c0_412 = arith.constant 0 : index
    %c0_413 = arith.constant 0 : index
    %936 = vector.load %arg9[%c14_411, %c0_412, %c0_413] : memref<15x128x128xbf16, #tpu.memory_space<vmem>>, vector<1x128x128xbf16>
    %937 = vector.shape_cast %936 : vector<1x128x128xbf16> to vector<128x128xbf16>
    %cst_414 = arith.constant dense<0.000000e+00> : vector<128x128xf32>
    %938 = tpu.matmul %904, %937, %cst_414 {dimension_numbers = #tpu.dot_dimension_numbers<[1], [0], [0], [1], [0, 0, 1, 1], [], []>} : vector<128x128xbf16>, vector<128x128xbf16>, vector<128x128xf32> -> vector<128x128xf32>
    %c127_i32_415 = arith.constant 127 : i32
    %939 = tpu.dynamic_rotate %938 by %c127_i32_415 dim 0 : vector<128x128xf32>, i32 -> vector<128x128xf32>
    %940 = tpu.iota {dimensions = array<i32: 0>} : vector<128x1xi32>
    %c64_i32_416 = arith.constant 64 : i32
    %c0_i32_417 = arith.constant 0 : i32
    %941 = arith.cmpi eq, %c64_i32_416, %c0_i32_417 : i32
    %c1_i32_418 = arith.constant 1 : i32
    %942 = arith.select %941, %c1_i32_418, %c64_i32_416 : i32
    %943 = vector.broadcast %942 : i32 to vector<128x1xi32>
    %944 = arith.remsi %940, %943 : vector<128x1xi32>
    %c0_i32_419 = arith.constant 0 : i32
    %945 = vector.broadcast %c0_i32_419 : i32 to vector<128x1xi32>
    %946 = arith.cmpi ne, %944, %945 : vector<128x1xi32>
    %c0_i32_420 = arith.constant 0 : i32
    %947 = vector.broadcast %c0_i32_420 : i32 to vector<128x1xi32>
    %948 = arith.cmpi slt, %944, %947 : vector<128x1xi32>
    %c0_i32_421 = arith.constant 0 : i32
    %949 = arith.cmpi slt, %942, %c0_i32_421 : i32
    %950 = vector.broadcast %949 : i1 to vector<128x1xi1>
    %951 = vector.broadcast %950 : vector<128x1xi1> to vector<128x1xi1>
    %952 = arith.xori %948, %951 : vector<128x1xi1>
    %953 = arith.andi %952, %946 : vector<128x1xi1>
    %954 = vector.broadcast %942 : i32 to vector<128x1xi32>
    %955 = arith.addi %944, %954 : vector<128x1xi32>
    %956 = arith.select %953, %955, %944 : vector<128x1xi1>, vector<128x1xi32>
    %c63_i32_422 = arith.constant 63 : i32
    %957 = vector.broadcast %c63_i32_422 : i32 to vector<128x1xi32>
    %958 = arith.cmpi eq, %956, %957 : vector<128x1xi32>
    %cst_423 = arith.constant 0.000000e+00 : f32
    %959 = vector.shape_cast %958 : vector<128x1xi1> to vector<128x1xi1>
    %960 = vector.broadcast %959 : vector<128x1xi1> to vector<128x128xi1>
    %961 = vector.broadcast %cst_423 : f32 to vector<128x128xf32>
    %962 = arith.select %960, %961, %939 : vector<128x128xi1>, vector<128x128xf32>
    %963 = arith.addf %935, %962 : vector<128x128xf32>
    %c4_424 = arith.constant 4 : index
    %c0_425 = arith.constant 0 : index
    %c0_426 = arith.constant 0 : index
    %964 = vector.load %arg10[%c4_424, %c0_425, %c0_426] : memref<5x2x128xf32, #tpu.memory_space<vmem>>, vector<1x2x128xf32>
    %965 = vector.shape_cast %964 : vector<1x2x128xf32> to vector<2x128xf32>
    %966 = vector.extract_strided_slice %965 {offsets = [0, 0], sizes = [1, 128], strides = [1, 1]} : vector<2x128xf32> to vector<1x128xf32>
    %967 = vector.broadcast %966 : vector<1x128xf32> to vector<128x128xf32>
    %968 = arith.mulf %963, %967 : vector<128x128xf32>
    %969 = vector.extract_strided_slice %965 {offsets = [1, 0], sizes = [1, 128], strides = [1, 1]} : vector<2x128xf32> to vector<1x128xf32>
    %970 = vector.broadcast %969 : vector<1x128xf32> to vector<128x128xf32>
    %971 = arith.addf %968, %970 : vector<128x128xf32>
    %cst_427 = arith.constant 0.000000e+00 : f32
    %972 = vector.broadcast %cst_427 : f32 to vector<128x128xf32>
    %973 = arith.cmpf ogt, %971, %972 : vector<128x128xf32>
    %cst_428 = arith.constant 2.000000e-01 : f32
    %974 = vector.broadcast %cst_428 : f32 to vector<128x128xf32>
    %975 = arith.mulf %974, %971 : vector<128x128xf32>
    %976 = arith.select %973, %971, %975 : vector<128x128xi1>, vector<128x128xf32>
    %977 = arith.truncf %976 : vector<128x128xf32> to vector<128x128xbf16>
    %c0_429 = arith.constant 0 : index
    %c0_430 = arith.constant 0 : index
    %978 = vector.load %arg11[%c0_429, %c0_430] : memref<128x128xbf16, #tpu.memory_space<vmem>>, vector<128x128xbf16>
    %cst_431 = arith.constant dense<0.000000e+00> : vector<128x128xf32>
    %979 = tpu.matmul %977, %978, %cst_431 {dimension_numbers = #tpu.dot_dimension_numbers<[1], [0], [0], [1], [0, 0, 1, 1], [], []>} : vector<128x128xbf16>, vector<128x128xbf16>, vector<128x128xf32> -> vector<128x128xf32>
    %c0_432 = arith.constant 0 : index
    %c0_433 = arith.constant 0 : index
    %980 = vector.load %arg12[%c0_432, %c0_433] : memref<2x128xf32, #tpu.memory_space<vmem>>, vector<1x128xf32>
    %981 = vector.broadcast %980 : vector<1x128xf32> to vector<128x128xf32>
    %982 = arith.mulf %979, %981 : vector<128x128xf32>
    %c1_434 = arith.constant 1 : index
    %c0_435 = arith.constant 0 : index
    %983 = vector.load %arg12[%c1_434, %c0_435] : memref<2x128xf32, #tpu.memory_space<vmem>>, vector<1x128xf32>
    %984 = vector.broadcast %983 : vector<1x128xf32> to vector<128x128xf32>
    %985 = arith.addf %982, %984 : vector<128x128xf32>
    %c0_436 = arith.constant 0 : index
    %c0_437 = arith.constant 0 : index
    %986 = vector.load %arg13[%c0_436, %c0_437] : memref<128x128xf32, #tpu.memory_space<vmem>>, vector<128x128xf32>
    tpu.vector_store %arg13[%c0_436, %c0_437], %985 {strides = array<i32>} : memref<128x128xf32, #tpu.memory_space<vmem>>, vector<128x128xf32>,
    return
  }
  func.func @transform_0(%arg0: i32) -> (i32, i32) {
    %c0_i32 = arith.constant 0 : i32
    %c0_i32_0 = arith.constant 0 : i32
    return %arg0, %c0_i32 : i32, i32
  }
  func.func @transform_1(%arg0: i32) -> (i32, i32) {
    %c0_i32 = arith.constant 0 : i32
    %c0_i32_0 = arith.constant 0 : i32
    %c0_i32_1 = arith.constant 0 : i32
    return %c0_i32, %c0_i32_0 : i32, i32
  }
  func.func @transform_2(%arg0: i32) -> (i32, i32) {
    %c0_i32 = arith.constant 0 : i32
    %c0_i32_0 = arith.constant 0 : i32
    %c0_i32_1 = arith.constant 0 : i32
    return %c0_i32, %c0_i32_0 : i32, i32
  }
  func.func @transform_3(%arg0: i32) -> (i32, i32) {
    %c0_i32 = arith.constant 0 : i32
    %c0_i32_0 = arith.constant 0 : i32
    %c0_i32_1 = arith.constant 0 : i32
    return %c0_i32, %c0_i32_0 : i32, i32
  }
  func.func @transform_4(%arg0: i32) -> (i32, i32, i32) {
    %c0_i32 = arith.constant 0 : i32
    %c0_i32_0 = arith.constant 0 : i32
    %c0_i32_1 = arith.constant 0 : i32
    %c0_i32_2 = arith.constant 0 : i32
    return %c0_i32, %c0_i32_0, %c0_i32_1 : i32, i32, i32
  }
  func.func @transform_5(%arg0: i32) -> (i32, i32, i32) {
    %c0_i32 = arith.constant 0 : i32
    %c0_i32_0 = arith.constant 0 : i32
    %c0_i32_1 = arith.constant 0 : i32
    %c0_i32_2 = arith.constant 0 : i32
    return %c0_i32, %c0_i32_0, %c0_i32_1 : i32, i32, i32
  }
  func.func @transform_6(%arg0: i32) -> (i32, i32, i32) {
    %c0_i32 = arith.constant 0 : i32
    %c0_i32_0 = arith.constant 0 : i32
    %c0_i32_1 = arith.constant 0 : i32
    %c0_i32_2 = arith.constant 0 : i32
    return %c0_i32, %c0_i32_0, %c0_i32_1 : i32, i32, i32
  }
  func.func @transform_7(%arg0: i32) -> (i32, i32, i32) {
    %c0_i32 = arith.constant 0 : i32
    %c0_i32_0 = arith.constant 0 : i32
    %c0_i32_1 = arith.constant 0 : i32
    %c0_i32_2 = arith.constant 0 : i32
    return %c0_i32, %c0_i32_0, %c0_i32_1 : i32, i32, i32
  }
  func.func @transform_8(%arg0: i32) -> (i32, i32, i32) {
    %c0_i32 = arith.constant 0 : i32
    %c0_i32_0 = arith.constant 0 : i32
    %c0_i32_1 = arith.constant 0 : i32
    %c0_i32_2 = arith.constant 0 : i32
    return %c0_i32, %c0_i32_0, %c0_i32_1 : i32, i32, i32
  }
  func.func @transform_9(%arg0: i32) -> (i32, i32, i32) {
    %c0_i32 = arith.constant 0 : i32
    %c0_i32_0 = arith.constant 0 : i32
    %c0_i32_1 = arith.constant 0 : i32
    %c0_i32_2 = arith.constant 0 : i32
    return %c0_i32, %c0_i32_0, %c0_i32_1 : i32, i32, i32
  }
  func.func @transform_10(%arg0: i32) -> (i32, i32) {
    %c0_i32 = arith.constant 0 : i32
    %c0_i32_0 = arith.constant 0 : i32
    %c0_i32_1 = arith.constant 0 : i32
    return %c0_i32, %c0_i32_0 : i32, i32
  }
  func.func @transform_11(%arg0: i32) -> (i32, i32) {
    %c0_i32 = arith.constant 0 : i32
    %c0_i32_0 = arith.constant 0 : i32
    %c0_i32_1 = arith.constant 0 : i32
    return %c0_i32, %c0_i32_0 : i32, i32
  }
  func.func @transform_12(%arg0: i32) -> (i32, i32) {
    %c0_i32 = arith.constant 0 : i32
    %c0_i32_0 = arith.constant 0 : i32
    return %arg0, %c0_i32 : i32, i32
  }
}

</mosaic_0001>

<llo_original>
// kernel: tpu_custom_call.1
$region0: #{tpu_custom_call.1}
  #allocation0 [shape = 'u32[]', space=smem, size = 0x4, offset = 0x4, fixed_abs, tag = 'smem constant byte address 0x4 - core index']
  #allocation1 [shape = 'u32[144,128]{1,0:T(1,128)}', space=vmem, size = 0x12000, scoped, tag = 'internal scratch']
  %s0 = inlined_call_operand.vmem [shape: f32[256,64], index: 0, kind: input, shape index: {}]
  %s1 = inlined_call_operand.vmem [shape: bf16[128,64], index: 1, kind: input, shape index: {}]
  %s2 = inlined_call_operand.vmem [shape: bf16[64,128], index: 2, kind: input, shape index: {}]
  %s3 = inlined_call_operand.vmem [shape: f32[2,128], index: 3, kind: input, shape index: {}]
  %s4 = inlined_call_operand.vmem [shape: bf16[6,128,128], index: 4, kind: input, shape index: {}]
  %s5 = inlined_call_operand.hbm [shape: f32[2,2,128], index: 5, kind: input, shape index: {}]
  %s6 = inlined_call_operand.hbm [shape: bf16[20,128,128], index: 6, kind: input, shape index: {}]
  %s7 = inlined_call_operand.vmem [shape: f32[5,2,128], index: 7, kind: input, shape index: {}]
  %s8 = inlined_call_operand.hbm [shape: bf16[15,128,128], index: 8, kind: input, shape index: {}]
  %s9 = inlined_call_operand.vmem [shape: f32[5,2,128], index: 9, kind: input, shape index: {}]
  %s10 = inlined_call_operand.vmem [shape: bf16[128,128], index: 10, kind: input, shape index: {}]
  %s11 = inlined_call_operand.vmem [shape: f32[2,128], index: 11, kind: input, shape index: {}]
  %s12 = inlined_call_operand.hbm [shape: f32[256,128], index: 12, kind: output, shape index: {}]
  %s13 = sld [smem:[#allocation0]]
  $region93: #{tpu_custom_call.1} parent=0
    _
  %s15 = ssub.s32 1, %s13
  %s16 = scalar_select 0, %s15, %s13
  $region1: #{tpu_custom_call.1} parent=0
    #allocation2 [shape = 'u8[2048]{0}', space=vmem, size = 0x800, scoped, tag = 'input window, operand 5, single buffered']
    #allocation3 [shape = 's32[2]{0}', space=sflag, size = 0x8, scoped, tag = 'scoped memory for tpu_custom_call.1']
    #allocation4 [shape = 's32[2]{0}', space=sflag, size = 0x8, scoped, tag = 'scoped memory for tpu_custom_call.1']
    #allocation5 [shape = 'u8[655360]{0}', space=vmem, size = 0xa0000, scoped, tag = 'input window, operand 6, single buffered']
    #allocation6 [shape = 's32[1]{0}', space=sflag, size = 0x4, scoped, tag = 'scoped memory for tpu_custom_call.1']
    #allocation7 [shape = 'u8[491520]{0}', space=vmem, size = 0x78000, scoped, tag = 'input window, operand 8, single buffered']
    #allocation8 [shape = 'u8[131072]{0}', space=vmem, size = 0x20000, scoped, tag = 'output window, operand 0']
    %17 = vsyncpa [#allocation3], 0
    %18 = vsyncpa [#allocation6], 0
    %19 = vsyncpa [#allocation4], 0
    %s20 = scalar_lea.sflag [#allocation4], 1
    %21 = vsyncpa %s20, 0
    loop: start=0, step=1, limit=4
    $region2: #{tpu_custom_call.1} parent=1 // loop_pre_header
      _
    $region3: #{tpu_custom_call.1} parent=1 // loop_header
      %s23 = sphi 0, %s27
      %p24 = scmp.ge.s32.totalorder %s23, 4
      %s33 = sphi 0, %s35
      %s36 = sphi 0, %s33
      %s37 = sphi 0, %s36
      %s53 = sphi 0, %s37
      %s57 = sphi 0, %s57
      %s59 = sphi 0, %s57
      %s60 = sphi 0, %s59
      %s74 = sphi 0, %s60
      %s78 = sphi 0, %s78
      %s80 = sphi 0, %s78
      %s81 = sphi 0, %s80
      %s95 = sphi 0, %s81
      %s99 = sphi 0, %s99
      %s101 = sphi 0, %s99
      %s102 = sphi 0, %s101
      %s116 = sphi 0, %s102
      %s120 = sphi 0, %s120
      %s122 = sphi 0, %s120
      %s123 = sphi 0, %s122
      %s137 = sphi 0, %s123
      %s141 = sphi 0, %s141
      %s143 = sphi 0, %s141
      %s144 = sphi 0, %s143
      %s158 = sphi 0, %s144
      %s162 = sphi 0, %s162
      %s164 = sphi 0, %s162
      %s165 = sphi 0, %s164
      %s179 = sphi 0, %s165
      %s183 = sphi 0, %s183
      %s185 = sphi 0, %s183
      %s186 = sphi 0, %s185
      %s200 = sphi 0, %s186
      %s204 = sphi 0, %s204
      %s206 = sphi 0, %s204
      %s207 = sphi 0, %s206
      %s221 = sphi 0, %s207
      %s225 = sphi 0, %s225
      %s227 = sphi 0, %s225
      %s228 = sphi 0, %s227
      %s242 = sphi 0, %s228
      %s246 = sphi 0, %s246
      %s248 = sphi 0, %s246
      %s249 = sphi 0, %s248
      %s263 = sphi 0, %s249
      %s267 = sphi 0, %s267
      %s269 = sphi 0, %s267
      %s270 = sphi 0, %s269
      %s284 = sphi 0, %s270
      %s290 = sphi 0, %s292
      %s293 = sphi 0, %s290
      %s294 = sphi 0, %s293
      %s310 = sphi 0, %s294
    $region4: #{tpu_custom_call.1} parent=1 // loop_header_branch
      %26 = sbr.rel (%p24) target = $region8
    $region5: #{tpu_custom_call.1} parent=1 // loop_body
      %s28 = ssub.s32 %s23, 1
      %s29 = ssub.s32 %s23, 2
      %s30 = sadd.s32 %s23, 1
      %s31 = ssub.s32 %s23, %s30
      %p32 = scmp.eq.s32.totalorder %s31, 0
      %s34 = sadd.s32 %s33, 1
      %s35 = scalar_select %p32, %s33, %s34
      %p38 = pneg %p32
      %p39 = scmp.eq.s32.totalorder %s23, 1
      %p40 = por %p38, %p39
      %p41 = scmp.ne.s32.totalorder %s33, %s36
      %p42 = scmp.eq.s32.totalorder %s23, 0
      %p43 = por %p41, %p42
      %p44 = scmp.ne.s32.totalorder %s33, %s36
      %p45 = scmp.eq.s32.totalorder %s28, 1
      %p46 = por %p44, %p45
      %p47 = scmp.ne.s32.totalorder %s36, %s37
      %p48 = scmp.eq.s32.totalorder %s28, 0
      %p49 = por %p47, %p48
      %p50 = scmp.ne.s32.totalorder %s36, %s37
      %p51 = scmp.eq.s32.totalorder %s29, 1
      %p52 = por %p50, %p51
      %p54 = scmp.ne.s32.totalorder %s37, %s53
      %p55 = scmp.eq.s32.totalorder %s29, 0
      %p56 = por %p54, %p55
      %s58 = sadd.s32 %s57, 1
      %p61 = scmp.eq.s32.totalorder %s23, 1
      %p62 = scmp.ne.s32.totalorder %s57, %s59
      %p63 = scmp.eq.s32.totalorder %s23, 0
      %p64 = por %p62, %p63
      %p65 = scmp.ne.s32.totalorder %s57, %s59
      %p66 = scmp.eq.s32.totalorder %s28, 1
      %p67 = por %p65, %p66
      %p68 = scmp.ne.s32.totalorder %s59, %s60
      %p69 = scmp.eq.s32.totalorder %s28, 0
      %p70 = por %p68, %p69
      %p71 = scmp.ne.s32.totalorder %s59, %s60
      %p72 = scmp.eq.s32.totalorder %s29, 1
      %p73 = por %p71, %p72
      %p75 = scmp.ne.s32.totalorder %s60, %s74
      %p76 = scmp.eq.s32.totalorder %s29, 0
      %p77 = por %p75, %p76
      %s79 = sadd.s32 %s78, 1
      %p82 = scmp.eq.s32.totalorder %s23, 1
      %p83 = scmp.ne.s32.totalorder %s78, %s80
      %p84 = scmp.eq.s32.totalorder %s23, 0
      %p85 = por %p83, %p84
      %p86 = scmp.ne.s32.totalorder %s78, %s80
      %p87 = scmp.eq.s32.totalorder %s28, 1
      %p88 = por %p86, %p87
      %p89 = scmp.ne.s32.totalorder %s80, %s81
      %p90 = scmp.eq.s32.totalorder %s28, 0
      %p91 = por %p89, %p90
      %p92 = scmp.ne.s32.totalorder %s80, %s81
      %p93 = scmp.eq.s32.totalorder %s29, 1
      %p94 = por %p92, %p93
      %p96 = scmp.ne.s32.totalorder %s81, %s95
      %p97 = scmp.eq.s32.totalorder %s29, 0
      %p98 = por %p96, %p97
      %s100 = sadd.s32 %s99, 1
      %p103 = scmp.eq.s32.totalorder %s23, 1
      %p104 = scmp.ne.s32.totalorder %s99, %s101
      %p105 = scmp.eq.s32.totalorder %s23, 0
      %p106 = por %p104, %p105
      %p107 = scmp.ne.s32.totalorder %s99, %s101
      %p108 = scmp.eq.s32.totalorder %s28, 1
      %p109 = por %p107, %p108
      %p110 = scmp.ne.s32.totalorder %s101, %s102
      %p111 = scmp.eq.s32.totalorder %s28, 0
      %p112 = por %p110, %p111
      %p113 = scmp.ne.s32.totalorder %s101, %s102
      %p114 = scmp.eq.s32.totalorder %s29, 1
      %p115 = por %p113, %p114
      %p117 = scmp.ne.s32.totalorder %s102, %s116
      %p118 = scmp.eq.s32.totalorder %s29, 0
      %p119 = por %p117, %p118
      %s121 = sadd.s32 %s120, 1
      %p124 = scmp.eq.s32.totalorder %s23, 1
      %p125 = scmp.ne.s32.totalorder %s120, %s122
      %p126 = scmp.eq.s32.totalorder %s23, 0
      %p127 = por %p125, %p126
      %p128 = scmp.ne.s32.totalorder %s120, %s122
      %p129 = scmp.eq.s32.totalorder %s28, 1
      %p130 = por %p128, %p129
      %p131 = scmp.ne.s32.totalorder %s122, %s123
      %p132 = scmp.eq.s32.totalorder %s28, 0
      %p133 = por %p131, %p132
      %p134 = scmp.ne.s32.totalorder %s122, %s123
      %p135 = scmp.eq.s32.totalorder %s29, 1
      %p136 = por %p134, %p135
      %p138 = scmp.ne.s32.totalorder %s123, %s137
      %p139 = scmp.eq.s32.totalorder %s29, 0
      %p140 = por %p138, %p139
      %s142 = sadd.s32 %s141, 1
      %p145 = scmp.eq.s32.totalorder %s23, 1
      %p146 = scmp.ne.s32.totalorder %s141, %s143
      %p147 = scmp.eq.s32.totalorder %s23, 0
      %p148 = por %p146, %p147
      %p149 = scmp.ne.s32.totalorder %s141, %s143
      %p150 = scmp.eq.s32.totalorder %s28, 1
      %p151 = por %p149, %p150
      %p152 = scmp.ne.s32.totalorder %s143, %s144
      %p153 = scmp.eq.s32.totalorder %s28, 0
      %p154 = por %p152, %p153
      %p155 = scmp.ne.s32.totalorder %s143, %s144
      %p156 = scmp.eq.s32.totalorder %s29, 1
      %p157 = por %p155, %p156
      %p159 = scmp.ne.s32.totalorder %s144, %s158
      %p160 = scmp.eq.s32.totalorder %s29, 0
      %p161 = por %p159, %p160
      %s163 = sadd.s32 %s162, 1
      %p166 = scmp.eq.s32.totalorder %s23, 1
      %p167 = scmp.ne.s32.totalorder %s162, %s164
      %p168 = scmp.eq.s32.totalorder %s23, 0
      %p169 = por %p167, %p168
      %p170 = scmp.ne.s32.totalorder %s162, %s164
      %p171 = scmp.eq.s32.totalorder %s28, 1
      %p172 = por %p170, %p171
      %p173 = scmp.ne.s32.totalorder %s164, %s165
      %p174 = scmp.eq.s32.totalorder %s28, 0
      %p175 = por %p173, %p174
      %p176 = scmp.ne.s32.totalorder %s164, %s165
      %p177 = scmp.eq.s32.totalorder %s29, 1
      %p178 = por %p176, %p177
      %p180 = scmp.ne.s32.totalorder %s165, %s179
      %p181 = scmp.eq.s32.totalorder %s29, 0
      %p182 = por %p180, %p181
      %s184 = sadd.s32 %s183, 1
      %p187 = scmp.eq.s32.totalorder %s23, 1
      %p188 = scmp.ne.s32.totalorder %s183, %s185
      %p189 = scmp.eq.s32.totalorder %s23, 0
      %p190 = por %p188, %p189
      %p191 = scmp.ne.s32.totalorder %s183, %s185
      %p192 = scmp.eq.s32.totalorder %s28, 1
      %p193 = por %p191, %p192
      %p194 = scmp.ne.s32.totalorder %s185, %s186
      %p195 = scmp.eq.s32.totalorder %s28, 0
      %p196 = por %p194, %p195
      %p197 = scmp.ne.s32.totalorder %s185, %s186
      %p198 = scmp.eq.s32.totalorder %s29, 1
      %p199 = por %p197, %p198
      %p201 = scmp.ne.s32.totalorder %s186, %s200
      %p202 = scmp.eq.s32.totalorder %s29, 0
      %p203 = por %p201, %p202
      %s205 = sadd.s32 %s204, 1
      %p208 = scmp.eq.s32.totalorder %s23, 1
      %p209 = scmp.ne.s32.totalorder %s204, %s206
      %p210 = scmp.eq.s32.totalorder %s23, 0
      %p211 = por %p209, %p210
      %p212 = scmp.ne.s32.totalorder %s204, %s206
      %p213 = scmp.eq.s32.totalorder %s28, 1
      %p214 = por %p212, %p213
      %p215 = scmp.ne.s32.totalorder %s206, %s207
      %p216 = scmp.eq.s32.totalorder %s28, 0
      %p217 = por %p215, %p216
      %p218 = scmp.ne.s32.totalorder %s206, %s207
      %p219 = scmp.eq.s32.totalorder %s29, 1
      %p220 = por %p218, %p219
      %p222 = scmp.ne.s32.totalorder %s207, %s221
      %p223 = scmp.eq.s32.totalorder %s29, 0
      %p224 = por %p222, %p223
      %s226 = sadd.s32 %s225, 1
      %p229 = scmp.eq.s32.totalorder %s23, 1
      %p230 = scmp.ne.s32.totalorder %s225, %s227
      %p231 = scmp.eq.s32.totalorder %s23, 0
      %p232 = por %p230, %p231
      %p233 = scmp.ne.s32.totalorder %s225, %s227
      %p234 = scmp.eq.s32.totalorder %s28, 1
      %p235 = por %p233, %p234
      %p236 = scmp.ne.s32.totalorder %s227, %s228
      %p237 = scmp.eq.s32.totalorder %s28, 0
      %p238 = por %p236, %p237
      %p239 = scmp.ne.s32.totalorder %s227, %s228
      %p240 = scmp.eq.s32.totalorder %s29, 1
      %p241 = por %p239, %p240
      %p243 = scmp.ne.s32.totalorder %s228, %s242
      %p244 = scmp.eq.s32.totalorder %s29, 0
      %p245 = por %p243, %p244
      %s247 = sadd.s32 %s246, 1
      %p250 = scmp.eq.s32.totalorder %s23, 1
      %p251 = scmp.ne.s32.totalorder %s246, %s248
      %p252 = scmp.eq.s32.totalorder %s23, 0
      %p253 = por %p251, %p252
      %p254 = scmp.ne.s32.totalorder %s246, %s248
      %p255 = scmp.eq.s32.totalorder %s28, 1
      %p256 = por %p254, %p255
      %p257 = scmp.ne.s32.totalorder %s248, %s249
      %p258 = scmp.eq.s32.totalorder %s28, 0
      %p259 = por %p257, %p258
      %p260 = scmp.ne.s32.totalorder %s248, %s249
      %p261 = scmp.eq.s32.totalorder %s29, 1
      %p262 = por %p260, %p261
      %p264 = scmp.ne.s32.totalorder %s249, %s263
      %p265 = scmp.eq.s32.totalorder %s29, 0
      %p266 = por %p264, %p265
      %s268 = sadd.s32 %s267, 1
      %p271 = scmp.eq.s32.totalorder %s23, 1
      %p272 = scmp.ne.s32.totalorder %s267, %s269
      %p273 = scmp.eq.s32.totalorder %s23, 0
      %p274 = por %p272, %p273
      %p275 = scmp.ne.s32.totalorder %s267, %s269
      %p276 = scmp.eq.s32.totalorder %s28, 1
      %p277 = por %p275, %p276
      %p278 = scmp.ne.s32.totalorder %s269, %s270
      %p279 = scmp.eq.s32.totalorder %s28, 0
      %p280 = por %p278, %p279
      %p281 = scmp.ne.s32.totalorder %s269, %s270
      %p282 = scmp.eq.s32.totalorder %s29, 1
      %p283 = por %p281, %p282
      %p285 = scmp.ne.s32.totalorder %s270, %s284
      %p286 = scmp.eq.s32.totalorder %s29, 0
      %p287 = por %p285, %p286
      %s288 = ssub.s32 %s23, %s30
      %p289 = scmp.eq.s32.totalorder %s288, 0
      %s291 = sadd.s32 %s290, 1
      %s292 = scalar_select %p289, %s290, %s291
      %p295 = pneg %p289
      %p296 = scmp.eq.s32.totalorder %s23, 1
      %p297 = por %p295, %p296
      %p298 = scmp.ne.s32.totalorder %s290, %s293
      %p299 = scmp.eq.s32.totalorder %s23, 0
      %p300 = por %p298, %p299
      %p301 = scmp.ne.s32.totalorder %s290, %s293
      %p302 = scmp.eq.s32.totalorder %s28, 1
      %p303 = por %p301, %p302
      %p304 = scmp.ne.s32.totalorder %s293, %s294
      %p305 = scmp.eq.s32.totalorder %s28, 0
      %p306 = por %p304, %p305
      %p307 = scmp.ne.s32.totalorder %s293, %s294
      %p308 = scmp.eq.s32.totalorder %s29, 1
      %p309 = por %p307, %p308
      %p311 = scmp.ne.s32.totalorder %s294, %s310
      %p312 = scmp.eq.s32.totalorder %s29, 0
      %p313 = por %p311, %p312
      %p314 = scmp.le.s32.totalorder 1, %s23
      %p315 = scmp.lt.s32.totalorder %s23, 3
      %p316 = pnand %p314, %p315
      %p317 = pneg %p316
      // Predicated region
      $region9: #{tpu_custom_call.1} parent=5 // pred_check
        _
      $region10: #{tpu_custom_call.1} parent=5 // pred_check_branch
        %319 = sbr.rel (%p316) target = $region12
      $region11: #{tpu_custom_call.1} parent=5 // pred_region
        %s320 = ssub.s32 %s23, 1
        // Predicated region
        $region13: #{tpu_custom_call.1} parent=11 // pred_check
          %p321 = pneg %p70
        $region14: #{tpu_custom_call.1} parent=11 // pred_check_branch
          %323 = sbr.rel (%p321) target = $region16
        $region15: #{tpu_custom_call.1} parent=11 // pred_region
          _
        $region16: #{tpu_custom_call.1} parent=11 // pred_fallthru
          _
        // Predicated region
        $region17: #{tpu_custom_call.1} parent=11 // pred_check
          %p324 = pneg %p91
        $region18: #{tpu_custom_call.1} parent=11 // pred_check_branch
          %326 = sbr.rel (%p324) target = $region20
        $region19: #{tpu_custom_call.1} parent=11 // pred_region
          _
        $region20: #{tpu_custom_call.1} parent=11 // pred_fallthru
          _
        // Predicated region
        $region21: #{tpu_custom_call.1} parent=11 // pred_check
          %p327 = pneg %p112
        $region22: #{tpu_custom_call.1} parent=11 // pred_check_branch
          %329 = sbr.rel (%p327) target = $region24
        $region23: #{tpu_custom_call.1} parent=11 // pred_region
          _
        $region24: #{tpu_custom_call.1} parent=11 // pred_fallthru
          _
        // Predicated region
        $region25: #{tpu_custom_call.1} parent=11 // pred_check
          %p330 = pneg %p133
        $region26: #{tpu_custom_call.1} parent=11 // pred_check_branch
          %332 = sbr.rel (%p330) target = $region28
        $region27: #{tpu_custom_call.1} parent=11 // pred_region
          _
        $region28: #{tpu_custom_call.1} parent=11 // pred_fallthru
          _
        // Predicated region
        $region29: #{tpu_custom_call.1} parent=11 // pred_check
          %p333 = pneg %p154
        $region30: #{tpu_custom_call.1} parent=11 // pred_check_branch
          %335 = sbr.rel (%p333) target = $region32
        $region31: #{tpu_custom_call.1} parent=11 // pred_region
          %s337 = ssub.s32 64, 64
          %338 = vsyncadd [#allocation3], %s337
          %s339 = sshll.u32 [#allocation2], 4
          %s340 = int_to_ptr.vmem [resolvable:$true] %s339
          %345 = dma.hbm_to_vmem [thread:$0]  %s5, 64, %s340, [#allocation3], 32, 32, 2
        $region32: #{tpu_custom_call.1} parent=11 // pred_fallthru
          _
        // Predicated region
        $region33: #{tpu_custom_call.1} parent=11 // pred_check
          %p346 = pneg %p175
        $region34: #{tpu_custom_call.1} parent=11 // pred_check_branch
          %348 = sbr.rel (%p346) target = $region36
        $region35: #{tpu_custom_call.1} parent=11 // pred_region
          %s350 = ssub.s32 20480, 20480
          %351 = vsyncadd [#allocation6], %s350
          %s352 = sshll.u32 [#allocation5], 4
          %s353 = int_to_ptr.vmem [resolvable:$true] %s352
          %358 = dma.hbm_to_vmem [thread:$0]  %s6, 20480, %s353, [#allocation6], 64, 64, 4
        $region36: #{tpu_custom_call.1} parent=11 // pred_fallthru
          _
        // Predicated region
        $region37: #{tpu_custom_call.1} parent=11 // pred_check
          %p359 = pneg %p196
        $region38: #{tpu_custom_call.1} parent=11 // pred_check_branch
          %361 = sbr.rel (%p359) target = $region40
        $region39: #{tpu_custom_call.1} parent=11 // pred_region
          _
        $region40: #{tpu_custom_call.1} parent=11 // pred_fallthru
          _
        // Predicated region
        $region41: #{tpu_custom_call.1} parent=11 // pred_check
          %p362 = pneg %p217
        $region42: #{tpu_custom_call.1} parent=11 // pred_check_branch
          %364 = sbr.rel (%p362) target = $region44
        $region43: #{tpu_custom_call.1} parent=11 // pred_region
          %s366 = ssub.s32 15360, 15360
          %367 = vsyncadd [#allocation6], %s366
          %s368 = sshll.u32 [#allocation7], 4
          %s369 = int_to_ptr.vmem [resolvable:$true] %s368
          %374 = dma.hbm_to_vmem [thread:$0]  %s8, 15360, %s369, [#allocation6], 64, 64, 4
        $region44: #{tpu_custom_call.1} parent=11 // pred_fallthru
          _
        // Predicated region
        $region45: #{tpu_custom_call.1} parent=11 // pred_check
          %p375 = pneg %p238
        $region46: #{tpu_custom_call.1} parent=11 // pred_check_branch
          %377 = sbr.rel (%p375) target = $region48
        $region47: #{tpu_custom_call.1} parent=11 // pred_region
          _
        $region48: #{tpu_custom_call.1} parent=11 // pred_fallthru
          _
        // Predicated region
        $region49: #{tpu_custom_call.1} parent=11 // pred_check
          %p378 = pneg %p259
        $region50: #{tpu_custom_call.1} parent=11 // pred_check_branch
          %380 = sbr.rel (%p378) target = $region52
        $region51: #{tpu_custom_call.1} parent=11 // pred_region
          _
        $region52: #{tpu_custom_call.1} parent=11 // pred_fallthru
          _
        // Predicated region
        $region53: #{tpu_custom_call.1} parent=11 // pred_check
          %p381 = pneg %p280
        $region54: #{tpu_custom_call.1} parent=11 // pred_check_branch
          %383 = sbr.rel (%p381) target = $region56
        $region55: #{tpu_custom_call.1} parent=11 // pred_region
          _
        $region56: #{tpu_custom_call.1} parent=11 // pred_fallthru
          _
      $region12: #{tpu_custom_call.1} parent=5 // pred_fallthru
        _
      %p384 = scmp.lt.s32.totalorder %s23, 2
      // Predicated region
      $region57: #{tpu_custom_call.1} parent=5 // pred_check
        %p385 = pneg %p384
      $region58: #{tpu_custom_call.1} parent=5 // pred_check_branch
        %387 = sbr.rel (%p385) target = $region60
      $region59: #{tpu_custom_call.1} parent=5 // pred_region
        // Predicated region
        $region61: #{tpu_custom_call.1} parent=59 // pred_check
          %p388 = pneg %p43
        $region62: #{tpu_custom_call.1} parent=59 // pred_check_branch
          %390 = sbr.rel (%p388) target = $region64
        $region63: #{tpu_custom_call.1} parent=59 // pred_region
          %s391 = smul.u32 16, %s23
          %p392 = scmp.lt.s32.totalorder %s391, 31
          %s393 = scalar_select %p392, %s391, 31
          %s394 = smul.addr %s393, 8
          %s395 = scalar_lea.vmem %s0, %s394
          %s396 = smul.u32 16, %s23
        $region64: #{tpu_custom_call.1} parent=59 // pred_fallthru
          _
      $region60: #{tpu_custom_call.1} parent=5 // pred_fallthru
        _
      %p397 = scmp.le.s32.totalorder 1, %s23
      %p398 = scmp.lt.s32.totalorder %s23, 3
      %p399 = pnand %p397, %p398
      %p400 = pneg %p399
      // Predicated region
      $region65: #{tpu_custom_call.1} parent=5 // pred_check
        _
      $region66: #{tpu_custom_call.1} parent=5 // pred_check_branch
        %402 = sbr.rel (%p399) target = $region68
      $region67: #{tpu_custom_call.1} parent=5 // pred_region
        %s403 = ssub.s32 %s23, 1
        // Predicated region
        $region69: #{tpu_custom_call.1} parent=67 // pred_check
          %p404 = pneg %p154
        $region70: #{tpu_custom_call.1} parent=67 // pred_check_branch
          %406 = sbr.rel (%p404) target = $region72
        $region71: #{tpu_custom_call.1} parent=67 // pred_region
          %407 = dma.done [#allocation3], 64
        $region72: #{tpu_custom_call.1} parent=67 // pred_fallthru
          _
        // Predicated region
        $region73: #{tpu_custom_call.1} parent=67 // pred_check
          %p408 = pneg %p175
        $region74: #{tpu_custom_call.1} parent=67 // pred_check_branch
          %410 = sbr.rel (%p408) target = $region76
        $region75: #{tpu_custom_call.1} parent=67 // pred_region
          %411 = dma.done [#allocation6], 20480
        $region76: #{tpu_custom_call.1} parent=67 // pred_fallthru
          _
        // Predicated region
        $region77: #{tpu_custom_call.1} parent=67 // pred_check
          %p412 = pneg %p217
        $region78: #{tpu_custom_call.1} parent=67 // pred_check_branch
          %414 = sbr.rel (%p412) target = $region80
        $region79: #{tpu_custom_call.1} parent=67 // pred_region
          %415 = dma.done [#allocation6], 15360
        $region80: #{tpu_custom_call.1} parent=67 // pred_fallthru
          _
        %s416 = smul.u32 16, %s28
        %p417 = scmp.lt.s32.totalorder %s416, 31
        %s418 = scalar_select %p417, %s416, 31
        %s419 = smul.addr %s418, 8
        %s420 = scalar_lea.vmem %s0, %s419
        %p421 = pneg %p49
        %p422 = pneg %p46
        %p423 = pneg %p70
        %p424 = pneg %p67
        %p425 = pneg %p91
        %p426 = pneg %p88
        %p427 = pneg %p112
        %p428 = pneg %p109
        %p429 = pneg %p133
        %p430 = pneg %p130
        %p431 = pneg %p154
        %p432 = pneg %p151
        %p433 = pneg %p175
        %p434 = pneg %p172
        %p435 = pneg %p196
        %p436 = pneg %p193
        %p437 = pneg %p217
        %p438 = pneg %p214
        %p439 = pneg %p238
        %p440 = pneg %p235
        %p441 = pneg %p259
        %p442 = pneg %p256
        %p443 = pneg %p280
        %p444 = pneg %p277
        %p445 = pneg %p306
        %p446 = pneg %p303
        %s447 = sand.u32 %s293, 1
        %s448 = scalar_lea.sflag [#allocation4], %s447
        %s449 = sand.u32 %s293, 1
        %s450 = smul.addr %s449, 128
        %s451 = scalar_lea.vmem [#allocation8], %s450
        %s452 = smul.u32 16, %s28
        %p453 = scmp.lt.s32.totalorder %s452, 31
        %s454 = scalar_select %p453, %s452, 31
        %s455 = smul.addr %s454, 8
        %s456 = scalar_lea.vmem %s0, %s455
        %s457 = smul.u32 16, %s28
        %s458 = smul.u32 16, %s28
        %v460 = vld [vmem:[%s456] sm:$0xff]
        %v461 = vld [vmem:[%s456 + $0x8] sm:$0xff]
        %v462 = vld [vmem:[%s456 + $0x10] sm:$0xff]
        %v463 = vld [vmem:[%s456 + $0x18] sm:$0xff]
        %v464 = vld [vmem:[%s456 + $0x20] sm:$0xff]
        %v465 = vld [vmem:[%s456 + $0x28] sm:$0xff]
        %v466 = vld [vmem:[%s456 + $0x30] sm:$0xff]
        %v467 = vld [vmem:[%s456 + $0x38] sm:$0xff]
        %v468 = vld [vmem:[%s456 + $0x40] sm:$0xff]
        %v469 = vld [vmem:[%s456 + $0x48] sm:$0xff]
        %v470 = vld [vmem:[%s456 + $0x50] sm:$0xff]
        %v471 = vld [vmem:[%s456 + $0x58] sm:$0xff]
        %v472 = vld [vmem:[%s456 + $0x60] sm:$0xff]
        %v473 = vld [vmem:[%s456 + $0x68] sm:$0xff]
        %v474 = vld [vmem:[%s456 + $0x70] sm:$0xff]
        %v475 = vld [vmem:[%s456 + $0x78] sm:$0xff]
        %v476 = vpack.c.bf16 %v461, %v460
        %v477 = vpack.c.bf16 %v463, %v462
        %v478 = vpack.c.bf16 %v465, %v464
        %v479 = vpack.c.bf16 %v467, %v466
        %v480 = vpack.c.bf16 %v469, %v468
        %v481 = vpack.c.bf16 %v471, %v470
        %v482 = vpack.c.bf16 %v473, %v472
        %v483 = vpack.c.bf16 %v475, %v474
        %v484 = vld [vmem:[%s2] sm:$0xf]
        %v485 = vld [vmem:[%s2 + $0x4] sm:$0xf]
        %v486 = vld [vmem:[%s2 + $0x8] sm:$0xf]
        %v487 = vld [vmem:[%s2 + $0xc] sm:$0xf]
        %v488 = vld [vmem:[%s2 + $0x10] sm:$0xf]
        %v489 = vld [vmem:[%s2 + $0x14] sm:$0xf]
        %v490 = vld [vmem:[%s2 + $0x18] sm:$0xf]
        %v491 = vld [vmem:[%s2 + $0x1c] sm:$0xf]
        %v500 = vunpack.c.l.b16 %v484
        %v501 = vunpack.c.l.b16 %v485
        %v502 = vunpack.c.l.b16 %v486
        %v503 = vunpack.c.l.b16 %v487
        %v504 = vunpack.c.l.b16 %v488
        %v505 = vunpack.c.l.b16 %v489
        %v506 = vunpack.c.l.b16 %v490
        %v507 = vunpack.c.l.b16 %v491
        %v508 = vpack.c.b16 %v501, %v500
        %v509 = vpack.c.b16 %v503, %v502
        %v510 = vpack.c.b16 %v505, %v504
        %v511 = vpack.c.b16 %v507, %v506
        %vm516 = vcmask 523264
        %v518 = vsel %vm516, %v476, 0
        %v521 = vsel %vm516, %v477, 0
        %v524 = vsel %vm516, %v478, 0
        %v527 = vsel %vm516, %v479, 0
        %v530 = vsel %vm516, %v480, 0
        %v533 = vsel %vm516, %v481, 0
        %v536 = vsel %vm516, %v482, 0
        %v539 = vsel %vm516, %v483, 0
        %541 = vmatprep.subr.bf16.mxu0 0
        %542 = vmatpush1.bf16.msra.mxu0 %v508
        %543 = vmatprep.subr.bf16.mxu0 0
        %544 = vmatpush1.bf16.msra.mxu0 %v509
        %545 = vmatprep.subr.bf16.mxu0 0
        %546 = vmatpush1.bf16.msra.mxu0 %v510
        %547 = vmatprep.subr.bf16.mxu0 0
        %548 = vmatpush1.bf16.msra.mxu0 %v511
        %549 = vmatprep.subr.bf16.mxu0 0
        %550 = vmatpush1.bf16.msra.mxu0 0
        %551 = vmatprep.subr.bf16.mxu0 0
        %552 = vmatpush1.bf16.msra.mxu0 0
        %553 = vmatprep.subr.bf16.mxu0 0
        %554 = vmatpush1.bf16.msra.mxu0 0
        %555 = vmatprep.subr.bf16.mxu0 0
        %556 = vmatpush1.bf16.msra.mxu0 0
        %557 = vmatprep.subr.bf16.mxu0 0
        %558 = vmatpush1.bf16.msra.mxu0 0
        %559 = vmatprep.subr.bf16.mxu0 0
        %560 = vmatpush1.bf16.msra.mxu0 0
        %561 = vmatprep.subr.bf16.mxu0 0
        %562 = vmatpush1.bf16.msra.mxu0 0
        %563 = vmatprep.subr.bf16.mxu0 0
        %564 = vmatpush1.bf16.msra.mxu0 0
        %565 = vmatprep.subr.bf16.mxu0 0
        %566 = vmatpush1.bf16.msra.mxu0 0
        %567 = vmatprep.subr.bf16.mxu0 0
        %568 = vmatpush1.bf16.msra.mxu0 0
        %569 = vmatprep.subr.bf16.mxu0 0
        %570 = vmatpush1.bf16.msra.mxu0 0
        %571 = vmatprep.subr.bf16.mxu0 0
        %572 = vmatpush1.bf16.msra.mxu0 0
        %573 = vmatprep.mubr.bf16.mxu0 0
        %574 = vmatmul.mubr.bf16.gmra.mrb[0].mxu0 %v518
        %v575 = vpop.f32.mrb[0].mxu0
        %v576 = vadd.f32 0.0, %v575
        %v577 = vpop.f32.mrb[0].mxu0
        %v578 = vpop.f32.mrb[0].mxu0
        %v579 = vadd.f32 0.0, %v578
        %v580 = vpop.f32.mrb[0].mxu0
        %581 = vmatprep.mubr.bf16.mxu0 0
        %582 = vmatmul.mubr.bf16.gmra.mrb[0].mxu0 %v521
        %v583 = vpop.f32.mrb[0].mxu0
        %v584 = vadd.f32 0.0, %v583
        %v585 = vpop.f32.mrb[0].mxu0
        %v586 = vpop.f32.mrb[0].mxu0
        %v587 = vadd.f32 0.0, %v586
        %v588 = vpop.f32.mrb[0].mxu0
        %589 = vmatprep.mubr.bf16.mxu0 0
        %590 = vmatmul.mubr.bf16.gmra.mrb[0].mxu0 %v524
        %v591 = vpop.f32.mrb[0].mxu0
        %v592 = vadd.f32 0.0, %v591
        %v593 = vpop.f32.mrb[0].mxu0
        %v594 = vpop.f32.mrb[0].mxu0
        %v595 = vadd.f32 0.0, %v594
        %v596 = vpop.f32.mrb[0].mxu0
        %597 = vmatprep.mubr.bf16.mxu0 0
        %598 = vmatmul.mubr.bf16.gmra.mrb[0].mxu0 %v527
        %v599 = vpop.f32.mrb[0].mxu0
        %v600 = vadd.f32 0.0, %v599
        %v601 = vpop.f32.mrb[0].mxu0
        %v602 = vpop.f32.mrb[0].mxu0
        %v603 = vadd.f32 0.0, %v602
        %v604 = vpop.f32.mrb[0].mxu0
        %605 = vmatprep.mubr.bf16.mxu0 0
        %606 = vmatmul.mubr.bf16.gmra.mrb[0].mxu0 %v530
        %v607 = vpop.f32.mrb[0].mxu0
        %v608 = vadd.f32 0.0, %v607
        %v609 = vpop.f32.mrb[0].mxu0
        %v610 = vpop.f32.mrb[0].mxu0
        %v611 = vadd.f32 0.0, %v610
        %v612 = vpop.f32.mrb[0].mxu0
        %613 = vmatprep.mubr.bf16.mxu0 0
        %614 = vmatmul.mubr.bf16.gmra.mrb[0].mxu0 %v533
        %v615 = vpop.f32.mrb[0].mxu0
        %v616 = vadd.f32 0.0, %v615
        %v617 = vpop.f32.mrb[0].mxu0
        %v618 = vpop.f32.mrb[0].mxu0
        %v619 = vadd.f32 0.0, %v618
        %v620 = vpop.f32.mrb[0].mxu0
        %621 = vmatprep.mubr.bf16.mxu0 0
        %622 = vmatmul.mubr.bf16.gmra.mrb[0].mxu0 %v536
        %v623 = vpop.f32.mrb[0].mxu0
        %v624 = vadd.f32 0.0, %v623
        %v625 = vpop.f32.mrb[0].mxu0
        %v626 = vpop.f32.mrb[0].mxu0
        %v627 = vadd.f32 0.0, %v626
        %v628 = vpop.f32.mrb[0].mxu0
        %629 = vmatprep.mubr.bf16.mxu0 0
        %630 = vmatmul.mubr.bf16.gmra.mrb[0].mxu0 %v539
        %v631 = vpop.f32.mrb[0].mxu0
        %v632 = vadd.f32 0.0, %v631
        %v633 = vpop.f32.mrb[0].mxu0
        %v634 = vpop.f32.mrb[0].mxu0
        %v635 = vadd.f32 0.0, %v634
        %v636 = vpop.f32.mrb[0].mxu0
        %637 = vdwg.mxu0
        %v638 = vld [vmem:[%s3] sm:$0x3]
        %v639 = vlaneseq
        %v640 = vshrl.u32 %v639, 7
        %v641 = vsub.s32 0, %v640
        %v642 = vrot.slane %v638, %v641
        %v643 = vmul.f32 %v576, %v642
        %v644 = vmul.f32 %v579, %v642
        %v645 = vmul.f32 %v584, %v642
        %v646 = vmul.f32 %v587, %v642
        %v647 = vmul.f32 %v592, %v642
        %v648 = vmul.f32 %v595, %v642
        %v649 = vmul.f32 %v600, %v642
        %v650 = vmul.f32 %v603, %v642
        %v651 = vmul.f32 %v608, %v642
        %v652 = vmul.f32 %v611, %v642
        %v653 = vmul.f32 %v616, %v642
        %v654 = vmul.f32 %v619, %v642
        %v655 = vmul.f32 %v624, %v642
        %v656 = vmul.f32 %v627, %v642
        %v657 = vmul.f32 %v632, %v642
        %v658 = vmul.f32 %v635, %v642
        %v659 = vlaneseq
        %v660 = vshrl.u32 %v659, 7
        %v661 = vsub.s32 1, %v660
        %v662 = vrot.slane %v638, %v661
        %v663 = vadd.f32 %v643, %v662
        %v664 = vadd.f32 %v644, %v662
        %v665 = vadd.f32 %v645, %v662
        %v666 = vadd.f32 %v646, %v662
        %v667 = vadd.f32 %v647, %v662
        %v668 = vadd.f32 %v648, %v662
        %v669 = vadd.f32 %v649, %v662
        %v670 = vadd.f32 %v650, %v662
        %v671 = vadd.f32 %v651, %v662
        %v672 = vadd.f32 %v652, %v662
        %v673 = vadd.f32 %v653, %v662
        %v674 = vadd.f32 %v654, %v662
        %v675 = vadd.f32 %v655, %v662
        %v676 = vadd.f32 %v656, %v662
        %v677 = vadd.f32 %v657, %v662
        %v678 = vadd.f32 %v658, %v662
        %vm679 = vcmp.gt.f32.partialorder %v663, 0.0
        %vm680 = vcmp.gt.f32.partialorder %v664, 0.0
        %vm681 = vcmp.gt.f32.partialorder %v665, 0.0
        %vm682 = vcmp.gt.f32.partialorder %v666, 0.0
        %vm683 = vcmp.gt.f32.partialorder %v667, 0.0
        %vm684 = vcmp.gt.f32.partialorder %v668, 0.0
        %vm685 = vcmp.gt.f32.partialorder %v669, 0.0
        %vm686 = vcmp.gt.f32.partialorder %v670, 0.0
        %vm687 = vcmp.gt.f32.partialorder %v671, 0.0
        %vm688 = vcmp.gt.f32.partialorder %v672, 0.0
        %vm689 = vcmp.gt.f32.partialorder %v673, 0.0
        %vm690 = vcmp.gt.f32.partialorder %v674, 0.0
        %vm691 = vcmp.gt.f32.partialorder %v675, 0.0
        %vm692 = vcmp.gt.f32.partialorder %v676, 0.0
        %vm693 = vcmp.gt.f32.partialorder %v677, 0.0
        %vm694 = vcmp.gt.f32.partialorder %v678, 0.0
        %v695 = vmul.f32 %v663, 0.2
        %v696 = vmul.f32 %v664, 0.2
        %v697 = vmul.f32 %v665, 0.2
        %v698 = vmul.f32 %v666, 0.2
        %v699 = vmul.f32 %v667, 0.2
        %v700 = vmul.f32 %v668, 0.2
        %v701 = vmul.f32 %v669, 0.2
        %v702 = vmul.f32 %v670, 0.2
        %v703 = vmul.f32 %v671, 0.2
        %v704 = vmul.f32 %v672, 0.2
        %v705 = vmul.f32 %v673, 0.2
        %v706 = vmul.f32 %v674, 0.2
        %v707 = vmul.f32 %v675, 0.2
        %v708 = vmul.f32 %v676, 0.2
        %v709 = vmul.f32 %v677, 0.2
        %v710 = vmul.f32 %v678, 0.2
        %v711 = vsel %vm679, %v663, %v695
        %v712 = vsel %vm680, %v664, %v696
        %v713 = vsel %vm681, %v665, %v697
        %v714 = vsel %vm682, %v666, %v698
        %v715 = vsel %vm683, %v667, %v699
        %v716 = vsel %vm684, %v668, %v700
        %v717 = vsel %vm685, %v669, %v701
        %v718 = vsel %vm686, %v670, %v702
        %v719 = vsel %vm687, %v671, %v703
        %v720 = vsel %vm688, %v672, %v704
        %v721 = vsel %vm689, %v673, %v705
        %v722 = vsel %vm690, %v674, %v706
        %v723 = vsel %vm691, %v675, %v707
        %v724 = vsel %vm692, %v676, %v708
        %v725 = vsel %vm693, %v677, %v709
        %v726 = vsel %vm694, %v678, %v710
        %v727 = vpack.c.bf16 %v712, %v711
        %v728 = vpack.c.bf16 %v714, %v713
        %v729 = vpack.c.bf16 %v716, %v715
        %v730 = vpack.c.bf16 %v718, %v717
        %v731 = vpack.c.bf16 %v720, %v719
        %v732 = vpack.c.bf16 %v722, %v721
        %v733 = vpack.c.bf16 %v724, %v723
        %v734 = vpack.c.bf16 %v726, %v725
        %s735 = scalar_lea.vmem %s4, 64
        %v736 = vld [vmem:[%s735] sm:$0xf]
        %v737 = vld [vmem:[%s735 + $0x4] sm:$0xf]
        %v738 = vld [vmem:[%s735 + $0x8] sm:$0xf]
        %v739 = vld [vmem:[%s735 + $0xc] sm:$0xf]
        %v740 = vld [vmem:[%s735 + $0x10] sm:$0xf]
        %v741 = vld [vmem:[%s735 + $0x14] sm:$0xf]
        %v742 = vld [vmem:[%s735 + $0x18] sm:$0xf]
        %v743 = vld [vmem:[%s735 + $0x1c] sm:$0xf]
        %v744 = vld [vmem:[%s735 + $0x20] sm:$0xf]
        %v745 = vld [vmem:[%s735 + $0x24] sm:$0xf]
        %v746 = vld [vmem:[%s735 + $0x28] sm:$0xf]
        %v747 = vld [vmem:[%s735 + $0x2c] sm:$0xf]
        %v748 = vld [vmem:[%s735 + $0x30] sm:$0xf]
        %v749 = vld [vmem:[%s735 + $0x34] sm:$0xf]
        %v750 = vld [vmem:[%s735 + $0x38] sm:$0xf]
        %v751 = vld [vmem:[%s735 + $0x3c] sm:$0xf]
        %v752 = vld [vmem:[%s4] sm:$0xf]
        %v753 = vld [vmem:[%s4 + $0x4] sm:$0xf]
        %v754 = vld [vmem:[%s4 + $0x8] sm:$0xf]
        %v755 = vld [vmem:[%s4 + $0xc] sm:$0xf]
        %v756 = vld [vmem:[%s4 + $0x10] sm:$0xf]
        %v757 = vld [vmem:[%s4 + $0x14] sm:$0xf]
        %v758 = vld [vmem:[%s4 + $0x18] sm:$0xf]
        %v759 = vld [vmem:[%s4 + $0x1c] sm:$0xf]
        %v760 = vld [vmem:[%s4 + $0x20] sm:$0xf]
        %v761 = vld [vmem:[%s4 + $0x24] sm:$0xf]
        %v762 = vld [vmem:[%s4 + $0x28] sm:$0xf]
        %v763 = vld [vmem:[%s4 + $0x2c] sm:$0xf]
        %v764 = vld [vmem:[%s4 + $0x30] sm:$0xf]
        %v765 = vld [vmem:[%s4 + $0x34] sm:$0xf]
        %v766 = vld [vmem:[%s4 + $0x38] sm:$0xf]
        %v767 = vld [vmem:[%s4 + $0x3c] sm:$0xf]
        %v784 = vunpack.c.l.b16 %v752
        %v785 = vunpack.c.l.b16 %v753
        %v786 = vunpack.c.l.b16 %v754
        %v787 = vunpack.c.l.b16 %v755
        %v788 = vunpack.c.l.b16 %v756
        %v789 = vunpack.c.l.b16 %v757
        %v790 = vunpack.c.l.b16 %v758
        %v791 = vunpack.c.l.b16 %v759
        %v792 = vunpack.c.l.b16 %v760
        %v793 = vunpack.c.l.b16 %v761
        %v794 = vunpack.c.l.b16 %v762
        %v795 = vunpack.c.l.b16 %v763
        %v796 = vunpack.c.l.b16 %v764
        %v797 = vunpack.c.l.b16 %v765
        %v798 = vunpack.c.l.b16 %v766
        %v799 = vunpack.c.l.b16 %v767
        %v800 = vpack.c.b16 %v785, %v784
        %v801 = vpack.c.b16 %v787, %v786
        %v802 = vpack.c.b16 %v789, %v788
        %v803 = vpack.c.b16 %v791, %v790
        %v804 = vpack.c.b16 %v793, %v792
        %v805 = vpack.c.b16 %v795, %v794
        %v806 = vpack.c.b16 %v797, %v796
        %v807 = vpack.c.b16 %v799, %v798
        %816 = vmatprep.subr.bf16.mxu0 0
        %817 = vmatpush1.bf16.msra.mxu0 %v800
        %818 = vmatprep.subr.bf16.mxu0 0
        %819 = vmatpush1.bf16.msra.mxu0 %v801
        %820 = vmatprep.subr.bf16.mxu0 0
        %821 = vmatpush1.bf16.msra.mxu0 %v802
        %822 = vmatprep.subr.bf16.mxu0 0
        %823 = vmatpush1.bf16.msra.mxu0 %v803
        %824 = vmatprep.subr.bf16.mxu0 0
        %825 = vmatpush1.bf16.msra.mxu0 %v804
        %826 = vmatprep.subr.bf16.mxu0 0
        %827 = vmatpush1.bf16.msra.mxu0 %v805
        %828 = vmatprep.subr.bf16.mxu0 0
        %829 = vmatpush1.bf16.msra.mxu0 %v806
        %830 = vmatprep.subr.bf16.mxu0 0
        %831 = vmatpush1.bf16.msra.mxu0 %v807
        %832 = vmatprep.subr.bf16.mxu0 0
        %833 = vmatpush1.bf16.msra.mxu0 0
        %834 = vmatprep.subr.bf16.mxu0 0
        %835 = vmatpush1.bf16.msra.mxu0 0
        %836 = vmatprep.subr.bf16.mxu0 0
        %837 = vmatpush1.bf16.msra.mxu0 0
        %838 = vmatprep.subr.bf16.mxu0 0
        %839 = vmatpush1.bf16.msra.mxu0 0
        %840 = vmatprep.subr.bf16.mxu0 0
        %841 = vmatpush1.bf16.msra.mxu0 0
        %842 = vmatprep.subr.bf16.mxu0 0
        %843 = vmatpush1.bf16.msra.mxu0 0
        %844 = vmatprep.subr.bf16.mxu0 0
        %845 = vmatpush1.bf16.msra.mxu0 0
        %846 = vmatprep.subr.bf16.mxu0 0
        %847 = vmatpush1.bf16.msra.mxu0 0
        %848 = vmatprep.mubr.bf16.mxu0 0
        %849 = vmatmul.mubr.bf16.gmra.mrb[0].mxu0 %v727
        %v850 = vpop.f32.mrb[0].mxu0
        %v851 = vadd.f32 0.0, %v850
        %v852 = vpop.f32.mrb[0].mxu0
        %v853 = vpop.f32.mrb[0].mxu0
        %v854 = vadd.f32 0.0, %v853
        %v855 = vpop.f32.mrb[0].mxu0
        %856 = vmatprep.mubr.bf16.mxu0 0
        %857 = vmatmul.mubr.bf16.gmra.mrb[0].mxu0 %v728
        %v858 = vpop.f32.mrb[0].mxu0
        %v859 = vadd.f32 0.0, %v858
        %v860 = vpop.f32.mrb[0].mxu0
        %v861 = vpop.f32.mrb[0].mxu0
        %v862 = vadd.f32 0.0, %v861
        %v863 = vpop.f32.mrb[0].mxu0
        %864 = vmatprep.mubr.bf16.mxu0 0
        %865 = vmatmul.mubr.bf16.gmra.mrb[0].mxu0 %v729
        %v866 = vpop.f32.mrb[0].mxu0
        %v867 = vadd.f32 0.0, %v866
        %v868 = vpop.f32.mrb[0].mxu0
        %v869 = vpop.f32.mrb[0].mxu0
        %v870 = vadd.f32 0.0, %v869
        %v871 = vpop.f32.mrb[0].mxu0
        %872 = vmatprep.mubr.bf16.mxu0 0
        %873 = vmatmul.mubr.bf16.gmra.mrb[0].mxu0 %v730
        %v874 = vpop.f32.mrb[0].mxu0
        %v875 = vadd.f32 0.0, %v874
        %v876 = vpop.f32.mrb[0].mxu0
        %v877 = vpop.f32.mrb[0].mxu0
        %v878 = vadd.f32 0.0, %v877
        %v879 = vpop.f32.mrb[0].mxu0
        %880 = vmatprep.mubr.bf16.mxu0 0
        %881 = vmatmul.mubr.bf16.gmra.mrb[0].mxu0 %v731
        %v882 = vpop.f32.mrb[0].mxu0
        %v883 = vadd.f32 0.0, %v882
        %v884 = vpop.f32.mrb[0].mxu0
        %v885 = vpop.f32.mrb[0].mxu0
        %v886 = vadd.f32 0.0, %v885
        %v887 = vpop.f32.mrb[0].mxu0
        %888 = vmatprep.mubr.bf16.mxu0 0
        %889 = vmatmul.mubr.bf16.gmra.mrb[0].mxu0 %v732
        %v890 = vpop.f32.mrb[0].mxu0
        %v891 = vadd.f32 0.0, %v890
        %v892 = vpop.f32.mrb[0].mxu0
        %v893 = vpop.f32.mrb[0].mxu0
        %v894 = vadd.f32 0.0, %v893
        %v895 = vpop.f32.mrb[0].mxu0
        %896 = vmatprep.mubr.bf16.mxu0 0
        %897 = vmatmul.mubr.bf16.gmra.mrb[0].mxu0 %v733
        %v898 = vpop.f32.mrb[0].mxu0
        %v899 = vadd.f32 0.0, %v898
        %v900 = vpop.f32.mrb[0].mxu0
        %v901 = vpop.f32.mrb[0].mxu0
        %v902 = vadd.f32 0.0, %v901
        %v903 = vpop.f32.mrb[0].mxu0
        %904 = vmatprep.mubr.bf16.mxu0 0
        %905 = vmatmul.mubr.bf16.gmra.mrb[0].mxu0 %v734
        %v906 = vpop.f32.mrb[0].mxu0
        %v907 = vadd.f32 0.0, %v906
        %v908 = vpop.f32.mrb[0].mxu0
        %v909 = vpop.f32.mrb[0].mxu0
        %v910 = vadd.f32 0.0, %v909
        %v911 = vpop.f32.mrb[0].mxu0
        %912 = vdwg.mxu0
        %v913 = vrot.slane %v851, 7
        %v914 = vrot.slane %v854, 7
        %v915 = vrot.slane %v859, 7
        %v916 = vrot.slane %v862, 7
        %v917 = vrot.slane %v867, 7
        %v918 = vrot.slane %v870, 7
        %v919 = vrot.slane %v875, 7
        %v920 = vrot.slane %v878, 7
        %v921 = vrot.slane %v883, 7
        %v922 = vrot.slane %v886, 7
        %v923 = vrot.slane %v891, 7
        %v924 = vrot.slane %v894, 7
        %v925 = vrot.slane %v899, 7
        %v926 = vrot.slane %v902, 7
        %v927 = vrot.slane %v907, 7
        %v928 = vrot.slane %v910, 7
        %v929 = vlaneseq
        %v930 = vshrl.u32 %v929, 7
        %vm931 = vcmp.lt.s32.totalorder %v930, 1
        %v932 = vsel %vm931, %v927, %v928
        %v933 = vsel %vm931, %v926, %v927
        %v934 = vsel %vm931, %v925, %v926
        %v935 = vsel %vm931, %v924, %v925
        %v936 = vsel %vm931, %v923, %v924
        %v937 = vsel %vm931, %v922, %v923
        %v938 = vsel %vm931, %v921, %v922
        %v939 = vsel %vm931, %v920, %v921
        %v940 = vsel %vm931, %v919, %v920
        %v941 = vsel %vm931, %v918, %v919
        %v942 = vsel %vm931, %v917, %v918
        %v943 = vsel %vm931, %v916, %v917
        %v944 = vsel %vm931, %v915, %v916
        %v945 = vsel %vm931, %v914, %v915
        %v946 = vsel %vm931, %v913, %v914
        %v947 = vsel %vm931, %v928, %v913
        %v948 = vadd.s32 %v930, 8
        %v949 = vadd.s32 %v930, 16
        %v950 = vadd.s32 %v930, 24
        %v951 = vadd.s32 %v930, 32
        %v952 = vadd.s32 %v930, 40
        %v953 = vadd.s32 %v930, 48
        %v954 = vadd.s32 %v930, 56
        %v955 = vadd.s32 %v930, 64
        %v956 = vadd.s32 %v930, 72
        %v957 = vadd.s32 %v930, 80
        %v958 = vadd.s32 %v930, 88
        %v959 = vadd.s32 %v930, 96
        %v960 = vadd.s32 %v930, 104
        %v961 = vadd.s32 %v930, 112
        %v962 = vadd.s32 %v930, 120
        %vm963 = vcmp.lt.s32.totalorder %v930, 0
        %v964 = vsub.s32 0, %v930
        %v965 = vsel %vm963, %v964, %v930
        %v966 = vshrl.u32 %v965, 6
        %v967 = vand.u32 %v965, 63
        %v968 = vsub.s32 0, %v967
        %v969 = vsel %vm963, %v968, %v967
        %vm970 = vcmp.lt.s32.totalorder %v948, 0
        %v971 = vsub.s32 0, %v948
        %v972 = vsel %vm970, %v971, %v948
        %v973 = vshrl.u32 %v972, 6
        %v974 = vand.u32 %v972, 63
        %v975 = vsub.s32 0, %v974
        %v976 = vsel %vm970, %v975, %v974
        %vm977 = vcmp.lt.s32.totalorder %v949, 0
        %v978 = vsub.s32 0, %v949
        %v979 = vsel %vm977, %v978, %v949
        %v980 = vshrl.u32 %v979, 6
        %v981 = vand.u32 %v979, 63
        %v982 = vsub.s32 0, %v981
        %v983 = vsel %vm977, %v982, %v981
        %vm984 = vcmp.lt.s32.totalorder %v950, 0
        %v985 = vsub.s32 0, %v950
        %v986 = vsel %vm984, %v985, %v950
        %v987 = vshrl.u32 %v986, 6
        %v988 = vand.u32 %v986, 63
        %v989 = vsub.s32 0, %v988
        %v990 = vsel %vm984, %v989, %v988
        %vm991 = vcmp.lt.s32.totalorder %v951, 0
        %v992 = vsub.s32 0, %v951
        %v993 = vsel %vm991, %v992, %v951
        %v994 = vshrl.u32 %v993, 6
        %v995 = vand.u32 %v993, 63
        %v996 = vsub.s32 0, %v995
        %v997 = vsel %vm991, %v996, %v995
        %vm998 = vcmp.lt.s32.totalorder %v952, 0
        %v999 = vsub.s32 0, %v952
        %v1000 = vsel %vm998, %v999, %v952
        %v1001 = vshrl.u32 %v1000, 6
        %v1002 = vand.u32 %v1000, 63
        %v1003 = vsub.s32 0, %v1002
        %v1004 = vsel %vm998, %v1003, %v1002
        %vm1005 = vcmp.lt.s32.totalorder %v953, 0
        %v1006 = vsub.s32 0, %v953
        %v1007 = vsel %vm1005, %v1006, %v953
        %v1008 = vshrl.u32 %v1007, 6
        %v1009 = vand.u32 %v1007, 63
        %v1010 = vsub.s32 0, %v1009
        %v1011 = vsel %vm1005, %v1010, %v1009
        %vm1012 = vcmp.lt.s32.totalorder %v954, 0
        %v1013 = vsub.s32 0, %v954
        %v1014 = vsel %vm1012, %v1013, %v954
        %v1015 = vshrl.u32 %v1014, 6
        %v1016 = vand.u32 %v1014, 63
        %v1017 = vsub.s32 0, %v1016
        %v1018 = vsel %vm1012, %v1017, %v1016
        %vm1019 = vcmp.lt.s32.totalorder %v955, 0
        %v1020 = vsub.s32 0, %v955
        %v1021 = vsel %vm1019, %v1020, %v955
        %v1022 = vshrl.u32 %v1021, 6
        %v1023 = vand.u32 %v1021, 63
        %v1024 = vsub.s32 0, %v1023
        %v1025 = vsel %vm1019, %v1024, %v1023
        %vm1026 = vcmp.lt.s32.totalorder %v956, 0
        %v1027 = vsub.s32 0, %v956
        %v1028 = vsel %vm1026, %v1027, %v956
        %v1029 = vshrl.u32 %v1028, 6
        %v1030 = vand.u32 %v1028, 63
        %v1031 = vsub.s32 0, %v1030
        %v1032 = vsel %vm1026, %v1031, %v1030
        %vm1033 = vcmp.lt.s32.totalorder %v957, 0
        %v1034 = vsub.s32 0, %v957
        %v1035 = vsel %vm1033, %v1034, %v957
        %v1036 = vshrl.u32 %v1035, 6
        %v1037 = vand.u32 %v1035, 63
        %v1038 = vsub.s32 0, %v1037
        %v1039 = vsel %vm1033, %v1038, %v1037
        %vm1040 = vcmp.lt.s32.totalorder %v958, 0
        %v1041 = vsub.s32 0, %v958
        %v1042 = vsel %vm1040, %v1041, %v958
        %v1043 = vshrl.u32 %v1042, 6
        %v1044 = vand.u32 %v1042, 63
        %v1045 = vsub.s32 0, %v1044
        %v1046 = vsel %vm1040, %v1045, %v1044
        %vm1047 = vcmp.lt.s32.totalorder %v959, 0
        %v1048 = vsub.s32 0, %v959
        %v1049 = vsel %vm1047, %v1048, %v959
        %v1050 = vshrl.u32 %v1049, 6
        %v1051 = vand.u32 %v1049, 63
        %v1052 = vsub.s32 0, %v1051
        %v1053 = vsel %vm1047, %v1052, %v1051
        %vm1054 = vcmp.lt.s32.totalorder %v960, 0
        %v1055 = vsub.s32 0, %v960
        %v1056 = vsel %vm1054, %v1055, %v960
        %v1057 = vshrl.u32 %v1056, 6
        %v1058 = vand.u32 %v1056, 63
        %v1059 = vsub.s32 0, %v1058
        %v1060 = vsel %vm1054, %v1059, %v1058
        %vm1061 = vcmp.lt.s32.totalorder %v961, 0
        %v1062 = vsub.s32 0, %v961
        %v1063 = vsel %vm1061, %v1062, %v961
        %v1064 = vshrl.u32 %v1063, 6
        %v1065 = vand.u32 %v1063, 63
        %v1066 = vsub.s32 0, %v1065
        %v1067 = vsel %vm1061, %v1066, %v1065
        %vm1068 = vcmp.lt.s32.totalorder %v962, 0
        %v1069 = vsub.s32 0, %v962
        %v1070 = vsel %vm1068, %v1069, %v962
        %v1071 = vshrl.u32 %v1070, 6
        %v1072 = vand.u32 %v1070, 63
        %v1073 = vsub.s32 0, %v1072
        %v1074 = vsel %vm1068, %v1073, %v1072
        %vm1075 = vcmp.ne.s32.totalorder %v969, 0
        %vm1076 = vcmp.ne.s32.totalorder %v976, 0
        %vm1077 = vcmp.ne.s32.totalorder %v983, 0
        %vm1078 = vcmp.ne.s32.totalorder %v990, 0
        %vm1079 = vcmp.ne.s32.totalorder %v997, 0
        %vm1080 = vcmp.ne.s32.totalorder %v1004, 0
        %vm1081 = vcmp.ne.s32.totalorder %v1011, 0
        %vm1082 = vcmp.ne.s32.totalorder %v1018, 0
        %vm1083 = vcmp.ne.s32.totalorder %v1025, 0
        %vm1084 = vcmp.ne.s32.totalorder %v1032, 0
        %vm1085 = vcmp.ne.s32.totalorder %v1039, 0
        %vm1086 = vcmp.ne.s32.totalorder %v1046, 0
        %vm1087 = vcmp.ne.s32.totalorder %v1053, 0
        %vm1088 = vcmp.ne.s32.totalorder %v1060, 0
        %vm1089 = vcmp.ne.s32.totalorder %v1067, 0
        %vm1090 = vcmp.ne.s32.totalorder %v1074, 0
        %vm1091 = vcmp.lt.s32.totalorder %v969, 0
        %vm1092 = vcmp.lt.s32.totalorder %v976, 0
        %vm1093 = vcmp.lt.s32.totalorder %v983, 0
        %vm1094 = vcmp.lt.s32.totalorder %v990, 0
        %vm1095 = vcmp.lt.s32.totalorder %v997, 0
        %vm1096 = vcmp.lt.s32.totalorder %v1004, 0
        %vm1097 = vcmp.lt.s32.totalorder %v1011, 0
        %vm1098 = vcmp.lt.s32.totalorder %v1018, 0
        %vm1099 = vcmp.lt.s32.totalorder %v1025, 0
        %vm1100 = vcmp.lt.s32.totalorder %v1032, 0
        %vm1101 = vcmp.lt.s32.totalorder %v1039, 0
        %vm1102 = vcmp.lt.s32.totalorder %v1046, 0
        %vm1103 = vcmp.lt.s32.totalorder %v1053, 0
        %vm1104 = vcmp.lt.s32.totalorder %v1060, 0
        %vm1105 = vcmp.lt.s32.totalorder %v1067, 0
        %vm1106 = vcmp.lt.s32.totalorder %v1074, 0
        %vm1107 = vmand %vm1091, %vm1075
        %vm1108 = vmand %vm1092, %vm1076
        %vm1109 = vmand %vm1093, %vm1077
        %vm1110 = vmand %vm1094, %vm1078
        %vm1111 = vmand %vm1095, %vm1079
        %vm1112 = vmand %vm1096, %vm1080
        %vm1113 = vmand %vm1097, %vm1081
        %vm1114 = vmand %vm1098, %vm1082
        %vm1115 = vmand %vm1099, %vm1083
        %vm1116 = vmand %vm1100, %vm1084
        %vm1117 = vmand %vm1101, %vm1085
        %vm1118 = vmand %vm1102, %vm1086
        %vm1119 = vmand %vm1103, %vm1087
        %vm1120 = vmand %vm1104, %vm1088
        %vm1121 = vmand %vm1105, %vm1089
        %vm1122 = vmand %vm1106, %vm1090
        %v1123 = vadd.s32 %v969, 64
        %v1124 = vadd.s32 %v976, 64
        %v1125 = vadd.s32 %v983, 64
        %v1126 = vadd.s32 %v990, 64
        %v1127 = vadd.s32 %v997, 64
        %v1128 = vadd.s32 %v1004, 64
        %v1129 = vadd.s32 %v1011, 64
        %v1130 = vadd.s32 %v1018, 64
        %v1131 = vadd.s32 %v1025, 64
        %v1132 = vadd.s32 %v1032, 64
        %v1133 = vadd.s32 %v1039, 64
        %v1134 = vadd.s32 %v1046, 64
        %v1135 = vadd.s32 %v1053, 64
        %v1136 = vadd.s32 %v1060, 64
        %v1137 = vadd.s32 %v1067, 64
        %v1138 = vadd.s32 %v1074, 64
        %v1139 = vsel %vm1107, %v1123, %v969
        %v1140 = vsel %vm1108, %v1124, %v976
        %v1141 = vsel %vm1109, %v1125, %v983
        %v1142 = vsel %vm1110, %v1126, %v990
        %v1143 = vsel %vm1111, %v1127, %v997
        %v1144 = vsel %vm1112, %v1128, %v1004
        %v1145 = vsel %vm1113, %v1129, %v1011
        %v1146 = vsel %vm1114, %v1130, %v1018
        %v1147 = vsel %vm1115, %v1131, %v1025
        %v1148 = vsel %vm1116, %v1132, %v1032
        %v1149 = vsel %vm1117, %v1133, %v1039
        %v1150 = vsel %vm1118, %v1134, %v1046
        %v1151 = vsel %vm1119, %v1135, %v1053
        %v1152 = vsel %vm1120, %v1136, %v1060
        %v1153 = vsel %vm1121, %v1137, %v1067
        %v1154 = vsel %vm1122, %v1138, %v1074
        %vm1155 = vcmp.eq.s32.totalorder %v1139, 0
        %vm1156 = vcmp.eq.s32.totalorder %v1140, 0
        %vm1157 = vcmp.eq.s32.totalorder %v1141, 0
        %vm1158 = vcmp.eq.s32.totalorder %v1142, 0
        %vm1159 = vcmp.eq.s32.totalorder %v1143, 0
        %vm1160 = vcmp.eq.s32.totalorder %v1144, 0
        %vm1161 = vcmp.eq.s32.totalorder %v1145, 0
        %vm1162 = vcmp.eq.s32.totalorder %v1146, 0
        %vm1163 = vcmp.eq.s32.totalorder %v1147, 0
        %vm1164 = vcmp.eq.s32.totalorder %v1148, 0
        %vm1165 = vcmp.eq.s32.totalorder %v1149, 0
        %vm1166 = vcmp.eq.s32.totalorder %v1150, 0
        %vm1167 = vcmp.eq.s32.totalorder %v1151, 0
        %vm1168 = vcmp.eq.s32.totalorder %v1152, 0
        %vm1169 = vcmp.eq.s32.totalorder %v1153, 0
        %vm1170 = vcmp.eq.s32.totalorder %v1154, 0
        %v1171 = vsel %vm1155, 1, 0
        %v1172 = vsel %vm1156, 1, 0
        %v1173 = vsel %vm1157, 1, 0
        %v1174 = vsel %vm1158, 1, 0
        %v1175 = vsel %vm1159, 1, 0
        %v1176 = vsel %vm1160, 1, 0
        %v1177 = vsel %vm1161, 1, 0
        %v1178 = vsel %vm1162, 1, 0
        %v1179 = vsel %vm1163, 1, 0
        %v1180 = vsel %vm1164, 1, 0
        %v1181 = vsel %vm1165, 1, 0
        %v1182 = vsel %vm1166, 1, 0
        %v1183 = vsel %vm1167, 1, 0
        %v1184 = vsel %vm1168, 1, 0
        %v1185 = vsel %vm1169, 1, 0
        %v1186 = vsel %vm1170, 1, 0
        %vm1187 = vcmp.eq.s32.totalorder %v1171, 1
        %vm1188 = vcmp.eq.s32.totalorder %v1172, 1
        %vm1189 = vcmp.eq.s32.totalorder %v1173, 1
        %vm1190 = vcmp.eq.s32.totalorder %v1174, 1
        %vm1191 = vcmp.eq.s32.totalorder %v1175, 1
        %vm1192 = vcmp.eq.s32.totalorder %v1176, 1
        %vm1193 = vcmp.eq.s32.totalorder %v1177, 1
        %vm1194 = vcmp.eq.s32.totalorder %v1178, 1
        %vm1195 = vcmp.eq.s32.totalorder %v1179, 1
        %vm1196 = vcmp.eq.s32.totalorder %v1180, 1
        %vm1197 = vcmp.eq.s32.totalorder %v1181, 1
        %vm1198 = vcmp.eq.s32.totalorder %v1182, 1
        %vm1199 = vcmp.eq.s32.totalorder %v1183, 1
        %vm1200 = vcmp.eq.s32.totalorder %v1184, 1
        %vm1201 = vcmp.eq.s32.totalorder %v1185, 1
        %vm1202 = vcmp.eq.s32.totalorder %v1186, 1
        %v1203 = vsel %vm1187, 0.0, %v947
        %v1204 = vsel %vm1188, 0.0, %v946
        %v1205 = vsel %vm1189, 0.0, %v945
        %v1206 = vsel %vm1190, 0.0, %v944
        %v1207 = vsel %vm1191, 0.0, %v943
        %v1208 = vsel %vm1192, 0.0, %v942
        %v1209 = vsel %vm1193, 0.0, %v941
        %v1210 = vsel %vm1194, 0.0, %v940
        %v1211 = vsel %vm1195, 0.0, %v939
        %v1212 = vsel %vm1196, 0.0, %v938
        %v1213 = vsel %vm1197, 0.0, %v937
        %v1214 = vsel %vm1198, 0.0, %v936
        %v1215 = vsel %vm1199, 0.0, %v935
        %v1216 = vsel %vm1200, 0.0, %v934
        %v1217 = vsel %vm1201, 0.0, %v933
        %v1218 = vsel %vm1202, 0.0, %v932
        %v1235 = vunpack.c.l.b16 %v736
        %v1236 = vunpack.c.l.b16 %v737
        %v1237 = vunpack.c.l.b16 %v738
        %v1238 = vunpack.c.l.b16 %v739
        %v1239 = vunpack.c.l.b16 %v740
        %v1240 = vunpack.c.l.b16 %v741
        %v1241 = vunpack.c.l.b16 %v742
        %v1242 = vunpack.c.l.b16 %v743
        %v1243 = vunpack.c.l.b16 %v744
        %v1244 = vunpack.c.l.b16 %v745
        %v1245 = vunpack.c.l.b16 %v746
        %v1246 = vunpack.c.l.b16 %v747
        %v1247 = vunpack.c.l.b16 %v748
        %v1248 = vunpack.c.l.b16 %v749
        %v1249 = vunpack.c.l.b16 %v750
        %v1250 = vunpack.c.l.b16 %v751
        %v1251 = vpack.c.b16 %v1236, %v1235
        %v1252 = vpack.c.b16 %v1238, %v1237
        %v1253 = vpack.c.b16 %v1240, %v1239
        %v1254 = vpack.c.b16 %v1242, %v1241
        %v1255 = vpack.c.b16 %v1244, %v1243
        %v1256 = vpack.c.b16 %v1246, %v1245
        %v1257 = vpack.c.b16 %v1248, %v1247
        %v1258 = vpack.c.b16 %v1250, %v1249
        %1267 = vmatprep.subr.bf16.mxu0 0
        %1268 = vmatpush1.bf16.msra.mxu0 %v1251
        %1269 = vmatprep.subr.bf16.mxu0 0
        %1270 = vmatpush1.bf16.msra.mxu0 %v1252
        %1271 = vmatprep.subr.bf16.mxu0 0
        %1272 = vmatpush1.bf16.msra.mxu0 %v1253
        %1273 = vmatprep.subr.bf16.mxu0 0
        %1274 = vmatpush1.bf16.msra.mxu0 %v1254
        %1275 = vmatprep.subr.bf16.mxu0 0
        %1276 = vmatpush1.bf16.msra.mxu0 %v1255
        %1277 = vmatprep.subr.bf16.mxu0 0
        %1278 = vmatpush1.bf16.msra.mxu0 %v1256
        %1279 = vmatprep.subr.bf16.mxu0 0
        %1280 = vmatpush1.bf16.msra.mxu0 %v1257
        %1281 = vmatprep.subr.bf16.mxu0 0
        %1282 = vmatpush1.bf16.msra.mxu0 %v1258
        %1283 = vmatprep.subr.bf16.mxu0 0
        %1284 = vmatpush1.bf16.msra.mxu0 0
        %1285 = vmatprep.subr.bf16.mxu0 0
        %1286 = vmatpush1.bf16.msra.mxu0 0
        %1287 = vmatprep.subr.bf16.mxu0 0
        %1288 = vmatpush1.bf16.msra.mxu0 0
        %1289 = vmatprep.subr.bf16.mxu0 0
        %1290 = vmatpush1.bf16.msra.mxu0 0
        %1291 = vmatprep.subr.bf16.mxu0 0
        %1292 = vmatpush1.bf16.msra.mxu0 0
        %1293 = vmatprep.subr.bf16.mxu0 0
        %1294 = vmatpush1.bf16.msra.mxu0 0
        %1295 = vmatprep.subr.bf16.mxu0 0
        %1296 = vmatpush1.bf16.msra.mxu0 0
        %1297 = vmatprep.subr.bf16.mxu0 0
        %1298 = vmatpush1.bf16.msra.mxu0 0
        %1299 = vmatprep.mubr.bf16.mxu0 0
        %1300 = vmatmul.mubr.bf16.gmra.mrb[0].mxu0 %v727
        %v1301 = vpop.f32.mrb[0].mxu0
        %v1302 = vadd.f32 %v1203, %v1301
        %v1303 = vpop.f32.mrb[0].mxu0
        %v1304 = vpop.f32.mrb[0].mxu0
        %v1305 = vadd.f32 %v1204, %v1304
        %v1306 = vpop.f32.mrb[0].mxu0
        %1307 = vmatprep.mubr.bf16.mxu0 0
        %1308 = vmatmul.mubr.bf16.gmra.mrb[0].mxu0 %v728
        %v1309 = vpop.f32.mrb[0].mxu0
        %v1310 = vadd.f32 %v1205, %v1309
        %v1311 = vpop.f32.mrb[0].mxu0
        %v1312 = vpop.f32.mrb[0].mxu0
        %v1313 = vadd.f32 %v1206, %v1312
        %v1314 = vpop.f32.mrb[0].mxu0
        %1315 = vmatprep.mubr.bf16.mxu0 0
        %1316 = vmatmul.mubr.bf16.gmra.mrb[0].mxu0 %v729
        %v1317 = vpop.f32.mrb[0].mxu0
        %v1318 = vadd.f32 %v1207, %v1317
        %v1319 = vpop.f32.mrb[0].mxu0
        %v1320 = vpop.f32.mrb[0].mxu0
        %v1321 = vadd.f32 %v1208, %v1320
        %v1322 = vpop.f32.mrb[0].mxu0
        %1323 = vmatprep.mubr.bf16.mxu0 0
        %1324 = vmatmul.mubr.bf16.gmra.mrb[0].mxu0 %v730
        %v1325 = vpop.f32.mrb[0].mxu0
        %v1326 = vadd.f32 %v1209, %v1325
        %v1327 = vpop.f32.mrb[0].mxu0
        %v1328 = vpop.f32.mrb[0].mxu0
        %v1329 = vadd.f32 %v1210, %v1328
        %v1330 = vpop.f32.mrb[0].mxu0
        %1331 = vmatprep.mubr.bf16.mxu0 0
        %1332 = vmatmul.mubr.bf16.gmra.mrb[0].mxu0 %v731
        %v1333 = vpop.f32.mrb[0].mxu0
        %v1334 = vadd.f32 %v1211, %v1333
        %v1335 = vpop.f32.mrb[0].mxu0
        %v1336 = vpop.f32.mrb[0].mxu0
        %v1337 = vadd.f32 %v1212, %v1336
        %v1338 = vpop.f32.mrb[0].mxu0
        %1339 = vmatprep.mubr.bf16.mxu0 0
        %1340 = vmatmul.mubr.bf16.gmra.mrb[0].mxu0 %v732
        %v1341 = vpop.f32.mrb[0].mxu0
        %v1342 = vadd.f32 %v1213, %v1341
        %v1343 = vpop.f32.mrb[0].mxu0
        %v1344 = vpop.f32.mrb[0].mxu0
        %v1345 = vadd.f32 %v1214, %v1344
        %v1346 = vpop.f32.mrb[0].mxu0
        %1347 = vmatprep.mubr.bf16.mxu0 0
        %1348 = vmatmul.mubr.bf16.gmra.mrb[0].mxu0 %v733
        %v1349 = vpop.f32.mrb[0].mxu0
        %v1350 = vadd.f32 %v1215, %v1349
        %v1351 = vpop.f32.mrb[0].mxu0
        %v1352 = vpop.f32.mrb[0].mxu0
        %v1353 = vadd.f32 %v1216, %v1352
        %v1354 = vpop.f32.mrb[0].mxu0
        %1355 = vmatprep.mubr.bf16.mxu0 0
        %1356 = vmatmul.mubr.bf16.gmra.mrb[0].mxu0 %v734
        %v1357 = vpop.f32.mrb[0].mxu0
        %v1358 = vadd.f32 %v1217, %v1357
        %v1359 = vpop.f32.mrb[0].mxu0
        %v1360 = vpop.f32.mrb[0].mxu0
        %v1361 = vadd.f32 %v1218, %v1360
        %v1362 = vpop.f32.mrb[0].mxu0
        %1363 = vdwg.mxu0
        %s1364 = scalar_lea.vmem %s4, 128
        %v1365 = vld [vmem:[%s1364] sm:$0xf]
        %v1366 = vld [vmem:[%s1364 + $0x4] sm:$0xf]
        %v1367 = vld [vmem:[%s1364 + $0x8] sm:$0xf]
        %v1368 = vld [vmem:[%s1364 + $0xc] sm:$0xf]
        %v1369 = vld [vmem:[%s1364 + $0x10] sm:$0xf]
        %v1370 = vld [vmem:[%s1364 + $0x14] sm:$0xf]
        %v1371 = vld [vmem:[%s1364 + $0x18] sm:$0xf]
        %v1372 = vld [vmem:[%s1364 + $0x1c] sm:$0xf]
        %v1373 = vld [vmem:[%s1364 + $0x20] sm:$0xf]
        %v1374 = vld [vmem:[%s1364 + $0x24] sm:$0xf]
        %v1375 = vld [vmem:[%s1364 + $0x28] sm:$0xf]
        %v1376 = vld [vmem:[%s1364 + $0x2c] sm:$0xf]
        %v1377 = vld [vmem:[%s1364 + $0x30] sm:$0xf]
        %v1378 = vld [vmem:[%s1364 + $0x34] sm:$0xf]
        %v1379 = vld [vmem:[%s1364 + $0x38] sm:$0xf]
        %v1380 = vld [vmem:[%s1364 + $0x3c] sm:$0xf]
        %v1397 = vunpack.c.l.b16 %v1365
        %v1398 = vunpack.c.l.b16 %v1366
        %v1399 = vunpack.c.l.b16 %v1367
        %v1400 = vunpack.c.l.b16 %v1368
        %v1401 = vunpack.c.l.b16 %v1369
        %v1402 = vunpack.c.l.b16 %v1370
        %v1403 = vunpack.c.l.b16 %v1371
        %v1404 = vunpack.c.l.b16 %v1372
        %v1405 = vunpack.c.l.b16 %v1373
        %v1406 = vunpack.c.l.b16 %v1374
        %v1407 = vunpack.c.l.b16 %v1375
        %v1408 = vunpack.c.l.b16 %v1376
        %v1409 = vunpack.c.l.b16 %v1377
        %v1410 = vunpack.c.l.b16 %v1378
        %v1411 = vunpack.c.l.b16 %v1379
        %v1412 = vunpack.c.l.b16 %v1380
        %v1413 = vpack.c.b16 %v1398, %v1397
        %v1414 = vpack.c.b16 %v1400, %v1399
        %v1415 = vpack.c.b16 %v1402, %v1401
        %v1416 = vpack.c.b16 %v1404, %v1403
        %v1417 = vpack.c.b16 %v1406, %v1405
        %v1418 = vpack.c.b16 %v1408, %v1407
        %v1419 = vpack.c.b16 %v1410, %v1409
        %v1420 = vpack.c.b16 %v1412, %v1411
        %1429 = vmatprep.subr.bf16.mxu0 0
        %1430 = vmatpush1.bf16.msra.mxu0 %v1413
        %1431 = vmatprep.subr.bf16.mxu0 0
        %1432 = vmatpush1.bf16.msra.mxu0 %v1414
        %1433 = vmatprep.subr.bf16.mxu0 0
        %1434 = vmatpush1.bf16.msra.mxu0 %v1415
        %1435 = vmatprep.subr.bf16.mxu0 0
        %1436 = vmatpush1.bf16.msra.mxu0 %v1416
        %1437 = vmatprep.subr.bf16.mxu0 0
        %1438 = vmatpush1.bf16.msra.mxu0 %v1417
        %1439 = vmatprep.subr.bf16.mxu0 0
        %1440 = vmatpush1.bf16.msra.mxu0 %v1418
        %1441 = vmatprep.subr.bf16.mxu0 0
        %1442 = vmatpush1.bf16.msra.mxu0 %v1419
        %1443 = vmatprep.subr.bf16.mxu0 0
        %1444 = vmatpush1.bf16.msra.mxu0 %v1420
        %1445 = vmatprep.subr.bf16.mxu0 0
        %1446 = vmatpush1.bf16.msra.mxu0 0
        %1447 = vmatprep.subr.bf16.mxu0 0
        %1448 = vmatpush1.bf16.msra.mxu0 0
        %1449 = vmatprep.subr.bf16.mxu0 0
        %1450 = vmatpush1.bf16.msra.mxu0 0
        %1451 = vmatprep.subr.bf16.mxu0 0
        %1452 = vmatpush1.bf16.msra.mxu0 0
        %1453 = vmatprep.subr.bf16.mxu0 0
        %1454 = vmatpush1.bf16.msra.mxu0 0
        %1455 = vmatprep.subr.bf16.mxu0 0
        %1456 = vmatpush1.bf16.msra.mxu0 0
        %1457 = vmatprep.subr.bf16.mxu0 0
        %1458 = vmatpush1.bf16.msra.mxu0 0
        %1459 = vmatprep.subr.bf16.mxu0 0
        %1460 = vmatpush1.bf16.msra.mxu0 0
        %1461 = vmatprep.mubr.bf16.mxu0 0
        %1462 = vmatmul.mubr.bf16.gmra.mrb[0].mxu0 %v727
        %v1463 = vpop.f32.mrb[0].mxu0
        %v1464 = vadd.f32 0.0, %v1463
        %v1465 = vpop.f32.mrb[0].mxu0
        %v1466 = vpop.f32.mrb[0].mxu0
        %v1467 = vadd.f32 0.0, %v1466
        %v1468 = vpop.f32.mrb[0].mxu0
        %1469 = vmatprep.mubr.bf16.mxu0 0
        %1470 = vmatmul.mubr.bf16.gmra.mrb[0].mxu0 %v728
        %v1471 = vpop.f32.mrb[0].mxu0
        %v1472 = vadd.f32 0.0, %v1471
        %v1473 = vpop.f32.mrb[0].mxu0
        %v1474 = vpop.f32.mrb[0].mxu0
        %v1475 = vadd.f32 0.0, %v1474
        %v1476 = vpop.f32.mrb[0].mxu0
        %1477 = vmatprep.mubr.bf16.mxu0 0
        %1478 = vmatmul.mubr.bf16.gmra.mrb[0].mxu0 %v729
        %v1479 = vpop.f32.mrb[0].mxu0
        %v1480 = vadd.f32 0.0, %v1479
        %v1481 = vpop.f32.mrb[0].mxu0
        %v1482 = vpop.f32.mrb[0].mxu0
        %v1483 = vadd.f32 0.0, %v1482
        %v1484 = vpop.f32.mrb[0].mxu0
        %1485 = vmatprep.mubr.bf16.mxu0 0
        %1486 = vmatmul.mubr.bf16.gmra.mrb[0].mxu0 %v730
        %v1487 = vpop.f32.mrb[0].mxu0
        %v1488 = vadd.f32 0.0, %v1487
        %v1489 = vpop.f32.mrb[0].mxu0
        %v1490 = vpop.f32.mrb[0].mxu0
        %v1491 = vadd.f32 0.0, %v1490
        %v1492 = vpop.f32.mrb[0].mxu0
        %1493 = vmatprep.mubr.bf16.mxu0 0
        %1494 = vmatmul.mubr.bf16.gmra.mrb[0].mxu0 %v731
        %v1495 = vpop.f32.mrb[0].mxu0
        %v1496 = vadd.f32 0.0, %v1495
        %v1497 = vpop.f32.mrb[0].mxu0
        %v1498 = vpop.f32.mrb[0].mxu0
        %v1499 = vadd.f32 0.0, %v1498
        %v1500 = vpop.f32.mrb[0].mxu0
        %1501 = vmatprep.mubr.bf16.mxu0 0
        %1502 = vmatmul.mubr.bf16.gmra.mrb[0].mxu0 %v732
        %v1503 = vpop.f32.mrb[0].mxu0
        %v1504 = vadd.f32 0.0, %v1503
        %v1505 = vpop.f32.mrb[0].mxu0
        %v1506 = vpop.f32.mrb[0].mxu0
        %v1507 = vadd.f32 0.0, %v1506
        %v1508 = vpop.f32.mrb[0].mxu0
        %1509 = vmatprep.mubr.bf16.mxu0 0
        %1510 = vmatmul.mubr.bf16.gmra.mrb[0].mxu0 %v733
        %v1511 = vpop.f32.mrb[0].mxu0
        %v1512 = vadd.f32 0.0, %v1511
        %v1513 = vpop.f32.mrb[0].mxu0
        %v1514 = vpop.f32.mrb[0].mxu0
        %v1515 = vadd.f32 0.0, %v1514
        %v1516 = vpop.f32.mrb[0].mxu0
        %1517 = vmatprep.mubr.bf16.mxu0 0
        %1518 = vmatmul.mubr.bf16.gmra.mrb[0].mxu0 %v734
        %v1519 = vpop.f32.mrb[0].mxu0
        %v1520 = vadd.f32 0.0, %v1519
        %v1521 = vpop.f32.mrb[0].mxu0
        %v1522 = vpop.f32.mrb[0].mxu0
        %v1523 = vadd.f32 0.0, %v1522
        %v1524 = vpop.f32.mrb[0].mxu0
        %1525 = vdwg.mxu0
        %v1526 = vrot.slane %v1464, 1
        %v1527 = vrot.slane %v1467, 1
        %v1528 = vrot.slane %v1472, 1
        %v1529 = vrot.slane %v1475, 1
        %v1530 = vrot.slane %v1480, 1
        %v1531 = vrot.slane %v1483, 1
        %v1532 = vrot.slane %v1488, 1
        %v1533 = vrot.slane %v1491, 1
        %v1534 = vrot.slane %v1496, 1
        %v1535 = vrot.slane %v1499, 1
        %v1536 = vrot.slane %v1504, 1
        %v1537 = vrot.slane %v1507, 1
        %v1538 = vrot.slane %v1512, 1
        %v1539 = vrot.slane %v1515, 1
        %v1540 = vrot.slane %v1520, 1
        %v1541 = vrot.slane %v1523, 1
        %vm1542 = vcmp.lt.s32.totalorder %v930, 7
        %v1543 = vsel %vm1542, %v1540, %v1541
        %v1544 = vsel %vm1542, %v1539, %v1540
        %v1545 = vsel %vm1542, %v1538, %v1539
        %v1546 = vsel %vm1542, %v1537, %v1538
        %v1547 = vsel %vm1542, %v1536, %v1537
        %v1548 = vsel %vm1542, %v1535, %v1536
        %v1549 = vsel %vm1542, %v1534, %v1535
        %v1550 = vsel %vm1542, %v1533, %v1534
        %v1551 = vsel %vm1542, %v1532, %v1533
        %v1552 = vsel %vm1542, %v1531, %v1532
        %v1553 = vsel %vm1542, %v1530, %v1531
        %v1554 = vsel %vm1542, %v1529, %v1530
        %v1555 = vsel %vm1542, %v1528, %v1529
        %v1556 = vsel %vm1542, %v1527, %v1528
        %v1557 = vsel %vm1542, %v1526, %v1527
        %v1558 = vsel %vm1542, %v1541, %v1526
        %vm1559 = vcmp.eq.s32.totalorder %v1139, 63
        %vm1560 = vcmp.eq.s32.totalorder %v1140, 63
        %vm1561 = vcmp.eq.s32.totalorder %v1141, 63
        %vm1562 = vcmp.eq.s32.totalorder %v1142, 63
        %vm1563 = vcmp.eq.s32.totalorder %v1143, 63
        %vm1564 = vcmp.eq.s32.totalorder %v1144, 63
        %vm1565 = vcmp.eq.s32.totalorder %v1145, 63
        %vm1566 = vcmp.eq.s32.totalorder %v1146, 63
        %vm1567 = vcmp.eq.s32.totalorder %v1147, 63
        %vm1568 = vcmp.eq.s32.totalorder %v1148, 63
        %vm1569 = vcmp.eq.s32.totalorder %v1149, 63
        %vm1570 = vcmp.eq.s32.totalorder %v1150, 63
        %vm1571 = vcmp.eq.s32.totalorder %v1151, 63
        %vm1572 = vcmp.eq.s32.totalorder %v1152, 63
        %vm1573 = vcmp.eq.s32.totalorder %v1153, 63
        %vm1574 = vcmp.eq.s32.totalorder %v1154, 63
        %v1575 = vsel %vm1559, 1, 0
        %v1576 = vsel %vm1560, 1, 0
        %v1577 = vsel %vm1561, 1, 0
        %v1578 = vsel %vm1562, 1, 0
        %v1579 = vsel %vm1563, 1, 0
        %v1580 = vsel %vm1564, 1, 0
        %v1581 = vsel %vm1565, 1, 0
        %v1582 = vsel %vm1566, 1, 0
        %v1583 = vsel %vm1567, 1, 0
        %v1584 = vsel %vm1568, 1, 0
        %v1585 = vsel %vm1569, 1, 0
        %v1586 = vsel %vm1570, 1, 0
        %v1587 = vsel %vm1571, 1, 0
        %v1588 = vsel %vm1572, 1, 0
        %v1589 = vsel %vm1573, 1, 0
        %v1590 = vsel %vm1574, 1, 0
        %vm1591 = vcmp.eq.s32.totalorder %v1575, 1
        %vm1592 = vcmp.eq.s32.totalorder %v1576, 1
        %vm1593 = vcmp.eq.s32.totalorder %v1577, 1
        %vm1594 = vcmp.eq.s32.totalorder %v1578, 1
        %vm1595 = vcmp.eq.s32.totalorder %v1579, 1
        %vm1596 = vcmp.eq.s32.totalorder %v1580, 1
        %vm1597 = vcmp.eq.s32.totalorder %v1581, 1
        %vm1598 = vcmp.eq.s32.totalorder %v1582, 1
        %vm1599 = vcmp.eq.s32.totalorder %v1583, 1
        %vm1600 = vcmp.eq.s32.totalorder %v1584, 1
        %vm1601 = vcmp.eq.s32.totalorder %v1585, 1
        %vm1602 = vcmp.eq.s32.totalorder %v1586, 1
        %vm1603 = vcmp.eq.s32.totalorder %v1587, 1
        %vm1604 = vcmp.eq.s32.totalorder %v1588, 1
        %vm1605 = vcmp.eq.s32.totalorder %v1589, 1
        %vm1606 = vcmp.eq.s32.totalorder %v1590, 1
        %v1607 = vsel %vm1591, 0.0, %v1557
        %v1608 = vsel %vm1592, 0.0, %v1556
        %v1609 = vsel %vm1593, 0.0, %v1555
        %v1610 = vsel %vm1594, 0.0, %v1554
        %v1611 = vsel %vm1595, 0.0, %v1553
        %v1612 = vsel %vm1596, 0.0, %v1552
        %v1613 = vsel %vm1597, 0.0, %v1551
        %v1614 = vsel %vm1598, 0.0, %v1550
        %v1615 = vsel %vm1599, 0.0, %v1549
        %v1616 = vsel %vm1600, 0.0, %v1548
        %v1617 = vsel %vm1601, 0.0, %v1547
        %v1618 = vsel %vm1602, 0.0, %v1546
        %v1619 = vsel %vm1603, 0.0, %v1545
        %v1620 = vsel %vm1604, 0.0, %v1544
        %v1621 = vsel %vm1605, 0.0, %v1543
        %v1622 = vsel %vm1606, 0.0, %v1558
        %v1623 = vadd.f32 %v1302, %v1607
        %v1624 = vadd.f32 %v1305, %v1608
        %v1625 = vadd.f32 %v1310, %v1609
        %v1626 = vadd.f32 %v1313, %v1610
        %v1627 = vadd.f32 %v1318, %v1611
        %v1628 = vadd.f32 %v1321, %v1612
        %v1629 = vadd.f32 %v1326, %v1613
        %v1630 = vadd.f32 %v1329, %v1614
        %v1631 = vadd.f32 %v1334, %v1615
        %v1632 = vadd.f32 %v1337, %v1616
        %v1633 = vadd.f32 %v1342, %v1617
        %v1634 = vadd.f32 %v1345, %v1618
        %v1635 = vadd.f32 %v1350, %v1619
        %v1636 = vadd.f32 %v1353, %v1620
        %v1637 = vadd.f32 %v1358, %v1621
        %v1638 = vadd.f32 %v1361, %v1622
        %v1639 = vld [vmem:[#allocation2] sm:$0x3]
        %v1640 = vlaneseq
        %v1641 = vshrl.u32 %v1640, 7
        %v1642 = vsub.s32 0, %v1641
        %v1643 = vrot.slane %v1639, %v1642
        %v1644 = vmul.f32 %v1623, %v1643
        %v1645 = vmul.f32 %v1624, %v1643
        %v1646 = vmul.f32 %v1625, %v1643
        %v1647 = vmul.f32 %v1626, %v1643
        %v1648 = vmul.f32 %v1627, %v1643
        %v1649 = vmul.f32 %v1628, %v1643
        %v1650 = vmul.f32 %v1629, %v1643
        %v1651 = vmul.f32 %v1630, %v1643
        %v1652 = vmul.f32 %v1631, %v1643
        %v1653 = vmul.f32 %v1632, %v1643
        %v1654 = vmul.f32 %v1633, %v1643
        %v1655 = vmul.f32 %v1634, %v1643
        %v1656 = vmul.f32 %v1635, %v1643
        %v1657 = vmul.f32 %v1636, %v1643
        %v1658 = vmul.f32 %v1637, %v1643
        %v1659 = vmul.f32 %v1638, %v1643
        %v1660 = vlaneseq
        %v1661 = vshrl.u32 %v1660, 7
        %v1662 = vsub.s32 1, %v1661
        %v1663 = vrot.slane %v1639, %v1662
        %v1664 = vadd.f32 %v1644, %v1663
        %v1665 = vadd.f32 %v1645, %v1663
        %v1666 = vadd.f32 %v1646, %v1663
        %v1667 = vadd.f32 %v1647, %v1663
        %v1668 = vadd.f32 %v1648, %v1663
        %v1669 = vadd.f32 %v1649, %v1663
        %v1670 = vadd.f32 %v1650, %v1663
        %v1671 = vadd.f32 %v1651, %v1663
        %v1672 = vadd.f32 %v1652, %v1663
        %v1673 = vadd.f32 %v1653, %v1663
        %v1674 = vadd.f32 %v1654, %v1663
        %v1675 = vadd.f32 %v1655, %v1663
        %v1676 = vadd.f32 %v1656, %v1663
        %v1677 = vadd.f32 %v1657, %v1663
        %v1678 = vadd.f32 %v1658, %v1663
        %v1679 = vadd.f32 %v1659, %v1663
        %vm1680 = vcmp.gt.f32.partialorder %v1664, 0.0
        %vm1681 = vcmp.gt.f32.partialorder %v1665, 0.0
        %vm1682 = vcmp.gt.f32.partialorder %v1666, 0.0
        %vm1683 = vcmp.gt.f32.partialorder %v1667, 0.0
        %vm1684 = vcmp.gt.f32.partialorder %v1668, 0.0
        %vm1685 = vcmp.gt.f32.partialorder %v1669, 0.0
        %vm1686 = vcmp.gt.f32.partialorder %v1670, 0.0
        %vm1687 = vcmp.gt.f32.partialorder %v1671, 0.0
        %vm1688 = vcmp.gt.f32.partialorder %v1672, 0.0
        %vm1689 = vcmp.gt.f32.partialorder %v1673, 0.0
        %vm1690 = vcmp.gt.f32.partialorder %v1674, 0.0
        %vm1691 = vcmp.gt.f32.partialorder %v1675, 0.0
        %vm1692 = vcmp.gt.f32.partialorder %v1676, 0.0
        %vm1693 = vcmp.gt.f32.partialorder %v1677, 0.0
        %vm1694 = vcmp.gt.f32.partialorder %v1678, 0.0
        %vm1695 = vcmp.gt.f32.partialorder %v1679, 0.0
        %v1696 = vmul.f32 %v1664, 0.2
        %v1697 = vmul.f32 %v1665, 0.2
        %v1698 = vmul.f32 %v1666, 0.2
        %v1699 = vmul.f32 %v1667, 0.2
        %v1700 = vmul.f32 %v1668, 0.2
        %v1701 = vmul.f32 %v1669, 0.2
        %v1702 = vmul.f32 %v1670, 0.2
        %v1703 = vmul.f32 %v1671, 0.2
        %v1704 = vmul.f32 %v1672, 0.2
        %v1705 = vmul.f32 %v1673, 0.2
        %v1706 = vmul.f32 %v1674, 0.2
        %v1707 = vmul.f32 %v1675, 0.2
        %v1708 = vmul.f32 %v1676, 0.2
        %v1709 = vmul.f32 %v1677, 0.2
        %v1710 = vmul.f32 %v1678, 0.2
        %v1711 = vmul.f32 %v1679, 0.2
        %v1712 = vsel %vm1680, %v1664, %v1696
        %v1713 = vsel %vm1681, %v1665, %v1697
        %v1714 = vsel %vm1682, %v1666, %v1698
        %v1715 = vsel %vm1683, %v1667, %v1699
        %v1716 = vsel %vm1684, %v1668, %v1700
        %v1717 = vsel %vm1685, %v1669, %v1701
        %v1718 = vsel %vm1686, %v1670, %v1702
        %v1719 = vsel %vm1687, %v1671, %v1703
        %v1720 = vsel %vm1688, %v1672, %v1704
        %v1721 = vsel %vm1689, %v1673, %v1705
        %v1722 = vsel %vm1690, %v1674, %v1706
        %v1723 = vsel %vm1691, %v1675, %v1707
        %v1724 = vsel %vm1692, %v1676, %v1708
        %v1725 = vsel %vm1693, %v1677, %v1709
        %v1726 = vsel %vm1694, %v1678, %v1710
        %v1727 = vsel %vm1695, %v1679, %v1711
        %v1728 = vpack.c.bf16 %v1713, %v1712
        %v1729 = vpack.c.bf16 %v1715, %v1714
        %v1730 = vpack.c.bf16 %v1717, %v1716
        %v1731 = vpack.c.bf16 %v1719, %v1718
        %v1732 = vpack.c.bf16 %v1721, %v1720
        %v1733 = vpack.c.bf16 %v1723, %v1722
        %v1734 = vpack.c.bf16 %v1725, %v1724
        %v1735 = vpack.c.bf16 %v1727, %v1726
        %s1736 = scalar_lea.vmem %s4, 256
        %v1737 = vld [vmem:[%s1736] sm:$0xf]
        %v1738 = vld [vmem:[%s1736 + $0x4] sm:$0xf]
        %v1739 = vld [vmem:[%s1736 + $0x8] sm:$0xf]
        %v1740 = vld [vmem:[%s1736 + $0xc] sm:$0xf]
        %v1741 = vld [vmem:[%s1736 + $0x10] sm:$0xf]
        %v1742 = vld [vmem:[%s1736 + $0x14] sm:$0xf]
        %v1743 = vld [vmem:[%s1736 + $0x18] sm:$0xf]
        %v1744 = vld [vmem:[%s1736 + $0x1c] sm:$0xf]
        %v1745 = vld [vmem:[%s1736 + $0x20] sm:$0xf]
        %v1746 = vld [vmem:[%s1736 + $0x24] sm:$0xf]
        %v1747 = vld [vmem:[%s1736 + $0x28] sm:$0xf]
        %v1748 = vld [vmem:[%s1736 + $0x2c] sm:$0xf]
        %v1749 = vld [vmem:[%s1736 + $0x30] sm:$0xf]
        %v1750 = vld [vmem:[%s1736 + $0x34] sm:$0xf]
        %v1751 = vld [vmem:[%s1736 + $0x38] sm:$0xf]
        %v1752 = vld [vmem:[%s1736 + $0x3c] sm:$0xf]
        %s1753 = scalar_lea.vmem %s4, 192
        %v1754 = vld [vmem:[%s1753] sm:$0xf]
        %v1755 = vld [vmem:[%s1753 + $0x4] sm:$0xf]
        %v1756 = vld [vmem:[%s1753 + $0x8] sm:$0xf]
        %v1757 = vld [vmem:[%s1753 + $0xc] sm:$0xf]
        %v1758 = vld [vmem:[%s1753 + $0x10] sm:$0xf]
        %v1759 = vld [vmem:[%s1753 + $0x14] sm:$0xf]
        %v1760 = vld [vmem:[%s1753 + $0x18] sm:$0xf]
        %v1761 = vld [vmem:[%s1753 + $0x1c] sm:$0xf]
        %v1762 = vld [vmem:[%s1753 + $0x20] sm:$0xf]
        %v1763 = vld [vmem:[%s1753 + $0x24] sm:$0xf]
        %v1764 = vld [vmem:[%s1753 + $0x28] sm:$0xf]
        %v1765 = vld [vmem:[%s1753 + $0x2c] sm:$0xf]
        %v1766 = vld [vmem:[%s1753 + $0x30] sm:$0xf]
        %v1767 = vld [vmem:[%s1753 + $0x34] sm:$0xf]
        %v1768 = vld [vmem:[%s1753 + $0x38] sm:$0xf]
        %v1769 = vld [vmem:[%s1753 + $0x3c] sm:$0xf]
        %v1786 = vunpack.c.l.b16 %v1754
        %v1787 = vunpack.c.l.b16 %v1755
        %v1788 = vunpack.c.l.b16 %v1756
        %v1789 = vunpack.c.l.b16 %v1757
        %v1790 = vunpack.c.l.b16 %v1758
        %v1791 = vunpack.c.l.b16 %v1759
        %v1792 = vunpack.c.l.b16 %v1760
        %v1793 = vunpack.c.l.b16 %v1761
        %v1794 = vunpack.c.l.b16 %v1762
        %v1795 = vunpack.c.l.b16 %v1763
        %v1796 = vunpack.c.l.b16 %v1764
        %v1797 = vunpack.c.l.b16 %v1765
        %v1798 = vunpack.c.l.b16 %v1766
        %v1799 = vunpack.c.l.b16 %v1767
        %v1800 = vunpack.c.l.b16 %v1768
        %v1801 = vunpack.c.l.b16 %v1769
        %v1802 = vpack.c.b16 %v1787, %v1786
        %v1803 = vpack.c.b16 %v1789, %v1788
        %v1804 = vpack.c.b16 %v1791, %v1790
        %v1805 = vpack.c.b16 %v1793, %v1792
        %v1806 = vpack.c.b16 %v1795, %v1794
        %v1807 = vpack.c.b16 %v1797, %v1796
        %v1808 = vpack.c.b16 %v1799, %v1798
        %v1809 = vpack.c.b16 %v1801, %v1800
        %1818 = vmatprep.subr.bf16.mxu0 0
        %1819 = vmatpush1.bf16.msra.mxu0 %v1802
        %1820 = vmatprep.subr.bf16.mxu0 0
        %1821 = vmatpush1.bf16.msra.mxu0 %v1803
        %1822 = vmatprep.subr.bf16.mxu0 0
        %1823 = vmatpush1.bf16.msra.mxu0 %v1804
        %1824 = vmatprep.subr.bf16.mxu0 0
        %1825 = vmatpush1.bf16.msra.mxu0 %v1805
        %1826 = vmatprep.subr.bf16.mxu0 0
        %1827 = vmatpush1.bf16.msra.mxu0 %v1806
        %1828 = vmatprep.subr.bf16.mxu0 0
        %1829 = vmatpush1.bf16.msra.mxu0 %v1807
        %1830 = vmatprep.subr.bf16.mxu0 0
        %1831 = vmatpush1.bf16.msra.mxu0 %v1808
        %1832 = vmatprep.subr.bf16.mxu0 0
        %1833 = vmatpush1.bf16.msra.mxu0 %v1809
        %1834 = vmatprep.subr.bf16.mxu0 0
        %1835 = vmatpush1.bf16.msra.mxu0 0
        %1836 = vmatprep.subr.bf16.mxu0 0
        %1837 = vmatpush1.bf16.msra.mxu0 0
        %1838 = vmatprep.subr.bf16.mxu0 0
        %1839 = vmatpush1.bf16.msra.mxu0 0
        %1840 = vmatprep.subr.bf16.mxu0 0
        %1841 = vmatpush1.bf16.msra.mxu0 0
        %1842 = vmatprep.subr.bf16.mxu0 0
        %1843 = vmatpush1.bf16.msra.mxu0 0
        %1844 = vmatprep.subr.bf16.mxu0 0
        %1845 = vmatpush1.bf16.msra.mxu0 0
        %1846 = vmatprep.subr.bf16.mxu0 0
        %1847 = vmatpush1.bf16.msra.mxu0 0
        %1848 = vmatprep.subr.bf16.mxu0 0
        %1849 = vmatpush1.bf16.msra.mxu0 0
        %1850 = vmatprep.mubr.bf16.mxu0 0
        %1851 = vmatmul.mubr.bf16.gmra.mrb[0].mxu0 %v1728
        %v1852 = vpop.f32.mrb[0].mxu0
        %v1853 = vadd.f32 0.0, %v1852
        %v1854 = vpop.f32.mrb[0].mxu0
        %v1855 = vpop.f32.mrb[0].mxu0
        %v1856 = vadd.f32 0.0, %v1855
        %v1857 = vpop.f32.mrb[0].mxu0
        %1858 = vmatprep.mubr.bf16.mxu0 0
        %1859 = vmatmul.mubr.bf16.gmra.mrb[0].mxu0 %v1729
        %v1860 = vpop.f32.mrb[0].mxu0
        %v1861 = vadd.f32 0.0, %v1860
        %v1862 = vpop.f32.mrb[0].mxu0
        %v1863 = vpop.f32.mrb[0].mxu0
        %v1864 = vadd.f32 0.0, %v1863
        %v1865 = vpop.f32.mrb[0].mxu0
        %1866 = vmatprep.mubr.bf16.mxu0 0
        %1867 = vmatmul.mubr.bf16.gmra.mrb[0].mxu0 %v1730
        %v1868 = vpop.f32.mrb[0].mxu0
        %v1869 = vadd.f32 0.0, %v1868
        %v1870 = vpop.f32.mrb[0].mxu0
        %v1871 = vpop.f32.mrb[0].mxu0
        %v1872 = vadd.f32 0.0, %v1871
        %v1873 = vpop.f32.mrb[0].mxu0
        %1874 = vmatprep.mubr.bf16.mxu0 0
        %1875 = vmatmul.mubr.bf16.gmra.mrb[0].mxu0 %v1731
        %v1876 = vpop.f32.mrb[0].mxu0
        %v1877 = vadd.f32 0.0, %v1876
        %v1878 = vpop.f32.mrb[0].mxu0
        %v1879 = vpop.f32.mrb[0].mxu0
        %v1880 = vadd.f32 0.0, %v1879
        %v1881 = vpop.f32.mrb[0].mxu0
        %1882 = vmatprep.mubr.bf16.mxu0 0
        %1883 = vmatmul.mubr.bf16.gmra.mrb[0].mxu0 %v1732
        %v1884 = vpop.f32.mrb[0].mxu0
        %v1885 = vadd.f32 0.0, %v1884
        %v1886 = vpop.f32.mrb[0].mxu0
        %v1887 = vpop.f32.mrb[0].mxu0
        %v1888 = vadd.f32 0.0, %v1887
        %v1889 = vpop.f32.mrb[0].mxu0
        %1890 = vmatprep.mubr.bf16.mxu0 0
        %1891 = vmatmul.mubr.bf16.gmra.mrb[0].mxu0 %v1733
        %v1892 = vpop.f32.mrb[0].mxu0
        %v1893 = vadd.f32 0.0, %v1892
        %v1894 = vpop.f32.mrb[0].mxu0
        %v1895 = vpop.f32.mrb[0].mxu0
        %v1896 = vadd.f32 0.0, %v1895
        %v1897 = vpop.f32.mrb[0].mxu0
        %1898 = vmatprep.mubr.bf16.mxu0 0
        %1899 = vmatmul.mubr.bf16.gmra.mrb[0].mxu0 %v1734
        %v1900 = vpop.f32.mrb[0].mxu0
        %v1901 = vadd.f32 0.0, %v1900
        %v1902 = vpop.f32.mrb[0].mxu0
        %v1903 = vpop.f32.mrb[0].mxu0
        %v1904 = vadd.f32 0.0, %v1903
        %v1905 = vpop.f32.mrb[0].mxu0
        %1906 = vmatprep.mubr.bf16.mxu0 0
        %1907 = vmatmul.mubr.bf16.gmra.mrb[0].mxu0 %v1735
        %v1908 = vpop.f32.mrb[0].mxu0
        %v1909 = vadd.f32 0.0, %v1908
        %v1910 = vpop.f32.mrb[0].mxu0
        %v1911 = vpop.f32.mrb[0].mxu0
        %v1912 = vadd.f32 0.0, %v1911
        %v1913 = vpop.f32.mrb[0].mxu0
        %1914 = vdwg.mxu0
        %v1915 = vrot.slane %v1853, 7
        %v1916 = vrot.slane %v1856, 7
        %v1917 = vrot.slane %v1861, 7
        %v1918 = vrot.slane %v1864, 7
        %v1919 = vrot.slane %v1869, 7
        %v1920 = vrot.slane %v1872, 7
        %v1921 = vrot.slane %v1877, 7
        %v1922 = vrot.slane %v1880, 7
        %v1923 = vrot.slane %v1885, 7
        %v1924 = vrot.slane %v1888, 7
        %v1925 = vrot.slane %v1893, 7
        %v1926 = vrot.slane %v1896, 7
        %v1927 = vrot.slane %v1901, 7
        %v1928 = vrot.slane %v1904, 7
        %v1929 = vrot.slane %v1909, 7
        %v1930 = vrot.slane %v1912, 7
        %v1931 = vsel %vm931, %v1929, %v1930
        %v1932 = vsel %vm931, %v1928, %v1929
        %v1933 = vsel %vm931, %v1927, %v1928
        %v1934 = vsel %vm931, %v1926, %v1927
        %v1935 = vsel %vm931, %v1925, %v1926
        %v1936 = vsel %vm931, %v1924, %v1925
        %v1937 = vsel %vm931, %v1923, %v1924
        %v1938 = vsel %vm931, %v1922, %v1923
        %v1939 = vsel %vm931, %v1921, %v1922
        %v1940 = vsel %vm931, %v1920, %v1921
        %v1941 = vsel %vm931, %v1919, %v1920
        %v1942 = vsel %vm931, %v1918, %v1919
        %v1943 = vsel %vm931, %v1917, %v1918
        %v1944 = vsel %vm931, %v1916, %v1917
        %v1945 = vsel %vm931, %v1915, %v1916
        %v1946 = vsel %vm931, %v1930, %v1915
        %v1947 = vsel %vm1187, 0.0, %v1946
        %v1948 = vsel %vm1188, 0.0, %v1945
        %v1949 = vsel %vm1189, 0.0, %v1944
        %v1950 = vsel %vm1190, 0.0, %v1943
        %v1951 = vsel %vm1191, 0.0, %v1942
        %v1952 = vsel %vm1192, 0.0, %v1941
        %v1953 = vsel %vm1193, 0.0, %v1940
        %v1954 = vsel %vm1194, 0.0, %v1939
        %v1955 = vsel %vm1195, 0.0, %v1938
        %v1956 = vsel %vm1196, 0.0, %v1937
        %v1957 = vsel %vm1197, 0.0, %v1936
        %v1958 = vsel %vm1198, 0.0, %v1935
        %v1959 = vsel %vm1199, 0.0, %v1934
        %v1960 = vsel %vm1200, 0.0, %v1933
        %v1961 = vsel %vm1201, 0.0, %v1932
        %v1962 = vsel %vm1202, 0.0, %v1931
        %v1979 = vunpack.c.l.b16 %v1737
        %v1980 = vunpack.c.l.b16 %v1738
        %v1981 = vunpack.c.l.b16 %v1739
        %v1982 = vunpack.c.l.b16 %v1740
        %v1983 = vunpack.c.l.b16 %v1741
        %v1984 = vunpack.c.l.b16 %v1742
        %v1985 = vunpack.c.l.b16 %v1743
        %v1986 = vunpack.c.l.b16 %v1744
        %v1987 = vunpack.c.l.b16 %v1745
        %v1988 = vunpack.c.l.b16 %v1746
        %v1989 = vunpack.c.l.b16 %v1747
        %v1990 = vunpack.c.l.b16 %v1748
        %v1991 = vunpack.c.l.b16 %v1749
        %v1992 = vunpack.c.l.b16 %v1750
        %v1993 = vunpack.c.l.b16 %v1751
        %v1994 = vunpack.c.l.b16 %v1752
        %v1995 = vpack.c.b16 %v1980, %v1979
        %v1996 = vpack.c.b16 %v1982, %v1981
        %v1997 = vpack.c.b16 %v1984, %v1983
        %v1998 = vpack.c.b16 %v1986, %v1985
        %v1999 = vpack.c.b16 %v1988, %v1987
        %v2000 = vpack.c.b16 %v1990, %v1989
        %v2001 = vpack.c.b16 %v1992, %v1991
        %v2002 = vpack.c.b16 %v1994, %v1993
        %2011 = vmatprep.subr.bf16.mxu0 0
        %2012 = vmatpush1.bf16.msra.mxu0 %v1995
        %2013 = vmatprep.subr.bf16.mxu0 0
        %2014 = vmatpush1.bf16.msra.mxu0 %v1996
        %2015 = vmatprep.subr.bf16.mxu0 0
        %2016 = vmatpush1.bf16.msra.mxu0 %v1997
        %2017 = vmatprep.subr.bf16.mxu0 0
        %2018 = vmatpush1.bf16.msra.mxu0 %v1998
        %2019 = vmatprep.subr.bf16.mxu0 0
        %2020 = vmatpush1.bf16.msra.mxu0 %v1999
        %2021 = vmatprep.subr.bf16.mxu0 0
        %2022 = vmatpush1.bf16.msra.mxu0 %v2000
        %2023 = vmatprep.subr.bf16.mxu0 0
        %2024 = vmatpush1.bf16.msra.mxu0 %v2001
        %2025 = vmatprep.subr.bf16.mxu0 0
        %2026 = vmatpush1.bf16.msra.mxu0 %v2002
        %2027 = vmatprep.subr.bf16.mxu0 0
        %2028 = vmatpush1.bf16.msra.mxu0 0
        %2029 = vmatprep.subr.bf16.mxu0 0
        %2030 = vmatpush1.bf16.msra.mxu0 0
        %2031 = vmatprep.subr.bf16.mxu0 0
        %2032 = vmatpush1.bf16.msra.mxu0 0
        %2033 = vmatprep.subr.bf16.mxu0 0
        %2034 = vmatpush1.bf16.msra.mxu0 0
        %2035 = vmatprep.subr.bf16.mxu0 0
        %2036 = vmatpush1.bf16.msra.mxu0 0
        %2037 = vmatprep.subr.bf16.mxu0 0
        %2038 = vmatpush1.bf16.msra.mxu0 0
        %2039 = vmatprep.subr.bf16.mxu0 0
        %2040 = vmatpush1.bf16.msra.mxu0 0
        %2041 = vmatprep.subr.bf16.mxu0 0
        %2042 = vmatpush1.bf16.msra.mxu0 0
        %2043 = vmatprep.mubr.bf16.mxu0 0
        %2044 = vmatmul.mubr.bf16.gmra.mrb[0].mxu0 %v1728
        %v2045 = vpop.f32.mrb[0].mxu0
        %v2046 = vadd.f32 %v1947, %v2045
        %v2047 = vpop.f32.mrb[0].mxu0
        %v2048 = vpop.f32.mrb[0].mxu0
        %v2049 = vadd.f32 %v1948, %v2048
        %v2050 = vpop.f32.mrb[0].mxu0
        %2051 = vmatprep.mubr.bf16.mxu0 0
        %2052 = vmatmul.mubr.bf16.gmra.mrb[0].mxu0 %v1729
        %v2053 = vpop.f32.mrb[0].mxu0
        %v2054 = vadd.f32 %v1949, %v2053
        %v2055 = vpop.f32.mrb[0].mxu0
        %v2056 = vpop.f32.mrb[0].mxu0
        %v2057 = vadd.f32 %v1950, %v2056
        %v2058 = vpop.f32.mrb[0].mxu0
        %2059 = vmatprep.mubr.bf16.mxu0 0
        %2060 = vmatmul.mubr.bf16.gmra.mrb[0].mxu0 %v1730
        %v2061 = vpop.f32.mrb[0].mxu0
        %v2062 = vadd.f32 %v1951, %v2061
        %v2063 = vpop.f32.mrb[0].mxu0
        %v2064 = vpop.f32.mrb[0].mxu0
        %v2065 = vadd.f32 %v1952, %v2064
        %v2066 = vpop.f32.mrb[0].mxu0
        %2067 = vmatprep.mubr.bf16.mxu0 0
        %2068 = vmatmul.mubr.bf16.gmra.mrb[0].mxu0 %v1731
        %v2069 = vpop.f32.mrb[0].mxu0
        %v2070 = vadd.f32 %v1953, %v2069
        %v2071 = vpop.f32.mrb[0].mxu0
        %v2072 = vpop.f32.mrb[0].mxu0
        %v2073 = vadd.f32 %v1954, %v2072
        %v2074 = vpop.f32.mrb[0].mxu0
        %2075 = vmatprep.mubr.bf16.mxu0 0
        %2076 = vmatmul.mubr.bf16.gmra.mrb[0].mxu0 %v1732
        %v2077 = vpop.f32.mrb[0].mxu0
        %v2078 = vadd.f32 %v1955, %v2077
        %v2079 = vpop.f32.mrb[0].mxu0
        %v2080 = vpop.f32.mrb[0].mxu0
        %v2081 = vadd.f32 %v1956, %v2080
        %v2082 = vpop.f32.mrb[0].mxu0
        %2083 = vmatprep.mubr.bf16.mxu0 0
        %2084 = vmatmul.mubr.bf16.gmra.mrb[0].mxu0 %v1733
        %v2085 = vpop.f32.mrb[0].mxu0
        %v2086 = vadd.f32 %v1957, %v2085
        %v2087 = vpop.f32.mrb[0].mxu0
        %v2088 = vpop.f32.mrb[0].mxu0
        %v2089 = vadd.f32 %v1958, %v2088
        %v2090 = vpop.f32.mrb[0].mxu0
        %2091 = vmatprep.mubr.bf16.mxu0 0
        %2092 = vmatmul.mubr.bf16.gmra.mrb[0].mxu0 %v1734
        %v2093 = vpop.f32.mrb[0].mxu0
        %v2094 = vadd.f32 %v1959, %v2093
        %v2095 = vpop.f32.mrb[0].mxu0
        %v2096 = vpop.f32.mrb[0].mxu0
        %v2097 = vadd.f32 %v1960, %v2096
        %v2098 = vpop.f32.mrb[0].mxu0
        %2099 = vmatprep.mubr.bf16.mxu0 0
        %2100 = vmatmul.mubr.bf16.gmra.mrb[0].mxu0 %v1735
        %v2101 = vpop.f32.mrb[0].mxu0
        %v2102 = vadd.f32 %v1961, %v2101
        %v2103 = vpop.f32.mrb[0].mxu0
        %v2104 = vpop.f32.mrb[0].mxu0
        %v2105 = vadd.f32 %v1962, %v2104
        %v2106 = vpop.f32.mrb[0].mxu0
        %2107 = vdwg.mxu0
        %s2108 = scalar_lea.vmem %s4, 320
        %v2109 = vld [vmem:[%s2108] sm:$0xf]
        %v2110 = vld [vmem:[%s2108 + $0x4] sm:$0xf]
        %v2111 = vld [vmem:[%s2108 + $0x8] sm:$0xf]
        %v2112 = vld [vmem:[%s2108 + $0xc] sm:$0xf]
        %v2113 = vld [vmem:[%s2108 + $0x10] sm:$0xf]
        %v2114 = vld [vmem:[%s2108 + $0x14] sm:$0xf]
        %v2115 = vld [vmem:[%s2108 + $0x18] sm:$0xf]
        %v2116 = vld [vmem:[%s2108 + $0x1c] sm:$0xf]
        %v2117 = vld [vmem:[%s2108 + $0x20] sm:$0xf]
        %v2118 = vld [vmem:[%s2108 + $0x24] sm:$0xf]
        %v2119 = vld [vmem:[%s2108 + $0x28] sm:$0xf]
        %v2120 = vld [vmem:[%s2108 + $0x2c] sm:$0xf]
        %v2121 = vld [vmem:[%s2108 + $0x30] sm:$0xf]
        %v2122 = vld [vmem:[%s2108 + $0x34] sm:$0xf]
        %v2123 = vld [vmem:[%s2108 + $0x38] sm:$0xf]
        %v2124 = vld [vmem:[%s2108 + $0x3c] sm:$0xf]
        %v2141 = vunpack.c.l.b16 %v2109
        %v2142 = vunpack.c.l.b16 %v2110
        %v2143 = vunpack.c.l.b16 %v2111
        %v2144 = vunpack.c.l.b16 %v2112
        %v2145 = vunpack.c.l.b16 %v2113
        %v2146 = vunpack.c.l.b16 %v2114
        %v2147 = vunpack.c.l.b16 %v2115
        %v2148 = vunpack.c.l.b16 %v2116
        %v2149 = vunpack.c.l.b16 %v2117
        %v2150 = vunpack.c.l.b16 %v2118
        %v2151 = vunpack.c.l.b16 %v2119
        %v2152 = vunpack.c.l.b16 %v2120
        %v2153 = vunpack.c.l.b16 %v2121
        %v2154 = vunpack.c.l.b16 %v2122
        %v2155 = vunpack.c.l.b16 %v2123
        %v2156 = vunpack.c.l.b16 %v2124
        %v2157 = vpack.c.b16 %v2142, %v2141
        %v2158 = vpack.c.b16 %v2144, %v2143
        %v2159 = vpack.c.b16 %v2146, %v2145
        %v2160 = vpack.c.b16 %v2148, %v2147
        %v2161 = vpack.c.b16 %v2150, %v2149
        %v2162 = vpack.c.b16 %v2152, %v2151
        %v2163 = vpack.c.b16 %v2154, %v2153
        %v2164 = vpack.c.b16 %v2156, %v2155
        %2173 = vmatprep.subr.bf16.mxu0 0
        %2174 = vmatpush1.bf16.msra.mxu0 %v2157
        %2175 = vmatprep.subr.bf16.mxu0 0
        %2176 = vmatpush1.bf16.msra.mxu0 %v2158
        %2177 = vmatprep.subr.bf16.mxu0 0
        %2178 = vmatpush1.bf16.msra.mxu0 %v2159
        %2179 = vmatprep.subr.bf16.mxu0 0
        %2180 = vmatpush1.bf16.msra.mxu0 %v2160
        %2181 = vmatprep.subr.bf16.mxu0 0
        %2182 = vmatpush1.bf16.msra.mxu0 %v2161
        %2183 = vmatprep.subr.bf16.mxu0 0
        %2184 = vmatpush1.bf16.msra.mxu0 %v2162
        %2185 = vmatprep.subr.bf16.mxu0 0
        %2186 = vmatpush1.bf16.msra.mxu0 %v2163
        %2187 = vmatprep.subr.bf16.mxu0 0
        %2188 = vmatpush1.bf16.msra.mxu0 %v2164
        %2189 = vmatprep.subr.bf16.mxu0 0
        %2190 = vmatpush1.bf16.msra.mxu0 0
        %2191 = vmatprep.subr.bf16.mxu0 0
        %2192 = vmatpush1.bf16.msra.mxu0 0
        %2193 = vmatprep.subr.bf16.mxu0 0
        %2194 = vmatpush1.bf16.msra.mxu0 0
        %2195 = vmatprep.subr.bf16.mxu0 0
        %2196 = vmatpush1.bf16.msra.mxu0 0
        %2197 = vmatprep.subr.bf16.mxu0 0
        %2198 = vmatpush1.bf16.msra.mxu0 0
        %2199 = vmatprep.subr.bf16.mxu0 0
        %2200 = vmatpush1.bf16.msra.mxu0 0
        %2201 = vmatprep.subr.bf16.mxu0 0
        %2202 = vmatpush1.bf16.msra.mxu0 0
        %2203 = vmatprep.subr.bf16.mxu0 0
        %2204 = vmatpush1.bf16.msra.mxu0 0
        %2205 = vmatprep.mubr.bf16.mxu0 0
        %2206 = vmatmul.mubr.bf16.gmra.mrb[0].mxu0 %v1728
        %v2207 = vpop.f32.mrb[0].mxu0
        %v2208 = vadd.f32 0.0, %v2207
        %v2209 = vpop.f32.mrb[0].mxu0
        %v2210 = vpop.f32.mrb[0].mxu0
        %v2211 = vadd.f32 0.0, %v2210
        %v2212 = vpop.f32.mrb[0].mxu0
        %2213 = vmatprep.mubr.bf16.mxu0 0
        %2214 = vmatmul.mubr.bf16.gmra.mrb[0].mxu0 %v1729
        %v2215 = vpop.f32.mrb[0].mxu0
        %v2216 = vadd.f32 0.0, %v2215
        %v2217 = vpop.f32.mrb[0].mxu0
        %v2218 = vpop.f32.mrb[0].mxu0
        %v2219 = vadd.f32 0.0, %v2218
        %v2220 = vpop.f32.mrb[0].mxu0
        %2221 = vmatprep.mubr.bf16.mxu0 0
        %2222 = vmatmul.mubr.bf16.gmra.mrb[0].mxu0 %v1730
        %v2223 = vpop.f32.mrb[0].mxu0
        %v2224 = vadd.f32 0.0, %v2223
        %v2225 = vpop.f32.mrb[0].mxu0
        %v2226 = vpop.f32.mrb[0].mxu0
        %v2227 = vadd.f32 0.0, %v2226
        %v2228 = vpop.f32.mrb[0].mxu0
        %2229 = vmatprep.mubr.bf16.mxu0 0
        %2230 = vmatmul.mubr.bf16.gmra.mrb[0].mxu0 %v1731
        %v2231 = vpop.f32.mrb[0].mxu0
        %v2232 = vadd.f32 0.0, %v2231
        %v2233 = vpop.f32.mrb[0].mxu0
        %v2234 = vpop.f32.mrb[0].mxu0
        %v2235 = vadd.f32 0.0, %v2234
        %v2236 = vpop.f32.mrb[0].mxu0
        %2237 = vmatprep.mubr.bf16.mxu0 0
        %2238 = vmatmul.mubr.bf16.gmra.mrb[0].mxu0 %v1732
        %v2239 = vpop.f32.mrb[0].mxu0
        %v2240 = vadd.f32 0.0, %v2239
        %v2241 = vpop.f32.mrb[0].mxu0
        %v2242 = vpop.f32.mrb[0].mxu0
        %v2243 = vadd.f32 0.0, %v2242
        %v2244 = vpop.f32.mrb[0].mxu0
        %2245 = vmatprep.mubr.bf16.mxu0 0
        %2246 = vmatmul.mubr.bf16.gmra.mrb[0].mxu0 %v1733
        %v2247 = vpop.f32.mrb[0].mxu0
        %v2248 = vadd.f32 0.0, %v2247
        %v2249 = vpop.f32.mrb[0].mxu0
        %v2250 = vpop.f32.mrb[0].mxu0
        %v2251 = vadd.f32 0.0, %v2250
        %v2252 = vpop.f32.mrb[0].mxu0
        %2253 = vmatprep.mubr.bf16.mxu0 0
        %2254 = vmatmul.mubr.bf16.gmra.mrb[0].mxu0 %v1734
        %v2255 = vpop.f32.mrb[0].mxu0
        %v2256 = vadd.f32 0.0, %v2255
        %v2257 = vpop.f32.mrb[0].mxu0
        %v2258 = vpop.f32.mrb[0].mxu0
        %v2259 = vadd.f32 0.0, %v2258
        %v2260 = vpop.f32.mrb[0].mxu0
        %2261 = vmatprep.mubr.bf16.mxu0 0
        %2262 = vmatmul.mubr.bf16.gmra.mrb[0].mxu0 %v1735
        %v2263 = vpop.f32.mrb[0].mxu0
        %v2264 = vadd.f32 0.0, %v2263
        %v2265 = vpop.f32.mrb[0].mxu0
        %v2266 = vpop.f32.mrb[0].mxu0
        %v2267 = vadd.f32 0.0, %v2266
        %v2268 = vpop.f32.mrb[0].mxu0
        %2269 = vdwg.mxu0
        %v2270 = vrot.slane %v2208, 1
        %v2271 = vrot.slane %v2211, 1
        %v2272 = vrot.slane %v2216, 1
        %v2273 = vrot.slane %v2219, 1
        %v2274 = vrot.slane %v2224, 1
        %v2275 = vrot.slane %v2227, 1
        %v2276 = vrot.slane %v2232, 1
        %v2277 = vrot.slane %v2235, 1
        %v2278 = vrot.slane %v2240, 1
        %v2279 = vrot.slane %v2243, 1
        %v2280 = vrot.slane %v2248, 1
        %v2281 = vrot.slane %v2251, 1
        %v2282 = vrot.slane %v2256, 1
        %v2283 = vrot.slane %v2259, 1
        %v2284 = vrot.slane %v2264, 1
        %v2285 = vrot.slane %v2267, 1
        %v2286 = vsel %vm1542, %v2284, %v2285
        %v2287 = vsel %vm1542, %v2283, %v2284
        %v2288 = vsel %vm1542, %v2282, %v2283
        %v2289 = vsel %vm1542, %v2281, %v2282
        %v2290 = vsel %vm1542, %v2280, %v2281
        %v2291 = vsel %vm1542, %v2279, %v2280
        %v2292 = vsel %vm1542, %v2278, %v2279
        %v2293 = vsel %vm1542, %v2277, %v2278
        %v2294 = vsel %vm1542, %v2276, %v2277
        %v2295 = vsel %vm1542, %v2275, %v2276
        %v2296 = vsel %vm1542, %v2274, %v2275
        %v2297 = vsel %vm1542, %v2273, %v2274
        %v2298 = vsel %vm1542, %v2272, %v2273
        %v2299 = vsel %vm1542, %v2271, %v2272
        %v2300 = vsel %vm1542, %v2270, %v2271
        %v2301 = vsel %vm1542, %v2285, %v2270
        %v2302 = vsel %vm1591, 0.0, %v2300
        %v2303 = vsel %vm1592, 0.0, %v2299
        %v2304 = vsel %vm1593, 0.0, %v2298
        %v2305 = vsel %vm1594, 0.0, %v2297
        %v2306 = vsel %vm1595, 0.0, %v2296
        %v2307 = vsel %vm1596, 0.0, %v2295
        %v2308 = vsel %vm1597, 0.0, %v2294
        %v2309 = vsel %vm1598, 0.0, %v2293
        %v2310 = vsel %vm1599, 0.0, %v2292
        %v2311 = vsel %vm1600, 0.0, %v2291
        %v2312 = vsel %vm1601, 0.0, %v2290
        %v2313 = vsel %vm1602, 0.0, %v2289
        %v2314 = vsel %vm1603, 0.0, %v2288
        %v2315 = vsel %vm1604, 0.0, %v2287
        %v2316 = vsel %vm1605, 0.0, %v2286
        %v2317 = vsel %vm1606, 0.0, %v2301
        %v2318 = vadd.f32 %v2046, %v2302
        %v2319 = vadd.f32 %v2049, %v2303
        %v2320 = vadd.f32 %v2054, %v2304
        %v2321 = vadd.f32 %v2057, %v2305
        %v2322 = vadd.f32 %v2062, %v2306
        %v2323 = vadd.f32 %v2065, %v2307
        %v2324 = vadd.f32 %v2070, %v2308
        %v2325 = vadd.f32 %v2073, %v2309
        %v2326 = vadd.f32 %v2078, %v2310
        %v2327 = vadd.f32 %v2081, %v2311
        %v2328 = vadd.f32 %v2086, %v2312
        %v2329 = vadd.f32 %v2089, %v2313
        %v2330 = vadd.f32 %v2094, %v2314
        %v2331 = vadd.f32 %v2097, %v2315
        %v2332 = vadd.f32 %v2102, %v2316
        %v2333 = vadd.f32 %v2105, %v2317
        %s2334 = scalar_lea.vmem [#allocation2], 2
        %v2335 = vld [vmem:[%s2334] sm:$0x3]
        %v2336 = vlaneseq
        %v2337 = vshrl.u32 %v2336, 7
        %v2338 = vsub.s32 0, %v2337
        %v2339 = vrot.slane %v2335, %v2338
        %v2340 = vmul.f32 %v2318, %v2339
        %v2341 = vmul.f32 %v2319, %v2339
        %v2342 = vmul.f32 %v2320, %v2339
        %v2343 = vmul.f32 %v2321, %v2339
        %v2344 = vmul.f32 %v2322, %v2339
        %v2345 = vmul.f32 %v2323, %v2339
        %v2346 = vmul.f32 %v2324, %v2339
        %v2347 = vmul.f32 %v2325, %v2339
        %v2348 = vmul.f32 %v2326, %v2339
        %v2349 = vmul.f32 %v2327, %v2339
        %v2350 = vmul.f32 %v2328, %v2339
        %v2351 = vmul.f32 %v2329, %v2339
        %v2352 = vmul.f32 %v2330, %v2339
        %v2353 = vmul.f32 %v2331, %v2339
        %v2354 = vmul.f32 %v2332, %v2339
        %v2355 = vmul.f32 %v2333, %v2339
        %v2356 = vlaneseq
        %v2357 = vshrl.u32 %v2356, 7
        %v2358 = vsub.s32 1, %v2357
        %v2359 = vrot.slane %v2335, %v2358
        %v2360 = vadd.f32 %v2340, %v2359
        %v2361 = vadd.f32 %v2341, %v2359
        %v2362 = vadd.f32 %v2342, %v2359
        %v2363 = vadd.f32 %v2343, %v2359
        %v2364 = vadd.f32 %v2344, %v2359
        %v2365 = vadd.f32 %v2345, %v2359
        %v2366 = vadd.f32 %v2346, %v2359
        %v2367 = vadd.f32 %v2347, %v2359
        %v2368 = vadd.f32 %v2348, %v2359
        %v2369 = vadd.f32 %v2349, %v2359
        %v2370 = vadd.f32 %v2350, %v2359
        %v2371 = vadd.f32 %v2351, %v2359
        %v2372 = vadd.f32 %v2352, %v2359
        %v2373 = vadd.f32 %v2353, %v2359
        %v2374 = vadd.f32 %v2354, %v2359
        %v2375 = vadd.f32 %v2355, %v2359
        %vm2376 = vcmp.gt.f32.partialorder %v2360, 0.0
        %vm2377 = vcmp.gt.f32.partialorder %v2361, 0.0
        %vm2378 = vcmp.gt.f32.partialorder %v2362, 0.0
        %vm2379 = vcmp.gt.f32.partialorder %v2363, 0.0
        %vm2380 = vcmp.gt.f32.partialorder %v2364, 0.0
        %vm2381 = vcmp.gt.f32.partialorder %v2365, 0.0
        %vm2382 = vcmp.gt.f32.partialorder %v2366, 0.0
        %vm2383 = vcmp.gt.f32.partialorder %v2367, 0.0
        %vm2384 = vcmp.gt.f32.partialorder %v2368, 0.0
        %vm2385 = vcmp.gt.f32.partialorder %v2369, 0.0
        %vm2386 = vcmp.gt.f32.partialorder %v2370, 0.0
        %vm2387 = vcmp.gt.f32.partialorder %v2371, 0.0
        %vm2388 = vcmp.gt.f32.partialorder %v2372, 0.0
        %vm2389 = vcmp.gt.f32.partialorder %v2373, 0.0
        %vm2390 = vcmp.gt.f32.partialorder %v2374, 0.0
        %vm2391 = vcmp.gt.f32.partialorder %v2375, 0.0
        %v2392 = vmul.f32 %v2360, 0.2
        %v2393 = vmul.f32 %v2361, 0.2
        %v2394 = vmul.f32 %v2362, 0.2
        %v2395 = vmul.f32 %v2363, 0.2
        %v2396 = vmul.f32 %v2364, 0.2
        %v2397 = vmul.f32 %v2365, 0.2
        %v2398 = vmul.f32 %v2366, 0.2
        %v2399 = vmul.f32 %v2367, 0.2
        %v2400 = vmul.f32 %v2368, 0.2
        %v2401 = vmul.f32 %v2369, 0.2
        %v2402 = vmul.f32 %v2370, 0.2
        %v2403 = vmul.f32 %v2371, 0.2
        %v2404 = vmul.f32 %v2372, 0.2
        %v2405 = vmul.f32 %v2373, 0.2
        %v2406 = vmul.f32 %v2374, 0.2
        %v2407 = vmul.f32 %v2375, 0.2
        %v2408 = vsel %vm2376, %v2360, %v2392
        %v2409 = vsel %vm2377, %v2361, %v2393
        %v2410 = vsel %vm2378, %v2362, %v2394
        %v2411 = vsel %vm2379, %v2363, %v2395
        %v2412 = vsel %vm2380, %v2364, %v2396
        %v2413 = vsel %vm2381, %v2365, %v2397
        %v2414 = vsel %vm2382, %v2366, %v2398
        %v2415 = vsel %vm2383, %v2367, %v2399
        %v2416 = vsel %vm2384, %v2368, %v2400
        %v2417 = vsel %vm2385, %v2369, %v2401
        %v2418 = vsel %vm2386, %v2370, %v2402
        %v2419 = vsel %vm2387, %v2371, %v2403
        %v2420 = vsel %vm2388, %v2372, %v2404
        %v2421 = vsel %vm2389, %v2373, %v2405
        %v2422 = vsel %vm2390, %v2374, %v2406
        %v2423 = vsel %vm2391, %v2375, %v2407
        %v2424 = vpack.c.bf16 %v2409, %v2408
        %v2425 = vpack.c.bf16 %v2411, %v2410
        %v2426 = vpack.c.bf16 %v2413, %v2412
        %v2427 = vpack.c.bf16 %v2415, %v2414
        %v2428 = vpack.c.bf16 %v2417, %v2416
        %v2429 = vpack.c.bf16 %v2419, %v2418
        %v2430 = vpack.c.bf16 %v2421, %v2420
        %v2431 = vpack.c.bf16 %v2423, %v2422
        %v2432 = vunpack.c.l.bf16 %v2424
        %v2433 = vunpack.c.h.bf16 %v2424
        %v2434 = vunpack.c.l.bf16 %v2425
        %v2435 = vunpack.c.h.bf16 %v2425
        %v2436 = vunpack.c.l.bf16 %v2426
        %v2437 = vunpack.c.h.bf16 %v2426
        %v2438 = vunpack.c.l.bf16 %v2427
        %v2439 = vunpack.c.h.bf16 %v2427
        %v2440 = vunpack.c.l.bf16 %v2428
        %v2441 = vunpack.c.h.bf16 %v2428
        %v2442 = vunpack.c.l.bf16 %v2429
        %v2443 = vunpack.c.h.bf16 %v2429
        %v2444 = vunpack.c.l.bf16 %v2430
        %v2445 = vunpack.c.h.bf16 %v2430
        %v2446 = vunpack.c.l.bf16 %v2431
        %v2447 = vunpack.c.h.bf16 %v2431
        %v2464 = vcombine.high %v2432, %v2432
        %v2466 = vunpack.c.l.s4 1983009808
        %v2467 = vunpack.c.0.s8 %v2466
        %v2468 = vlaneseq
        %v2469 = vshrl.u32 %v2468, 7
        %v2470 = vsub.s32 %v2467, %v2469
        %v2471 = vrot.slane %v2432, %v2470
        %v2473 = vunpack.c.l.s4 1983009808
        %v2474 = vunpack.c.0.s8 %v2473
        %v2475 = vlaneseq
        %v2476 = vshrl.u32 %v2475, 7
        %v2477 = vsub.s32 %v2474, %v2476
        %v2478 = vrot.slane %v2464, %v2477
        %v2479 = vcombine.high %v2471, %v2471
        %v2480 = vcombine.high %v2478, %v2478
        %v2481 = vcombine.high %v2433, %v2433
        %v2483 = vunpack.c.l.s4 1983009808
        %v2484 = vunpack.c.0.s8 %v2483
        %v2485 = vlaneseq
        %v2486 = vshrl.u32 %v2485, 7
        %v2487 = vsub.s32 %v2484, %v2486
        %v2488 = vrot.slane %v2433, %v2487
        %v2490 = vunpack.c.l.s4 1983009808
        %v2491 = vunpack.c.0.s8 %v2490
        %v2492 = vlaneseq
        %v2493 = vshrl.u32 %v2492, 7
        %v2494 = vsub.s32 %v2491, %v2493
        %v2495 = vrot.slane %v2481, %v2494
        %v2496 = vcombine.high %v2488, %v2488
        %v2497 = vcombine.high %v2495, %v2495
        %v2498 = vcombine.high %v2434, %v2434
        %v2500 = vunpack.c.l.s4 1983009808
        %v2501 = vunpack.c.0.s8 %v2500
        %v2502 = vlaneseq
        %v2503 = vshrl.u32 %v2502, 7
        %v2504 = vsub.s32 %v2501, %v2503
        %v2505 = vrot.slane %v2434, %v2504
        %v2507 = vunpack.c.l.s4 1983009808
        %v2508 = vunpack.c.0.s8 %v2507
        %v2509 = vlaneseq
        %v2510 = vshrl.u32 %v2509, 7
        %v2511 = vsub.s32 %v2508, %v2510
        %v2512 = vrot.slane %v2498, %v2511
        %v2513 = vcombine.high %v2505, %v2505
        %v2514 = vcombine.high %v2512, %v2512
        %v2515 = vcombine.high %v2435, %v2435
        %v2517 = vunpack.c.l.s4 1983009808
        %v2518 = vunpack.c.0.s8 %v2517
        %v2519 = vlaneseq
        %v2520 = vshrl.u32 %v2519, 7
        %v2521 = vsub.s32 %v2518, %v2520
        %v2522 = vrot.slane %v2435, %v2521
        %v2524 = vunpack.c.l.s4 1983009808
        %v2525 = vunpack.c.0.s8 %v2524
        %v2526 = vlaneseq
        %v2527 = vshrl.u32 %v2526, 7
        %v2528 = vsub.s32 %v2525, %v2527
        %v2529 = vrot.slane %v2515, %v2528
        %v2530 = vcombine.high %v2522, %v2522
        %v2531 = vcombine.high %v2529, %v2529
        %v2532 = vcombine.high %v2436, %v2436
        %v2534 = vunpack.c.l.s4 1983009808
        %v2535 = vunpack.c.0.s8 %v2534
        %v2536 = vlaneseq
        %v2537 = vshrl.u32 %v2536, 7
        %v2538 = vsub.s32 %v2535, %v2537
        %v2539 = vrot.slane %v2436, %v2538
        %v2541 = vunpack.c.l.s4 1983009808
        %v2542 = vunpack.c.0.s8 %v2541
        %v2543 = vlaneseq
        %v2544 = vshrl.u32 %v2543, 7
        %v2545 = vsub.s32 %v2542, %v2544
        %v2546 = vrot.slane %v2532, %v2545
        %v2547 = vcombine.high %v2539, %v2539
        %v2548 = vcombine.high %v2546, %v2546
        %v2549 = vcombine.high %v2437, %v2437
        %v2551 = vunpack.c.l.s4 1983009808
        %v2552 = vunpack.c.0.s8 %v2551
        %v2553 = vlaneseq
        %v2554 = vshrl.u32 %v2553, 7
        %v2555 = vsub.s32 %v2552, %v2554
        %v2556 = vrot.slane %v2437, %v2555
        %v2558 = vunpack.c.l.s4 1983009808
        %v2559 = vunpack.c.0.s8 %v2558
        %v2560 = vlaneseq
        %v2561 = vshrl.u32 %v2560, 7
        %v2562 = vsub.s32 %v2559, %v2561
        %v2563 = vrot.slane %v2549, %v2562
        %v2564 = vcombine.high %v2556, %v2556
        %v2565 = vcombine.high %v2563, %v2563
        %v2566 = vcombine.high %v2438, %v2438
        %v2568 = vunpack.c.l.s4 1983009808
        %v2569 = vunpack.c.0.s8 %v2568
        %v2570 = vlaneseq
        %v2571 = vshrl.u32 %v2570, 7
        %v2572 = vsub.s32 %v2569, %v2571
        %v2573 = vrot.slane %v2438, %v2572
        %v2575 = vunpack.c.l.s4 1983009808
        %v2576 = vunpack.c.0.s8 %v2575
        %v2577 = vlaneseq
        %v2578 = vshrl.u32 %v2577, 7
        %v2579 = vsub.s32 %v2576, %v2578
        %v2580 = vrot.slane %v2566, %v2579
        %v2581 = vcombine.high %v2573, %v2573
        %v2582 = vcombine.high %v2580, %v2580
        %v2583 = vcombine.high %v2439, %v2439
        %v2585 = vunpack.c.l.s4 1983009808
        %v2586 = vunpack.c.0.s8 %v2585
        %v2587 = vlaneseq
        %v2588 = vshrl.u32 %v2587, 7
        %v2589 = vsub.s32 %v2586, %v2588
        %v2590 = vrot.slane %v2439, %v2589
        %v2592 = vunpack.c.l.s4 1983009808
        %v2593 = vunpack.c.0.s8 %v2592
        %v2594 = vlaneseq
        %v2595 = vshrl.u32 %v2594, 7
        %v2596 = vsub.s32 %v2593, %v2595
        %v2597 = vrot.slane %v2583, %v2596
        %v2598 = vcombine.high %v2590, %v2590
        %v2599 = vcombine.high %v2597, %v2597
        %v2600 = vcombine.high %v2440, %v2440
        %v2602 = vunpack.c.l.s4 1983009808
        %v2603 = vunpack.c.0.s8 %v2602
        %v2604 = vlaneseq
        %v2605 = vshrl.u32 %v2604, 7
        %v2606 = vsub.s32 %v2603, %v2605
        %v2607 = vrot.slane %v2440, %v2606
        %v2609 = vunpack.c.l.s4 1983009808
        %v2610 = vunpack.c.0.s8 %v2609
        %v2611 = vlaneseq
        %v2612 = vshrl.u32 %v2611, 7
        %v2613 = vsub.s32 %v2610, %v2612
        %v2614 = vrot.slane %v2600, %v2613
        %v2615 = vcombine.high %v2607, %v2607
        %v2616 = vcombine.high %v2614, %v2614
        %v2617 = vcombine.high %v2441, %v2441
        %v2619 = vunpack.c.l.s4 1983009808
        %v2620 = vunpack.c.0.s8 %v2619
        %v2621 = vlaneseq
        %v2622 = vshrl.u32 %v2621, 7
        %v2623 = vsub.s32 %v2620, %v2622
        %v2624 = vrot.slane %v2441, %v2623
        %v2626 = vunpack.c.l.s4 1983009808
        %v2627 = vunpack.c.0.s8 %v2626
        %v2628 = vlaneseq
        %v2629 = vshrl.u32 %v2628, 7
        %v2630 = vsub.s32 %v2627, %v2629
        %v2631 = vrot.slane %v2617, %v2630
        %v2632 = vcombine.high %v2624, %v2624
        %v2633 = vcombine.high %v2631, %v2631
        %v2634 = vcombine.high %v2442, %v2442
        %v2636 = vunpack.c.l.s4 1983009808
        %v2637 = vunpack.c.0.s8 %v2636
        %v2638 = vlaneseq
        %v2639 = vshrl.u32 %v2638, 7
        %v2640 = vsub.s32 %v2637, %v2639
        %v2641 = vrot.slane %v2442, %v2640
        %v2643 = vunpack.c.l.s4 1983009808
        %v2644 = vunpack.c.0.s8 %v2643
        %v2645 = vlaneseq
        %v2646 = vshrl.u32 %v2645, 7
        %v2647 = vsub.s32 %v2644, %v2646
        %v2648 = vrot.slane %v2634, %v2647
        %v2649 = vcombine.high %v2641, %v2641
        %v2650 = vcombine.high %v2648, %v2648
        %v2651 = vcombine.high %v2443, %v2443
        %v2653 = vunpack.c.l.s4 1983009808
        %v2654 = vunpack.c.0.s8 %v2653
        %v2655 = vlaneseq
        %v2656 = vshrl.u32 %v2655, 7
        %v2657 = vsub.s32 %v2654, %v2656
        %v2658 = vrot.slane %v2443, %v2657
        %v2660 = vunpack.c.l.s4 1983009808
        %v2661 = vunpack.c.0.s8 %v2660
        %v2662 = vlaneseq
        %v2663 = vshrl.u32 %v2662, 7
        %v2664 = vsub.s32 %v2661, %v2663
        %v2665 = vrot.slane %v2651, %v2664
        %v2666 = vcombine.high %v2658, %v2658
        %v2667 = vcombine.high %v2665, %v2665
        %v2668 = vcombine.high %v2444, %v2444
        %v2670 = vunpack.c.l.s4 1983009808
        %v2671 = vunpack.c.0.s8 %v2670
        %v2672 = vlaneseq
        %v2673 = vshrl.u32 %v2672, 7
        %v2674 = vsub.s32 %v2671, %v2673
        %v2675 = vrot.slane %v2444, %v2674
        %v2677 = vunpack.c.l.s4 1983009808
        %v2678 = vunpack.c.0.s8 %v2677
        %v2679 = vlaneseq
        %v2680 = vshrl.u32 %v2679, 7
        %v2681 = vsub.s32 %v2678, %v2680
        %v2682 = vrot.slane %v2668, %v2681
        %v2683 = vcombine.high %v2675, %v2675
        %v2684 = vcombine.high %v2682, %v2682
        %v2685 = vcombine.high %v2445, %v2445
        %v2687 = vunpack.c.l.s4 1983009808
        %v2688 = vunpack.c.0.s8 %v2687
        %v2689 = vlaneseq
        %v2690 = vshrl.u32 %v2689, 7
        %v2691 = vsub.s32 %v2688, %v2690
        %v2692 = vrot.slane %v2445, %v2691
        %v2694 = vunpack.c.l.s4 1983009808
        %v2695 = vunpack.c.0.s8 %v2694
        %v2696 = vlaneseq
        %v2697 = vshrl.u32 %v2696, 7
        %v2698 = vsub.s32 %v2695, %v2697
        %v2699 = vrot.slane %v2685, %v2698
        %v2700 = vcombine.high %v2692, %v2692
        %v2701 = vcombine.high %v2699, %v2699
        %v2702 = vcombine.high %v2446, %v2446
        %v2704 = vunpack.c.l.s4 1983009808
        %v2705 = vunpack.c.0.s8 %v2704
        %v2706 = vlaneseq
        %v2707 = vshrl.u32 %v2706, 7
        %v2708 = vsub.s32 %v2705, %v2707
        %v2709 = vrot.slane %v2446, %v2708
        %v2711 = vunpack.c.l.s4 1983009808
        %v2712 = vunpack.c.0.s8 %v2711
        %v2713 = vlaneseq
        %v2714 = vshrl.u32 %v2713, 7
        %v2715 = vsub.s32 %v2712, %v2714
        %v2716 = vrot.slane %v2702, %v2715
        %v2717 = vcombine.high %v2709, %v2709
        %v2718 = vcombine.high %v2716, %v2716
        %v2719 = vcombine.high %v2447, %v2447
        %v2721 = vunpack.c.l.s4 1983009808
        %v2722 = vunpack.c.0.s8 %v2721
        %v2723 = vlaneseq
        %v2724 = vshrl.u32 %v2723, 7
        %v2725 = vsub.s32 %v2722, %v2724
        %v2726 = vrot.slane %v2447, %v2725
        %v2728 = vunpack.c.l.s4 1983009808
        %v2729 = vunpack.c.0.s8 %v2728
        %v2730 = vlaneseq
        %v2731 = vshrl.u32 %v2730, 7
        %v2732 = vsub.s32 %v2729, %v2731
        %v2733 = vrot.slane %v2719, %v2732
        %v2734 = vcombine.high %v2726, %v2726
        %v2735 = vcombine.high %v2733, %v2733
        %v2800 = vpack.c.bf16 %v2471, %v2471
        %v2801 = vpack.c.bf16 %v2479, %v2479
        %v2802 = vpack.c.bf16 %v2478, %v2478
        %v2803 = vpack.c.bf16 %v2480, %v2480
        %v2804 = vpack.c.bf16 %v2488, %v2488
        %v2805 = vpack.c.bf16 %v2496, %v2496
        %v2806 = vpack.c.bf16 %v2495, %v2495
        %v2807 = vpack.c.bf16 %v2497, %v2497
        %v2808 = vpack.c.bf16 %v2505, %v2505
        %v2809 = vpack.c.bf16 %v2513, %v2513
        %v2810 = vpack.c.bf16 %v2512, %v2512
        %v2811 = vpack.c.bf16 %v2514, %v2514
        %v2812 = vpack.c.bf16 %v2522, %v2522
        %v2813 = vpack.c.bf16 %v2530, %v2530
        %v2814 = vpack.c.bf16 %v2529, %v2529
        %v2815 = vpack.c.bf16 %v2531, %v2531
        %v2816 = vpack.c.bf16 %v2539, %v2539
        %v2817 = vpack.c.bf16 %v2547, %v2547
        %v2818 = vpack.c.bf16 %v2546, %v2546
        %v2819 = vpack.c.bf16 %v2548, %v2548
        %v2820 = vpack.c.bf16 %v2556, %v2556
        %v2821 = vpack.c.bf16 %v2564, %v2564
        %v2822 = vpack.c.bf16 %v2563, %v2563
        %v2823 = vpack.c.bf16 %v2565, %v2565
        %v2824 = vpack.c.bf16 %v2573, %v2573
        %v2825 = vpack.c.bf16 %v2581, %v2581
        %v2826 = vpack.c.bf16 %v2580, %v2580
        %v2827 = vpack.c.bf16 %v2582, %v2582
        %v2828 = vpack.c.bf16 %v2590, %v2590
        %v2829 = vpack.c.bf16 %v2598, %v2598
        %v2830 = vpack.c.bf16 %v2597, %v2597
        %v2831 = vpack.c.bf16 %v2599, %v2599
        %v2832 = vpack.c.bf16 %v2607, %v2607
        %v2833 = vpack.c.bf16 %v2615, %v2615
        %v2834 = vpack.c.bf16 %v2614, %v2614
        %v2835 = vpack.c.bf16 %v2616, %v2616
        %v2836 = vpack.c.bf16 %v2624, %v2624
        %v2837 = vpack.c.bf16 %v2632, %v2632
        %v2838 = vpack.c.bf16 %v2631, %v2631
        %v2839 = vpack.c.bf16 %v2633, %v2633
        %v2840 = vpack.c.bf16 %v2641, %v2641
        %v2841 = vpack.c.bf16 %v2649, %v2649
        %v2842 = vpack.c.bf16 %v2648, %v2648
        %v2843 = vpack.c.bf16 %v2650, %v2650
        %v2844 = vpack.c.bf16 %v2658, %v2658
        %v2845 = vpack.c.bf16 %v2666, %v2666
        %v2846 = vpack.c.bf16 %v2665, %v2665
        %v2847 = vpack.c.bf16 %v2667, %v2667
        %v2848 = vpack.c.bf16 %v2675, %v2675
        %v2849 = vpack.c.bf16 %v2683, %v2683
        %v2850 = vpack.c.bf16 %v2682, %v2682
        %v2851 = vpack.c.bf16 %v2684, %v2684
        %v2852 = vpack.c.bf16 %v2692, %v2692
        %v2853 = vpack.c.bf16 %v2700, %v2700
        %v2854 = vpack.c.bf16 %v2699, %v2699
        %v2855 = vpack.c.bf16 %v2701, %v2701
        %v2856 = vpack.c.bf16 %v2709, %v2709
        %v2857 = vpack.c.bf16 %v2717, %v2717
        %v2858 = vpack.c.bf16 %v2716, %v2716
        %v2859 = vpack.c.bf16 %v2718, %v2718
        %v2860 = vpack.c.bf16 %v2726, %v2726
        %v2861 = vpack.c.bf16 %v2734, %v2734
        %v2862 = vpack.c.bf16 %v2733, %v2733
        %v2863 = vpack.c.bf16 %v2735, %v2735
        %s2864 = scalar_lea.vmem [#allocation5], 64
        %v2865 = vld [vmem:[%s2864] sm:$0xf]
        %v2866 = vld [vmem:[%s2864 + $0x4] sm:$0xf]
        %v2867 = vld [vmem:[%s2864 + $0x8] sm:$0xf]
        %v2868 = vld [vmem:[%s2864 + $0xc] sm:$0xf]
        %v2869 = vld [vmem:[%s2864 + $0x10] sm:$0xf]
        %v2870 = vld [vmem:[%s2864 + $0x14] sm:$0xf]
        %v2871 = vld [vmem:[%s2864 + $0x18] sm:$0xf]
        %v2872 = vld [vmem:[%s2864 + $0x1c] sm:$0xf]
        %v2873 = vld [vmem:[%s2864 + $0x20] sm:$0xf]
        %v2874 = vld [vmem:[%s2864 + $0x24] sm:$0xf]
        %v2875 = vld [vmem:[%s2864 + $0x28] sm:$0xf]
        %v2876 = vld [vmem:[%s2864 + $0x2c] sm:$0xf]
        %v2877 = vld [vmem:[%s2864 + $0x30] sm:$0xf]
        %v2878 = vld [vmem:[%s2864 + $0x34] sm:$0xf]
        %v2879 = vld [vmem:[%s2864 + $0x38] sm:$0xf]
        %v2880 = vld [vmem:[%s2864 + $0x3c] sm:$0xf]
        %s2881 = scalar_lea.vmem [#allocation5], 128
        %v2882 = vld [vmem:[%s2881] sm:$0xf]
        %v2883 = vld [vmem:[%s2881 + $0x4] sm:$0xf]
        %v2884 = vld [vmem:[%s2881 + $0x8] sm:$0xf]
        %v2885 = vld [vmem:[%s2881 + $0xc] sm:$0xf]
        %v2886 = vld [vmem:[%s2881 + $0x10] sm:$0xf]
        %v2887 = vld [vmem:[%s2881 + $0x14] sm:$0xf]
        %v2888 = vld [vmem:[%s2881 + $0x18] sm:$0xf]
        %v2889 = vld [vmem:[%s2881 + $0x1c] sm:$0xf]
        %v2890 = vld [vmem:[%s2881 + $0x20] sm:$0xf]
        %v2891 = vld [vmem:[%s2881 + $0x24] sm:$0xf]
        %v2892 = vld [vmem:[%s2881 + $0x28] sm:$0xf]
        %v2893 = vld [vmem:[%s2881 + $0x2c] sm:$0xf]
        %v2894 = vld [vmem:[%s2881 + $0x30] sm:$0xf]
        %v2895 = vld [vmem:[%s2881 + $0x34] sm:$0xf]
        %v2896 = vld [vmem:[%s2881 + $0x38] sm:$0xf]
        %v2897 = vld [vmem:[%s2881 + $0x3c] sm:$0xf]
        %v2962 = vunpack.c.l.b16 %v2800
        %v2963 = vunpack.c.l.b16 %v2801
        %v2964 = vunpack.c.l.b16 %v2802
        %v2965 = vunpack.c.l.b16 %v2803
        %v2966 = vunpack.c.l.b16 %v2804
        %v2967 = vunpack.c.l.b16 %v2805
        %v2968 = vunpack.c.l.b16 %v2806
        %v2969 = vunpack.c.l.b16 %v2807
        %v2970 = vunpack.c.l.b16 %v2808
        %v2971 = vunpack.c.l.b16 %v2809
        %v2972 = vunpack.c.l.b16 %v2810
        %v2973 = vunpack.c.l.b16 %v2811
        %v2974 = vunpack.c.l.b16 %v2812
        %v2975 = vunpack.c.l.b16 %v2813
        %v2976 = vunpack.c.l.b16 %v2814
        %v2977 = vunpack.c.l.b16 %v2815
        %v2978 = vunpack.c.l.b16 %v2816
        %v2979 = vunpack.c.l.b16 %v2817
        %v2980 = vunpack.c.l.b16 %v2818
        %v2981 = vunpack.c.l.b16 %v2819
        %v2982 = vunpack.c.l.b16 %v2820
        %v2983 = vunpack.c.l.b16 %v2821
        %v2984 = vunpack.c.l.b16 %v2822
        %v2985 = vunpack.c.l.b16 %v2823
        %v2986 = vunpack.c.l.b16 %v2824
        %v2987 = vunpack.c.l.b16 %v2825
        %v2988 = vunpack.c.l.b16 %v2826
        %v2989 = vunpack.c.l.b16 %v2827
        %v2990 = vunpack.c.l.b16 %v2828
        %v2991 = vunpack.c.l.b16 %v2829
        %v2992 = vunpack.c.l.b16 %v2830
        %v2993 = vunpack.c.l.b16 %v2831
        %v2994 = vunpack.c.l.b16 %v2832
        %v2995 = vunpack.c.l.b16 %v2833
        %v2996 = vunpack.c.l.b16 %v2834
        %v2997 = vunpack.c.l.b16 %v2835
        %v2998 = vunpack.c.l.b16 %v2836
        %v2999 = vunpack.c.l.b16 %v2837
        %v3000 = vunpack.c.l.b16 %v2838
        %v3001 = vunpack.c.l.b16 %v2839
        %v3002 = vunpack.c.l.b16 %v2840
        %v3003 = vunpack.c.l.b16 %v2841
        %v3004 = vunpack.c.l.b16 %v2842
        %v3005 = vunpack.c.l.b16 %v2843
        %v3006 = vunpack.c.l.b16 %v2844
        %v3007 = vunpack.c.l.b16 %v2845
        %v3008 = vunpack.c.l.b16 %v2846
        %v3009 = vunpack.c.l.b16 %v2847
        %v3010 = vunpack.c.l.b16 %v2848
        %v3011 = vunpack.c.l.b16 %v2849
        %v3012 = vunpack.c.l.b16 %v2850
        %v3013 = vunpack.c.l.b16 %v2851
        %v3014 = vunpack.c.l.b16 %v2852
        %v3015 = vunpack.c.l.b16 %v2853
        %v3016 = vunpack.c.l.b16 %v2854
        %v3017 = vunpack.c.l.b16 %v2855
        %v3018 = vunpack.c.l.b16 %v2856
        %v3019 = vunpack.c.l.b16 %v2857
        %v3020 = vunpack.c.l.b16 %v2858
        %v3021 = vunpack.c.l.b16 %v2859
        %v3022 = vunpack.c.l.b16 %v2860
        %v3023 = vunpack.c.l.b16 %v2861
        %v3024 = vunpack.c.l.b16 %v2862
        %v3025 = vunpack.c.l.b16 %v2863
        %v3026 = vrot.slane %v2962, 1
        %vm3027 = vcmask 1041409
        %v3028 = vsel %vm3027, %v2963, %v3026
        %v3029 = vrot.slane %v2964, 7
        %vm3030 = vcmask 1042434
        %v3031 = vsel %vm3030, %v3029, %v3028
        %v3032 = vrot.slane %v2965, 6
        %vm3033 = vcmask 1043459
        %v3034 = vsel %vm3033, %v3032, %v3031
        %v3035 = vrot.slane %v2966, 5
        %vm3036 = vcmask 1044484
        %v3037 = vsel %vm3036, %v3035, %v3034
        %v3038 = vrot.slane %v2967, 4
        %vm3039 = vcmask 1045509
        %v3040 = vsel %vm3039, %v3038, %v3037
        %v3041 = vrot.slane %v2968, 3
        %vm3042 = vcmask 1046534
        %v3043 = vsel %vm3042, %v3041, %v3040
        %v3044 = vrot.slane %v2969, 2
        %vm3045 = vcmask 1047559
        %v3046 = vsel %vm3045, %v3044, %v3043
        %v3047 = vrot.slane %v2970, 1
        %v3048 = vsel %vm3027, %v2971, %v3047
        %v3049 = vrot.slane %v2972, 7
        %v3050 = vsel %vm3030, %v3049, %v3048
        %v3051 = vrot.slane %v2973, 6
        %v3052 = vsel %vm3033, %v3051, %v3050
        %v3053 = vrot.slane %v2974, 5
        %v3054 = vsel %vm3036, %v3053, %v3052
        %v3055 = vrot.slane %v2975, 4
        %v3056 = vsel %vm3039, %v3055, %v3054
        %v3057 = vrot.slane %v2976, 3
        %v3058 = vsel %vm3042, %v3057, %v3056
        %v3059 = vrot.slane %v2977, 2
        %v3060 = vsel %vm3045, %v3059, %v3058
        %v3061 = vrot.slane %v2978, 1
        %v3062 = vsel %vm3027, %v2979, %v3061
        %v3063 = vrot.slane %v2980, 7
        %v3064 = vsel %vm3030, %v3063, %v3062
        %v3065 = vrot.slane %v2981, 6
        %v3066 = vsel %vm3033, %v3065, %v3064
        %v3067 = vrot.slane %v2982, 5
        %v3068 = vsel %vm3036, %v3067, %v3066
        %v3069 = vrot.slane %v2983, 4
        %v3070 = vsel %vm3039, %v3069, %v3068
        %v3071 = vrot.slane %v2984, 3
        %v3072 = vsel %vm3042, %v3071, %v3070
        %v3073 = vrot.slane %v2985, 2
        %v3074 = vsel %vm3045, %v3073, %v3072
        %v3075 = vrot.slane %v2986, 1
        %v3076 = vsel %vm3027, %v2987, %v3075
        %v3077 = vrot.slane %v2988, 7
        %v3078 = vsel %vm3030, %v3077, %v3076
        %v3079 = vrot.slane %v2989, 6
        %v3080 = vsel %vm3033, %v3079, %v3078
        %v3081 = vrot.slane %v2990, 5
        %v3082 = vsel %vm3036, %v3081, %v3080
        %v3083 = vrot.slane %v2991, 4
        %v3084 = vsel %vm3039, %v3083, %v3082
        %v3085 = vrot.slane %v2992, 3
        %v3086 = vsel %vm3042, %v3085, %v3084
        %v3087 = vrot.slane %v2993, 2
        %v3088 = vsel %vm3045, %v3087, %v3086
        %v3089 = vrot.slane %v2994, 1
        %v3090 = vsel %vm3027, %v2995, %v3089
        %v3091 = vrot.slane %v2996, 7
        %v3092 = vsel %vm3030, %v3091, %v3090
        %v3093 = vrot.slane %v2997, 6
        %v3094 = vsel %vm3033, %v3093, %v3092
        %v3095 = vrot.slane %v2998, 5
        %v3096 = vsel %vm3036, %v3095, %v3094
        %v3097 = vrot.slane %v2999, 4
        %v3098 = vsel %vm3039, %v3097, %v3096
        %v3099 = vrot.slane %v3000, 3
        %v3100 = vsel %vm3042, %v3099, %v3098
        %v3101 = vrot.slane %v3001, 2
        %v3102 = vsel %vm3045, %v3101, %v3100
        %v3103 = vrot.slane %v3002, 1
        %v3104 = vsel %vm3027, %v3003, %v3103
        %v3105 = vrot.slane %v3004, 7
        %v3106 = vsel %vm3030, %v3105, %v3104
        %v3107 = vrot.slane %v3005, 6
        %v3108 = vsel %vm3033, %v3107, %v3106
        %v3109 = vrot.slane %v3006, 5
        %v3110 = vsel %vm3036, %v3109, %v3108
        %v3111 = vrot.slane %v3007, 4
        %v3112 = vsel %vm3039, %v3111, %v3110
        %v3113 = vrot.slane %v3008, 3
        %v3114 = vsel %vm3042, %v3113, %v3112
        %v3115 = vrot.slane %v3009, 2
        %v3116 = vsel %vm3045, %v3115, %v3114
        %v3117 = vrot.slane %v3010, 1
        %v3118 = vsel %vm3027, %v3011, %v3117
        %v3119 = vrot.slane %v3012, 7
        %v3120 = vsel %vm3030, %v3119, %v3118
        %v3121 = vrot.slane %v3013, 6
        %v3122 = vsel %vm3033, %v3121, %v3120
        %v3123 = vrot.slane %v3014, 5
        %v3124 = vsel %vm3036, %v3123, %v3122
        %v3125 = vrot.slane %v3015, 4
        %v3126 = vsel %vm3039, %v3125, %v3124
        %v3127 = vrot.slane %v3016, 3
        %v3128 = vsel %vm3042, %v3127, %v3126
        %v3129 = vrot.slane %v3017, 2
        %v3130 = vsel %vm3045, %v3129, %v3128
        %v3131 = vrot.slane %v3018, 1
        %v3132 = vsel %vm3027, %v3019, %v3131
        %v3133 = vrot.slane %v3020, 7
        %v3134 = vsel %vm3030, %v3133, %v3132
        %v3135 = vrot.slane %v3021, 6
        %v3136 = vsel %vm3033, %v3135, %v3134
        %v3137 = vrot.slane %v3022, 5
        %v3138 = vsel %vm3036, %v3137, %v3136
        %v3139 = vrot.slane %v3023, 4
        %v3140 = vsel %vm3039, %v3139, %v3138
        %v3141 = vrot.slane %v3024, 3
        %v3142 = vsel %vm3042, %v3141, %v3140
        %v3143 = vrot.slane %v3025, 2
        %v3144 = vsel %vm3045, %v3143, %v3142
        %v3145 = vpack.c.b16 %v3060, %v3046
        %v3146 = vpack.c.b16 %v3088, %v3074
        %v3147 = vpack.c.b16 %v3116, %v3102
        %v3148 = vpack.c.b16 %v3144, %v3130
        %v3169 = vunpack.c.l.b16 %v2882
        %v3170 = vunpack.c.l.b16 %v2883
        %v3171 = vunpack.c.l.b16 %v2884
        %v3172 = vunpack.c.l.b16 %v2885
        %v3173 = vunpack.c.l.b16 %v2886
        %v3174 = vunpack.c.l.b16 %v2887
        %v3175 = vunpack.c.l.b16 %v2888
        %v3176 = vunpack.c.l.b16 %v2889
        %v3177 = vunpack.c.l.b16 %v2890
        %v3178 = vunpack.c.l.b16 %v2891
        %v3179 = vunpack.c.l.b16 %v2892
        %v3180 = vunpack.c.l.b16 %v2893
        %v3181 = vunpack.c.l.b16 %v2894
        %v3182 = vunpack.c.l.b16 %v2895
        %v3183 = vunpack.c.l.b16 %v2896
        %v3184 = vunpack.c.l.b16 %v2897
        %v3185 = vpack.c.b16 %v3170, %v3169
        %v3186 = vpack.c.b16 %v3172, %v3171
        %v3187 = vpack.c.b16 %v3174, %v3173
        %v3188 = vpack.c.b16 %v3176, %v3175
        %v3189 = vpack.c.b16 %v3178, %v3177
        %v3190 = vpack.c.b16 %v3180, %v3179
        %v3191 = vpack.c.b16 %v3182, %v3181
        %v3192 = vpack.c.b16 %v3184, %v3183
        %3201 = vmatprep.subr.bf16.mxu0 0
        %3202 = vmatpush1.bf16.msra.mxu0 %v3185
        %3203 = vmatprep.subr.bf16.mxu0 0
        %3204 = vmatpush1.bf16.msra.mxu0 %v3186
        %3205 = vmatprep.subr.bf16.mxu0 0
        %3206 = vmatpush1.bf16.msra.mxu0 %v3187
        %3207 = vmatprep.subr.bf16.mxu0 0
        %3208 = vmatpush1.bf16.msra.mxu0 %v3188
        %3209 = vmatprep.subr.bf16.mxu0 0
        %3210 = vmatpush1.bf16.msra.mxu0 %v3189
        %3211 = vmatprep.subr.bf16.mxu0 0
        %3212 = vmatpush1.bf16.msra.mxu0 %v3190
        %3213 = vmatprep.subr.bf16.mxu0 0
        %3214 = vmatpush1.bf16.msra.mxu0 %v3191
        %3215 = vmatprep.subr.bf16.mxu0 0
        %3216 = vmatpush1.bf16.msra.mxu0 %v3192
        %3217 = vmatprep.subr.bf16.mxu0 0
        %3218 = vmatpush1.bf16.msra.mxu0 0
        %3219 = vmatprep.subr.bf16.mxu0 0
        %3220 = vmatpush1.bf16.msra.mxu0 0
        %3221 = vmatprep.subr.bf16.mxu0 0
        %3222 = vmatpush1.bf16.msra.mxu0 0
        %3223 = vmatprep.subr.bf16.mxu0 0
        %3224 = vmatpush1.bf16.msra.mxu0 0
        %3225 = vmatprep.subr.bf16.mxu0 0
        %3226 = vmatpush1.bf16.msra.mxu0 0
        %3227 = vmatprep.subr.bf16.mxu0 0
        %3228 = vmatpush1.bf16.msra.mxu0 0
        %3229 = vmatprep.subr.bf16.mxu0 0
        %3230 = vmatpush1.bf16.msra.mxu0 0
        %3231 = vmatprep.subr.bf16.mxu0 0
        %3232 = vmatpush1.bf16.msra.mxu0 0
        %3233 = vmatprep.mubr.bf16.mxu0 0
        %3234 = vmatmul.mubr.bf16.gmra.mrb[0].mxu0 %v3145
        %v3235 = vpop.f32.mrb[0].mxu0
        %v3236 = vadd.f32 0.0, %v3235
        %v3237 = vpop.f32.mrb[0].mxu0
        %v3238 = vpop.f32.mrb[0].mxu0
        %v3239 = vadd.f32 0.0, %v3238
        %v3240 = vpop.f32.mrb[0].mxu0
        %3241 = vmatprep.mubr.bf16.mxu0 0
        %3242 = vmatmul.mubr.bf16.gmra.mrb[0].mxu0 %v3146
        %v3243 = vpop.f32.mrb[0].mxu0
        %v3244 = vadd.f32 0.0, %v3243
        %v3245 = vpop.f32.mrb[0].mxu0
        %v3246 = vpop.f32.mrb[0].mxu0
        %v3247 = vadd.f32 0.0, %v3246
        %v3248 = vpop.f32.mrb[0].mxu0
        %3249 = vmatprep.mubr.bf16.mxu0 0
        %3250 = vmatmul.mubr.bf16.gmra.mrb[0].mxu0 %v3147
        %v3251 = vpop.f32.mrb[0].mxu0
        %v3252 = vadd.f32 0.0, %v3251
        %v3253 = vpop.f32.mrb[0].mxu0
        %v3254 = vpop.f32.mrb[0].mxu0
        %v3255 = vadd.f32 0.0, %v3254
        %v3256 = vpop.f32.mrb[0].mxu0
        %3257 = vmatprep.mubr.bf16.mxu0 0
        %3258 = vmatmul.mubr.bf16.gmra.mrb[0].mxu0 %v3148
        %v3259 = vpop.f32.mrb[0].mxu0
        %v3260 = vadd.f32 0.0, %v3259
        %v3261 = vpop.f32.mrb[0].mxu0
        %v3262 = vpop.f32.mrb[0].mxu0
        %v3263 = vadd.f32 0.0, %v3262
        %v3264 = vpop.f32.mrb[0].mxu0
        %3265 = vdwg.mxu0
        %v3266 = vrot.slane %v2963, 7
        %v3267 = vsel %vm3027, %v3266, %v2962
        %v3268 = vrot.slane %v2964, 6
        %v3269 = vsel %vm3030, %v3268, %v3267
        %v3270 = vrot.slane %v2965, 5
        %v3271 = vsel %vm3033, %v3270, %v3269
        %v3272 = vrot.slane %v2966, 4
        %v3273 = vsel %vm3036, %v3272, %v3271
        %v3274 = vrot.slane %v2967, 3
        %v3275 = vsel %vm3039, %v3274, %v3273
        %v3276 = vrot.slane %v2968, 2
        %v3277 = vsel %vm3042, %v3276, %v3275
        %v3278 = vrot.slane %v2969, 1
        %v3279 = vsel %vm3045, %v3278, %v3277
        %v3280 = vrot.slane %v2971, 7
        %v3281 = vsel %vm3027, %v3280, %v2970
        %v3282 = vrot.slane %v2972, 6
        %v3283 = vsel %vm3030, %v3282, %v3281
        %v3284 = vrot.slane %v2973, 5
        %v3285 = vsel %vm3033, %v3284, %v3283
        %v3286 = vrot.slane %v2974, 4
        %v3287 = vsel %vm3036, %v3286, %v3285
        %v3288 = vrot.slane %v2975, 3
        %v3289 = vsel %vm3039, %v3288, %v3287
        %v3290 = vrot.slane %v2976, 2
        %v3291 = vsel %vm3042, %v3290, %v3289
        %v3292 = vrot.slane %v2977, 1
        %v3293 = vsel %vm3045, %v3292, %v3291
        %v3294 = vrot.slane %v2979, 7
        %v3295 = vsel %vm3027, %v3294, %v2978
        %v3296 = vrot.slane %v2980, 6
        %v3297 = vsel %vm3030, %v3296, %v3295
        %v3298 = vrot.slane %v2981, 5
        %v3299 = vsel %vm3033, %v3298, %v3297
        %v3300 = vrot.slane %v2982, 4
        %v3301 = vsel %vm3036, %v3300, %v3299
        %v3302 = vrot.slane %v2983, 3
        %v3303 = vsel %vm3039, %v3302, %v3301
        %v3304 = vrot.slane %v2984, 2
        %v3305 = vsel %vm3042, %v3304, %v3303
        %v3306 = vrot.slane %v2985, 1
        %v3307 = vsel %vm3045, %v3306, %v3305
        %v3308 = vrot.slane %v2987, 7
        %v3309 = vsel %vm3027, %v3308, %v2986
        %v3310 = vrot.slane %v2988, 6
        %v3311 = vsel %vm3030, %v3310, %v3309
        %v3312 = vrot.slane %v2989, 5
        %v3313 = vsel %vm3033, %v3312, %v3311
        %v3314 = vrot.slane %v2990, 4
        %v3315 = vsel %vm3036, %v3314, %v3313
        %v3316 = vrot.slane %v2991, 3
        %v3317 = vsel %vm3039, %v3316, %v3315
        %v3318 = vrot.slane %v2992, 2
        %v3319 = vsel %vm3042, %v3318, %v3317
        %v3320 = vrot.slane %v2993, 1
        %v3321 = vsel %vm3045, %v3320, %v3319
        %v3322 = vrot.slane %v2995, 7
        %v3323 = vsel %vm3027, %v3322, %v2994
        %v3324 = vrot.slane %v2996, 6
        %v3325 = vsel %vm3030, %v3324, %v3323
        %v3326 = vrot.slane %v2997, 5
        %v3327 = vsel %vm3033, %v3326, %v3325
        %v3328 = vrot.slane %v2998, 4
        %v3329 = vsel %vm3036, %v3328, %v3327
        %v3330 = vrot.slane %v2999, 3
        %v3331 = vsel %vm3039, %v3330, %v3329
        %v3332 = vrot.slane %v3000, 2
        %v3333 = vsel %vm3042, %v3332, %v3331
        %v3334 = vrot.slane %v3001, 1
        %v3335 = vsel %vm3045, %v3334, %v3333
        %v3336 = vrot.slane %v3003, 7
        %v3337 = vsel %vm3027, %v3336, %v3002
        %v3338 = vrot.slane %v3004, 6
        %v3339 = vsel %vm3030, %v3338, %v3337
        %v3340 = vrot.slane %v3005, 5
        %v3341 = vsel %vm3033, %v3340, %v3339
        %v3342 = vrot.slane %v3006, 4
        %v3343 = vsel %vm3036, %v3342, %v3341
        %v3344 = vrot.slane %v3007, 3
        %v3345 = vsel %vm3039, %v3344, %v3343
        %v3346 = vrot.slane %v3008, 2
        %v3347 = vsel %vm3042, %v3346, %v3345
        %v3348 = vrot.slane %v3009, 1
        %v3349 = vsel %vm3045, %v3348, %v3347
        %v3350 = vrot.slane %v3011, 7
        %v3351 = vsel %vm3027, %v3350, %v3010
        %v3352 = vrot.slane %v3012, 6
        %v3353 = vsel %vm3030, %v3352, %v3351
        %v3354 = vrot.slane %v3013, 5
        %v3355 = vsel %vm3033, %v3354, %v3353
        %v3356 = vrot.slane %v3014, 4
        %v3357 = vsel %vm3036, %v3356, %v3355
        %v3358 = vrot.slane %v3015, 3
        %v3359 = vsel %vm3039, %v3358, %v3357
        %v3360 = vrot.slane %v3016, 2
        %v3361 = vsel %vm3042, %v3360, %v3359
        %v3362 = vrot.slane %v3017, 1
        %v3363 = vsel %vm3045, %v3362, %v3361
        %v3364 = vrot.slane %v3019, 7
        %v3365 = vsel %vm3027, %v3364, %v3018
        %v3366 = vrot.slane %v3020, 6
        %v3367 = vsel %vm3030, %v3366, %v3365
        %v3368 = vrot.slane %v3021, 5
        %v3369 = vsel %vm3033, %v3368, %v3367
        %v3370 = vrot.slane %v3022, 4
        %v3371 = vsel %vm3036, %v3370, %v3369
        %v3372 = vrot.slane %v3023, 3
        %v3373 = vsel %vm3039, %v3372, %v3371
        %v3374 = vrot.slane %v3024, 2
        %v3375 = vsel %vm3042, %v3374, %v3373
        %v3376 = vrot.slane %v3025, 1
        %v3377 = vsel %vm3045, %v3376, %v3375
        %v3378 = vpack.c.b16 %v3293, %v3279
        %v3379 = vpack.c.b16 %v3321, %v3307
        %v3380 = vpack.c.b16 %v3349, %v3335
        %v3381 = vpack.c.b16 %v3377, %v3363
        %v3402 = vunpack.c.l.b16 %v2865
        %v3403 = vunpack.c.l.b16 %v2866
        %v3404 = vunpack.c.l.b16 %v2867
        %v3405 = vunpack.c.l.b16 %v2868
        %v3406 = vunpack.c.l.b16 %v2869
        %v3407 = vunpack.c.l.b16 %v2870
        %v3408 = vunpack.c.l.b16 %v2871
        %v3409 = vunpack.c.l.b16 %v2872
        %v3410 = vunpack.c.l.b16 %v2873
        %v3411 = vunpack.c.l.b16 %v2874
        %v3412 = vunpack.c.l.b16 %v2875
        %v3413 = vunpack.c.l.b16 %v2876
        %v3414 = vunpack.c.l.b16 %v2877
        %v3415 = vunpack.c.l.b16 %v2878
        %v3416 = vunpack.c.l.b16 %v2879
        %v3417 = vunpack.c.l.b16 %v2880
        %v3418 = vpack.c.b16 %v3403, %v3402
        %v3419 = vpack.c.b16 %v3405, %v3404
        %v3420 = vpack.c.b16 %v3407, %v3406
        %v3421 = vpack.c.b16 %v3409, %v3408
        %v3422 = vpack.c.b16 %v3411, %v3410
        %v3423 = vpack.c.b16 %v3413, %v3412
        %v3424 = vpack.c.b16 %v3415, %v3414
        %v3425 = vpack.c.b16 %v3417, %v3416
        %3434 = vmatprep.subr.bf16.mxu0 0
        %3435 = vmatpush1.bf16.msra.mxu0 %v3418
        %3436 = vmatprep.subr.bf16.mxu0 0
        %3437 = vmatpush1.bf16.msra.mxu0 %v3419
        %3438 = vmatprep.subr.bf16.mxu0 0
        %3439 = vmatpush1.bf16.msra.mxu0 %v3420
        %3440 = vmatprep.subr.bf16.mxu0 0
        %3441 = vmatpush1.bf16.msra.mxu0 %v3421
        %3442 = vmatprep.subr.bf16.mxu0 0
        %3443 = vmatpush1.bf16.msra.mxu0 %v3422
        %3444 = vmatprep.subr.bf16.mxu0 0
        %3445 = vmatpush1.bf16.msra.mxu0 %v3423
        %3446 = vmatprep.subr.bf16.mxu0 0
        %3447 = vmatpush1.bf16.msra.mxu0 %v3424
        %3448 = vmatprep.subr.bf16.mxu0 0
        %3449 = vmatpush1.bf16.msra.mxu0 %v3425
        %3450 = vmatprep.subr.bf16.mxu0 0
        %3451 = vmatpush1.bf16.msra.mxu0 0
        %3452 = vmatprep.subr.bf16.mxu0 0
        %3453 = vmatpush1.bf16.msra.mxu0 0
        %3454 = vmatprep.subr.bf16.mxu0 0
        %3455 = vmatpush1.bf16.msra.mxu0 0
        %3456 = vmatprep.subr.bf16.mxu0 0
        %3457 = vmatpush1.bf16.msra.mxu0 0
        %3458 = vmatprep.subr.bf16.mxu0 0
        %3459 = vmatpush1.bf16.msra.mxu0 0
        %3460 = vmatprep.subr.bf16.mxu0 0
        %3461 = vmatpush1.bf16.msra.mxu0 0
        %3462 = vmatprep.subr.bf16.mxu0 0
        %3463 = vmatpush1.bf16.msra.mxu0 0
        %3464 = vmatprep.subr.bf16.mxu0 0
        %3465 = vmatpush1.bf16.msra.mxu0 0
        %3466 = vmatprep.mubr.bf16.mxu0 0
        %3467 = vmatmul.mubr.bf16.gmra.mrb[0].mxu0 %v3378
        %v3468 = vpop.f32.mrb[0].mxu0
        %v3469 = vadd.f32 %v3236, %v3468
        %v3470 = vpop.f32.mrb[0].mxu0
        %v3471 = vpop.f32.mrb[0].mxu0
        %v3472 = vadd.f32 %v3239, %v3471
        %v3473 = vpop.f32.mrb[0].mxu0
        %3474 = vmatprep.mubr.bf16.mxu0 0
        %3475 = vmatmul.mubr.bf16.gmra.mrb[0].mxu0 %v3379
        %v3476 = vpop.f32.mrb[0].mxu0
        %v3477 = vadd.f32 %v3244, %v3476
        %v3478 = vpop.f32.mrb[0].mxu0
        %v3479 = vpop.f32.mrb[0].mxu0
        %v3480 = vadd.f32 %v3247, %v3479
        %v3481 = vpop.f32.mrb[0].mxu0
        %3482 = vmatprep.mubr.bf16.mxu0 0
        %3483 = vmatmul.mubr.bf16.gmra.mrb[0].mxu0 %v3380
        %v3484 = vpop.f32.mrb[0].mxu0
        %v3485 = vadd.f32 %v3252, %v3484
        %v3486 = vpop.f32.mrb[0].mxu0
        %v3487 = vpop.f32.mrb[0].mxu0
        %v3488 = vadd.f32 %v3255, %v3487
        %v3489 = vpop.f32.mrb[0].mxu0
        %3490 = vmatprep.mubr.bf16.mxu0 0
        %3491 = vmatmul.mubr.bf16.gmra.mrb[0].mxu0 %v3381
        %v3492 = vpop.f32.mrb[0].mxu0
        %v3493 = vadd.f32 %v3260, %v3492
        %v3494 = vpop.f32.mrb[0].mxu0
        %v3495 = vpop.f32.mrb[0].mxu0
        %v3496 = vadd.f32 %v3263, %v3495
        %v3497 = vpop.f32.mrb[0].mxu0
        %3498 = vdwg.mxu0
        %v3499 = vld [vmem:[#allocation5] sm:$0xf]
        %v3500 = vld [vmem:[#allocation5 + $0x4] sm:$0xf]
        %v3501 = vld [vmem:[#allocation5 + $0x8] sm:$0xf]
        %v3502 = vld [vmem:[#allocation5 + $0xc] sm:$0xf]
        %v3503 = vld [vmem:[#allocation5 + $0x10] sm:$0xf]
        %v3504 = vld [vmem:[#allocation5 + $0x14] sm:$0xf]
        %v3505 = vld [vmem:[#allocation5 + $0x18] sm:$0xf]
        %v3506 = vld [vmem:[#allocation5 + $0x1c] sm:$0xf]
        %v3507 = vld [vmem:[#allocation5 + $0x20] sm:$0xf]
        %v3508 = vld [vmem:[#allocation5 + $0x24] sm:$0xf]
        %v3509 = vld [vmem:[#allocation5 + $0x28] sm:$0xf]
        %v3510 = vld [vmem:[#allocation5 + $0x2c] sm:$0xf]
        %v3511 = vld [vmem:[#allocation5 + $0x30] sm:$0xf]
        %v3512 = vld [vmem:[#allocation5 + $0x34] sm:$0xf]
        %v3513 = vld [vmem:[#allocation5 + $0x38] sm:$0xf]
        %v3514 = vld [vmem:[#allocation5 + $0x3c] sm:$0xf]
        %v3531 = vunpack.c.l.b16 %v3499
        %v3532 = vunpack.c.l.b16 %v3500
        %v3533 = vunpack.c.l.b16 %v3501
        %v3534 = vunpack.c.l.b16 %v3502
        %v3535 = vunpack.c.l.b16 %v3503
        %v3536 = vunpack.c.l.b16 %v3504
        %v3537 = vunpack.c.l.b16 %v3505
        %v3538 = vunpack.c.l.b16 %v3506
        %v3539 = vunpack.c.l.b16 %v3507
        %v3540 = vunpack.c.l.b16 %v3508
        %v3541 = vunpack.c.l.b16 %v3509
        %v3542 = vunpack.c.l.b16 %v3510
        %v3543 = vunpack.c.l.b16 %v3511
        %v3544 = vunpack.c.l.b16 %v3512
        %v3545 = vunpack.c.l.b16 %v3513
        %v3546 = vunpack.c.l.b16 %v3514
        %v3547 = vpack.c.b16 %v3532, %v3531
        %v3548 = vpack.c.b16 %v3534, %v3533
        %v3549 = vpack.c.b16 %v3536, %v3535
        %v3550 = vpack.c.b16 %v3538, %v3537
        %v3551 = vpack.c.b16 %v3540, %v3539
        %v3552 = vpack.c.b16 %v3542, %v3541
        %v3553 = vpack.c.b16 %v3544, %v3543
        %v3554 = vpack.c.b16 %v3546, %v3545
        %3563 = vmatprep.subr.bf16.mxu0 0
        %3564 = vmatpush1.bf16.msra.mxu0 %v3547
        %3565 = vmatprep.subr.bf16.mxu0 0
        %3566 = vmatpush1.bf16.msra.mxu0 %v3548
        %3567 = vmatprep.subr.bf16.mxu0 0
        %3568 = vmatpush1.bf16.msra.mxu0 %v3549
        %3569 = vmatprep.subr.bf16.mxu0 0
        %3570 = vmatpush1.bf16.msra.mxu0 %v3550
        %3571 = vmatprep.subr.bf16.mxu0 0
        %3572 = vmatpush1.bf16.msra.mxu0 %v3551
        %3573 = vmatprep.subr.bf16.mxu0 0
        %3574 = vmatpush1.bf16.msra.mxu0 %v3552
        %3575 = vmatprep.subr.bf16.mxu0 0
        %3576 = vmatpush1.bf16.msra.mxu0 %v3553
        %3577 = vmatprep.subr.bf16.mxu0 0
        %3578 = vmatpush1.bf16.msra.mxu0 %v3554
        %3579 = vmatprep.subr.bf16.mxu0 0
        %3580 = vmatpush1.bf16.msra.mxu0 0
        %3581 = vmatprep.subr.bf16.mxu0 0
        %3582 = vmatpush1.bf16.msra.mxu0 0
        %3583 = vmatprep.subr.bf16.mxu0 0
        %3584 = vmatpush1.bf16.msra.mxu0 0
        %3585 = vmatprep.subr.bf16.mxu0 0
        %3586 = vmatpush1.bf16.msra.mxu0 0
        %3587 = vmatprep.subr.bf16.mxu0 0
        %3588 = vmatpush1.bf16.msra.mxu0 0
        %3589 = vmatprep.subr.bf16.mxu0 0
        %3590 = vmatpush1.bf16.msra.mxu0 0
        %3591 = vmatprep.subr.bf16.mxu0 0
        %3592 = vmatpush1.bf16.msra.mxu0 0
        %3593 = vmatprep.subr.bf16.mxu0 0
        %3594 = vmatpush1.bf16.msra.mxu0 0
        %3595 = vmatprep.mubr.bf16.mxu0 0
        %3596 = vmatmul.mubr.bf16.gmra.mrb[0].mxu0 %v3145
        %v3597 = vpop.f32.mrb[0].mxu0
        %v3598 = vadd.f32 0.0, %v3597
        %v3599 = vpop.f32.mrb[0].mxu0
        %v3600 = vpop.f32.mrb[0].mxu0
        %v3601 = vadd.f32 0.0, %v3600
        %v3602 = vpop.f32.mrb[0].mxu0
        %3603 = vmatprep.mubr.bf16.mxu0 0
        %3604 = vmatmul.mubr.bf16.gmra.mrb[0].mxu0 %v3146
        %v3605 = vpop.f32.mrb[0].mxu0
        %v3606 = vadd.f32 0.0, %v3605
        %v3607 = vpop.f32.mrb[0].mxu0
        %v3608 = vpop.f32.mrb[0].mxu0
        %v3609 = vadd.f32 0.0, %v3608
        %v3610 = vpop.f32.mrb[0].mxu0
        %3611 = vmatprep.mubr.bf16.mxu0 0
        %3612 = vmatmul.mubr.bf16.gmra.mrb[0].mxu0 %v3147
        %v3613 = vpop.f32.mrb[0].mxu0
        %v3614 = vadd.f32 0.0, %v3613
        %v3615 = vpop.f32.mrb[0].mxu0
        %v3616 = vpop.f32.mrb[0].mxu0
        %v3617 = vadd.f32 0.0, %v3616
        %v3618 = vpop.f32.mrb[0].mxu0
        %3619 = vmatprep.mubr.bf16.mxu0 0
        %3620 = vmatmul.mubr.bf16.gmra.mrb[0].mxu0 %v3148
        %v3621 = vpop.f32.mrb[0].mxu0
        %v3622 = vadd.f32 0.0, %v3621
        %v3623 = vpop.f32.mrb[0].mxu0
        %v3624 = vpop.f32.mrb[0].mxu0
        %v3625 = vadd.f32 0.0, %v3624
        %v3626 = vpop.f32.mrb[0].mxu0
        %3627 = vdwg.mxu0
        %v3628 = vrot.slane %v3598, 7
        %v3629 = vrot.slane %v3601, 7
        %v3630 = vrot.slane %v3606, 7
        %v3631 = vrot.slane %v3609, 7
        %v3632 = vrot.slane %v3614, 7
        %v3633 = vrot.slane %v3617, 7
        %v3634 = vrot.slane %v3622, 7
        %v3635 = vrot.slane %v3625, 7
        %v3636 = vsel %vm931, %v3634, %v3635
        %v3637 = vsel %vm931, %v3633, %v3634
        %v3638 = vsel %vm931, %v3632, %v3633
        %v3639 = vsel %vm931, %v3631, %v3632
        %v3640 = vsel %vm931, %v3630, %v3631
        %v3641 = vsel %vm931, %v3629, %v3630
        %v3642 = vsel %vm931, %v3628, %v3629
        %v3643 = vsel %vm931, %v3635, %v3628
        %vm3644 = vcmp.lt.s32.totalorder %v930, 0
        %v3645 = vsub.s32 0, %v930
        %v3646 = vsel %vm3644, %v3645, %v930
        %v3647 = vshrl.u32 %v3646, 5
        %v3648 = vand.u32 %v3646, 31
        %v3649 = vsub.s32 0, %v3648
        %v3650 = vsel %vm3644, %v3649, %v3648
        %vm3651 = vcmp.lt.s32.totalorder %v948, 0
        %v3652 = vsub.s32 0, %v948
        %v3653 = vsel %vm3651, %v3652, %v948
        %v3654 = vshrl.u32 %v3653, 5
        %v3655 = vand.u32 %v3653, 31
        %v3656 = vsub.s32 0, %v3655
        %v3657 = vsel %vm3651, %v3656, %v3655
        %vm3658 = vcmp.lt.s32.totalorder %v949, 0
        %v3659 = vsub.s32 0, %v949
        %v3660 = vsel %vm3658, %v3659, %v949
        %v3661 = vshrl.u32 %v3660, 5
        %v3662 = vand.u32 %v3660, 31
        %v3663 = vsub.s32 0, %v3662
        %v3664 = vsel %vm3658, %v3663, %v3662
        %vm3665 = vcmp.lt.s32.totalorder %v950, 0
        %v3666 = vsub.s32 0, %v950
        %v3667 = vsel %vm3665, %v3666, %v950
        %v3668 = vshrl.u32 %v3667, 5
        %v3669 = vand.u32 %v3667, 31
        %v3670 = vsub.s32 0, %v3669
        %v3671 = vsel %vm3665, %v3670, %v3669
        %vm3672 = vcmp.lt.s32.totalorder %v951, 0
        %v3673 = vsub.s32 0, %v951
        %v3674 = vsel %vm3672, %v3673, %v951
        %v3675 = vshrl.u32 %v3674, 5
        %v3676 = vand.u32 %v3674, 31
        %v3677 = vsub.s32 0, %v3676
        %v3678 = vsel %vm3672, %v3677, %v3676
        %vm3679 = vcmp.lt.s32.totalorder %v952, 0
        %v3680 = vsub.s32 0, %v952
        %v3681 = vsel %vm3679, %v3680, %v952
        %v3682 = vshrl.u32 %v3681, 5
        %v3683 = vand.u32 %v3681, 31
        %v3684 = vsub.s32 0, %v3683
        %v3685 = vsel %vm3679, %v3684, %v3683
        %vm3686 = vcmp.lt.s32.totalorder %v953, 0
        %v3687 = vsub.s32 0, %v953
        %v3688 = vsel %vm3686, %v3687, %v953
        %v3689 = vshrl.u32 %v3688, 5
        %v3690 = vand.u32 %v3688, 31
        %v3691 = vsub.s32 0, %v3690
        %v3692 = vsel %vm3686, %v3691, %v3690
        %vm3693 = vcmp.lt.s32.totalorder %v954, 0
        %v3694 = vsub.s32 0, %v954
        %v3695 = vsel %vm3693, %v3694, %v954
        %v3696 = vshrl.u32 %v3695, 5
        %v3697 = vand.u32 %v3695, 31
        %v3698 = vsub.s32 0, %v3697
        %v3699 = vsel %vm3693, %v3698, %v3697
        %vm3700 = vcmp.ne.s32.totalorder %v3650, 0
        %vm3701 = vcmp.ne.s32.totalorder %v3657, 0
        %vm3702 = vcmp.ne.s32.totalorder %v3664, 0
        %vm3703 = vcmp.ne.s32.totalorder %v3671, 0
        %vm3704 = vcmp.ne.s32.totalorder %v3678, 0
        %vm3705 = vcmp.ne.s32.totalorder %v3685, 0
        %vm3706 = vcmp.ne.s32.totalorder %v3692, 0
        %vm3707 = vcmp.ne.s32.totalorder %v3699, 0
        %vm3708 = vcmp.lt.s32.totalorder %v3650, 0
        %vm3709 = vcmp.lt.s32.totalorder %v3657, 0
        %vm3710 = vcmp.lt.s32.totalorder %v3664, 0
        %vm3711 = vcmp.lt.s32.totalorder %v3671, 0
        %vm3712 = vcmp.lt.s32.totalorder %v3678, 0
        %vm3713 = vcmp.lt.s32.totalorder %v3685, 0
        %vm3714 = vcmp.lt.s32.totalorder %v3692, 0
        %vm3715 = vcmp.lt.s32.totalorder %v3699, 0
        %vm3716 = vmand %vm3708, %vm3700
        %vm3717 = vmand %vm3709, %vm3701
        %vm3718 = vmand %vm3710, %vm3702
        %vm3719 = vmand %vm3711, %vm3703
        %vm3720 = vmand %vm3712, %vm3704
        %vm3721 = vmand %vm3713, %vm3705
        %vm3722 = vmand %vm3714, %vm3706
        %vm3723 = vmand %vm3715, %vm3707
        %v3724 = vadd.s32 %v3650, 32
        %v3725 = vadd.s32 %v3657, 32
        %v3726 = vadd.s32 %v3664, 32
        %v3727 = vadd.s32 %v3671, 32
        %v3728 = vadd.s32 %v3678, 32
        %v3729 = vadd.s32 %v3685, 32
        %v3730 = vadd.s32 %v3692, 32
        %v3731 = vadd.s32 %v3699, 32
        %v3732 = vsel %vm3716, %v3724, %v3650
        %v3733 = vsel %vm3717, %v3725, %v3657
        %v3734 = vsel %vm3718, %v3726, %v3664
        %v3735 = vsel %vm3719, %v3727, %v3671
        %v3736 = vsel %vm3720, %v3728, %v3678
        %v3737 = vsel %vm3721, %v3729, %v3685
        %v3738 = vsel %vm3722, %v3730, %v3692
        %v3739 = vsel %vm3723, %v3731, %v3699
        %vm3740 = vcmp.eq.s32.totalorder %v3732, 0
        %vm3741 = vcmp.eq.s32.totalorder %v3733, 0
        %vm3742 = vcmp.eq.s32.totalorder %v3734, 0
        %vm3743 = vcmp.eq.s32.totalorder %v3735, 0
        %vm3744 = vcmp.eq.s32.totalorder %v3736, 0
        %vm3745 = vcmp.eq.s32.totalorder %v3737, 0
        %vm3746 = vcmp.eq.s32.totalorder %v3738, 0
        %vm3747 = vcmp.eq.s32.totalorder %v3739, 0
        %v3748 = vsel %vm3740, 1, 0
        %v3749 = vsel %vm3741, 1, 0
        %v3750 = vsel %vm3742, 1, 0
        %v3751 = vsel %vm3743, 1, 0
        %v3752 = vsel %vm3744, 1, 0
        %v3753 = vsel %vm3745, 1, 0
        %v3754 = vsel %vm3746, 1, 0
        %v3755 = vsel %vm3747, 1, 0
        %vm3756 = vcmp.eq.s32.totalorder %v3748, 1
        %vm3757 = vcmp.eq.s32.totalorder %v3749, 1
        %vm3758 = vcmp.eq.s32.totalorder %v3750, 1
        %vm3759 = vcmp.eq.s32.totalorder %v3751, 1
        %vm3760 = vcmp.eq.s32.totalorder %v3752, 1
        %vm3761 = vcmp.eq.s32.totalorder %v3753, 1
        %vm3762 = vcmp.eq.s32.totalorder %v3754, 1
        %vm3763 = vcmp.eq.s32.totalorder %v3755, 1
        %v3764 = vsel %vm3756, 0.0, %v3643
        %v3765 = vsel %vm3757, 0.0, %v3642
        %v3766 = vsel %vm3758, 0.0, %v3641
        %v3767 = vsel %vm3759, 0.0, %v3640
        %v3768 = vsel %vm3760, 0.0, %v3639
        %v3769 = vsel %vm3761, 0.0, %v3638
        %v3770 = vsel %vm3762, 0.0, %v3637
        %v3771 = vsel %vm3763, 0.0, %v3636
        %v3772 = vadd.f32 %v3469, %v3764
        %v3773 = vadd.f32 %v3472, %v3765
        %v3774 = vadd.f32 %v3477, %v3766
        %v3775 = vadd.f32 %v3480, %v3767
        %v3776 = vadd.f32 %v3485, %v3768
        %v3777 = vadd.f32 %v3488, %v3769
        %v3778 = vadd.f32 %v3493, %v3770
        %v3779 = vadd.f32 %v3496, %v3771
        %s3780 = scalar_lea.vmem [#allocation5], 192
        %v3781 = vld [vmem:[%s3780] sm:$0xf]
        %v3782 = vld [vmem:[%s3780 + $0x4] sm:$0xf]
        %v3783 = vld [vmem:[%s3780 + $0x8] sm:$0xf]
        %v3784 = vld [vmem:[%s3780 + $0xc] sm:$0xf]
        %v3785 = vld [vmem:[%s3780 + $0x10] sm:$0xf]
        %v3786 = vld [vmem:[%s3780 + $0x14] sm:$0xf]
        %v3787 = vld [vmem:[%s3780 + $0x18] sm:$0xf]
        %v3788 = vld [vmem:[%s3780 + $0x1c] sm:$0xf]
        %v3789 = vld [vmem:[%s3780 + $0x20] sm:$0xf]
        %v3790 = vld [vmem:[%s3780 + $0x24] sm:$0xf]
        %v3791 = vld [vmem:[%s3780 + $0x28] sm:$0xf]
        %v3792 = vld [vmem:[%s3780 + $0x2c] sm:$0xf]
        %v3793 = vld [vmem:[%s3780 + $0x30] sm:$0xf]
        %v3794 = vld [vmem:[%s3780 + $0x34] sm:$0xf]
        %v3795 = vld [vmem:[%s3780 + $0x38] sm:$0xf]
        %v3796 = vld [vmem:[%s3780 + $0x3c] sm:$0xf]
        %v3813 = vunpack.c.l.b16 %v3781
        %v3814 = vunpack.c.l.b16 %v3782
        %v3815 = vunpack.c.l.b16 %v3783
        %v3816 = vunpack.c.l.b16 %v3784
        %v3817 = vunpack.c.l.b16 %v3785
        %v3818 = vunpack.c.l.b16 %v3786
        %v3819 = vunpack.c.l.b16 %v3787
        %v3820 = vunpack.c.l.b16 %v3788
        %v3821 = vunpack.c.l.b16 %v3789
        %v3822 = vunpack.c.l.b16 %v3790
        %v3823 = vunpack.c.l.b16 %v3791
        %v3824 = vunpack.c.l.b16 %v3792
        %v3825 = vunpack.c.l.b16 %v3793
        %v3826 = vunpack.c.l.b16 %v3794
        %v3827 = vunpack.c.l.b16 %v3795
        %v3828 = vunpack.c.l.b16 %v3796
        %v3829 = vpack.c.b16 %v3814, %v3813
        %v3830 = vpack.c.b16 %v3816, %v3815
        %v3831 = vpack.c.b16 %v3818, %v3817
        %v3832 = vpack.c.b16 %v3820, %v3819
        %v3833 = vpack.c.b16 %v3822, %v3821
        %v3834 = vpack.c.b16 %v3824, %v3823
        %v3835 = vpack.c.b16 %v3826, %v3825
        %v3836 = vpack.c.b16 %v3828, %v3827
        %3845 = vmatprep.subr.bf16.mxu0 0
        %3846 = vmatpush1.bf16.msra.mxu0 %v3829
        %3847 = vmatprep.subr.bf16.mxu0 0
        %3848 = vmatpush1.bf16.msra.mxu0 %v3830
        %3849 = vmatprep.subr.bf16.mxu0 0
        %3850 = vmatpush1.bf16.msra.mxu0 %v3831
        %3851 = vmatprep.subr.bf16.mxu0 0
        %3852 = vmatpush1.bf16.msra.mxu0 %v3832
        %3853 = vmatprep.subr.bf16.mxu0 0
        %3854 = vmatpush1.bf16.msra.mxu0 %v3833
        %3855 = vmatprep.subr.bf16.mxu0 0
        %3856 = vmatpush1.bf16.msra.mxu0 %v3834
        %3857 = vmatprep.subr.bf16.mxu0 0
        %3858 = vmatpush1.bf16.msra.mxu0 %v3835
        %3859 = vmatprep.subr.bf16.mxu0 0
        %3860 = vmatpush1.bf16.msra.mxu0 %v3836
        %3861 = vmatprep.subr.bf16.mxu0 0
        %3862 = vmatpush1.bf16.msra.mxu0 0
        %3863 = vmatprep.subr.bf16.mxu0 0
        %3864 = vmatpush1.bf16.msra.mxu0 0
        %3865 = vmatprep.subr.bf16.mxu0 0
        %3866 = vmatpush1.bf16.msra.mxu0 0
        %3867 = vmatprep.subr.bf16.mxu0 0
        %3868 = vmatpush1.bf16.msra.mxu0 0
        %3869 = vmatprep.subr.bf16.mxu0 0
        %3870 = vmatpush1.bf16.msra.mxu0 0
        %3871 = vmatprep.subr.bf16.mxu0 0
        %3872 = vmatpush1.bf16.msra.mxu0 0
        %3873 = vmatprep.subr.bf16.mxu0 0
        %3874 = vmatpush1.bf16.msra.mxu0 0
        %3875 = vmatprep.subr.bf16.mxu0 0
        %3876 = vmatpush1.bf16.msra.mxu0 0
        %3877 = vmatprep.mubr.bf16.mxu0 0
        %3878 = vmatmul.mubr.bf16.gmra.mrb[0].mxu0 %v3378
        %v3879 = vpop.f32.mrb[0].mxu0
        %v3880 = vadd.f32 0.0, %v3879
        %v3881 = vpop.f32.mrb[0].mxu0
        %v3882 = vpop.f32.mrb[0].mxu0
        %v3883 = vadd.f32 0.0, %v3882
        %v3884 = vpop.f32.mrb[0].mxu0
        %3885 = vmatprep.mubr.bf16.mxu0 0
        %3886 = vmatmul.mubr.bf16.gmra.mrb[0].mxu0 %v3379
        %v3887 = vpop.f32.mrb[0].mxu0
        %v3888 = vadd.f32 0.0, %v3887
        %v3889 = vpop.f32.mrb[0].mxu0
        %v3890 = vpop.f32.mrb[0].mxu0
        %v3891 = vadd.f32 0.0, %v3890
        %v3892 = vpop.f32.mrb[0].mxu0
        %3893 = vmatprep.mubr.bf16.mxu0 0
        %3894 = vmatmul.mubr.bf16.gmra.mrb[0].mxu0 %v3380
        %v3895 = vpop.f32.mrb[0].mxu0
        %v3896 = vadd.f32 0.0, %v3895
        %v3897 = vpop.f32.mrb[0].mxu0
        %v3898 = vpop.f32.mrb[0].mxu0
        %v3899 = vadd.f32 0.0, %v3898
        %v3900 = vpop.f32.mrb[0].mxu0
        %3901 = vmatprep.mubr.bf16.mxu0 0
        %3902 = vmatmul.mubr.bf16.gmra.mrb[0].mxu0 %v3381
        %v3903 = vpop.f32.mrb[0].mxu0
        %v3904 = vadd.f32 0.0, %v3903
        %v3905 = vpop.f32.mrb[0].mxu0
        %v3906 = vpop.f32.mrb[0].mxu0
        %v3907 = vadd.f32 0.0, %v3906
        %v3908 = vpop.f32.mrb[0].mxu0
        %3909 = vdwg.mxu0
        %v3910 = vrot.slane %v3880, 1
        %v3911 = vrot.slane %v3883, 1
        %v3912 = vrot.slane %v3888, 1
        %v3913 = vrot.slane %v3891, 1
        %v3914 = vrot.slane %v3896, 1
        %v3915 = vrot.slane %v3899, 1
        %v3916 = vrot.slane %v3904, 1
        %v3917 = vrot.slane %v3907, 1
        %v3918 = vsel %vm1542, %v3916, %v3917
        %v3919 = vsel %vm1542, %v3915, %v3916
        %v3920 = vsel %vm1542, %v3914, %v3915
        %v3921 = vsel %vm1542, %v3913, %v3914
        %v3922 = vsel %vm1542, %v3912, %v3913
        %v3923 = vsel %vm1542, %v3911, %v3912
        %v3924 = vsel %vm1542, %v3910, %v3911
        %v3925 = vsel %vm1542, %v3917, %v3910
        %vm3926 = vcmp.eq.s32.totalorder %v3732, 31
        %vm3927 = vcmp.eq.s32.totalorder %v3733, 31
        %vm3928 = vcmp.eq.s32.totalorder %v3734, 31
        %vm3929 = vcmp.eq.s32.totalorder %v3735, 31
        %vm3930 = vcmp.eq.s32.totalorder %v3736, 31
        %vm3931 = vcmp.eq.s32.totalorder %v3737, 31
        %vm3932 = vcmp.eq.s32.totalorder %v3738, 31
        %vm3933 = vcmp.eq.s32.totalorder %v3739, 31
        %v3934 = vsel %vm3926, 1, 0
        %v3935 = vsel %vm3927, 1, 0
        %v3936 = vsel %vm3928, 1, 0
        %v3937 = vsel %vm3929, 1, 0
        %v3938 = vsel %vm3930, 1, 0
        %v3939 = vsel %vm3931, 1, 0
        %v3940 = vsel %vm3932, 1, 0
        %v3941 = vsel %vm3933, 1, 0
        %vm3942 = vcmp.eq.s32.totalorder %v3934, 1
        %vm3943 = vcmp.eq.s32.totalorder %v3935, 1
        %vm3944 = vcmp.eq.s32.totalorder %v3936, 1
        %vm3945 = vcmp.eq.s32.totalorder %v3937, 1
        %vm3946 = vcmp.eq.s32.totalorder %v3938, 1
        %vm3947 = vcmp.eq.s32.totalorder %v3939, 1
        %vm3948 = vcmp.eq.s32.totalorder %v3940, 1
        %vm3949 = vcmp.eq.s32.totalorder %v3941, 1
        %v3950 = vsel %vm3942, 0.0, %v3924
        %v3951 = vsel %vm3943, 0.0, %v3923
        %v3952 = vsel %vm3944, 0.0, %v3922
        %v3953 = vsel %vm3945, 0.0, %v3921
        %v3954 = vsel %vm3946, 0.0, %v3920
        %v3955 = vsel %vm3947, 0.0, %v3919
        %v3956 = vsel %vm3948, 0.0, %v3918
        %v3957 = vsel %vm3949, 0.0, %v3925
        %v3958 = vadd.f32 %v3772, %v3950
        %v3959 = vadd.f32 %v3773, %v3951
        %v3960 = vadd.f32 %v3774, %v3952
        %v3961 = vadd.f32 %v3775, %v3953
        %v3962 = vadd.f32 %v3776, %v3954
        %v3963 = vadd.f32 %v3777, %v3955
        %v3964 = vadd.f32 %v3778, %v3956
        %v3965 = vadd.f32 %v3779, %v3957
        %v3966 = vld [vmem:[%s7] sm:$0x3]
        %v3967 = vlaneseq
        %v3968 = vshrl.u32 %v3967, 7
        %v3969 = vsub.s32 0, %v3968
        %v3970 = vrot.slane %v3966, %v3969
        %v3971 = vmul.f32 %v3958, %v3970
        %v3972 = vmul.f32 %v3959, %v3970
        %v3973 = vmul.f32 %v3960, %v3970
        %v3974 = vmul.f32 %v3961, %v3970
        %v3975 = vmul.f32 %v3962, %v3970
        %v3976 = vmul.f32 %v3963, %v3970
        %v3977 = vmul.f32 %v3964, %v3970
        %v3978 = vmul.f32 %v3965, %v3970
        %v3979 = vlaneseq
        %v3980 = vshrl.u32 %v3979, 7
        %v3981 = vsub.s32 1, %v3980
        %v3982 = vrot.slane %v3966, %v3981
        %v3983 = vadd.f32 %v3971, %v3982
        %v3984 = vadd.f32 %v3972, %v3982
        %v3985 = vadd.f32 %v3973, %v3982
        %v3986 = vadd.f32 %v3974, %v3982
        %v3987 = vadd.f32 %v3975, %v3982
        %v3988 = vadd.f32 %v3976, %v3982
        %v3989 = vadd.f32 %v3977, %v3982
        %v3990 = vadd.f32 %v3978, %v3982
        %vm3991 = vcmp.gt.f32.partialorder %v3983, 0.0
        %vm3992 = vcmp.gt.f32.partialorder %v3984, 0.0
        %vm3993 = vcmp.gt.f32.partialorder %v3985, 0.0
        %vm3994 = vcmp.gt.f32.partialorder %v3986, 0.0
        %vm3995 = vcmp.gt.f32.partialorder %v3987, 0.0
        %vm3996 = vcmp.gt.f32.partialorder %v3988, 0.0
        %vm3997 = vcmp.gt.f32.partialorder %v3989, 0.0
        %vm3998 = vcmp.gt.f32.partialorder %v3990, 0.0
        %v3999 = vmul.f32 %v3983, 0.2
        %v4000 = vmul.f32 %v3984, 0.2
        %v4001 = vmul.f32 %v3985, 0.2
        %v4002 = vmul.f32 %v3986, 0.2
        %v4003 = vmul.f32 %v3987, 0.2
        %v4004 = vmul.f32 %v3988, 0.2
        %v4005 = vmul.f32 %v3989, 0.2
        %v4006 = vmul.f32 %v3990, 0.2
        %v4007 = vsel %vm3991, %v3983, %v3999
        %v4008 = vsel %vm3992, %v3984, %v4000
        %v4009 = vsel %vm3993, %v3985, %v4001
        %v4010 = vsel %vm3994, %v3986, %v4002
        %v4011 = vsel %vm3995, %v3987, %v4003
        %v4012 = vsel %vm3996, %v3988, %v4004
        %v4013 = vsel %vm3997, %v3989, %v4005
        %v4014 = vsel %vm3998, %v3990, %v4006
        %v4015 = vpack.c.bf16 %v4008, %v4007
        %v4016 = vpack.c.bf16 %v4010, %v4009
        %v4017 = vpack.c.bf16 %v4012, %v4011
        %v4018 = vpack.c.bf16 %v4014, %v4013
        %v4019 = vunpack.c.l.bf16 %v4015
        %v4020 = vunpack.c.h.bf16 %v4015
        %v4021 = vunpack.c.l.bf16 %v4016
        %v4022 = vunpack.c.h.bf16 %v4016
        %v4023 = vunpack.c.l.bf16 %v4017
        %v4024 = vunpack.c.h.bf16 %v4017
        %v4025 = vunpack.c.l.bf16 %v4018
        %v4026 = vunpack.c.h.bf16 %v4018
        %v4035 = vcombine.high %v4019, %v4019
        %v4037 = vunpack.c.l.s4 1983009808
        %v4038 = vunpack.c.0.s8 %v4037
        %v4039 = vlaneseq
        %v4040 = vshrl.u32 %v4039, 7
        %v4041 = vsub.s32 %v4038, %v4040
        %v4042 = vrot.slane %v4019, %v4041
        %v4044 = vunpack.c.l.s4 1983009808
        %v4045 = vunpack.c.0.s8 %v4044
        %v4046 = vlaneseq
        %v4047 = vshrl.u32 %v4046, 7
        %v4048 = vsub.s32 %v4045, %v4047
        %v4049 = vrot.slane %v4035, %v4048
        %v4050 = vcombine.high %v4042, %v4042
        %v4051 = vcombine.high %v4049, %v4049
        %v4052 = vcombine.high %v4020, %v4020
        %v4054 = vunpack.c.l.s4 1983009808
        %v4055 = vunpack.c.0.s8 %v4054
        %v4056 = vlaneseq
        %v4057 = vshrl.u32 %v4056, 7
        %v4058 = vsub.s32 %v4055, %v4057
        %v4059 = vrot.slane %v4020, %v4058
        %v4061 = vunpack.c.l.s4 1983009808
        %v4062 = vunpack.c.0.s8 %v4061
        %v4063 = vlaneseq
        %v4064 = vshrl.u32 %v4063, 7
        %v4065 = vsub.s32 %v4062, %v4064
        %v4066 = vrot.slane %v4052, %v4065
        %v4067 = vcombine.high %v4059, %v4059
        %v4068 = vcombine.high %v4066, %v4066
        %v4069 = vcombine.high %v4021, %v4021
        %v4071 = vunpack.c.l.s4 1983009808
        %v4072 = vunpack.c.0.s8 %v4071
        %v4073 = vlaneseq
        %v4074 = vshrl.u32 %v4073, 7
        %v4075 = vsub.s32 %v4072, %v4074
        %v4076 = vrot.slane %v4021, %v4075
        %v4078 = vunpack.c.l.s4 1983009808
        %v4079 = vunpack.c.0.s8 %v4078
        %v4080 = vlaneseq
        %v4081 = vshrl.u32 %v4080, 7
        %v4082 = vsub.s32 %v4079, %v4081
        %v4083 = vrot.slane %v4069, %v4082
        %v4084 = vcombine.high %v4076, %v4076
        %v4085 = vcombine.high %v4083, %v4083
        %v4086 = vcombine.high %v4022, %v4022
        %v4088 = vunpack.c.l.s4 1983009808
        %v4089 = vunpack.c.0.s8 %v4088
        %v4090 = vlaneseq
        %v4091 = vshrl.u32 %v4090, 7
        %v4092 = vsub.s32 %v4089, %v4091
        %v4093 = vrot.slane %v4022, %v4092
        %v4095 = vunpack.c.l.s4 1983009808
        %v4096 = vunpack.c.0.s8 %v4095
        %v4097 = vlaneseq
        %v4098 = vshrl.u32 %v4097, 7
        %v4099 = vsub.s32 %v4096, %v4098
        %v4100 = vrot.slane %v4086, %v4099
        %v4101 = vcombine.high %v4093, %v4093
        %v4102 = vcombine.high %v4100, %v4100
        %v4103 = vcombine.high %v4023, %v4023
        %v4105 = vunpack.c.l.s4 1983009808
        %v4106 = vunpack.c.0.s8 %v4105
        %v4107 = vlaneseq
        %v4108 = vshrl.u32 %v4107, 7
        %v4109 = vsub.s32 %v4106, %v4108
        %v4110 = vrot.slane %v4023, %v4109
        %v4112 = vunpack.c.l.s4 1983009808
        %v4113 = vunpack.c.0.s8 %v4112
        %v4114 = vlaneseq
        %v4115 = vshrl.u32 %v4114, 7
        %v4116 = vsub.s32 %v4113, %v4115
        %v4117 = vrot.slane %v4103, %v4116
        %v4118 = vcombine.high %v4110, %v4110
        %v4119 = vcombine.high %v4117, %v4117
        %v4120 = vcombine.high %v4024, %v4024
        %v4122 = vunpack.c.l.s4 1983009808
        %v4123 = vunpack.c.0.s8 %v4122
        %v4124 = vlaneseq
        %v4125 = vshrl.u32 %v4124, 7
        %v4126 = vsub.s32 %v4123, %v4125
        %v4127 = vrot.slane %v4024, %v4126
        %v4129 = vunpack.c.l.s4 1983009808
        %v4130 = vunpack.c.0.s8 %v4129
        %v4131 = vlaneseq
        %v4132 = vshrl.u32 %v4131, 7
        %v4133 = vsub.s32 %v4130, %v4132
        %v4134 = vrot.slane %v4120, %v4133
        %v4135 = vcombine.high %v4127, %v4127
        %v4136 = vcombine.high %v4134, %v4134
        %v4137 = vcombine.high %v4025, %v4025
        %v4139 = vunpack.c.l.s4 1983009808
        %v4140 = vunpack.c.0.s8 %v4139
        %v4141 = vlaneseq
        %v4142 = vshrl.u32 %v4141, 7
        %v4143 = vsub.s32 %v4140, %v4142
        %v4144 = vrot.slane %v4025, %v4143
        %v4146 = vunpack.c.l.s4 1983009808
        %v4147 = vunpack.c.0.s8 %v4146
        %v4148 = vlaneseq
        %v4149 = vshrl.u32 %v4148, 7
        %v4150 = vsub.s32 %v4147, %v4149
        %v4151 = vrot.slane %v4137, %v4150
        %v4152 = vcombine.high %v4144, %v4144
        %v4153 = vcombine.high %v4151, %v4151
        %v4154 = vcombine.high %v4026, %v4026
        %v4156 = vunpack.c.l.s4 1983009808
        %v4157 = vunpack.c.0.s8 %v4156
        %v4158 = vlaneseq
        %v4159 = vshrl.u32 %v4158, 7
        %v4160 = vsub.s32 %v4157, %v4159
        %v4161 = vrot.slane %v4026, %v4160
        %v4163 = vunpack.c.l.s4 1983009808
        %v4164 = vunpack.c.0.s8 %v4163
        %v4165 = vlaneseq
        %v4166 = vshrl.u32 %v4165, 7
        %v4167 = vsub.s32 %v4164, %v4166
        %v4168 = vrot.slane %v4154, %v4167
        %v4169 = vcombine.high %v4161, %v4161
        %v4170 = vcombine.high %v4168, %v4168
        %v4203 = vpack.c.bf16 %v4042, %v4042
        %v4204 = vpack.c.bf16 %v4050, %v4050
        %v4205 = vpack.c.bf16 %v4049, %v4049
        %v4206 = vpack.c.bf16 %v4051, %v4051
        %v4207 = vpack.c.bf16 %v4059, %v4059
        %v4208 = vpack.c.bf16 %v4067, %v4067
        %v4209 = vpack.c.bf16 %v4066, %v4066
        %v4210 = vpack.c.bf16 %v4068, %v4068
        %v4211 = vpack.c.bf16 %v4076, %v4076
        %v4212 = vpack.c.bf16 %v4084, %v4084
        %v4213 = vpack.c.bf16 %v4083, %v4083
        %v4214 = vpack.c.bf16 %v4085, %v4085
        %v4215 = vpack.c.bf16 %v4093, %v4093
        %v4216 = vpack.c.bf16 %v4101, %v4101
        %v4217 = vpack.c.bf16 %v4100, %v4100
        %v4218 = vpack.c.bf16 %v4102, %v4102
        %v4219 = vpack.c.bf16 %v4110, %v4110
        %v4220 = vpack.c.bf16 %v4118, %v4118
        %v4221 = vpack.c.bf16 %v4117, %v4117
        %v4222 = vpack.c.bf16 %v4119, %v4119
        %v4223 = vpack.c.bf16 %v4127, %v4127
        %v4224 = vpack.c.bf16 %v4135, %v4135
        %v4225 = vpack.c.bf16 %v4134, %v4134
        %v4226 = vpack.c.bf16 %v4136, %v4136
        %v4227 = vpack.c.bf16 %v4144, %v4144
        %v4228 = vpack.c.bf16 %v4152, %v4152
        %v4229 = vpack.c.bf16 %v4151, %v4151
        %v4230 = vpack.c.bf16 %v4153, %v4153
        %v4231 = vpack.c.bf16 %v4161, %v4161
        %v4232 = vpack.c.bf16 %v4169, %v4169
        %v4233 = vpack.c.bf16 %v4168, %v4168
        %v4234 = vpack.c.bf16 %v4170, %v4170
        %s4235 = scalar_lea.vmem [#allocation5], 320
        %v4236 = vld [vmem:[%s4235] sm:$0xf]
        %v4237 = vld [vmem:[%s4235 + $0x4] sm:$0xf]
        %v4238 = vld [vmem:[%s4235 + $0x8] sm:$0xf]
        %v4239 = vld [vmem:[%s4235 + $0xc] sm:$0xf]
        %v4240 = vld [vmem:[%s4235 + $0x10] sm:$0xf]
        %v4241 = vld [vmem:[%s4235 + $0x14] sm:$0xf]
        %v4242 = vld [vmem:[%s4235 + $0x18] sm:$0xf]
        %v4243 = vld [vmem:[%s4235 + $0x1c] sm:$0xf]
        %v4244 = vld [vmem:[%s4235 + $0x20] sm:$0xf]
        %v4245 = vld [vmem:[%s4235 + $0x24] sm:$0xf]
        %v4246 = vld [vmem:[%s4235 + $0x28] sm:$0xf]
        %v4247 = vld [vmem:[%s4235 + $0x2c] sm:$0xf]
        %v4248 = vld [vmem:[%s4235 + $0x30] sm:$0xf]
        %v4249 = vld [vmem:[%s4235 + $0x34] sm:$0xf]
        %v4250 = vld [vmem:[%s4235 + $0x38] sm:$0xf]
        %v4251 = vld [vmem:[%s4235 + $0x3c] sm:$0xf]
        %s4252 = scalar_lea.vmem [#allocation5], 384
        %v4253 = vld [vmem:[%s4252] sm:$0xf]
        %v4254 = vld [vmem:[%s4252 + $0x4] sm:$0xf]
        %v4255 = vld [vmem:[%s4252 + $0x8] sm:$0xf]
        %v4256 = vld [vmem:[%s4252 + $0xc] sm:$0xf]
        %v4257 = vld [vmem:[%s4252 + $0x10] sm:$0xf]
        %v4258 = vld [vmem:[%s4252 + $0x14] sm:$0xf]
        %v4259 = vld [vmem:[%s4252 + $0x18] sm:$0xf]
        %v4260 = vld [vmem:[%s4252 + $0x1c] sm:$0xf]
        %v4261 = vld [vmem:[%s4252 + $0x20] sm:$0xf]
        %v4262 = vld [vmem:[%s4252 + $0x24] sm:$0xf]
        %v4263 = vld [vmem:[%s4252 + $0x28] sm:$0xf]
        %v4264 = vld [vmem:[%s4252 + $0x2c] sm:$0xf]
        %v4265 = vld [vmem:[%s4252 + $0x30] sm:$0xf]
        %v4266 = vld [vmem:[%s4252 + $0x34] sm:$0xf]
        %v4267 = vld [vmem:[%s4252 + $0x38] sm:$0xf]
        %v4268 = vld [vmem:[%s4252 + $0x3c] sm:$0xf]
        %v4301 = vunpack.c.l.b16 %v4203
        %v4302 = vunpack.c.l.b16 %v4204
        %v4303 = vunpack.c.l.b16 %v4205
        %v4304 = vunpack.c.l.b16 %v4206
        %v4305 = vunpack.c.l.b16 %v4207
        %v4306 = vunpack.c.l.b16 %v4208
        %v4307 = vunpack.c.l.b16 %v4209
        %v4308 = vunpack.c.l.b16 %v4210
        %v4309 = vunpack.c.l.b16 %v4211
        %v4310 = vunpack.c.l.b16 %v4212
        %v4311 = vunpack.c.l.b16 %v4213
        %v4312 = vunpack.c.l.b16 %v4214
        %v4313 = vunpack.c.l.b16 %v4215
        %v4314 = vunpack.c.l.b16 %v4216
        %v4315 = vunpack.c.l.b16 %v4217
        %v4316 = vunpack.c.l.b16 %v4218
        %v4317 = vunpack.c.l.b16 %v4219
        %v4318 = vunpack.c.l.b16 %v4220
        %v4319 = vunpack.c.l.b16 %v4221
        %v4320 = vunpack.c.l.b16 %v4222
        %v4321 = vunpack.c.l.b16 %v4223
        %v4322 = vunpack.c.l.b16 %v4224
        %v4323 = vunpack.c.l.b16 %v4225
        %v4324 = vunpack.c.l.b16 %v4226
        %v4325 = vunpack.c.l.b16 %v4227
        %v4326 = vunpack.c.l.b16 %v4228
        %v4327 = vunpack.c.l.b16 %v4229
        %v4328 = vunpack.c.l.b16 %v4230
        %v4329 = vunpack.c.l.b16 %v4231
        %v4330 = vunpack.c.l.b16 %v4232
        %v4331 = vunpack.c.l.b16 %v4233
        %v4332 = vunpack.c.l.b16 %v4234
        %v4333 = vrot.slane %v4301, 1
        %v4334 = vsel %vm3027, %v4302, %v4333
        %v4335 = vrot.slane %v4303, 7
        %v4336 = vsel %vm3030, %v4335, %v4334
        %v4337 = vrot.slane %v4304, 6
        %v4338 = vsel %vm3033, %v4337, %v4336
        %v4339 = vrot.slane %v4305, 5
        %v4340 = vsel %vm3036, %v4339, %v4338
        %v4341 = vrot.slane %v4306, 4
        %v4342 = vsel %vm3039, %v4341, %v4340
        %v4343 = vrot.slane %v4307, 3
        %v4344 = vsel %vm3042, %v4343, %v4342
        %v4345 = vrot.slane %v4308, 2
        %v4346 = vsel %vm3045, %v4345, %v4344
        %v4347 = vrot.slane %v4309, 1
        %v4348 = vsel %vm3027, %v4310, %v4347
        %v4349 = vrot.slane %v4311, 7
        %v4350 = vsel %vm3030, %v4349, %v4348
        %v4351 = vrot.slane %v4312, 6
        %v4352 = vsel %vm3033, %v4351, %v4350
        %v4353 = vrot.slane %v4313, 5
        %v4354 = vsel %vm3036, %v4353, %v4352
        %v4355 = vrot.slane %v4314, 4
        %v4356 = vsel %vm3039, %v4355, %v4354
        %v4357 = vrot.slane %v4315, 3
        %v4358 = vsel %vm3042, %v4357, %v4356
        %v4359 = vrot.slane %v4316, 2
        %v4360 = vsel %vm3045, %v4359, %v4358
        %v4361 = vrot.slane %v4317, 1
        %v4362 = vsel %vm3027, %v4318, %v4361
        %v4363 = vrot.slane %v4319, 7
        %v4364 = vsel %vm3030, %v4363, %v4362
        %v4365 = vrot.slane %v4320, 6
        %v4366 = vsel %vm3033, %v4365, %v4364
        %v4367 = vrot.slane %v4321, 5
        %v4368 = vsel %vm3036, %v4367, %v4366
        %v4369 = vrot.slane %v4322, 4
        %v4370 = vsel %vm3039, %v4369, %v4368
        %v4371 = vrot.slane %v4323, 3
        %v4372 = vsel %vm3042, %v4371, %v4370
        %v4373 = vrot.slane %v4324, 2
        %v4374 = vsel %vm3045, %v4373, %v4372
        %v4375 = vrot.slane %v4325, 1
        %v4376 = vsel %vm3027, %v4326, %v4375
        %v4377 = vrot.slane %v4327, 7
        %v4378 = vsel %vm3030, %v4377, %v4376
        %v4379 = vrot.slane %v4328, 6
        %v4380 = vsel %vm3033, %v4379, %v4378
        %v4381 = vrot.slane %v4329, 5
        %v4382 = vsel %vm3036, %v4381, %v4380
        %v4383 = vrot.slane %v4330, 4
        %v4384 = vsel %vm3039, %v4383, %v4382
        %v4385 = vrot.slane %v4331, 3
        %v4386 = vsel %vm3042, %v4385, %v4384
        %v4387 = vrot.slane %v4332, 2
        %v4388 = vsel %vm3045, %v4387, %v4386
        %v4389 = vpack.c.b16 %v4360, %v4346
        %v4390 = vpack.c.b16 %v4388, %v4374
        %v4409 = vunpack.c.l.b16 %v4253
        %v4410 = vunpack.c.l.b16 %v4254
        %v4411 = vunpack.c.l.b16 %v4255
        %v4412 = vunpack.c.l.b16 %v4256
        %v4413 = vunpack.c.l.b16 %v4257
        %v4414 = vunpack.c.l.b16 %v4258
        %v4415 = vunpack.c.l.b16 %v4259
        %v4416 = vunpack.c.l.b16 %v4260
        %v4417 = vunpack.c.l.b16 %v4261
        %v4418 = vunpack.c.l.b16 %v4262
        %v4419 = vunpack.c.l.b16 %v4263
        %v4420 = vunpack.c.l.b16 %v4264
        %v4421 = vunpack.c.l.b16 %v4265
        %v4422 = vunpack.c.l.b16 %v4266
        %v4423 = vunpack.c.l.b16 %v4267
        %v4424 = vunpack.c.l.b16 %v4268
        %v4425 = vpack.c.b16 %v4410, %v4409
        %v4426 = vpack.c.b16 %v4412, %v4411
        %v4427 = vpack.c.b16 %v4414, %v4413
        %v4428 = vpack.c.b16 %v4416, %v4415
        %v4429 = vpack.c.b16 %v4418, %v4417
        %v4430 = vpack.c.b16 %v4420, %v4419
        %v4431 = vpack.c.b16 %v4422, %v4421
        %v4432 = vpack.c.b16 %v4424, %v4423
        %4441 = vmatprep.subr.bf16.mxu0 0
        %4442 = vmatpush1.bf16.msra.mxu0 %v4425
        %4443 = vmatprep.subr.bf16.mxu0 0
        %4444 = vmatpush1.bf16.msra.mxu0 %v4426
        %4445 = vmatprep.subr.bf16.mxu0 0
        %4446 = vmatpush1.bf16.msra.mxu0 %v4427
        %4447 = vmatprep.subr.bf16.mxu0 0
        %4448 = vmatpush1.bf16.msra.mxu0 %v4428
        %4449 = vmatprep.subr.bf16.mxu0 0
        %4450 = vmatpush1.bf16.msra.mxu0 %v4429
        %4451 = vmatprep.subr.bf16.mxu0 0
        %4452 = vmatpush1.bf16.msra.mxu0 %v4430
        %4453 = vmatprep.subr.bf16.mxu0 0
        %4454 = vmatpush1.bf16.msra.mxu0 %v4431
        %4455 = vmatprep.subr.bf16.mxu0 0
        %4456 = vmatpush1.bf16.msra.mxu0 %v4432
        %4457 = vmatprep.subr.bf16.mxu0 0
        %4458 = vmatpush1.bf16.msra.mxu0 0
        %4459 = vmatprep.subr.bf16.mxu0 0
        %4460 = vmatpush1.bf16.msra.mxu0 0
        %4461 = vmatprep.subr.bf16.mxu0 0
        %4462 = vmatpush1.bf16.msra.mxu0 0
        %4463 = vmatprep.subr.bf16.mxu0 0
        %4464 = vmatpush1.bf16.msra.mxu0 0
        %4465 = vmatprep.subr.bf16.mxu0 0
        %4466 = vmatpush1.bf16.msra.mxu0 0
        %4467 = vmatprep.subr.bf16.mxu0 0
        %4468 = vmatpush1.bf16.msra.mxu0 0
        %4469 = vmatprep.subr.bf16.mxu0 0
        %4470 = vmatpush1.bf16.msra.mxu0 0
        %4471 = vmatprep.subr.bf16.mxu0 0
        %4472 = vmatpush1.bf16.msra.mxu0 0
        %4473 = vmatprep.mubr.bf16.mxu0 0
        %4474 = vmatmul.mubr.bf16.gmra.mrb[0].mxu0 %v4389
        %v4475 = vpop.f32.mrb[0].mxu0
        %v4476 = vadd.f32 0.0, %v4475
        %v4477 = vpop.f32.mrb[0].mxu0
        %v4478 = vpop.f32.mrb[0].mxu0
        %v4479 = vadd.f32 0.0, %v4478
        %v4480 = vpop.f32.mrb[0].mxu0
        %4481 = vmatprep.mubr.bf16.mxu0 0
        %4482 = vmatmul.mubr.bf16.gmra.mrb[0].mxu0 %v4390
        %v4483 = vpop.f32.mrb[0].mxu0
        %v4484 = vadd.f32 0.0, %v4483
        %v4485 = vpop.f32.mrb[0].mxu0
        %v4486 = vpop.f32.mrb[0].mxu0
        %v4487 = vadd.f32 0.0, %v4486
        %v4488 = vpop.f32.mrb[0].mxu0
        %4489 = vdwg.mxu0
        %v4490 = vrot.slane %v4302, 7
        %v4491 = vsel %vm3027, %v4490, %v4301
        %v4492 = vrot.slane %v4303, 6
        %v4493 = vsel %vm3030, %v4492, %v4491
        %v4494 = vrot.slane %v4304, 5
        %v4495 = vsel %vm3033, %v4494, %v4493
        %v4496 = vrot.slane %v4305, 4
        %v4497 = vsel %vm3036, %v4496, %v4495
        %v4498 = vrot.slane %v4306, 3
        %v4499 = vsel %vm3039, %v4498, %v4497
        %v4500 = vrot.slane %v4307, 2
        %v4501 = vsel %vm3042, %v4500, %v4499
        %v4502 = vrot.slane %v4308, 1
        %v4503 = vsel %vm3045, %v4502, %v4501
        %v4504 = vrot.slane %v4310, 7
        %v4505 = vsel %vm3027, %v4504, %v4309
        %v4506 = vrot.slane %v4311, 6
        %v4507 = vsel %vm3030, %v4506, %v4505
        %v4508 = vrot.slane %v4312, 5
        %v4509 = vsel %vm3033, %v4508, %v4507
        %v4510 = vrot.slane %v4313, 4
        %v4511 = vsel %vm3036, %v4510, %v4509
        %v4512 = vrot.slane %v4314, 3
        %v4513 = vsel %vm3039, %v4512, %v4511
        %v4514 = vrot.slane %v4315, 2
        %v4515 = vsel %vm3042, %v4514, %v4513
        %v4516 = vrot.slane %v4316, 1
        %v4517 = vsel %vm3045, %v4516, %v4515
        %v4518 = vrot.slane %v4318, 7
        %v4519 = vsel %vm3027, %v4518, %v4317
        %v4520 = vrot.slane %v4319, 6
        %v4521 = vsel %vm3030, %v4520, %v4519
        %v4522 = vrot.slane %v4320, 5
        %v4523 = vsel %vm3033, %v4522, %v4521
        %v4524 = vrot.slane %v4321, 4
        %v4525 = vsel %vm3036, %v4524, %v4523
        %v4526 = vrot.slane %v4322, 3
        %v4527 = vsel %vm3039, %v4526, %v4525
        %v4528 = vrot.slane %v4323, 2
        %v4529 = vsel %vm3042, %v4528, %v4527
        %v4530 = vrot.slane %v4324, 1
        %v4531 = vsel %vm3045, %v4530, %v4529
        %v4532 = vrot.slane %v4326, 7
        %v4533 = vsel %vm3027, %v4532, %v4325
        %v4534 = vrot.slane %v4327, 6
        %v4535 = vsel %vm3030, %v4534, %v4533
        %v4536 = vrot.slane %v4328, 5
        %v4537 = vsel %vm3033, %v4536, %v4535
        %v4538 = vrot.slane %v4329, 4
        %v4539 = vsel %vm3036, %v4538, %v4537
        %v4540 = vrot.slane %v4330, 3
        %v4541 = vsel %vm3039, %v4540, %v4539
        %v4542 = vrot.slane %v4331, 2
        %v4543 = vsel %vm3042, %v4542, %v4541
        %v4544 = vrot.slane %v4332, 1
        %v4545 = vsel %vm3045, %v4544, %v4543
        %v4546 = vpack.c.b16 %v4517, %v4503
        %v4547 = vpack.c.b16 %v4545, %v4531
        %v4566 = vunpack.c.l.b16 %v4236
        %v4567 = vunpack.c.l.b16 %v4237
        %v4568 = vunpack.c.l.b16 %v4238
        %v4569 = vunpack.c.l.b16 %v4239
        %v4570 = vunpack.c.l.b16 %v4240
        %v4571 = vunpack.c.l.b16 %v4241
        %v4572 = vunpack.c.l.b16 %v4242
        %v4573 = vunpack.c.l.b16 %v4243
        %v4574 = vunpack.c.l.b16 %v4244
        %v4575 = vunpack.c.l.b16 %v4245
        %v4576 = vunpack.c.l.b16 %v4246
        %v4577 = vunpack.c.l.b16 %v4247
        %v4578 = vunpack.c.l.b16 %v4248
        %v4579 = vunpack.c.l.b16 %v4249
        %v4580 = vunpack.c.l.b16 %v4250
        %v4581 = vunpack.c.l.b16 %v4251
        %v4582 = vpack.c.b16 %v4567, %v4566
        %v4583 = vpack.c.b16 %v4569, %v4568
        %v4584 = vpack.c.b16 %v4571, %v4570
        %v4585 = vpack.c.b16 %v4573, %v4572
        %v4586 = vpack.c.b16 %v4575, %v4574
        %v4587 = vpack.c.b16 %v4577, %v4576
        %v4588 = vpack.c.b16 %v4579, %v4578
        %v4589 = vpack.c.b16 %v4581, %v4580
        %4598 = vmatprep.subr.bf16.mxu0 0
        %4599 = vmatpush1.bf16.msra.mxu0 %v4582
        %4600 = vmatprep.subr.bf16.mxu0 0
        %4601 = vmatpush1.bf16.msra.mxu0 %v4583
        %4602 = vmatprep.subr.bf16.mxu0 0
        %4603 = vmatpush1.bf16.msra.mxu0 %v4584
        %4604 = vmatprep.subr.bf16.mxu0 0
        %4605 = vmatpush1.bf16.msra.mxu0 %v4585
        %4606 = vmatprep.subr.bf16.mxu0 0
        %4607 = vmatpush1.bf16.msra.mxu0 %v4586
        %4608 = vmatprep.subr.bf16.mxu0 0
        %4609 = vmatpush1.bf16.msra.mxu0 %v4587
        %4610 = vmatprep.subr.bf16.mxu0 0
        %4611 = vmatpush1.bf16.msra.mxu0 %v4588
        %4612 = vmatprep.subr.bf16.mxu0 0
        %4613 = vmatpush1.bf16.msra.mxu0 %v4589
        %4614 = vmatprep.subr.bf16.mxu0 0
        %4615 = vmatpush1.bf16.msra.mxu0 0
        %4616 = vmatprep.subr.bf16.mxu0 0
        %4617 = vmatpush1.bf16.msra.mxu0 0
        %4618 = vmatprep.subr.bf16.mxu0 0
        %4619 = vmatpush1.bf16.msra.mxu0 0
        %4620 = vmatprep.subr.bf16.mxu0 0
        %4621 = vmatpush1.bf16.msra.mxu0 0
        %4622 = vmatprep.subr.bf16.mxu0 0
        %4623 = vmatpush1.bf16.msra.mxu0 0
        %4624 = vmatprep.subr.bf16.mxu0 0
        %4625 = vmatpush1.bf16.msra.mxu0 0
        %4626 = vmatprep.subr.bf16.mxu0 0
        %4627 = vmatpush1.bf16.msra.mxu0 0
        %4628 = vmatprep.subr.bf16.mxu0 0
        %4629 = vmatpush1.bf16.msra.mxu0 0
        %4630 = vmatprep.mubr.bf16.mxu0 0
        %4631 = vmatmul.mubr.bf16.gmra.mrb[0].mxu0 %v4546
        %v4632 = vpop.f32.mrb[0].mxu0
        %v4633 = vadd.f32 %v4476, %v4632
        %v4634 = vpop.f32.mrb[0].mxu0
        %v4635 = vpop.f32.mrb[0].mxu0
        %v4636 = vadd.f32 %v4479, %v4635
        %v4637 = vpop.f32.mrb[0].mxu0
        %4638 = vmatprep.mubr.bf16.mxu0 0
        %4639 = vmatmul.mubr.bf16.gmra.mrb[0].mxu0 %v4547
        %v4640 = vpop.f32.mrb[0].mxu0
        %v4641 = vadd.f32 %v4484, %v4640
        %v4642 = vpop.f32.mrb[0].mxu0
        %v4643 = vpop.f32.mrb[0].mxu0
        %v4644 = vadd.f32 %v4487, %v4643
        %v4645 = vpop.f32.mrb[0].mxu0
        %4646 = vdwg.mxu0
        %s4647 = scalar_lea.vmem [#allocation5], 256
        %v4648 = vld [vmem:[%s4647] sm:$0xf]
        %v4649 = vld [vmem:[%s4647 + $0x4] sm:$0xf]
        %v4650 = vld [vmem:[%s4647 + $0x8] sm:$0xf]
        %v4651 = vld [vmem:[%s4647 + $0xc] sm:$0xf]
        %v4652 = vld [vmem:[%s4647 + $0x10] sm:$0xf]
        %v4653 = vld [vmem:[%s4647 + $0x14] sm:$0xf]
        %v4654 = vld [vmem:[%s4647 + $0x18] sm:$0xf]
        %v4655 = vld [vmem:[%s4647 + $0x1c] sm:$0xf]
        %v4656 = vld [vmem:[%s4647 + $0x20] sm:$0xf]
        %v4657 = vld [vmem:[%s4647 + $0x24] sm:$0xf]
        %v4658 = vld [vmem:[%s4647 + $0x28] sm:$0xf]
        %v4659 = vld [vmem:[%s4647 + $0x2c] sm:$0xf]
        %v4660 = vld [vmem:[%s4647 + $0x30] sm:$0xf]
        %v4661 = vld [vmem:[%s4647 + $0x34] sm:$0xf]
        %v4662 = vld [vmem:[%s4647 + $0x38] sm:$0xf]
        %v4663 = vld [vmem:[%s4647 + $0x3c] sm:$0xf]
        %v4680 = vunpack.c.l.b16 %v4648
        %v4681 = vunpack.c.l.b16 %v4649
        %v4682 = vunpack.c.l.b16 %v4650
        %v4683 = vunpack.c.l.b16 %v4651
        %v4684 = vunpack.c.l.b16 %v4652
        %v4685 = vunpack.c.l.b16 %v4653
        %v4686 = vunpack.c.l.b16 %v4654
        %v4687 = vunpack.c.l.b16 %v4655
        %v4688 = vunpack.c.l.b16 %v4656
        %v4689 = vunpack.c.l.b16 %v4657
        %v4690 = vunpack.c.l.b16 %v4658
        %v4691 = vunpack.c.l.b16 %v4659
        %v4692 = vunpack.c.l.b16 %v4660
        %v4693 = vunpack.c.l.b16 %v4661
        %v4694 = vunpack.c.l.b16 %v4662
        %v4695 = vunpack.c.l.b16 %v4663
        %v4696 = vpack.c.b16 %v4681, %v4680
        %v4697 = vpack.c.b16 %v4683, %v4682
        %v4698 = vpack.c.b16 %v4685, %v4684
        %v4699 = vpack.c.b16 %v4687, %v4686
        %v4700 = vpack.c.b16 %v4689, %v4688
        %v4701 = vpack.c.b16 %v4691, %v4690
        %v4702 = vpack.c.b16 %v4693, %v4692
        %v4703 = vpack.c.b16 %v4695, %v4694
        %4712 = vmatprep.subr.bf16.mxu0 0
        %4713 = vmatpush1.bf16.msra.mxu0 %v4696
        %4714 = vmatprep.subr.bf16.mxu0 0
        %4715 = vmatpush1.bf16.msra.mxu0 %v4697
        %4716 = vmatprep.subr.bf16.mxu0 0
        %4717 = vmatpush1.bf16.msra.mxu0 %v4698
        %4718 = vmatprep.subr.bf16.mxu0 0
        %4719 = vmatpush1.bf16.msra.mxu0 %v4699
        %4720 = vmatprep.subr.bf16.mxu0 0
        %4721 = vmatpush1.bf16.msra.mxu0 %v4700
        %4722 = vmatprep.subr.bf16.mxu0 0
        %4723 = vmatpush1.bf16.msra.mxu0 %v4701
        %4724 = vmatprep.subr.bf16.mxu0 0
        %4725 = vmatpush1.bf16.msra.mxu0 %v4702
        %4726 = vmatprep.subr.bf16.mxu0 0
        %4727 = vmatpush1.bf16.msra.mxu0 %v4703
        %4728 = vmatprep.subr.bf16.mxu0 0
        %4729 = vmatpush1.bf16.msra.mxu0 0
        %4730 = vmatprep.subr.bf16.mxu0 0
        %4731 = vmatpush1.bf16.msra.mxu0 0
        %4732 = vmatprep.subr.bf16.mxu0 0
        %4733 = vmatpush1.bf16.msra.mxu0 0
        %4734 = vmatprep.subr.bf16.mxu0 0
        %4735 = vmatpush1.bf16.msra.mxu0 0
        %4736 = vmatprep.subr.bf16.mxu0 0
        %4737 = vmatpush1.bf16.msra.mxu0 0
        %4738 = vmatprep.subr.bf16.mxu0 0
        %4739 = vmatpush1.bf16.msra.mxu0 0
        %4740 = vmatprep.subr.bf16.mxu0 0
        %4741 = vmatpush1.bf16.msra.mxu0 0
        %4742 = vmatprep.subr.bf16.mxu0 0
        %4743 = vmatpush1.bf16.msra.mxu0 0
        %4744 = vmatprep.mubr.bf16.mxu0 0
        %4745 = vmatmul.mubr.bf16.gmra.mrb[0].mxu0 %v4389
        %v4746 = vpop.f32.mrb[0].mxu0
        %v4747 = vadd.f32 0.0, %v4746
        %v4748 = vpop.f32.mrb[0].mxu0
        %v4749 = vpop.f32.mrb[0].mxu0
        %v4750 = vadd.f32 0.0, %v4749
        %v4751 = vpop.f32.mrb[0].mxu0
        %4752 = vmatprep.mubr.bf16.mxu0 0
        %4753 = vmatmul.mubr.bf16.gmra.mrb[0].mxu0 %v4390
        %v4754 = vpop.f32.mrb[0].mxu0
        %v4755 = vadd.f32 0.0, %v4754
        %v4756 = vpop.f32.mrb[0].mxu0
        %v4757 = vpop.f32.mrb[0].mxu0
        %v4758 = vadd.f32 0.0, %v4757
        %v4759 = vpop.f32.mrb[0].mxu0
        %4760 = vdwg.mxu0
        %v4761 = vrot.slane %v4747, 7
        %v4762 = vrot.slane %v4750, 7
        %v4763 = vrot.slane %v4755, 7
        %v4764 = vrot.slane %v4758, 7
        %v4765 = vsel %vm931, %v4763, %v4764
        %v4766 = vsel %vm931, %v4762, %v4763
        %v4767 = vsel %vm931, %v4761, %v4762
        %v4768 = vsel %vm931, %v4764, %v4761
        %vm4769 = vcmp.lt.s32.totalorder %v930, 0
        %v4770 = vsub.s32 0, %v930
        %v4771 = vsel %vm4769, %v4770, %v930
        %v4772 = vshrl.u32 %v4771, 4
        %v4773 = vand.u32 %v4771, 15
        %v4774 = vsub.s32 0, %v4773
        %v4775 = vsel %vm4769, %v4774, %v4773
        %vm4776 = vcmp.lt.s32.totalorder %v948, 0
        %v4777 = vsub.s32 0, %v948
        %v4778 = vsel %vm4776, %v4777, %v948
        %v4779 = vshrl.u32 %v4778, 4
        %v4780 = vand.u32 %v4778, 15
        %v4781 = vsub.s32 0, %v4780
        %v4782 = vsel %vm4776, %v4781, %v4780
        %vm4783 = vcmp.lt.s32.totalorder %v949, 0
        %v4784 = vsub.s32 0, %v949
        %v4785 = vsel %vm4783, %v4784, %v949
        %v4786 = vshrl.u32 %v4785, 4
        %v4787 = vand.u32 %v4785, 15
        %v4788 = vsub.s32 0, %v4787
        %v4789 = vsel %vm4783, %v4788, %v4787
        %vm4790 = vcmp.lt.s32.totalorder %v950, 0
        %v4791 = vsub.s32 0, %v950
        %v4792 = vsel %vm4790, %v4791, %v950
        %v4793 = vshrl.u32 %v4792, 4
        %v4794 = vand.u32 %v4792, 15
        %v4795 = vsub.s32 0, %v4794
        %v4796 = vsel %vm4790, %v4795, %v4794
        %vm4797 = vcmp.ne.s32.totalorder %v4775, 0
        %vm4798 = vcmp.ne.s32.totalorder %v4782, 0
        %vm4799 = vcmp.ne.s32.totalorder %v4789, 0
        %vm4800 = vcmp.ne.s32.totalorder %v4796, 0
        %vm4801 = vcmp.lt.s32.totalorder %v4775, 0
        %vm4802 = vcmp.lt.s32.totalorder %v4782, 0
        %vm4803 = vcmp.lt.s32.totalorder %v4789, 0
        %vm4804 = vcmp.lt.s32.totalorder %v4796, 0
        %vm4805 = vmand %vm4801, %vm4797
        %vm4806 = vmand %vm4802, %vm4798
        %vm4807 = vmand %vm4803, %vm4799
        %vm4808 = vmand %vm4804, %vm4800
        %v4809 = vadd.s32 %v4775, 16
        %v4810 = vadd.s32 %v4782, 16
        %v4811 = vadd.s32 %v4789, 16
        %v4812 = vadd.s32 %v4796, 16
        %v4813 = vsel %vm4805, %v4809, %v4775
        %v4814 = vsel %vm4806, %v4810, %v4782
        %v4815 = vsel %vm4807, %v4811, %v4789
        %v4816 = vsel %vm4808, %v4812, %v4796
        %vm4817 = vcmp.eq.s32.totalorder %v4813, 0
        %vm4818 = vcmp.eq.s32.totalorder %v4814, 0
        %vm4819 = vcmp.eq.s32.totalorder %v4815, 0
        %vm4820 = vcmp.eq.s32.totalorder %v4816, 0
        %v4821 = vsel %vm4817, 1, 0
        %v4822 = vsel %vm4818, 1, 0
        %v4823 = vsel %vm4819, 1, 0
        %v4824 = vsel %vm4820, 1, 0
        %vm4825 = vcmp.eq.s32.totalorder %v4821, 1
        %vm4826 = vcmp.eq.s32.totalorder %v4822, 1
        %vm4827 = vcmp.eq.s32.totalorder %v4823, 1
        %vm4828 = vcmp.eq.s32.totalorder %v4824, 1
        %v4829 = vsel %vm4825, 0.0, %v4768
        %v4830 = vsel %vm4826, 0.0, %v4767
        %v4831 = vsel %vm4827, 0.0, %v4766
        %v4832 = vsel %vm4828, 0.0, %v4765
        %v4833 = vadd.f32 %v4633, %v4829
        %v4834 = vadd.f32 %v4636, %v4830
        %v4835 = vadd.f32 %v4641, %v4831
        %v4836 = vadd.f32 %v4644, %v4832
        %s4837 = scalar_lea.vmem [#allocation5], 448
        %v4838 = vld [vmem:[%s4837] sm:$0xf]
        %v4839 = vld [vmem:[%s4837 + $0x4] sm:$0xf]
        %v4840 = vld [vmem:[%s4837 + $0x8] sm:$0xf]
        %v4841 = vld [vmem:[%s4837 + $0xc] sm:$0xf]
        %v4842 = vld [vmem:[%s4837 + $0x10] sm:$0xf]
        %v4843 = vld [vmem:[%s4837 + $0x14] sm:$0xf]
        %v4844 = vld [vmem:[%s4837 + $0x18] sm:$0xf]
        %v4845 = vld [vmem:[%s4837 + $0x1c] sm:$0xf]
        %v4846 = vld [vmem:[%s4837 + $0x20] sm:$0xf]
        %v4847 = vld [vmem:[%s4837 + $0x24] sm:$0xf]
        %v4848 = vld [vmem:[%s4837 + $0x28] sm:$0xf]
        %v4849 = vld [vmem:[%s4837 + $0x2c] sm:$0xf]
        %v4850 = vld [vmem:[%s4837 + $0x30] sm:$0xf]
        %v4851 = vld [vmem:[%s4837 + $0x34] sm:$0xf]
        %v4852 = vld [vmem:[%s4837 + $0x38] sm:$0xf]
        %v4853 = vld [vmem:[%s4837 + $0x3c] sm:$0xf]
        %v4870 = vunpack.c.l.b16 %v4838
        %v4871 = vunpack.c.l.b16 %v4839
        %v4872 = vunpack.c.l.b16 %v4840
        %v4873 = vunpack.c.l.b16 %v4841
        %v4874 = vunpack.c.l.b16 %v4842
        %v4875 = vunpack.c.l.b16 %v4843
        %v4876 = vunpack.c.l.b16 %v4844
        %v4877 = vunpack.c.l.b16 %v4845
        %v4878 = vunpack.c.l.b16 %v4846
        %v4879 = vunpack.c.l.b16 %v4847
        %v4880 = vunpack.c.l.b16 %v4848
        %v4881 = vunpack.c.l.b16 %v4849
        %v4882 = vunpack.c.l.b16 %v4850
        %v4883 = vunpack.c.l.b16 %v4851
        %v4884 = vunpack.c.l.b16 %v4852
        %v4885 = vunpack.c.l.b16 %v4853
        %v4886 = vpack.c.b16 %v4871, %v4870
        %v4887 = vpack.c.b16 %v4873, %v4872
        %v4888 = vpack.c.b16 %v4875, %v4874
        %v4889 = vpack.c.b16 %v4877, %v4876
        %v4890 = vpack.c.b16 %v4879, %v4878
        %v4891 = vpack.c.b16 %v4881, %v4880
        %v4892 = vpack.c.b16 %v4883, %v4882
        %v4893 = vpack.c.b16 %v4885, %v4884
        %4902 = vmatprep.subr.bf16.mxu0 0
        %4903 = vmatpush1.bf16.msra.mxu0 %v4886
        %4904 = vmatprep.subr.bf16.mxu0 0
        %4905 = vmatpush1.bf16.msra.mxu0 %v4887
        %4906 = vmatprep.subr.bf16.mxu0 0
        %4907 = vmatpush1.bf16.msra.mxu0 %v4888
        %4908 = vmatprep.subr.bf16.mxu0 0
        %4909 = vmatpush1.bf16.msra.mxu0 %v4889
        %4910 = vmatprep.subr.bf16.mxu0 0
        %4911 = vmatpush1.bf16.msra.mxu0 %v4890
        %4912 = vmatprep.subr.bf16.mxu0 0
        %4913 = vmatpush1.bf16.msra.mxu0 %v4891
        %4914 = vmatprep.subr.bf16.mxu0 0
        %4915 = vmatpush1.bf16.msra.mxu0 %v4892
        %4916 = vmatprep.subr.bf16.mxu0 0
        %4917 = vmatpush1.bf16.msra.mxu0 %v4893
        %4918 = vmatprep.subr.bf16.mxu0 0
        %4919 = vmatpush1.bf16.msra.mxu0 0
        %4920 = vmatprep.subr.bf16.mxu0 0
        %4921 = vmatpush1.bf16.msra.mxu0 0
        %4922 = vmatprep.subr.bf16.mxu0 0
        %4923 = vmatpush1.bf16.msra.mxu0 0
        %4924 = vmatprep.subr.bf16.mxu0 0
        %4925 = vmatpush1.bf16.msra.mxu0 0
        %4926 = vmatprep.subr.bf16.mxu0 0
        %4927 = vmatpush1.bf16.msra.mxu0 0
        %4928 = vmatprep.subr.bf16.mxu0 0
        %4929 = vmatpush1.bf16.msra.mxu0 0
        %4930 = vmatprep.subr.bf16.mxu0 0
        %4931 = vmatpush1.bf16.msra.mxu0 0
        %4932 = vmatprep.subr.bf16.mxu0 0
        %4933 = vmatpush1.bf16.msra.mxu0 0
        %4934 = vmatprep.mubr.bf16.mxu0 0
        %4935 = vmatmul.mubr.bf16.gmra.mrb[0].mxu0 %v4546
        %v4936 = vpop.f32.mrb[0].mxu0
        %v4937 = vadd.f32 0.0, %v4936
        %v4938 = vpop.f32.mrb[0].mxu0
        %v4939 = vpop.f32.mrb[0].mxu0
        %v4940 = vadd.f32 0.0, %v4939
        %v4941 = vpop.f32.mrb[0].mxu0
        %4942 = vmatprep.mubr.bf16.mxu0 0
        %4943 = vmatmul.mubr.bf16.gmra.mrb[0].mxu0 %v4547
        %v4944 = vpop.f32.mrb[0].mxu0
        %v4945 = vadd.f32 0.0, %v4944
        %v4946 = vpop.f32.mrb[0].mxu0
        %v4947 = vpop.f32.mrb[0].mxu0
        %v4948 = vadd.f32 0.0, %v4947
        %v4949 = vpop.f32.mrb[0].mxu0
        %4950 = vdwg.mxu0
        %v4951 = vrot.slane %v4937, 1
        %v4952 = vrot.slane %v4940, 1
        %v4953 = vrot.slane %v4945, 1
        %v4954 = vrot.slane %v4948, 1
        %v4955 = vsel %vm1542, %v4953, %v4954
        %v4956 = vsel %vm1542, %v4952, %v4953
        %v4957 = vsel %vm1542, %v4951, %v4952
        %v4958 = vsel %vm1542, %v4954, %v4951
        %vm4959 = vcmp.eq.s32.totalorder %v4813, 15
        %vm4960 = vcmp.eq.s32.totalorder %v4814, 15
        %vm4961 = vcmp.eq.s32.totalorder %v4815, 15
        %vm4962 = vcmp.eq.s32.totalorder %v4816, 15
        %v4963 = vsel %vm4959, 1, 0
        %v4964 = vsel %vm4960, 1, 0
        %v4965 = vsel %vm4961, 1, 0
        %v4966 = vsel %vm4962, 1, 0
        %vm4967 = vcmp.eq.s32.totalorder %v4963, 1
        %vm4968 = vcmp.eq.s32.totalorder %v4964, 1
        %vm4969 = vcmp.eq.s32.totalorder %v4965, 1
        %vm4970 = vcmp.eq.s32.totalorder %v4966, 1
        %v4971 = vsel %vm4967, 0.0, %v4957
        %v4972 = vsel %vm4968, 0.0, %v4956
        %v4973 = vsel %vm4969, 0.0, %v4955
        %v4974 = vsel %vm4970, 0.0, %v4958
        %v4975 = vadd.f32 %v4833, %v4971
        %v4976 = vadd.f32 %v4834, %v4972
        %v4977 = vadd.f32 %v4835, %v4973
        %v4978 = vadd.f32 %v4836, %v4974
        %s4979 = scalar_lea.vmem %s7, 2
        %v4980 = vld [vmem:[%s4979] sm:$0x3]
        %v4981 = vlaneseq
        %v4982 = vshrl.u32 %v4981, 7
        %v4983 = vsub.s32 0, %v4982
        %v4984 = vrot.slane %v4980, %v4983
        %v4985 = vmul.f32 %v4975, %v4984
        %v4986 = vmul.f32 %v4976, %v4984
        %v4987 = vmul.f32 %v4977, %v4984
        %v4988 = vmul.f32 %v4978, %v4984
        %v4989 = vlaneseq
        %v4990 = vshrl.u32 %v4989, 7
        %v4991 = vsub.s32 1, %v4990
        %v4992 = vrot.slane %v4980, %v4991
        %v4993 = vadd.f32 %v4985, %v4992
        %v4994 = vadd.f32 %v4986, %v4992
        %v4995 = vadd.f32 %v4987, %v4992
        %v4996 = vadd.f32 %v4988, %v4992
        %vm4997 = vcmp.gt.f32.partialorder %v4993, 0.0
        %vm4998 = vcmp.gt.f32.partialorder %v4994, 0.0
        %vm4999 = vcmp.gt.f32.partialorder %v4995, 0.0
        %vm5000 = vcmp.gt.f32.partialorder %v4996, 0.0
        %v5001 = vmul.f32 %v4993, 0.2
        %v5002 = vmul.f32 %v4994, 0.2
        %v5003 = vmul.f32 %v4995, 0.2
        %v5004 = vmul.f32 %v4996, 0.2
        %v5005 = vsel %vm4997, %v4993, %v5001
        %v5006 = vsel %vm4998, %v4994, %v5002
        %v5007 = vsel %vm4999, %v4995, %v5003
        %v5008 = vsel %vm5000, %v4996, %v5004
        %v5009 = vpack.c.bf16 %v5006, %v5005
        %v5010 = vpack.c.bf16 %v5008, %v5007
        %v5011 = vunpack.c.l.bf16 %v5009
        %v5012 = vunpack.c.h.bf16 %v5009
        %v5013 = vunpack.c.l.bf16 %v5010
        %v5014 = vunpack.c.h.bf16 %v5010
        %v5019 = vcombine.high %v5011, %v5011
        %v5021 = vunpack.c.l.s4 1983009808
        %v5022 = vunpack.c.0.s8 %v5021
        %v5023 = vlaneseq
        %v5024 = vshrl.u32 %v5023, 7
        %v5025 = vsub.s32 %v5022, %v5024
        %v5026 = vrot.slane %v5011, %v5025
        %v5028 = vunpack.c.l.s4 1983009808
        %v5029 = vunpack.c.0.s8 %v5028
        %v5030 = vlaneseq
        %v5031 = vshrl.u32 %v5030, 7
        %v5032 = vsub.s32 %v5029, %v5031
        %v5033 = vrot.slane %v5019, %v5032
        %v5034 = vcombine.high %v5026, %v5026
        %v5035 = vcombine.high %v5033, %v5033
        %v5036 = vcombine.high %v5012, %v5012
        %v5038 = vunpack.c.l.s4 1983009808
        %v5039 = vunpack.c.0.s8 %v5038
        %v5040 = vlaneseq
        %v5041 = vshrl.u32 %v5040, 7
        %v5042 = vsub.s32 %v5039, %v5041
        %v5043 = vrot.slane %v5012, %v5042
        %v5045 = vunpack.c.l.s4 1983009808
        %v5046 = vunpack.c.0.s8 %v5045
        %v5047 = vlaneseq
        %v5048 = vshrl.u32 %v5047, 7
        %v5049 = vsub.s32 %v5046, %v5048
        %v5050 = vrot.slane %v5036, %v5049
        %v5051 = vcombine.high %v5043, %v5043
        %v5052 = vcombine.high %v5050, %v5050
        %v5053 = vcombine.high %v5013, %v5013
        %v5055 = vunpack.c.l.s4 1983009808
        %v5056 = vunpack.c.0.s8 %v5055
        %v5057 = vlaneseq
        %v5058 = vshrl.u32 %v5057, 7
        %v5059 = vsub.s32 %v5056, %v5058
        %v5060 = vrot.slane %v5013, %v5059
        %v5062 = vunpack.c.l.s4 1983009808
        %v5063 = vunpack.c.0.s8 %v5062
        %v5064 = vlaneseq
        %v5065 = vshrl.u32 %v5064, 7
        %v5066 = vsub.s32 %v5063, %v5065
        %v5067 = vrot.slane %v5053, %v5066
        %v5068 = vcombine.high %v5060, %v5060
        %v5069 = vcombine.high %v5067, %v5067
        %v5070 = vcombine.high %v5014, %v5014
        %v5072 = vunpack.c.l.s4 1983009808
        %v5073 = vunpack.c.0.s8 %v5072
        %v5074 = vlaneseq
        %v5075 = vshrl.u32 %v5074, 7
        %v5076 = vsub.s32 %v5073, %v5075
        %v5077 = vrot.slane %v5014, %v5076
        %v5079 = vunpack.c.l.s4 1983009808
        %v5080 = vunpack.c.0.s8 %v5079
        %v5081 = vlaneseq
        %v5082 = vshrl.u32 %v5081, 7
        %v5083 = vsub.s32 %v5080, %v5082
        %v5084 = vrot.slane %v5070, %v5083
        %v5085 = vcombine.high %v5077, %v5077
        %v5086 = vcombine.high %v5084, %v5084
        %v5103 = vpack.c.bf16 %v5026, %v5026
        %v5104 = vpack.c.bf16 %v5034, %v5034
        %v5105 = vpack.c.bf16 %v5033, %v5033
        %v5106 = vpack.c.bf16 %v5035, %v5035
        %v5107 = vpack.c.bf16 %v5043, %v5043
        %v5108 = vpack.c.bf16 %v5051, %v5051
        %v5109 = vpack.c.bf16 %v5050, %v5050
        %v5110 = vpack.c.bf16 %v5052, %v5052
        %v5111 = vpack.c.bf16 %v5060, %v5060
        %v5112 = vpack.c.bf16 %v5068, %v5068
        %v5113 = vpack.c.bf16 %v5067, %v5067
        %v5114 = vpack.c.bf16 %v5069, %v5069
        %v5115 = vpack.c.bf16 %v5077, %v5077
        %v5116 = vpack.c.bf16 %v5085, %v5085
        %v5117 = vpack.c.bf16 %v5084, %v5084
        %v5118 = vpack.c.bf16 %v5086, %v5086
        %s5119 = scalar_lea.vmem [#allocation5], 576
        %v5120 = vld [vmem:[%s5119] sm:$0xf]
        %v5121 = vld [vmem:[%s5119 + $0x4] sm:$0xf]
        %v5122 = vld [vmem:[%s5119 + $0x8] sm:$0xf]
        %v5123 = vld [vmem:[%s5119 + $0xc] sm:$0xf]
        %v5124 = vld [vmem:[%s5119 + $0x10] sm:$0xf]
        %v5125 = vld [vmem:[%s5119 + $0x14] sm:$0xf]
        %v5126 = vld [vmem:[%s5119 + $0x18] sm:$0xf]
        %v5127 = vld [vmem:[%s5119 + $0x1c] sm:$0xf]
        %v5128 = vld [vmem:[%s5119 + $0x20] sm:$0xf]
        %v5129 = vld [vmem:[%s5119 + $0x24] sm:$0xf]
        %v5130 = vld [vmem:[%s5119 + $0x28] sm:$0xf]
        %v5131 = vld [vmem:[%s5119 + $0x2c] sm:$0xf]
        %v5132 = vld [vmem:[%s5119 + $0x30] sm:$0xf]
        %v5133 = vld [vmem:[%s5119 + $0x34] sm:$0xf]
        %v5134 = vld [vmem:[%s5119 + $0x38] sm:$0xf]
        %v5135 = vld [vmem:[%s5119 + $0x3c] sm:$0xf]
        %s5136 = scalar_lea.vmem [#allocation5], 640
        %v5137 = vld [vmem:[%s5136] sm:$0xf]
        %v5138 = vld [vmem:[%s5136 + $0x4] sm:$0xf]
        %v5139 = vld [vmem:[%s5136 + $0x8] sm:$0xf]
        %v5140 = vld [vmem:[%s5136 + $0xc] sm:$0xf]
        %v5141 = vld [vmem:[%s5136 + $0x10] sm:$0xf]
        %v5142 = vld [vmem:[%s5136 + $0x14] sm:$0xf]
        %v5143 = vld [vmem:[%s5136 + $0x18] sm:$0xf]
        %v5144 = vld [vmem:[%s5136 + $0x1c] sm:$0xf]
        %v5145 = vld [vmem:[%s5136 + $0x20] sm:$0xf]
        %v5146 = vld [vmem:[%s5136 + $0x24] sm:$0xf]
        %v5147 = vld [vmem:[%s5136 + $0x28] sm:$0xf]
        %v5148 = vld [vmem:[%s5136 + $0x2c] sm:$0xf]
        %v5149 = vld [vmem:[%s5136 + $0x30] sm:$0xf]
        %v5150 = vld [vmem:[%s5136 + $0x34] sm:$0xf]
        %v5151 = vld [vmem:[%s5136 + $0x38] sm:$0xf]
        %v5152 = vld [vmem:[%s5136 + $0x3c] sm:$0xf]
        %v5169 = vunpack.c.l.b16 %v5103
        %v5170 = vunpack.c.l.b16 %v5104
        %v5171 = vunpack.c.l.b16 %v5105
        %v5172 = vunpack.c.l.b16 %v5106
        %v5173 = vunpack.c.l.b16 %v5107
        %v5174 = vunpack.c.l.b16 %v5108
        %v5175 = vunpack.c.l.b16 %v5109
        %v5176 = vunpack.c.l.b16 %v5110
        %v5177 = vunpack.c.l.b16 %v5111
        %v5178 = vunpack.c.l.b16 %v5112
        %v5179 = vunpack.c.l.b16 %v5113
        %v5180 = vunpack.c.l.b16 %v5114
        %v5181 = vunpack.c.l.b16 %v5115
        %v5182 = vunpack.c.l.b16 %v5116
        %v5183 = vunpack.c.l.b16 %v5117
        %v5184 = vunpack.c.l.b16 %v5118
        %v5185 = vrot.slane %v5169, 1
        %v5186 = vsel %vm3027, %v5170, %v5185
        %v5187 = vrot.slane %v5171, 7
        %v5188 = vsel %vm3030, %v5187, %v5186
        %v5189 = vrot.slane %v5172, 6
        %v5190 = vsel %vm3033, %v5189, %v5188
        %v5191 = vrot.slane %v5173, 5
        %v5192 = vsel %vm3036, %v5191, %v5190
        %v5193 = vrot.slane %v5174, 4
        %v5194 = vsel %vm3039, %v5193, %v5192
        %v5195 = vrot.slane %v5175, 3
        %v5196 = vsel %vm3042, %v5195, %v5194
        %v5197 = vrot.slane %v5176, 2
        %v5198 = vsel %vm3045, %v5197, %v5196
        %v5199 = vrot.slane %v5177, 1
        %v5200 = vsel %vm3027, %v5178, %v5199
        %v5201 = vrot.slane %v5179, 7
        %v5202 = vsel %vm3030, %v5201, %v5200
        %v5203 = vrot.slane %v5180, 6
        %v5204 = vsel %vm3033, %v5203, %v5202
        %v5205 = vrot.slane %v5181, 5
        %v5206 = vsel %vm3036, %v5205, %v5204
        %v5207 = vrot.slane %v5182, 4
        %v5208 = vsel %vm3039, %v5207, %v5206
        %v5209 = vrot.slane %v5183, 3
        %v5210 = vsel %vm3042, %v5209, %v5208
        %v5211 = vrot.slane %v5184, 2
        %v5212 = vsel %vm3045, %v5211, %v5210
        %v5213 = vpack.c.b16 %v5212, %v5198
        %v5231 = vunpack.c.l.b16 %v5137
        %v5232 = vunpack.c.l.b16 %v5138
        %v5233 = vunpack.c.l.b16 %v5139
        %v5234 = vunpack.c.l.b16 %v5140
        %v5235 = vunpack.c.l.b16 %v5141
        %v5236 = vunpack.c.l.b16 %v5142
        %v5237 = vunpack.c.l.b16 %v5143
        %v5238 = vunpack.c.l.b16 %v5144
        %v5239 = vunpack.c.l.b16 %v5145
        %v5240 = vunpack.c.l.b16 %v5146
        %v5241 = vunpack.c.l.b16 %v5147
        %v5242 = vunpack.c.l.b16 %v5148
        %v5243 = vunpack.c.l.b16 %v5149
        %v5244 = vunpack.c.l.b16 %v5150
        %v5245 = vunpack.c.l.b16 %v5151
        %v5246 = vunpack.c.l.b16 %v5152
        %v5247 = vpack.c.b16 %v5232, %v5231
        %v5248 = vpack.c.b16 %v5234, %v5233
        %v5249 = vpack.c.b16 %v5236, %v5235
        %v5250 = vpack.c.b16 %v5238, %v5237
        %v5251 = vpack.c.b16 %v5240, %v5239
        %v5252 = vpack.c.b16 %v5242, %v5241
        %v5253 = vpack.c.b16 %v5244, %v5243
        %v5254 = vpack.c.b16 %v5246, %v5245
        %5263 = vmatprep.subr.bf16.mxu0 0
        %5264 = vmatpush1.bf16.msra.mxu0 %v5247
        %5265 = vmatprep.subr.bf16.mxu0 0
        %5266 = vmatpush1.bf16.msra.mxu0 %v5248
        %5267 = vmatprep.subr.bf16.mxu0 0
        %5268 = vmatpush1.bf16.msra.mxu0 %v5249
        %5269 = vmatprep.subr.bf16.mxu0 0
        %5270 = vmatpush1.bf16.msra.mxu0 %v5250
        %5271 = vmatprep.subr.bf16.mxu0 0
        %5272 = vmatpush1.bf16.msra.mxu0 %v5251
        %5273 = vmatprep.subr.bf16.mxu0 0
        %5274 = vmatpush1.bf16.msra.mxu0 %v5252
        %5275 = vmatprep.subr.bf16.mxu0 0
        %5276 = vmatpush1.bf16.msra.mxu0 %v5253
        %5277 = vmatprep.subr.bf16.mxu0 0
        %5278 = vmatpush1.bf16.msra.mxu0 %v5254
        %5279 = vmatprep.subr.bf16.mxu0 0
        %5280 = vmatpush1.bf16.msra.mxu0 0
        %5281 = vmatprep.subr.bf16.mxu0 0
        %5282 = vmatpush1.bf16.msra.mxu0 0
        %5283 = vmatprep.subr.bf16.mxu0 0
        %5284 = vmatpush1.bf16.msra.mxu0 0
        %5285 = vmatprep.subr.bf16.mxu0 0
        %5286 = vmatpush1.bf16.msra.mxu0 0
        %5287 = vmatprep.subr.bf16.mxu0 0
        %5288 = vmatpush1.bf16.msra.mxu0 0
        %5289 = vmatprep.subr.bf16.mxu0 0
        %5290 = vmatpush1.bf16.msra.mxu0 0
        %5291 = vmatprep.subr.bf16.mxu0 0
        %5292 = vmatpush1.bf16.msra.mxu0 0
        %5293 = vmatprep.subr.bf16.mxu0 0
        %5294 = vmatpush1.bf16.msra.mxu0 0
        %5295 = vmatprep.mubr.bf16.mxu0 0
        %5296 = vmatmul.mubr.bf16.gmra.mrb[0].mxu0 %v5213
        %v5297 = vpop.f32.mrb[0].mxu0
        %v5298 = vadd.f32 0.0, %v5297
        %v5299 = vpop.f32.mrb[0].mxu0
        %v5300 = vpop.f32.mrb[0].mxu0
        %v5301 = vadd.f32 0.0, %v5300
        %v5302 = vpop.f32.mrb[0].mxu0
        %5303 = vdwg.mxu0
        %v5304 = vrot.slane %v5170, 7
        %v5305 = vsel %vm3027, %v5304, %v5169
        %v5306 = vrot.slane %v5171, 6
        %v5307 = vsel %vm3030, %v5306, %v5305
        %v5308 = vrot.slane %v5172, 5
        %v5309 = vsel %vm3033, %v5308, %v5307
        %v5310 = vrot.slane %v5173, 4
        %v5311 = vsel %vm3036, %v5310, %v5309
        %v5312 = vrot.slane %v5174, 3
        %v5313 = vsel %vm3039, %v5312, %v5311
        %v5314 = vrot.slane %v5175, 2
        %v5315 = vsel %vm3042, %v5314, %v5313
        %v5316 = vrot.slane %v5176, 1
        %v5317 = vsel %vm3045, %v5316, %v5315
        %v5318 = vrot.slane %v5178, 7
        %v5319 = vsel %vm3027, %v5318, %v5177
        %v5320 = vrot.slane %v5179, 6
        %v5321 = vsel %vm3030, %v5320, %v5319
        %v5322 = vrot.slane %v5180, 5
        %v5323 = vsel %vm3033, %v5322, %v5321
        %v5324 = vrot.slane %v5181, 4
        %v5325 = vsel %vm3036, %v5324, %v5323
        %v5326 = vrot.slane %v5182, 3
        %v5327 = vsel %vm3039, %v5326, %v5325
        %v5328 = vrot.slane %v5183, 2
        %v5329 = vsel %vm3042, %v5328, %v5327
        %v5330 = vrot.slane %v5184, 1
        %v5331 = vsel %vm3045, %v5330, %v5329
        %v5332 = vpack.c.b16 %v5331, %v5317
        %v5350 = vunpack.c.l.b16 %v5120
        %v5351 = vunpack.c.l.b16 %v5121
        %v5352 = vunpack.c.l.b16 %v5122
        %v5353 = vunpack.c.l.b16 %v5123
        %v5354 = vunpack.c.l.b16 %v5124
        %v5355 = vunpack.c.l.b16 %v5125
        %v5356 = vunpack.c.l.b16 %v5126
        %v5357 = vunpack.c.l.b16 %v5127
        %v5358 = vunpack.c.l.b16 %v5128
        %v5359 = vunpack.c.l.b16 %v5129
        %v5360 = vunpack.c.l.b16 %v5130
        %v5361 = vunpack.c.l.b16 %v5131
        %v5362 = vunpack.c.l.b16 %v5132
        %v5363 = vunpack.c.l.b16 %v5133
        %v5364 = vunpack.c.l.b16 %v5134
        %v5365 = vunpack.c.l.b16 %v5135
        %v5366 = vpack.c.b16 %v5351, %v5350
        %v5367 = vpack.c.b16 %v5353, %v5352
        %v5368 = vpack.c.b16 %v5355, %v5354
        %v5369 = vpack.c.b16 %v5357, %v5356
        %v5370 = vpack.c.b16 %v5359, %v5358
        %v5371 = vpack.c.b16 %v5361, %v5360
        %v5372 = vpack.c.b16 %v5363, %v5362
        %v5373 = vpack.c.b16 %v5365, %v5364
        %5382 = vmatprep.subr.bf16.mxu0 0
        %5383 = vmatpush1.bf16.msra.mxu0 %v5366
        %5384 = vmatprep.subr.bf16.mxu0 0
        %5385 = vmatpush1.bf16.msra.mxu0 %v5367
        %5386 = vmatprep.subr.bf16.mxu0 0
        %5387 = vmatpush1.bf16.msra.mxu0 %v5368
        %5388 = vmatprep.subr.bf16.mxu0 0
        %5389 = vmatpush1.bf16.msra.mxu0 %v5369
        %5390 = vmatprep.subr.bf16.mxu0 0
        %5391 = vmatpush1.bf16.msra.mxu0 %v5370
        %5392 = vmatprep.subr.bf16.mxu0 0
        %5393 = vmatpush1.bf16.msra.mxu0 %v5371
        %5394 = vmatprep.subr.bf16.mxu0 0
        %5395 = vmatpush1.bf16.msra.mxu0 %v5372
        %5396 = vmatprep.subr.bf16.mxu0 0
        %5397 = vmatpush1.bf16.msra.mxu0 %v5373
        %5398 = vmatprep.subr.bf16.mxu0 0
        %5399 = vmatpush1.bf16.msra.mxu0 0
        %5400 = vmatprep.subr.bf16.mxu0 0
        %5401 = vmatpush1.bf16.msra.mxu0 0
        %5402 = vmatprep.subr.bf16.mxu0 0
        %5403 = vmatpush1.bf16.msra.mxu0 0
        %5404 = vmatprep.subr.bf16.mxu0 0
        %5405 = vmatpush1.bf16.msra.mxu0 0
        %5406 = vmatprep.subr.bf16.mxu0 0
        %5407 = vmatpush1.bf16.msra.mxu0 0
        %5408 = vmatprep.subr.bf16.mxu0 0
        %5409 = vmatpush1.bf16.msra.mxu0 0
        %5410 = vmatprep.subr.bf16.mxu0 0
        %5411 = vmatpush1.bf16.msra.mxu0 0
        %5412 = vmatprep.subr.bf16.mxu0 0
        %5413 = vmatpush1.bf16.msra.mxu0 0
        %5414 = vmatprep.mubr.bf16.mxu0 0
        %5415 = vmatmul.mubr.bf16.gmra.mrb[0].mxu0 %v5332
        %v5416 = vpop.f32.mrb[0].mxu0
        %v5417 = vadd.f32 %v5298, %v5416
        %v5418 = vpop.f32.mrb[0].mxu0
        %v5419 = vpop.f32.mrb[0].mxu0
        %v5420 = vadd.f32 %v5301, %v5419
        %v5421 = vpop.f32.mrb[0].mxu0
        %5422 = vdwg.mxu0
        %s5423 = scalar_lea.vmem [#allocation5], 512
        %v5424 = vld [vmem:[%s5423] sm:$0xf]
        %v5425 = vld [vmem:[%s5423 + $0x4] sm:$0xf]
        %v5426 = vld [vmem:[%s5423 + $0x8] sm:$0xf]
        %v5427 = vld [vmem:[%s5423 + $0xc] sm:$0xf]
        %v5428 = vld [vmem:[%s5423 + $0x10] sm:$0xf]
        %v5429 = vld [vmem:[%s5423 + $0x14] sm:$0xf]
        %v5430 = vld [vmem:[%s5423 + $0x18] sm:$0xf]
        %v5431 = vld [vmem:[%s5423 + $0x1c] sm:$0xf]
        %v5432 = vld [vmem:[%s5423 + $0x20] sm:$0xf]
        %v5433 = vld [vmem:[%s5423 + $0x24] sm:$0xf]
        %v5434 = vld [vmem:[%s5423 + $0x28] sm:$0xf]
        %v5435 = vld [vmem:[%s5423 + $0x2c] sm:$0xf]
        %v5436 = vld [vmem:[%s5423 + $0x30] sm:$0xf]
        %v5437 = vld [vmem:[%s5423 + $0x34] sm:$0xf]
        %v5438 = vld [vmem:[%s5423 + $0x38] sm:$0xf]
        %v5439 = vld [vmem:[%s5423 + $0x3c] sm:$0xf]
        %v5456 = vunpack.c.l.b16 %v5424
        %v5457 = vunpack.c.l.b16 %v5425
        %v5458 = vunpack.c.l.b16 %v5426
        %v5459 = vunpack.c.l.b16 %v5427
        %v5460 = vunpack.c.l.b16 %v5428
        %v5461 = vunpack.c.l.b16 %v5429
        %v5462 = vunpack.c.l.b16 %v5430
        %v5463 = vunpack.c.l.b16 %v5431
        %v5464 = vunpack.c.l.b16 %v5432
        %v5465 = vunpack.c.l.b16 %v5433
        %v5466 = vunpack.c.l.b16 %v5434
        %v5467 = vunpack.c.l.b16 %v5435
        %v5468 = vunpack.c.l.b16 %v5436
        %v5469 = vunpack.c.l.b16 %v5437
        %v5470 = vunpack.c.l.b16 %v5438
        %v5471 = vunpack.c.l.b16 %v5439
        %v5472 = vpack.c.b16 %v5457, %v5456
        %v5473 = vpack.c.b16 %v5459, %v5458
        %v5474 = vpack.c.b16 %v5461, %v5460
        %v5475 = vpack.c.b16 %v5463, %v5462
        %v5476 = vpack.c.b16 %v5465, %v5464
        %v5477 = vpack.c.b16 %v5467, %v5466
        %v5478 = vpack.c.b16 %v5469, %v5468
        %v5479 = vpack.c.b16 %v5471, %v5470
        %5488 = vmatprep.subr.bf16.mxu0 0
        %5489 = vmatpush1.bf16.msra.mxu0 %v5472
        %5490 = vmatprep.subr.bf16.mxu0 0
        %5491 = vmatpush1.bf16.msra.mxu0 %v5473
        %5492 = vmatprep.subr.bf16.mxu0 0
        %5493 = vmatpush1.bf16.msra.mxu0 %v5474
        %5494 = vmatprep.subr.bf16.mxu0 0
        %5495 = vmatpush1.bf16.msra.mxu0 %v5475
        %5496 = vmatprep.subr.bf16.mxu0 0
        %5497 = vmatpush1.bf16.msra.mxu0 %v5476
        %5498 = vmatprep.subr.bf16.mxu0 0
        %5499 = vmatpush1.bf16.msra.mxu0 %v5477
        %5500 = vmatprep.subr.bf16.mxu0 0
        %5501 = vmatpush1.bf16.msra.mxu0 %v5478
        %5502 = vmatprep.subr.bf16.mxu0 0
        %5503 = vmatpush1.bf16.msra.mxu0 %v5479
        %5504 = vmatprep.subr.bf16.mxu0 0
        %5505 = vmatpush1.bf16.msra.mxu0 0
        %5506 = vmatprep.subr.bf16.mxu0 0
        %5507 = vmatpush1.bf16.msra.mxu0 0
        %5508 = vmatprep.subr.bf16.mxu0 0
        %5509 = vmatpush1.bf16.msra.mxu0 0
        %5510 = vmatprep.subr.bf16.mxu0 0
        %5511 = vmatpush1.bf16.msra.mxu0 0
        %5512 = vmatprep.subr.bf16.mxu0 0
        %5513 = vmatpush1.bf16.msra.mxu0 0
        %5514 = vmatprep.subr.bf16.mxu0 0
        %5515 = vmatpush1.bf16.msra.mxu0 0
        %5516 = vmatprep.subr.bf16.mxu0 0
        %5517 = vmatpush1.bf16.msra.mxu0 0
        %5518 = vmatprep.subr.bf16.mxu0 0
        %5519 = vmatpush1.bf16.msra.mxu0 0
        %5520 = vmatprep.mubr.bf16.mxu0 0
        %5521 = vmatmul.mubr.bf16.gmra.mrb[0].mxu0 %v5213
        %v5522 = vpop.f32.mrb[0].mxu0
        %v5523 = vadd.f32 0.0, %v5522
        %v5524 = vpop.f32.mrb[0].mxu0
        %v5525 = vpop.f32.mrb[0].mxu0
        %v5526 = vadd.f32 0.0, %v5525
        %v5527 = vpop.f32.mrb[0].mxu0
        %5528 = vdwg.mxu0
        %v5529 = vrot.slane %v5523, 7
        %v5530 = vrot.slane %v5526, 7
        %v5531 = vsel %vm931, %v5529, %v5530
        %v5532 = vsel %vm931, %v5530, %v5529
        %vm5533 = vcmp.lt.s32.totalorder %v930, 0
        %v5534 = vsub.s32 0, %v930
        %v5535 = vsel %vm5533, %v5534, %v930
        %v5536 = vshrl.u32 %v5535, 3
        %v5537 = vand.u32 %v5535, 7
        %v5538 = vsub.s32 0, %v5537
        %v5539 = vsel %vm5533, %v5538, %v5537
        %vm5540 = vcmp.lt.s32.totalorder %v948, 0
        %v5541 = vsub.s32 0, %v948
        %v5542 = vsel %vm5540, %v5541, %v948
        %v5543 = vshrl.u32 %v5542, 3
        %v5544 = vand.u32 %v5542, 7
        %v5545 = vsub.s32 0, %v5544
        %v5546 = vsel %vm5540, %v5545, %v5544
        %vm5547 = vcmp.ne.s32.totalorder %v5539, 0
        %vm5548 = vcmp.ne.s32.totalorder %v5546, 0
        %vm5549 = vcmp.lt.s32.totalorder %v5539, 0
        %vm5550 = vcmp.lt.s32.totalorder %v5546, 0
        %vm5551 = vmand %vm5549, %vm5547
        %vm5552 = vmand %vm5550, %vm5548
        %v5553 = vadd.s32 %v5539, 8
        %v5554 = vadd.s32 %v5546, 8
        %v5555 = vsel %vm5551, %v5553, %v5539
        %v5556 = vsel %vm5552, %v5554, %v5546
        %vm5557 = vcmp.eq.s32.totalorder %v5555, 0
        %vm5558 = vcmp.eq.s32.totalorder %v5556, 0
        %v5559 = vsel %vm5557, 1, 0
        %v5560 = vsel %vm5558, 1, 0
        %vm5561 = vcmp.eq.s32.totalorder %v5559, 1
        %vm5562 = vcmp.eq.s32.totalorder %v5560, 1
        %v5563 = vsel %vm5561, 0.0, %v5532
        %v5564 = vsel %vm5562, 0.0, %v5531
        %v5565 = vadd.f32 %v5417, %v5563
        %v5566 = vadd.f32 %v5420, %v5564
        %s5567 = scalar_lea.vmem [#allocation5], 704
        %v5568 = vld [vmem:[%s5567] sm:$0xf]
        %v5569 = vld [vmem:[%s5567 + $0x4] sm:$0xf]
        %v5570 = vld [vmem:[%s5567 + $0x8] sm:$0xf]
        %v5571 = vld [vmem:[%s5567 + $0xc] sm:$0xf]
        %v5572 = vld [vmem:[%s5567 + $0x10] sm:$0xf]
        %v5573 = vld [vmem:[%s5567 + $0x14] sm:$0xf]
        %v5574 = vld [vmem:[%s5567 + $0x18] sm:$0xf]
        %v5575 = vld [vmem:[%s5567 + $0x1c] sm:$0xf]
        %v5576 = vld [vmem:[%s5567 + $0x20] sm:$0xf]
        %v5577 = vld [vmem:[%s5567 + $0x24] sm:$0xf]
        %v5578 = vld [vmem:[%s5567 + $0x28] sm:$0xf]
        %v5579 = vld [vmem:[%s5567 + $0x2c] sm:$0xf]
        %v5580 = vld [vmem:[%s5567 + $0x30] sm:$0xf]
        %v5581 = vld [vmem:[%s5567 + $0x34] sm:$0xf]
        %v5582 = vld [vmem:[%s5567 + $0x38] sm:$0xf]
        %v5583 = vld [vmem:[%s5567 + $0x3c] sm:$0xf]
        %v5600 = vunpack.c.l.b16 %v5568
        %v5601 = vunpack.c.l.b16 %v5569
        %v5602 = vunpack.c.l.b16 %v5570
        %v5603 = vunpack.c.l.b16 %v5571
        %v5604 = vunpack.c.l.b16 %v5572
        %v5605 = vunpack.c.l.b16 %v5573
        %v5606 = vunpack.c.l.b16 %v5574
        %v5607 = vunpack.c.l.b16 %v5575
        %v5608 = vunpack.c.l.b16 %v5576
        %v5609 = vunpack.c.l.b16 %v5577
        %v5610 = vunpack.c.l.b16 %v5578
        %v5611 = vunpack.c.l.b16 %v5579
        %v5612 = vunpack.c.l.b16 %v5580
        %v5613 = vunpack.c.l.b16 %v5581
        %v5614 = vunpack.c.l.b16 %v5582
        %v5615 = vunpack.c.l.b16 %v5583
        %v5616 = vpack.c.b16 %v5601, %v5600
        %v5617 = vpack.c.b16 %v5603, %v5602
        %v5618 = vpack.c.b16 %v5605, %v5604
        %v5619 = vpack.c.b16 %v5607, %v5606
        %v5620 = vpack.c.b16 %v5609, %v5608
        %v5621 = vpack.c.b16 %v5611, %v5610
        %v5622 = vpack.c.b16 %v5613, %v5612
        %v5623 = vpack.c.b16 %v5615, %v5614
        %5632 = vmatprep.subr.bf16.mxu0 0
        %5633 = vmatpush1.bf16.msra.mxu0 %v5616
        %5634 = vmatprep.subr.bf16.mxu0 0
        %5635 = vmatpush1.bf16.msra.mxu0 %v5617
        %5636 = vmatprep.subr.bf16.mxu0 0
        %5637 = vmatpush1.bf16.msra.mxu0 %v5618
        %5638 = vmatprep.subr.bf16.mxu0 0
        %5639 = vmatpush1.bf16.msra.mxu0 %v5619
        %5640 = vmatprep.subr.bf16.mxu0 0
        %5641 = vmatpush1.bf16.msra.mxu0 %v5620
        %5642 = vmatprep.subr.bf16.mxu0 0
        %5643 = vmatpush1.bf16.msra.mxu0 %v5621
        %5644 = vmatprep.subr.bf16.mxu0 0
        %5645 = vmatpush1.bf16.msra.mxu0 %v5622
        %5646 = vmatprep.subr.bf16.mxu0 0
        %5647 = vmatpush1.bf16.msra.mxu0 %v5623
        %5648 = vmatprep.subr.bf16.mxu0 0
        %5649 = vmatpush1.bf16.msra.mxu0 0
        %5650 = vmatprep.subr.bf16.mxu0 0
        %5651 = vmatpush1.bf16.msra.mxu0 0
        %5652 = vmatprep.subr.bf16.mxu0 0
        %5653 = vmatpush1.bf16.msra.mxu0 0
        %5654 = vmatprep.subr.bf16.mxu0 0
        %5655 = vmatpush1.bf16.msra.mxu0 0
        %5656 = vmatprep.subr.bf16.mxu0 0
        %5657 = vmatpush1.bf16.msra.mxu0 0
        %5658 = vmatprep.subr.bf16.mxu0 0
        %5659 = vmatpush1.bf16.msra.mxu0 0
        %5660 = vmatprep.subr.bf16.mxu0 0
        %5661 = vmatpush1.bf16.msra.mxu0 0
        %5662 = vmatprep.subr.bf16.mxu0 0
        %5663 = vmatpush1.bf16.msra.mxu0 0
        %5664 = vmatprep.mubr.bf16.mxu0 0
        %5665 = vmatmul.mubr.bf16.gmra.mrb[0].mxu0 %v5332
        %v5666 = vpop.f32.mrb[0].mxu0
        %v5667 = vadd.f32 0.0, %v5666
        %v5668 = vpop.f32.mrb[0].mxu0
        %v5669 = vpop.f32.mrb[0].mxu0
        %v5670 = vadd.f32 0.0, %v5669
        %v5671 = vpop.f32.mrb[0].mxu0
        %5672 = vdwg.mxu0
        %v5673 = vrot.slane %v5667, 1
        %v5674 = vrot.slane %v5670, 1
        %v5675 = vsel %vm1542, %v5673, %v5674
        %v5676 = vsel %vm1542, %v5674, %v5673
        %vm5677 = vcmp.eq.s32.totalorder %v5555, 7
        %vm5678 = vcmp.eq.s32.totalorder %v5556, 7
        %v5679 = vsel %vm5677, 1, 0
        %v5680 = vsel %vm5678, 1, 0
        %vm5681 = vcmp.eq.s32.totalorder %v5679, 1
        %vm5682 = vcmp.eq.s32.totalorder %v5680, 1
        %v5683 = vsel %vm5681, 0.0, %v5675
        %v5684 = vsel %vm5682, 0.0, %v5676
        %v5685 = vadd.f32 %v5565, %v5683
        %v5686 = vadd.f32 %v5566, %v5684
        %s5687 = scalar_lea.vmem %s7, 4
        %v5688 = vld [vmem:[%s5687] sm:$0x3]
        %v5689 = vlaneseq
        %v5690 = vshrl.u32 %v5689, 7
        %v5691 = vsub.s32 0, %v5690
        %v5692 = vrot.slane %v5688, %v5691
        %v5693 = vmul.f32 %v5685, %v5692
        %v5694 = vmul.f32 %v5686, %v5692
        %v5695 = vlaneseq
        %v5696 = vshrl.u32 %v5695, 7
        %v5697 = vsub.s32 1, %v5696
        %v5698 = vrot.slane %v5688, %v5697
        %v5699 = vadd.f32 %v5693, %v5698
        %v5700 = vadd.f32 %v5694, %v5698
        %vm5701 = vcmp.gt.f32.partialorder %v5699, 0.0
        %vm5702 = vcmp.gt.f32.partialorder %v5700, 0.0
        %v5703 = vmul.f32 %v5699, 0.2
        %v5704 = vmul.f32 %v5700, 0.2
        %v5705 = vsel %vm5701, %v5699, %v5703
        %v5706 = vsel %vm5702, %v5700, %v5704
        %v5707 = vpack.c.bf16 %v5706, %v5705
        %v5708 = vunpack.c.l.bf16 %v5707
        %v5709 = vunpack.c.h.bf16 %v5707
        %v5712 = vcombine.high %v5708, %v5708
        %v5714 = vunpack.c.l.s4 1983009808
        %v5715 = vunpack.c.0.s8 %v5714
        %v5716 = vlaneseq
        %v5717 = vshrl.u32 %v5716, 7
        %v5718 = vsub.s32 %v5715, %v5717
        %v5719 = vrot.slane %v5708, %v5718
        %v5721 = vunpack.c.l.s4 1983009808
        %v5722 = vunpack.c.0.s8 %v5721
        %v5723 = vlaneseq
        %v5724 = vshrl.u32 %v5723, 7
        %v5725 = vsub.s32 %v5722, %v5724
        %v5726 = vrot.slane %v5712, %v5725
        %v5727 = vcombine.high %v5719, %v5719
        %v5728 = vcombine.high %v5726, %v5726
        %v5729 = vcombine.high %v5709, %v5709
        %v5731 = vunpack.c.l.s4 1983009808
        %v5732 = vunpack.c.0.s8 %v5731
        %v5733 = vlaneseq
        %v5734 = vshrl.u32 %v5733, 7
        %v5735 = vsub.s32 %v5732, %v5734
        %v5736 = vrot.slane %v5709, %v5735
        %v5738 = vunpack.c.l.s4 1983009808
        %v5739 = vunpack.c.0.s8 %v5738
        %v5740 = vlaneseq
        %v5741 = vshrl.u32 %v5740, 7
        %v5742 = vsub.s32 %v5739, %v5741
        %v5743 = vrot.slane %v5729, %v5742
        %v5744 = vcombine.high %v5736, %v5736
        %v5745 = vcombine.high %v5743, %v5743
        %v5754 = vpack.c.bf16 %v5719, %v5719
        %v5755 = vpack.c.bf16 %v5727, %v5727
        %v5756 = vpack.c.bf16 %v5726, %v5726
        %v5757 = vpack.c.bf16 %v5728, %v5728
        %v5758 = vpack.c.bf16 %v5736, %v5736
        %v5759 = vpack.c.bf16 %v5744, %v5744
        %v5760 = vpack.c.bf16 %v5743, %v5743
        %v5761 = vpack.c.bf16 %v5745, %v5745
        %s5762 = scalar_lea.vmem [#allocation5], 832
        %v5763 = vld [vmem:[%s5762] sm:$0xf]
        %v5764 = vld [vmem:[%s5762 + $0x4] sm:$0xf]
        %v5765 = vld [vmem:[%s5762 + $0x8] sm:$0xf]
        %v5766 = vld [vmem:[%s5762 + $0xc] sm:$0xf]
        %v5767 = vld [vmem:[%s5762 + $0x10] sm:$0xf]
        %v5768 = vld [vmem:[%s5762 + $0x14] sm:$0xf]
        %v5769 = vld [vmem:[%s5762 + $0x18] sm:$0xf]
        %v5770 = vld [vmem:[%s5762 + $0x1c] sm:$0xf]
        %v5771 = vld [vmem:[%s5762 + $0x20] sm:$0xf]
        %v5772 = vld [vmem:[%s5762 + $0x24] sm:$0xf]
        %v5773 = vld [vmem:[%s5762 + $0x28] sm:$0xf]
        %v5774 = vld [vmem:[%s5762 + $0x2c] sm:$0xf]
        %v5775 = vld [vmem:[%s5762 + $0x30] sm:$0xf]
        %v5776 = vld [vmem:[%s5762 + $0x34] sm:$0xf]
        %v5777 = vld [vmem:[%s5762 + $0x38] sm:$0xf]
        %v5778 = vld [vmem:[%s5762 + $0x3c] sm:$0xf]
        %s5779 = scalar_lea.vmem [#allocation5], 896
        %v5780 = vld [vmem:[%s5779] sm:$0xf]
        %v5781 = vld [vmem:[%s5779 + $0x4] sm:$0xf]
        %v5782 = vld [vmem:[%s5779 + $0x8] sm:$0xf]
        %v5783 = vld [vmem:[%s5779 + $0xc] sm:$0xf]
        %v5784 = vld [vmem:[%s5779 + $0x10] sm:$0xf]
        %v5785 = vld [vmem:[%s5779 + $0x14] sm:$0xf]
        %v5786 = vld [vmem:[%s5779 + $0x18] sm:$0xf]
        %v5787 = vld [vmem:[%s5779 + $0x1c] sm:$0xf]
        %v5788 = vld [vmem:[%s5779 + $0x20] sm:$0xf]
        %v5789 = vld [vmem:[%s5779 + $0x24] sm:$0xf]
        %v5790 = vld [vmem:[%s5779 + $0x28] sm:$0xf]
        %v5791 = vld [vmem:[%s5779 + $0x2c] sm:$0xf]
        %v5792 = vld [vmem:[%s5779 + $0x30] sm:$0xf]
        %v5793 = vld [vmem:[%s5779 + $0x34] sm:$0xf]
        %v5794 = vld [vmem:[%s5779 + $0x38] sm:$0xf]
        %v5795 = vld [vmem:[%s5779 + $0x3c] sm:$0xf]
        %v5804 = vunpack.c.l.b16 %v5754
        %v5805 = vunpack.c.l.b16 %v5755
        %v5806 = vunpack.c.l.b16 %v5756
        %v5807 = vunpack.c.l.b16 %v5757
        %v5808 = vunpack.c.l.b16 %v5758
        %v5809 = vunpack.c.l.b16 %v5759
        %v5810 = vunpack.c.l.b16 %v5760
        %v5811 = vunpack.c.l.b16 %v5761
        %v5812 = vrot.slane %v5804, 1
        %v5813 = vsel %vm3027, %v5805, %v5812
        %v5814 = vrot.slane %v5806, 7
        %v5815 = vsel %vm3030, %v5814, %v5813
        %v5816 = vrot.slane %v5807, 6
        %v5817 = vsel %vm3033, %v5816, %v5815
        %v5818 = vrot.slane %v5808, 5
        %v5819 = vsel %vm3036, %v5818, %v5817
        %v5820 = vrot.slane %v5809, 4
        %v5821 = vsel %vm3039, %v5820, %v5819
        %v5822 = vrot.slane %v5810, 3
        %v5823 = vsel %vm3042, %v5822, %v5821
        %v5824 = vrot.slane %v5811, 2
        %v5825 = vsel %vm3045, %v5824, %v5823
        %v5826 = vpack.c.b16 %v5825, %v5825
        %v5844 = vunpack.c.l.b16 %v5780
        %v5845 = vunpack.c.l.b16 %v5781
        %v5846 = vunpack.c.l.b16 %v5782
        %v5847 = vunpack.c.l.b16 %v5783
        %v5848 = vunpack.c.l.b16 %v5784
        %v5849 = vunpack.c.l.b16 %v5785
        %v5850 = vunpack.c.l.b16 %v5786
        %v5851 = vunpack.c.l.b16 %v5787
        %v5852 = vunpack.c.l.b16 %v5788
        %v5853 = vunpack.c.l.b16 %v5789
        %v5854 = vunpack.c.l.b16 %v5790
        %v5855 = vunpack.c.l.b16 %v5791
        %v5856 = vunpack.c.l.b16 %v5792
        %v5857 = vunpack.c.l.b16 %v5793
        %v5858 = vunpack.c.l.b16 %v5794
        %v5859 = vunpack.c.l.b16 %v5795
        %v5860 = vpack.c.b16 %v5845, %v5844
        %v5861 = vpack.c.b16 %v5847, %v5846
        %v5862 = vpack.c.b16 %v5849, %v5848
        %v5863 = vpack.c.b16 %v5851, %v5850
        %v5864 = vpack.c.b16 %v5853, %v5852
        %v5865 = vpack.c.b16 %v5855, %v5854
        %v5866 = vpack.c.b16 %v5857, %v5856
        %v5867 = vpack.c.b16 %v5859, %v5858
        %5876 = vmatprep.subr.bf16.mxu0 0
        %5877 = vmatpush1.bf16.msra.mxu0 %v5860
        %5878 = vmatprep.subr.bf16.mxu0 0
        %5879 = vmatpush1.bf16.msra.mxu0 %v5861
        %5880 = vmatprep.subr.bf16.mxu0 0
        %5881 = vmatpush1.bf16.msra.mxu0 %v5862
        %5882 = vmatprep.subr.bf16.mxu0 0
        %5883 = vmatpush1.bf16.msra.mxu0 %v5863
        %5884 = vmatprep.subr.bf16.mxu0 0
        %5885 = vmatpush1.bf16.msra.mxu0 %v5864
        %5886 = vmatprep.subr.bf16.mxu0 0
        %5887 = vmatpush1.bf16.msra.mxu0 %v5865
        %5888 = vmatprep.subr.bf16.mxu0 0
        %5889 = vmatpush1.bf16.msra.mxu0 %v5866
        %5890 = vmatprep.subr.bf16.mxu0 0
        %5891 = vmatpush1.bf16.msra.mxu0 %v5867
        %5892 = vmatprep.subr.bf16.mxu0 0
        %5893 = vmatpush1.bf16.msra.mxu0 0
        %5894 = vmatprep.subr.bf16.mxu0 0
        %5895 = vmatpush1.bf16.msra.mxu0 0
        %5896 = vmatprep.subr.bf16.mxu0 0
        %5897 = vmatpush1.bf16.msra.mxu0 0
        %5898 = vmatprep.subr.bf16.mxu0 0
        %5899 = vmatpush1.bf16.msra.mxu0 0
        %5900 = vmatprep.subr.bf16.mxu0 0
        %5901 = vmatpush1.bf16.msra.mxu0 0
        %5902 = vmatprep.subr.bf16.mxu0 0
        %5903 = vmatpush1.bf16.msra.mxu0 0
        %5904 = vmatprep.subr.bf16.mxu0 0
        %5905 = vmatpush1.bf16.msra.mxu0 0
        %5906 = vmatprep.subr.bf16.mxu0 0
        %5907 = vmatpush1.bf16.msra.mxu0 0
        %5908 = vmatprep.mubr.bf16.mxu0 0
        %5909 = vmatmul.mubr.bf16.gmra.mrb[0].mxu0 %v5826
        %v5910 = vpop.f32.mrb[0].mxu0
        %v5911 = vadd.f32 0.0, %v5910
        %v5912 = vpop.f32.mrb[0].mxu0
        %v5913 = vpop.f32.mrb[0].mxu0
        %v5914 = vpop.f32.mrb[0].mxu0
        %5915 = vdwg.mxu0
        %v5916 = vrot.slane %v5805, 7
        %v5917 = vsel %vm3027, %v5916, %v5804
        %v5918 = vrot.slane %v5806, 6
        %v5919 = vsel %vm3030, %v5918, %v5917
        %v5920 = vrot.slane %v5807, 5
        %v5921 = vsel %vm3033, %v5920, %v5919
        %v5922 = vrot.slane %v5808, 4
        %v5923 = vsel %vm3036, %v5922, %v5921
        %v5924 = vrot.slane %v5809, 3
        %v5925 = vsel %vm3039, %v5924, %v5923
        %v5926 = vrot.slane %v5810, 2
        %v5927 = vsel %vm3042, %v5926, %v5925
        %v5928 = vrot.slane %v5811, 1
        %v5929 = vsel %vm3045, %v5928, %v5927
        %v5930 = vpack.c.b16 %v5929, %v5929
        %v5948 = vunpack.c.l.b16 %v5763
        %v5949 = vunpack.c.l.b16 %v5764
        %v5950 = vunpack.c.l.b16 %v5765
        %v5951 = vunpack.c.l.b16 %v5766
        %v5952 = vunpack.c.l.b16 %v5767
        %v5953 = vunpack.c.l.b16 %v5768
        %v5954 = vunpack.c.l.b16 %v5769
        %v5955 = vunpack.c.l.b16 %v5770
        %v5956 = vunpack.c.l.b16 %v5771
        %v5957 = vunpack.c.l.b16 %v5772
        %v5958 = vunpack.c.l.b16 %v5773
        %v5959 = vunpack.c.l.b16 %v5774
        %v5960 = vunpack.c.l.b16 %v5775
        %v5961 = vunpack.c.l.b16 %v5776
        %v5962 = vunpack.c.l.b16 %v5777
        %v5963 = vunpack.c.l.b16 %v5778
        %v5964 = vpack.c.b16 %v5949, %v5948
        %v5965 = vpack.c.b16 %v5951, %v5950
        %v5966 = vpack.c.b16 %v5953, %v5952
        %v5967 = vpack.c.b16 %v5955, %v5954
        %v5968 = vpack.c.b16 %v5957, %v5956
        %v5969 = vpack.c.b16 %v5959, %v5958
        %v5970 = vpack.c.b16 %v5961, %v5960
        %v5971 = vpack.c.b16 %v5963, %v5962
        %5980 = vmatprep.subr.bf16.mxu0 0
        %5981 = vmatpush1.bf16.msra.mxu0 %v5964
        %5982 = vmatprep.subr.bf16.mxu0 0
        %5983 = vmatpush1.bf16.msra.mxu0 %v5965
        %5984 = vmatprep.subr.bf16.mxu0 0
        %5985 = vmatpush1.bf16.msra.mxu0 %v5966
        %5986 = vmatprep.subr.bf16.mxu0 0
        %5987 = vmatpush1.bf16.msra.mxu0 %v5967
        %5988 = vmatprep.subr.bf16.mxu0 0
        %5989 = vmatpush1.bf16.msra.mxu0 %v5968
        %5990 = vmatprep.subr.bf16.mxu0 0
        %5991 = vmatpush1.bf16.msra.mxu0 %v5969
        %5992 = vmatprep.subr.bf16.mxu0 0
        %5993 = vmatpush1.bf16.msra.mxu0 %v5970
        %5994 = vmatprep.subr.bf16.mxu0 0
        %5995 = vmatpush1.bf16.msra.mxu0 %v5971
        %5996 = vmatprep.subr.bf16.mxu0 0
        %5997 = vmatpush1.bf16.msra.mxu0 0
        %5998 = vmatprep.subr.bf16.mxu0 0
        %5999 = vmatpush1.bf16.msra.mxu0 0
        %6000 = vmatprep.subr.bf16.mxu0 0
        %6001 = vmatpush1.bf16.msra.mxu0 0
        %6002 = vmatprep.subr.bf16.mxu0 0
        %6003 = vmatpush1.bf16.msra.mxu0 0
        %6004 = vmatprep.subr.bf16.mxu0 0
        %6005 = vmatpush1.bf16.msra.mxu0 0
        %6006 = vmatprep.subr.bf16.mxu0 0
        %6007 = vmatpush1.bf16.msra.mxu0 0
        %6008 = vmatprep.subr.bf16.mxu0 0
        %6009 = vmatpush1.bf16.msra.mxu0 0
        %6010 = vmatprep.subr.bf16.mxu0 0
        %6011 = vmatpush1.bf16.msra.mxu0 0
        %6012 = vmatprep.mubr.bf16.mxu0 0
        %6013 = vmatmul.mubr.bf16.gmra.mrb[0].mxu0 %v5930
        %v6014 = vpop.f32.mrb[0].mxu0
        %v6015 = vadd.f32 %v5911, %v6014
        %v6016 = vpop.f32.mrb[0].mxu0
        %v6017 = vpop.f32.mrb[0].mxu0
        %v6018 = vpop.f32.mrb[0].mxu0
        %6019 = vdwg.mxu0
        %s6020 = scalar_lea.vmem [#allocation5], 768
        %v6021 = vld [vmem:[%s6020] sm:$0xf]
        %v6022 = vld [vmem:[%s6020 + $0x4] sm:$0xf]
        %v6023 = vld [vmem:[%s6020 + $0x8] sm:$0xf]
        %v6024 = vld [vmem:[%s6020 + $0xc] sm:$0xf]
        %v6025 = vld [vmem:[%s6020 + $0x10] sm:$0xf]
        %v6026 = vld [vmem:[%s6020 + $0x14] sm:$0xf]
        %v6027 = vld [vmem:[%s6020 + $0x18] sm:$0xf]
        %v6028 = vld [vmem:[%s6020 + $0x1c] sm:$0xf]
        %v6029 = vld [vmem:[%s6020 + $0x20] sm:$0xf]
        %v6030 = vld [vmem:[%s6020 + $0x24] sm:$0xf]
        %v6031 = vld [vmem:[%s6020 + $0x28] sm:$0xf]
        %v6032 = vld [vmem:[%s6020 + $0x2c] sm:$0xf]
        %v6033 = vld [vmem:[%s6020 + $0x30] sm:$0xf]
        %v6034 = vld [vmem:[%s6020 + $0x34] sm:$0xf]
        %v6035 = vld [vmem:[%s6020 + $0x38] sm:$0xf]
        %v6036 = vld [vmem:[%s6020 + $0x3c] sm:$0xf]
        %v6053 = vunpack.c.l.b16 %v6021
        %v6054 = vunpack.c.l.b16 %v6022
        %v6055 = vunpack.c.l.b16 %v6023
        %v6056 = vunpack.c.l.b16 %v6024
        %v6057 = vunpack.c.l.b16 %v6025
        %v6058 = vunpack.c.l.b16 %v6026
        %v6059 = vunpack.c.l.b16 %v6027
        %v6060 = vunpack.c.l.b16 %v6028
        %v6061 = vunpack.c.l.b16 %v6029
        %v6062 = vunpack.c.l.b16 %v6030
        %v6063 = vunpack.c.l.b16 %v6031
        %v6064 = vunpack.c.l.b16 %v6032
        %v6065 = vunpack.c.l.b16 %v6033
        %v6066 = vunpack.c.l.b16 %v6034
        %v6067 = vunpack.c.l.b16 %v6035
        %v6068 = vunpack.c.l.b16 %v6036
        %v6069 = vpack.c.b16 %v6054, %v6053
        %v6070 = vpack.c.b16 %v6056, %v6055
        %v6071 = vpack.c.b16 %v6058, %v6057
        %v6072 = vpack.c.b16 %v6060, %v6059
        %v6073 = vpack.c.b16 %v6062, %v6061
        %v6074 = vpack.c.b16 %v6064, %v6063
        %v6075 = vpack.c.b16 %v6066, %v6065
        %v6076 = vpack.c.b16 %v6068, %v6067
        %6085 = vmatprep.subr.bf16.mxu0 0
        %6086 = vmatpush1.bf16.msra.mxu0 %v6069
        %6087 = vmatprep.subr.bf16.mxu0 0
        %6088 = vmatpush1.bf16.msra.mxu0 %v6070
        %6089 = vmatprep.subr.bf16.mxu0 0
        %6090 = vmatpush1.bf16.msra.mxu0 %v6071
        %6091 = vmatprep.subr.bf16.mxu0 0
        %6092 = vmatpush1.bf16.msra.mxu0 %v6072
        %6093 = vmatprep.subr.bf16.mxu0 0
        %6094 = vmatpush1.bf16.msra.mxu0 %v6073
        %6095 = vmatprep.subr.bf16.mxu0 0
        %6096 = vmatpush1.bf16.msra.mxu0 %v6074
        %6097 = vmatprep.subr.bf16.mxu0 0
        %6098 = vmatpush1.bf16.msra.mxu0 %v6075
        %6099 = vmatprep.subr.bf16.mxu0 0
        %6100 = vmatpush1.bf16.msra.mxu0 %v6076
        %6101 = vmatprep.subr.bf16.mxu0 0
        %6102 = vmatpush1.bf16.msra.mxu0 0
        %6103 = vmatprep.subr.bf16.mxu0 0
        %6104 = vmatpush1.bf16.msra.mxu0 0
        %6105 = vmatprep.subr.bf16.mxu0 0
        %6106 = vmatpush1.bf16.msra.mxu0 0
        %6107 = vmatprep.subr.bf16.mxu0 0
        %6108 = vmatpush1.bf16.msra.mxu0 0
        %6109 = vmatprep.subr.bf16.mxu0 0
        %6110 = vmatpush1.bf16.msra.mxu0 0
        %6111 = vmatprep.subr.bf16.mxu0 0
        %6112 = vmatpush1.bf16.msra.mxu0 0
        %6113 = vmatprep.subr.bf16.mxu0 0
        %6114 = vmatpush1.bf16.msra.mxu0 0
        %6115 = vmatprep.subr.bf16.mxu0 0
        %6116 = vmatpush1.bf16.msra.mxu0 0
        %6117 = vmatprep.mubr.bf16.mxu0 0
        %6118 = vmatmul.mubr.bf16.gmra.mrb[0].mxu0 %v5826
        %v6119 = vpop.f32.mrb[0].mxu0
        %v6120 = vadd.f32 0.0, %v6119
        %v6121 = vpop.f32.mrb[0].mxu0
        %v6122 = vpop.f32.mrb[0].mxu0
        %v6123 = vpop.f32.mrb[0].mxu0
        %6124 = vdwg.mxu0
        %v6125 = vrot.slane %v6120, 7
        %vm6126 = vcmp.lt.s32.totalorder %v930, 0
        %v6127 = vsub.s32 0, %v930
        %v6128 = vsel %vm6126, %v6127, %v930
        %v6129 = vshrl.u32 %v6128, 2
        %v6130 = vand.u32 %v6128, 3
        %v6131 = vsub.s32 0, %v6130
        %v6132 = vsel %vm6126, %v6131, %v6130
        %vm6133 = vcmp.ne.s32.totalorder %v6132, 0
        %vm6134 = vcmp.lt.s32.totalorder %v6132, 0
        %vm6135 = vmand %vm6134, %vm6133
        %v6136 = vadd.s32 %v6132, 4
        %v6137 = vsel %vm6135, %v6136, %v6132
        %vm6138 = vcmp.eq.s32.totalorder %v6137, 0
        %v6139 = vsel %vm6138, 1, 0
        %vm6140 = vcmp.eq.s32.totalorder %v6139, 1
        %v6141 = vsel %vm6140, 0.0, %v6125
        %v6142 = vadd.f32 %v6015, %v6141
        %s6143 = scalar_lea.vmem [#allocation5], 960
        %v6144 = vld [vmem:[%s6143] sm:$0xf]
        %v6145 = vld [vmem:[%s6143 + $0x4] sm:$0xf]
        %v6146 = vld [vmem:[%s6143 + $0x8] sm:$0xf]
        %v6147 = vld [vmem:[%s6143 + $0xc] sm:$0xf]
        %v6148 = vld [vmem:[%s6143 + $0x10] sm:$0xf]
        %v6149 = vld [vmem:[%s6143 + $0x14] sm:$0xf]
        %v6150 = vld [vmem:[%s6143 + $0x18] sm:$0xf]
        %v6151 = vld [vmem:[%s6143 + $0x1c] sm:$0xf]
        %v6152 = vld [vmem:[%s6143 + $0x20] sm:$0xf]
        %v6153 = vld [vmem:[%s6143 + $0x24] sm:$0xf]
        %v6154 = vld [vmem:[%s6143 + $0x28] sm:$0xf]
        %v6155 = vld [vmem:[%s6143 + $0x2c] sm:$0xf]
        %v6156 = vld [vmem:[%s6143 + $0x30] sm:$0xf]
        %v6157 = vld [vmem:[%s6143 + $0x34] sm:$0xf]
        %v6158 = vld [vmem:[%s6143 + $0x38] sm:$0xf]
        %v6159 = vld [vmem:[%s6143 + $0x3c] sm:$0xf]
        %v6176 = vunpack.c.l.b16 %v6144
        %v6177 = vunpack.c.l.b16 %v6145
        %v6178 = vunpack.c.l.b16 %v6146
        %v6179 = vunpack.c.l.b16 %v6147
        %v6180 = vunpack.c.l.b16 %v6148
        %v6181 = vunpack.c.l.b16 %v6149
        %v6182 = vunpack.c.l.b16 %v6150
        %v6183 = vunpack.c.l.b16 %v6151
        %v6184 = vunpack.c.l.b16 %v6152
        %v6185 = vunpack.c.l.b16 %v6153
        %v6186 = vunpack.c.l.b16 %v6154
        %v6187 = vunpack.c.l.b16 %v6155
        %v6188 = vunpack.c.l.b16 %v6156
        %v6189 = vunpack.c.l.b16 %v6157
        %v6190 = vunpack.c.l.b16 %v6158
        %v6191 = vunpack.c.l.b16 %v6159
        %v6192 = vpack.c.b16 %v6177, %v6176
        %v6193 = vpack.c.b16 %v6179, %v6178
        %v6194 = vpack.c.b16 %v6181, %v6180
        %v6195 = vpack.c.b16 %v6183, %v6182
        %v6196 = vpack.c.b16 %v6185, %v6184
        %v6197 = vpack.c.b16 %v6187, %v6186
        %v6198 = vpack.c.b16 %v6189, %v6188
        %v6199 = vpack.c.b16 %v6191, %v6190
        %6208 = vmatprep.subr.bf16.mxu0 0
        %6209 = vmatpush1.bf16.msra.mxu0 %v6192
        %6210 = vmatprep.subr.bf16.mxu0 0
        %6211 = vmatpush1.bf16.msra.mxu0 %v6193
        %6212 = vmatprep.subr.bf16.mxu0 0
        %6213 = vmatpush1.bf16.msra.mxu0 %v6194
        %6214 = vmatprep.subr.bf16.mxu0 0
        %6215 = vmatpush1.bf16.msra.mxu0 %v6195
        %6216 = vmatprep.subr.bf16.mxu0 0
        %6217 = vmatpush1.bf16.msra.mxu0 %v6196
        %6218 = vmatprep.subr.bf16.mxu0 0
        %6219 = vmatpush1.bf16.msra.mxu0 %v6197
        %6220 = vmatprep.subr.bf16.mxu0 0
        %6221 = vmatpush1.bf16.msra.mxu0 %v6198
        %6222 = vmatprep.subr.bf16.mxu0 0
        %6223 = vmatpush1.bf16.msra.mxu0 %v6199
        %6224 = vmatprep.subr.bf16.mxu0 0
        %6225 = vmatpush1.bf16.msra.mxu0 0
        %6226 = vmatprep.subr.bf16.mxu0 0
        %6227 = vmatpush1.bf16.msra.mxu0 0
        %6228 = vmatprep.subr.bf16.mxu0 0
        %6229 = vmatpush1.bf16.msra.mxu0 0
        %6230 = vmatprep.subr.bf16.mxu0 0
        %6231 = vmatpush1.bf16.msra.mxu0 0
        %6232 = vmatprep.subr.bf16.mxu0 0
        %6233 = vmatpush1.bf16.msra.mxu0 0
        %6234 = vmatprep.subr.bf16.mxu0 0
        %6235 = vmatpush1.bf16.msra.mxu0 0
        %6236 = vmatprep.subr.bf16.mxu0 0
        %6237 = vmatpush1.bf16.msra.mxu0 0
        %6238 = vmatprep.subr.bf16.mxu0 0
        %6239 = vmatpush1.bf16.msra.mxu0 0
        %6240 = vmatprep.mubr.bf16.mxu0 0
        %6241 = vmatmul.mubr.bf16.gmra.mrb[0].mxu0 %v5930
        %v6242 = vpop.f32.mrb[0].mxu0
        %v6243 = vadd.f32 0.0, %v6242
        %v6244 = vpop.f32.mrb[0].mxu0
        %v6245 = vpop.f32.mrb[0].mxu0
        %v6246 = vpop.f32.mrb[0].mxu0
        %6247 = vdwg.mxu0
        %v6248 = vrot.slane %v6243, 1
        %vm6249 = vcmp.eq.s32.totalorder %v6137, 3
        %v6250 = vsel %vm6249, 1, 0
        %vm6251 = vcmp.eq.s32.totalorder %v6250, 1
        %v6252 = vsel %vm6251, 0.0, %v6248
        %v6253 = vadd.f32 %v6142, %v6252
        %s6254 = scalar_lea.vmem %s7, 6
        %v6255 = vld [vmem:[%s6254] sm:$0x3]
        %v6256 = vlaneseq
        %v6257 = vshrl.u32 %v6256, 7
        %v6258 = vsub.s32 0, %v6257
        %v6259 = vrot.slane %v6255, %v6258
        %v6260 = vmul.f32 %v6253, %v6259
        %v6261 = vlaneseq
        %v6262 = vshrl.u32 %v6261, 7
        %v6263 = vsub.s32 1, %v6262
        %v6264 = vrot.slane %v6255, %v6263
        %v6265 = vadd.f32 %v6260, %v6264
        %vm6266 = vcmp.gt.f32.partialorder %v6265, 0.0
        %v6267 = vmul.f32 %v6265, 0.2
        %v6268 = vsel %vm6266, %v6265, %v6267
        %v6269 = vpack.c.bf16 %v6268, %v6268
        %v6270 = vunpack.c.l.bf16 %v6269
        %v6272 = vcombine.high %v6270, %v6270
        %v6274 = vunpack.c.l.s4 1983009808
        %v6275 = vunpack.c.0.s8 %v6274
        %v6276 = vlaneseq
        %v6277 = vshrl.u32 %v6276, 7
        %v6278 = vsub.s32 %v6275, %v6277
        %v6279 = vrot.slane %v6270, %v6278
        %v6281 = vunpack.c.l.s4 1983009808
        %v6282 = vunpack.c.0.s8 %v6281
        %v6283 = vlaneseq
        %v6284 = vshrl.u32 %v6283, 7
        %v6285 = vsub.s32 %v6282, %v6284
        %v6286 = vrot.slane %v6272, %v6285
        %v6287 = vcombine.high %v6279, %v6279
        %v6288 = vcombine.high %v6286, %v6286
        %v6293 = vpack.c.bf16 %v6279, %v6279
        %v6294 = vpack.c.bf16 %v6287, %v6287
        %v6295 = vpack.c.bf16 %v6286, %v6286
        %v6296 = vpack.c.bf16 %v6288, %v6288
        %s6297 = scalar_lea.vmem [#allocation5], 1088
        %v6298 = vld [vmem:[%s6297] sm:$0xf]
        %v6299 = vld [vmem:[%s6297 + $0x4] sm:$0xf]
        %v6300 = vld [vmem:[%s6297 + $0x8] sm:$0xf]
        %v6301 = vld [vmem:[%s6297 + $0xc] sm:$0xf]
        %v6302 = vld [vmem:[%s6297 + $0x10] sm:$0xf]
        %v6303 = vld [vmem:[%s6297 + $0x14] sm:$0xf]
        %v6304 = vld [vmem:[%s6297 + $0x18] sm:$0xf]
        %v6305 = vld [vmem:[%s6297 + $0x1c] sm:$0xf]
        %v6306 = vld [vmem:[%s6297 + $0x20] sm:$0xf]
        %v6307 = vld [vmem:[%s6297 + $0x24] sm:$0xf]
        %v6308 = vld [vmem:[%s6297 + $0x28] sm:$0xf]
        %v6309 = vld [vmem:[%s6297 + $0x2c] sm:$0xf]
        %v6310 = vld [vmem:[%s6297 + $0x30] sm:$0xf]
        %v6311 = vld [vmem:[%s6297 + $0x34] sm:$0xf]
        %v6312 = vld [vmem:[%s6297 + $0x38] sm:$0xf]
        %v6313 = vld [vmem:[%s6297 + $0x3c] sm:$0xf]
        %s6314 = scalar_lea.vmem [#allocation5], 1152
        %v6315 = vld [vmem:[%s6314] sm:$0xf]
        %v6316 = vld [vmem:[%s6314 + $0x4] sm:$0xf]
        %v6317 = vld [vmem:[%s6314 + $0x8] sm:$0xf]
        %v6318 = vld [vmem:[%s6314 + $0xc] sm:$0xf]
        %v6319 = vld [vmem:[%s6314 + $0x10] sm:$0xf]
        %v6320 = vld [vmem:[%s6314 + $0x14] sm:$0xf]
        %v6321 = vld [vmem:[%s6314 + $0x18] sm:$0xf]
        %v6322 = vld [vmem:[%s6314 + $0x1c] sm:$0xf]
        %v6323 = vld [vmem:[%s6314 + $0x20] sm:$0xf]
        %v6324 = vld [vmem:[%s6314 + $0x24] sm:$0xf]
        %v6325 = vld [vmem:[%s6314 + $0x28] sm:$0xf]
        %v6326 = vld [vmem:[%s6314 + $0x2c] sm:$0xf]
        %v6327 = vld [vmem:[%s6314 + $0x30] sm:$0xf]
        %v6328 = vld [vmem:[%s6314 + $0x34] sm:$0xf]
        %v6329 = vld [vmem:[%s6314 + $0x38] sm:$0xf]
        %v6330 = vld [vmem:[%s6314 + $0x3c] sm:$0xf]
        %v6335 = vunpack.c.l.b16 %v6293
        %v6336 = vunpack.c.l.b16 %v6294
        %v6337 = vunpack.c.l.b16 %v6295
        %v6338 = vunpack.c.l.b16 %v6296
        %v6339 = vrot.slane %v6335, 1
        %v6340 = vsel %vm3027, %v6336, %v6339
        %v6341 = vrot.slane %v6337, 7
        %v6342 = vsel %vm3030, %v6341, %v6340
        %v6343 = vrot.slane %v6338, 6
        %v6344 = vsel %vm3033, %v6343, %v6342
        %v6345 = vpack.c.b16 %v6344, %v6344
        %v6363 = vunpack.c.l.b16 %v6315
        %v6364 = vunpack.c.l.b16 %v6316
        %v6365 = vunpack.c.l.b16 %v6317
        %v6366 = vunpack.c.l.b16 %v6318
        %v6367 = vunpack.c.l.b16 %v6319
        %v6368 = vunpack.c.l.b16 %v6320
        %v6369 = vunpack.c.l.b16 %v6321
        %v6370 = vunpack.c.l.b16 %v6322
        %v6371 = vunpack.c.l.b16 %v6323
        %v6372 = vunpack.c.l.b16 %v6324
        %v6373 = vunpack.c.l.b16 %v6325
        %v6374 = vunpack.c.l.b16 %v6326
        %v6375 = vunpack.c.l.b16 %v6327
        %v6376 = vunpack.c.l.b16 %v6328
        %v6377 = vunpack.c.l.b16 %v6329
        %v6378 = vunpack.c.l.b16 %v6330
        %v6379 = vpack.c.b16 %v6364, %v6363
        %v6380 = vpack.c.b16 %v6366, %v6365
        %v6381 = vpack.c.b16 %v6368, %v6367
        %v6382 = vpack.c.b16 %v6370, %v6369
        %v6383 = vpack.c.b16 %v6372, %v6371
        %v6384 = vpack.c.b16 %v6374, %v6373
        %v6385 = vpack.c.b16 %v6376, %v6375
        %v6386 = vpack.c.b16 %v6378, %v6377
        %6395 = vmatprep.subr.bf16.mxu0 0
        %6396 = vmatpush1.bf16.msra.mxu0 %v6379
        %6397 = vmatprep.subr.bf16.mxu0 0
        %6398 = vmatpush1.bf16.msra.mxu0 %v6380
        %6399 = vmatprep.subr.bf16.mxu0 0
        %6400 = vmatpush1.bf16.msra.mxu0 %v6381
        %6401 = vmatprep.subr.bf16.mxu0 0
        %6402 = vmatpush1.bf16.msra.mxu0 %v6382
        %6403 = vmatprep.subr.bf16.mxu0 0
        %6404 = vmatpush1.bf16.msra.mxu0 %v6383
        %6405 = vmatprep.subr.bf16.mxu0 0
        %6406 = vmatpush1.bf16.msra.mxu0 %v6384
        %6407 = vmatprep.subr.bf16.mxu0 0
        %6408 = vmatpush1.bf16.msra.mxu0 %v6385
        %6409 = vmatprep.subr.bf16.mxu0 0
        %6410 = vmatpush1.bf16.msra.mxu0 %v6386
        %6411 = vmatprep.subr.bf16.mxu0 0
        %6412 = vmatpush1.bf16.msra.mxu0 0
        %6413 = vmatprep.subr.bf16.mxu0 0
        %6414 = vmatpush1.bf16.msra.mxu0 0
        %6415 = vmatprep.subr.bf16.mxu0 0
        %6416 = vmatpush1.bf16.msra.mxu0 0
        %6417 = vmatprep.subr.bf16.mxu0 0
        %6418 = vmatpush1.bf16.msra.mxu0 0
        %6419 = vmatprep.subr.bf16.mxu0 0
        %6420 = vmatpush1.bf16.msra.mxu0 0
        %6421 = vmatprep.subr.bf16.mxu0 0
        %6422 = vmatpush1.bf16.msra.mxu0 0
        %6423 = vmatprep.subr.bf16.mxu0 0
        %6424 = vmatpush1.bf16.msra.mxu0 0
        %6425 = vmatprep.subr.bf16.mxu0 0
        %6426 = vmatpush1.bf16.msra.mxu0 0
        %6427 = vmatprep.mubr.bf16.mxu0 0
        %6428 = vmatmul.mubr.bf16.gmra.mrb[0].mxu0 %v6345
        %v6429 = vpop.f32.mrb[0].mxu0
        %v6430 = vadd.f32 0.0, %v6429
        %v6431 = vpop.f32.mrb[0].mxu0
        %v6432 = vpop.f32.mrb[0].mxu0
        %v6433 = vpop.f32.mrb[0].mxu0
        %6434 = vdwg.mxu0
        %v6435 = vrot.slane %v6336, 7
        %v6436 = vsel %vm3027, %v6435, %v6335
        %v6437 = vrot.slane %v6337, 6
        %v6438 = vsel %vm3030, %v6437, %v6436
        %v6439 = vrot.slane %v6338, 5
        %v6440 = vsel %vm3033, %v6439, %v6438
        %v6441 = vpack.c.b16 %v6440, %v6440
        %v6459 = vunpack.c.l.b16 %v6298
        %v6460 = vunpack.c.l.b16 %v6299
        %v6461 = vunpack.c.l.b16 %v6300
        %v6462 = vunpack.c.l.b16 %v6301
        %v6463 = vunpack.c.l.b16 %v6302
        %v6464 = vunpack.c.l.b16 %v6303
        %v6465 = vunpack.c.l.b16 %v6304
        %v6466 = vunpack.c.l.b16 %v6305
        %v6467 = vunpack.c.l.b16 %v6306
        %v6468 = vunpack.c.l.b16 %v6307
        %v6469 = vunpack.c.l.b16 %v6308
        %v6470 = vunpack.c.l.b16 %v6309
        %v6471 = vunpack.c.l.b16 %v6310
        %v6472 = vunpack.c.l.b16 %v6311
        %v6473 = vunpack.c.l.b16 %v6312
        %v6474 = vunpack.c.l.b16 %v6313
        %v6475 = vpack.c.b16 %v6460, %v6459
        %v6476 = vpack.c.b16 %v6462, %v6461
        %v6477 = vpack.c.b16 %v6464, %v6463
        %v6478 = vpack.c.b16 %v6466, %v6465
        %v6479 = vpack.c.b16 %v6468, %v6467
        %v6480 = vpack.c.b16 %v6470, %v6469
        %v6481 = vpack.c.b16 %v6472, %v6471
        %v6482 = vpack.c.b16 %v6474, %v6473
        %6491 = vmatprep.subr.bf16.mxu0 0
        %6492 = vmatpush1.bf16.msra.mxu0 %v6475
        %6493 = vmatprep.subr.bf16.mxu0 0
        %6494 = vmatpush1.bf16.msra.mxu0 %v6476
        %6495 = vmatprep.subr.bf16.mxu0 0
        %6496 = vmatpush1.bf16.msra.mxu0 %v6477
        %6497 = vmatprep.subr.bf16.mxu0 0
        %6498 = vmatpush1.bf16.msra.mxu0 %v6478
        %6499 = vmatprep.subr.bf16.mxu0 0
        %6500 = vmatpush1.bf16.msra.mxu0 %v6479
        %6501 = vmatprep.subr.bf16.mxu0 0
        %6502 = vmatpush1.bf16.msra.mxu0 %v6480
        %6503 = vmatprep.subr.bf16.mxu0 0
        %6504 = vmatpush1.bf16.msra.mxu0 %v6481
        %6505 = vmatprep.subr.bf16.mxu0 0
        %6506 = vmatpush1.bf16.msra.mxu0 %v6482
        %6507 = vmatprep.subr.bf16.mxu0 0
        %6508 = vmatpush1.bf16.msra.mxu0 0
        %6509 = vmatprep.subr.bf16.mxu0 0
        %6510 = vmatpush1.bf16.msra.mxu0 0
        %6511 = vmatprep.subr.bf16.mxu0 0
        %6512 = vmatpush1.bf16.msra.mxu0 0
        %6513 = vmatprep.subr.bf16.mxu0 0
        %6514 = vmatpush1.bf16.msra.mxu0 0
        %6515 = vmatprep.subr.bf16.mxu0 0
        %6516 = vmatpush1.bf16.msra.mxu0 0
        %6517 = vmatprep.subr.bf16.mxu0 0
        %6518 = vmatpush1.bf16.msra.mxu0 0
        %6519 = vmatprep.subr.bf16.mxu0 0
        %6520 = vmatpush1.bf16.msra.mxu0 0
        %6521 = vmatprep.subr.bf16.mxu0 0
        %6522 = vmatpush1.bf16.msra.mxu0 0
        %6523 = vmatprep.mubr.bf16.mxu0 0
        %6524 = vmatmul.mubr.bf16.gmra.mrb[0].mxu0 %v6441
        %v6525 = vpop.f32.mrb[0].mxu0
        %v6526 = vadd.f32 %v6430, %v6525
        %v6527 = vpop.f32.mrb[0].mxu0
        %v6528 = vpop.f32.mrb[0].mxu0
        %v6529 = vpop.f32.mrb[0].mxu0
        %6530 = vdwg.mxu0
        %s6531 = scalar_lea.vmem [#allocation5], 1024
        %v6532 = vld [vmem:[%s6531] sm:$0xf]
        %v6533 = vld [vmem:[%s6531 + $0x4] sm:$0xf]
        %v6534 = vld [vmem:[%s6531 + $0x8] sm:$0xf]
        %v6535 = vld [vmem:[%s6531 + $0xc] sm:$0xf]
        %v6536 = vld [vmem:[%s6531 + $0x10] sm:$0xf]
        %v6537 = vld [vmem:[%s6531 + $0x14] sm:$0xf]
        %v6538 = vld [vmem:[%s6531 + $0x18] sm:$0xf]
        %v6539 = vld [vmem:[%s6531 + $0x1c] sm:$0xf]
        %v6540 = vld [vmem:[%s6531 + $0x20] sm:$0xf]
        %v6541 = vld [vmem:[%s6531 + $0x24] sm:$0xf]
        %v6542 = vld [vmem:[%s6531 + $0x28] sm:$0xf]
        %v6543 = vld [vmem:[%s6531 + $0x2c] sm:$0xf]
        %v6544 = vld [vmem:[%s6531 + $0x30] sm:$0xf]
        %v6545 = vld [vmem:[%s6531 + $0x34] sm:$0xf]
        %v6546 = vld [vmem:[%s6531 + $0x38] sm:$0xf]
        %v6547 = vld [vmem:[%s6531 + $0x3c] sm:$0xf]
        %v6564 = vunpack.c.l.b16 %v6532
        %v6565 = vunpack.c.l.b16 %v6533
        %v6566 = vunpack.c.l.b16 %v6534
        %v6567 = vunpack.c.l.b16 %v6535
        %v6568 = vunpack.c.l.b16 %v6536
        %v6569 = vunpack.c.l.b16 %v6537
        %v6570 = vunpack.c.l.b16 %v6538
        %v6571 = vunpack.c.l.b16 %v6539
        %v6572 = vunpack.c.l.b16 %v6540
        %v6573 = vunpack.c.l.b16 %v6541
        %v6574 = vunpack.c.l.b16 %v6542
        %v6575 = vunpack.c.l.b16 %v6543
        %v6576 = vunpack.c.l.b16 %v6544
        %v6577 = vunpack.c.l.b16 %v6545
        %v6578 = vunpack.c.l.b16 %v6546
        %v6579 = vunpack.c.l.b16 %v6547
        %v6580 = vpack.c.b16 %v6565, %v6564
        %v6581 = vpack.c.b16 %v6567, %v6566
        %v6582 = vpack.c.b16 %v6569, %v6568
        %v6583 = vpack.c.b16 %v6571, %v6570
        %v6584 = vpack.c.b16 %v6573, %v6572
        %v6585 = vpack.c.b16 %v6575, %v6574
        %v6586 = vpack.c.b16 %v6577, %v6576
        %v6587 = vpack.c.b16 %v6579, %v6578
        %6596 = vmatprep.subr.bf16.mxu0 0
        %6597 = vmatpush1.bf16.msra.mxu0 %v6580
        %6598 = vmatprep.subr.bf16.mxu0 0
        %6599 = vmatpush1.bf16.msra.mxu0 %v6581
        %6600 = vmatprep.subr.bf16.mxu0 0
        %6601 = vmatpush1.bf16.msra.mxu0 %v6582
        %6602 = vmatprep.subr.bf16.mxu0 0
        %6603 = vmatpush1.bf16.msra.mxu0 %v6583
        %6604 = vmatprep.subr.bf16.mxu0 0
        %6605 = vmatpush1.bf16.msra.mxu0 %v6584
        %6606 = vmatprep.subr.bf16.mxu0 0
        %6607 = vmatpush1.bf16.msra.mxu0 %v6585
        %6608 = vmatprep.subr.bf16.mxu0 0
        %6609 = vmatpush1.bf16.msra.mxu0 %v6586
        %6610 = vmatprep.subr.bf16.mxu0 0
        %6611 = vmatpush1.bf16.msra.mxu0 %v6587
        %6612 = vmatprep.subr.bf16.mxu0 0
        %6613 = vmatpush1.bf16.msra.mxu0 0
        %6614 = vmatprep.subr.bf16.mxu0 0
        %6615 = vmatpush1.bf16.msra.mxu0 0
        %6616 = vmatprep.subr.bf16.mxu0 0
        %6617 = vmatpush1.bf16.msra.mxu0 0
        %6618 = vmatprep.subr.bf16.mxu0 0
        %6619 = vmatpush1.bf16.msra.mxu0 0
        %6620 = vmatprep.subr.bf16.mxu0 0
        %6621 = vmatpush1.bf16.msra.mxu0 0
        %6622 = vmatprep.subr.bf16.mxu0 0
        %6623 = vmatpush1.bf16.msra.mxu0 0
        %6624 = vmatprep.subr.bf16.mxu0 0
        %6625 = vmatpush1.bf16.msra.mxu0 0
        %6626 = vmatprep.subr.bf16.mxu0 0
        %6627 = vmatpush1.bf16.msra.mxu0 0
        %6628 = vmatprep.mubr.bf16.mxu0 0
        %6629 = vmatmul.mubr.bf16.gmra.mrb[0].mxu0 %v6345
        %v6630 = vpop.f32.mrb[0].mxu0
        %v6631 = vadd.f32 0.0, %v6630
        %v6632 = vpop.f32.mrb[0].mxu0
        %v6633 = vpop.f32.mrb[0].mxu0
        %v6634 = vpop.f32.mrb[0].mxu0
        %6635 = vdwg.mxu0
        %vm6636 = vcmask 1047556
        %v6637 = vrot.slane %v6631, 4
        %v6638 = vsel %vm6636, %v6637, %v6631
        %v6639 = vrot.slane %v6638, 4
        %v6640 = vsel %vm6636, %v6639, %v6631
        %vm6641 = vcmp.lt.s32.totalorder %v930, 0
        %v6642 = vsub.s32 0, %v930
        %v6643 = vsel %vm6641, %v6642, %v930
        %v6644 = vshrl.u32 %v6643, 1
        %v6645 = vand.u32 %v6643, 1
        %v6646 = vsub.s32 0, %v6645
        %v6647 = vsel %vm6641, %v6646, %v6645
        %vm6648 = vcmp.ne.s32.totalorder %v6647, 0
        %vm6649 = vcmp.lt.s32.totalorder %v6647, 0
        %vm6650 = vmand %vm6649, %vm6648
        %v6651 = vadd.s32 %v6647, 2
        %v6652 = vsel %vm6650, %v6651, %v6647
        %vm6653 = vcmp.eq.s32.totalorder %v6652, 0
        %v6654 = vsel %vm6653, 1, 0
        %vm6655 = vcmp.eq.s32.totalorder %v6654, 1
        %v6657 = vrot.slane %v6640, 3
        %v6659 = vsel %vm6655, 0.0, %v6657
        %v6660 = vadd.f32 %v6526, %v6659
        %s6661 = scalar_lea.vmem [#allocation5], 1216
        %v6662 = vld [vmem:[%s6661] sm:$0xf]
        %v6663 = vld [vmem:[%s6661 + $0x4] sm:$0xf]
        %v6664 = vld [vmem:[%s6661 + $0x8] sm:$0xf]
        %v6665 = vld [vmem:[%s6661 + $0xc] sm:$0xf]
        %v6666 = vld [vmem:[%s6661 + $0x10] sm:$0xf]
        %v6667 = vld [vmem:[%s6661 + $0x14] sm:$0xf]
        %v6668 = vld [vmem:[%s6661 + $0x18] sm:$0xf]
        %v6669 = vld [vmem:[%s6661 + $0x1c] sm:$0xf]
        %v6670 = vld [vmem:[%s6661 + $0x20] sm:$0xf]
        %v6671 = vld [vmem:[%s6661 + $0x24] sm:$0xf]
        %v6672 = vld [vmem:[%s6661 + $0x28] sm:$0xf]
        %v6673 = vld [vmem:[%s6661 + $0x2c] sm:$0xf]
        %v6674 = vld [vmem:[%s6661 + $0x30] sm:$0xf]
        %v6675 = vld [vmem:[%s6661 + $0x34] sm:$0xf]
        %v6676 = vld [vmem:[%s6661 + $0x38] sm:$0xf]
        %v6677 = vld [vmem:[%s6661 + $0x3c] sm:$0xf]
        %v6694 = vunpack.c.l.b16 %v6662
        %v6695 = vunpack.c.l.b16 %v6663
        %v6696 = vunpack.c.l.b16 %v6664
        %v6697 = vunpack.c.l.b16 %v6665
        %v6698 = vunpack.c.l.b16 %v6666
        %v6699 = vunpack.c.l.b16 %v6667
        %v6700 = vunpack.c.l.b16 %v6668
        %v6701 = vunpack.c.l.b16 %v6669
        %v6702 = vunpack.c.l.b16 %v6670
        %v6703 = vunpack.c.l.b16 %v6671
        %v6704 = vunpack.c.l.b16 %v6672
        %v6705 = vunpack.c.l.b16 %v6673
        %v6706 = vunpack.c.l.b16 %v6674
        %v6707 = vunpack.c.l.b16 %v6675
        %v6708 = vunpack.c.l.b16 %v6676
        %v6709 = vunpack.c.l.b16 %v6677
        %v6710 = vpack.c.b16 %v6695, %v6694
        %v6711 = vpack.c.b16 %v6697, %v6696
        %v6712 = vpack.c.b16 %v6699, %v6698
        %v6713 = vpack.c.b16 %v6701, %v6700
        %v6714 = vpack.c.b16 %v6703, %v6702
        %v6715 = vpack.c.b16 %v6705, %v6704
        %v6716 = vpack.c.b16 %v6707, %v6706
        %v6717 = vpack.c.b16 %v6709, %v6708
        %6726 = vmatprep.subr.bf16.mxu0 0
        %6727 = vmatpush1.bf16.msra.mxu0 %v6710
        %6728 = vmatprep.subr.bf16.mxu0 0
        %6729 = vmatpush1.bf16.msra.mxu0 %v6711
        %6730 = vmatprep.subr.bf16.mxu0 0
        %6731 = vmatpush1.bf16.msra.mxu0 %v6712
        %6732 = vmatprep.subr.bf16.mxu0 0
        %6733 = vmatpush1.bf16.msra.mxu0 %v6713
        %6734 = vmatprep.subr.bf16.mxu0 0
        %6735 = vmatpush1.bf16.msra.mxu0 %v6714
        %6736 = vmatprep.subr.bf16.mxu0 0
        %6737 = vmatpush1.bf16.msra.mxu0 %v6715
        %6738 = vmatprep.subr.bf16.mxu0 0
        %6739 = vmatpush1.bf16.msra.mxu0 %v6716
        %6740 = vmatprep.subr.bf16.mxu0 0
        %6741 = vmatpush1.bf16.msra.mxu0 %v6717
        %6742 = vmatprep.subr.bf16.mxu0 0
        %6743 = vmatpush1.bf16.msra.mxu0 0
        %6744 = vmatprep.subr.bf16.mxu0 0
        %6745 = vmatpush1.bf16.msra.mxu0 0
        %6746 = vmatprep.subr.bf16.mxu0 0
        %6747 = vmatpush1.bf16.msra.mxu0 0
        %6748 = vmatprep.subr.bf16.mxu0 0
        %6749 = vmatpush1.bf16.msra.mxu0 0
        %6750 = vmatprep.subr.bf16.mxu0 0
        %6751 = vmatpush1.bf16.msra.mxu0 0
        %6752 = vmatprep.subr.bf16.mxu0 0
        %6753 = vmatpush1.bf16.msra.mxu0 0
        %6754 = vmatprep.subr.bf16.mxu0 0
        %6755 = vmatpush1.bf16.msra.mxu0 0
        %6756 = vmatprep.subr.bf16.mxu0 0
        %6757 = vmatpush1.bf16.msra.mxu0 0
        %6758 = vmatprep.mubr.bf16.mxu0 0
        %6759 = vmatmul.mubr.bf16.gmra.mrb[0].mxu0 %v6441
        %v6760 = vpop.f32.mrb[0].mxu0
        %v6761 = vadd.f32 0.0, %v6760
        %v6762 = vpop.f32.mrb[0].mxu0
        %v6763 = vpop.f32.mrb[0].mxu0
        %v6764 = vpop.f32.mrb[0].mxu0
        %6765 = vdwg.mxu0
        %v6766 = vrot.slane %v6761, 4
        %v6767 = vsel %vm6636, %v6766, %v6761
        %v6768 = vrot.slane %v6767, 4
        %v6769 = vsel %vm6636, %v6768, %v6761
        %vm6770 = vcmp.eq.s32.totalorder %v6652, 1
        %v6771 = vsel %vm6770, 1, 0
        %vm6772 = vcmp.eq.s32.totalorder %v6771, 1
        %v6774 = vrot.slane %v6769, 1
        %v6776 = vsel %vm6772, 0.0, %v6774
        %v6777 = vadd.f32 %v6660, %v6776
        %s6778 = scalar_lea.vmem %s7, 8
        %v6779 = vld [vmem:[%s6778] sm:$0x3]
        %v6780 = vlaneseq
        %v6781 = vshrl.u32 %v6780, 7
        %v6782 = vsub.s32 0, %v6781
        %v6783 = vrot.slane %v6779, %v6782
        %v6784 = vmul.f32 %v6777, %v6783
        %v6785 = vlaneseq
        %v6786 = vshrl.u32 %v6785, 7
        %v6787 = vsub.s32 1, %v6786
        %v6788 = vrot.slane %v6779, %v6787
        %v6789 = vadd.f32 %v6784, %v6788
        %vm6790 = vcmp.gt.f32.partialorder %v6789, 0.0
        %v6791 = vmul.f32 %v6789, 0.2
        %v6792 = vsel %vm6790, %v6789, %v6791
        %v6793 = vpack.c.bf16 %v6792, %v6792
        %v6794 = vld [vmem:[%s1] sm:$0xf]
        %vm6795 = vcmask 31744
        %v6797 = vsel %vm6795, %v6794, 0
        %vm6799 = vcmask 1041408
        %v6801 = vsel %vm6799, %v6793, 0
        %6803 = vmatprep.subr.bf16.mxu0 0
        %6804 = vmatpush1.bf16.msra.mxu0 %v6801
        %6805 = vmatprep.subr.bf16.mxu0 0
        %6806 = vmatpush1.bf16.msra.mxu0 0
        %6807 = vmatprep.subr.bf16.mxu0 0
        %6808 = vmatpush1.bf16.msra.mxu0 0
        %6809 = vmatprep.subr.bf16.mxu0 0
        %6810 = vmatpush1.bf16.msra.mxu0 0
        %6811 = vmatprep.subr.bf16.mxu0 0
        %6812 = vmatpush1.bf16.msra.mxu0 0
        %6813 = vmatprep.subr.bf16.mxu0 0
        %6814 = vmatpush1.bf16.msra.mxu0 0
        %6815 = vmatprep.subr.bf16.mxu0 0
        %6816 = vmatpush1.bf16.msra.mxu0 0
        %6817 = vmatprep.subr.bf16.mxu0 0
        %6818 = vmatpush1.bf16.msra.mxu0 0
        %6819 = vmatprep.subr.bf16.mxu0 0
        %6820 = vmatpush1.bf16.msra.mxu0 0
        %6821 = vmatprep.subr.bf16.mxu0 0
        %6822 = vmatpush1.bf16.msra.mxu0 0
        %6823 = vmatprep.subr.bf16.mxu0 0
        %6824 = vmatpush1.bf16.msra.mxu0 0
        %6825 = vmatprep.subr.bf16.mxu0 0
        %6826 = vmatpush1.bf16.msra.mxu0 0
        %6827 = vmatprep.subr.bf16.mxu0 0
        %6828 = vmatpush1.bf16.msra.mxu0 0
        %6829 = vmatprep.subr.bf16.mxu0 0
        %6830 = vmatpush1.bf16.msra.mxu0 0
        %6831 = vmatprep.subr.bf16.mxu0 0
        %6832 = vmatpush1.bf16.msra.mxu0 0
        %6833 = vmatprep.subr.bf16.mxu0 0
        %6834 = vmatpush1.bf16.msra.mxu0 0
        %6835 = vmatprep.mubr.bf16.mxu0 0
        %6836 = vmatmul.mubr.bf16.gmra.mrb[0].mxu0 %v6797
        %v6837 = vpop.f32.mrb[0].mxu0
        %v6838 = vadd.f32 %v6270, %v6837
        %v6839 = vpop.f32.mrb[0].mxu0
        %v6840 = vpop.f32.mrb[0].mxu0
        %v6841 = vpop.f32.mrb[0].mxu0
        %6842 = vdwg.mxu0
        %v6843 = vpack.c.bf16 %v6838, %v6838
        %s6844 = scalar_lea.vmem [#allocation7], 64
        %v6845 = vld [vmem:[%s6844] sm:$0xf]
        %v6846 = vld [vmem:[%s6844 + $0x4] sm:$0xf]
        %v6847 = vld [vmem:[%s6844 + $0x8] sm:$0xf]
        %v6848 = vld [vmem:[%s6844 + $0xc] sm:$0xf]
        %v6849 = vld [vmem:[%s6844 + $0x10] sm:$0xf]
        %v6850 = vld [vmem:[%s6844 + $0x14] sm:$0xf]
        %v6851 = vld [vmem:[%s6844 + $0x18] sm:$0xf]
        %v6852 = vld [vmem:[%s6844 + $0x1c] sm:$0xf]
        %v6853 = vld [vmem:[%s6844 + $0x20] sm:$0xf]
        %v6854 = vld [vmem:[%s6844 + $0x24] sm:$0xf]
        %v6855 = vld [vmem:[%s6844 + $0x28] sm:$0xf]
        %v6856 = vld [vmem:[%s6844 + $0x2c] sm:$0xf]
        %v6857 = vld [vmem:[%s6844 + $0x30] sm:$0xf]
        %v6858 = vld [vmem:[%s6844 + $0x34] sm:$0xf]
        %v6859 = vld [vmem:[%s6844 + $0x38] sm:$0xf]
        %v6860 = vld [vmem:[%s6844 + $0x3c] sm:$0xf]
        %v6861 = vld [vmem:[#allocation7] sm:$0xf]
        %v6862 = vld [vmem:[#allocation7 + $0x4] sm:$0xf]
        %v6863 = vld [vmem:[#allocation7 + $0x8] sm:$0xf]
        %v6864 = vld [vmem:[#allocation7 + $0xc] sm:$0xf]
        %v6865 = vld [vmem:[#allocation7 + $0x10] sm:$0xf]
        %v6866 = vld [vmem:[#allocation7 + $0x14] sm:$0xf]
        %v6867 = vld [vmem:[#allocation7 + $0x18] sm:$0xf]
        %v6868 = vld [vmem:[#allocation7 + $0x1c] sm:$0xf]
        %v6869 = vld [vmem:[#allocation7 + $0x20] sm:$0xf]
        %v6870 = vld [vmem:[#allocation7 + $0x24] sm:$0xf]
        %v6871 = vld [vmem:[#allocation7 + $0x28] sm:$0xf]
        %v6872 = vld [vmem:[#allocation7 + $0x2c] sm:$0xf]
        %v6873 = vld [vmem:[#allocation7 + $0x30] sm:$0xf]
        %v6874 = vld [vmem:[#allocation7 + $0x34] sm:$0xf]
        %v6875 = vld [vmem:[#allocation7 + $0x38] sm:$0xf]
        %v6876 = vld [vmem:[#allocation7 + $0x3c] sm:$0xf]
        %v6893 = vunpack.c.l.b16 %v6861
        %v6894 = vunpack.c.l.b16 %v6862
        %v6895 = vunpack.c.l.b16 %v6863
        %v6896 = vunpack.c.l.b16 %v6864
        %v6897 = vunpack.c.l.b16 %v6865
        %v6898 = vunpack.c.l.b16 %v6866
        %v6899 = vunpack.c.l.b16 %v6867
        %v6900 = vunpack.c.l.b16 %v6868
        %v6901 = vunpack.c.l.b16 %v6869
        %v6902 = vunpack.c.l.b16 %v6870
        %v6903 = vunpack.c.l.b16 %v6871
        %v6904 = vunpack.c.l.b16 %v6872
        %v6905 = vunpack.c.l.b16 %v6873
        %v6906 = vunpack.c.l.b16 %v6874
        %v6907 = vunpack.c.l.b16 %v6875
        %v6908 = vunpack.c.l.b16 %v6876
        %v6909 = vpack.c.b16 %v6894, %v6893
        %v6910 = vpack.c.b16 %v6896, %v6895
        %v6911 = vpack.c.b16 %v6898, %v6897
        %v6912 = vpack.c.b16 %v6900, %v6899
        %v6913 = vpack.c.b16 %v6902, %v6901
        %v6914 = vpack.c.b16 %v6904, %v6903
        %v6915 = vpack.c.b16 %v6906, %v6905
        %v6916 = vpack.c.b16 %v6908, %v6907
        %6925 = vmatprep.subr.bf16.mxu0 0
        %6926 = vmatpush1.bf16.msra.mxu0 %v6909
        %6927 = vmatprep.subr.bf16.mxu0 0
        %6928 = vmatpush1.bf16.msra.mxu0 %v6910
        %6929 = vmatprep.subr.bf16.mxu0 0
        %6930 = vmatpush1.bf16.msra.mxu0 %v6911
        %6931 = vmatprep.subr.bf16.mxu0 0
        %6932 = vmatpush1.bf16.msra.mxu0 %v6912
        %6933 = vmatprep.subr.bf16.mxu0 0
        %6934 = vmatpush1.bf16.msra.mxu0 %v6913
        %6935 = vmatprep.subr.bf16.mxu0 0
        %6936 = vmatpush1.bf16.msra.mxu0 %v6914
        %6937 = vmatprep.subr.bf16.mxu0 0
        %6938 = vmatpush1.bf16.msra.mxu0 %v6915
        %6939 = vmatprep.subr.bf16.mxu0 0
        %6940 = vmatpush1.bf16.msra.mxu0 %v6916
        %6941 = vmatprep.subr.bf16.mxu0 0
        %6942 = vmatpush1.bf16.msra.mxu0 0
        %6943 = vmatprep.subr.bf16.mxu0 0
        %6944 = vmatpush1.bf16.msra.mxu0 0
        %6945 = vmatprep.subr.bf16.mxu0 0
        %6946 = vmatpush1.bf16.msra.mxu0 0
        %6947 = vmatprep.subr.bf16.mxu0 0
        %6948 = vmatpush1.bf16.msra.mxu0 0
        %6949 = vmatprep.subr.bf16.mxu0 0
        %6950 = vmatpush1.bf16.msra.mxu0 0
        %6951 = vmatprep.subr.bf16.mxu0 0
        %6952 = vmatpush1.bf16.msra.mxu0 0
        %6953 = vmatprep.subr.bf16.mxu0 0
        %6954 = vmatpush1.bf16.msra.mxu0 0
        %6955 = vmatprep.subr.bf16.mxu0 0
        %6956 = vmatpush1.bf16.msra.mxu0 0
        %6957 = vmatprep.mubr.bf16.mxu0 0
        %6958 = vmatmul.mubr.bf16.gmra.mrb[0].mxu0 %v6843
        %v6959 = vpop.f32.mrb[0].mxu0
        %v6960 = vadd.f32 0.0, %v6959
        %v6961 = vpop.f32.mrb[0].mxu0
        %v6962 = vpop.f32.mrb[0].mxu0
        %v6963 = vpop.f32.mrb[0].mxu0
        %6964 = vdwg.mxu0
        %v6965 = vrot.slane %v6960, 7
        %v6966 = vsel %vm6140, 0.0, %v6965
        %v6983 = vunpack.c.l.b16 %v6845
        %v6984 = vunpack.c.l.b16 %v6846
        %v6985 = vunpack.c.l.b16 %v6847
        %v6986 = vunpack.c.l.b16 %v6848
        %v6987 = vunpack.c.l.b16 %v6849
        %v6988 = vunpack.c.l.b16 %v6850
        %v6989 = vunpack.c.l.b16 %v6851
        %v6990 = vunpack.c.l.b16 %v6852
        %v6991 = vunpack.c.l.b16 %v6853
        %v6992 = vunpack.c.l.b16 %v6854
        %v6993 = vunpack.c.l.b16 %v6855
        %v6994 = vunpack.c.l.b16 %v6856
        %v6995 = vunpack.c.l.b16 %v6857
        %v6996 = vunpack.c.l.b16 %v6858
        %v6997 = vunpack.c.l.b16 %v6859
        %v6998 = vunpack.c.l.b16 %v6860
        %v6999 = vpack.c.b16 %v6984, %v6983
        %v7000 = vpack.c.b16 %v6986, %v6985
        %v7001 = vpack.c.b16 %v6988, %v6987
        %v7002 = vpack.c.b16 %v6990, %v6989
        %v7003 = vpack.c.b16 %v6992, %v6991
        %v7004 = vpack.c.b16 %v6994, %v6993
        %v7005 = vpack.c.b16 %v6996, %v6995
        %v7006 = vpack.c.b16 %v6998, %v6997
        %7015 = vmatprep.subr.bf16.mxu0 0
        %7016 = vmatpush1.bf16.msra.mxu0 %v6999
        %7017 = vmatprep.subr.bf16.mxu0 0
        %7018 = vmatpush1.bf16.msra.mxu0 %v7000
        %7019 = vmatprep.subr.bf16.mxu0 0
        %7020 = vmatpush1.bf16.msra.mxu0 %v7001
        %7021 = vmatprep.subr.bf16.mxu0 0
        %7022 = vmatpush1.bf16.msra.mxu0 %v7002
        %7023 = vmatprep.subr.bf16.mxu0 0
        %7024 = vmatpush1.bf16.msra.mxu0 %v7003
        %7025 = vmatprep.subr.bf16.mxu0 0
        %7026 = vmatpush1.bf16.msra.mxu0 %v7004
        %7027 = vmatprep.subr.bf16.mxu0 0
        %7028 = vmatpush1.bf16.msra.mxu0 %v7005
        %7029 = vmatprep.subr.bf16.mxu0 0
        %7030 = vmatpush1.bf16.msra.mxu0 %v7006
        %7031 = vmatprep.subr.bf16.mxu0 0
        %7032 = vmatpush1.bf16.msra.mxu0 0
        %7033 = vmatprep.subr.bf16.mxu0 0
        %7034 = vmatpush1.bf16.msra.mxu0 0
        %7035 = vmatprep.subr.bf16.mxu0 0
        %7036 = vmatpush1.bf16.msra.mxu0 0
        %7037 = vmatprep.subr.bf16.mxu0 0
        %7038 = vmatpush1.bf16.msra.mxu0 0
        %7039 = vmatprep.subr.bf16.mxu0 0
        %7040 = vmatpush1.bf16.msra.mxu0 0
        %7041 = vmatprep.subr.bf16.mxu0 0
        %7042 = vmatpush1.bf16.msra.mxu0 0
        %7043 = vmatprep.subr.bf16.mxu0 0
        %7044 = vmatpush1.bf16.msra.mxu0 0
        %7045 = vmatprep.subr.bf16.mxu0 0
        %7046 = vmatpush1.bf16.msra.mxu0 0
        %7047 = vmatprep.mubr.bf16.mxu0 0
        %7048 = vmatmul.mubr.bf16.gmra.mrb[0].mxu0 %v6843
        %v7049 = vpop.f32.mrb[0].mxu0
        %v7050 = vadd.f32 %v6966, %v7049
        %v7051 = vpop.f32.mrb[0].mxu0
        %v7052 = vpop.f32.mrb[0].mxu0
        %v7053 = vpop.f32.mrb[0].mxu0
        %7054 = vdwg.mxu0
        %s7055 = scalar_lea.vmem [#allocation7], 128
        %v7056 = vld [vmem:[%s7055] sm:$0xf]
        %v7057 = vld [vmem:[%s7055 + $0x4] sm:$0xf]
        %v7058 = vld [vmem:[%s7055 + $0x8] sm:$0xf]
        %v7059 = vld [vmem:[%s7055 + $0xc] sm:$0xf]
        %v7060 = vld [vmem:[%s7055 + $0x10] sm:$0xf]
        %v7061 = vld [vmem:[%s7055 + $0x14] sm:$0xf]
        %v7062 = vld [vmem:[%s7055 + $0x18] sm:$0xf]
        %v7063 = vld [vmem:[%s7055 + $0x1c] sm:$0xf]
        %v7064 = vld [vmem:[%s7055 + $0x20] sm:$0xf]
        %v7065 = vld [vmem:[%s7055 + $0x24] sm:$0xf]
        %v7066 = vld [vmem:[%s7055 + $0x28] sm:$0xf]
        %v7067 = vld [vmem:[%s7055 + $0x2c] sm:$0xf]
        %v7068 = vld [vmem:[%s7055 + $0x30] sm:$0xf]
        %v7069 = vld [vmem:[%s7055 + $0x34] sm:$0xf]
        %v7070 = vld [vmem:[%s7055 + $0x38] sm:$0xf]
        %v7071 = vld [vmem:[%s7055 + $0x3c] sm:$0xf]
        %v7088 = vunpack.c.l.b16 %v7056
        %v7089 = vunpack.c.l.b16 %v7057
        %v7090 = vunpack.c.l.b16 %v7058
        %v7091 = vunpack.c.l.b16 %v7059
        %v7092 = vunpack.c.l.b16 %v7060
        %v7093 = vunpack.c.l.b16 %v7061
        %v7094 = vunpack.c.l.b16 %v7062
        %v7095 = vunpack.c.l.b16 %v7063
        %v7096 = vunpack.c.l.b16 %v7064
        %v7097 = vunpack.c.l.b16 %v7065
        %v7098 = vunpack.c.l.b16 %v7066
        %v7099 = vunpack.c.l.b16 %v7067
        %v7100 = vunpack.c.l.b16 %v7068
        %v7101 = vunpack.c.l.b16 %v7069
        %v7102 = vunpack.c.l.b16 %v7070
        %v7103 = vunpack.c.l.b16 %v7071
        %v7104 = vpack.c.b16 %v7089, %v7088
        %v7105 = vpack.c.b16 %v7091, %v7090
        %v7106 = vpack.c.b16 %v7093, %v7092
        %v7107 = vpack.c.b16 %v7095, %v7094
        %v7108 = vpack.c.b16 %v7097, %v7096
        %v7109 = vpack.c.b16 %v7099, %v7098
        %v7110 = vpack.c.b16 %v7101, %v7100
        %v7111 = vpack.c.b16 %v7103, %v7102
        %7120 = vmatprep.subr.bf16.mxu0 0
        %7121 = vmatpush1.bf16.msra.mxu0 %v7104
        %7122 = vmatprep.subr.bf16.mxu0 0
        %7123 = vmatpush1.bf16.msra.mxu0 %v7105
        %7124 = vmatprep.subr.bf16.mxu0 0
        %7125 = vmatpush1.bf16.msra.mxu0 %v7106
        %7126 = vmatprep.subr.bf16.mxu0 0
        %7127 = vmatpush1.bf16.msra.mxu0 %v7107
        %7128 = vmatprep.subr.bf16.mxu0 0
        %7129 = vmatpush1.bf16.msra.mxu0 %v7108
        %7130 = vmatprep.subr.bf16.mxu0 0
        %7131 = vmatpush1.bf16.msra.mxu0 %v7109
        %7132 = vmatprep.subr.bf16.mxu0 0
        %7133 = vmatpush1.bf16.msra.mxu0 %v7110
        %7134 = vmatprep.subr.bf16.mxu0 0
        %7135 = vmatpush1.bf16.msra.mxu0 %v7111
        %7136 = vmatprep.subr.bf16.mxu0 0
        %7137 = vmatpush1.bf16.msra.mxu0 0
        %7138 = vmatprep.subr.bf16.mxu0 0
        %7139 = vmatpush1.bf16.msra.mxu0 0
        %7140 = vmatprep.subr.bf16.mxu0 0
        %7141 = vmatpush1.bf16.msra.mxu0 0
        %7142 = vmatprep.subr.bf16.mxu0 0
        %7143 = vmatpush1.bf16.msra.mxu0 0
        %7144 = vmatprep.subr.bf16.mxu0 0
        %7145 = vmatpush1.bf16.msra.mxu0 0
        %7146 = vmatprep.subr.bf16.mxu0 0
        %7147 = vmatpush1.bf16.msra.mxu0 0
        %7148 = vmatprep.subr.bf16.mxu0 0
        %7149 = vmatpush1.bf16.msra.mxu0 0
        %7150 = vmatprep.subr.bf16.mxu0 0
        %7151 = vmatpush1.bf16.msra.mxu0 0
        %7152 = vmatprep.mubr.bf16.mxu0 0
        %7153 = vmatmul.mubr.bf16.gmra.mrb[0].mxu0 %v6843
        %v7154 = vpop.f32.mrb[0].mxu0
        %v7155 = vadd.f32 0.0, %v7154
        %v7156 = vpop.f32.mrb[0].mxu0
        %v7157 = vpop.f32.mrb[0].mxu0
        %v7158 = vpop.f32.mrb[0].mxu0
        %7159 = vdwg.mxu0
        %v7160 = vrot.slane %v7155, 1
        %v7161 = vsel %vm6251, 0.0, %v7160
        %v7162 = vadd.f32 %v7050, %v7161
        %v7163 = vld [vmem:[%s9] sm:$0x3]
        %v7164 = vlaneseq
        %v7165 = vshrl.u32 %v7164, 7
        %v7166 = vsub.s32 0, %v7165
        %v7167 = vrot.slane %v7163, %v7166
        %v7168 = vmul.f32 %v7162, %v7167
        %v7169 = vlaneseq
        %v7170 = vshrl.u32 %v7169, 7
        %v7171 = vsub.s32 1, %v7170
        %v7172 = vrot.slane %v7163, %v7171
        %v7173 = vadd.f32 %v7168, %v7172
        %vm7174 = vcmp.gt.f32.partialorder %v7173, 0.0
        %v7175 = vmul.f32 %v7173, 0.2
        %v7176 = vsel %vm7174, %v7173, %v7175
        %v7177 = vpack.c.bf16 %v7176, %v7176
        %v7178 = vld [vmem:[%s1] sm:$0xf]
        %v7179 = vld [vmem:[%s1 + $0x4] sm:$0xf]
        %v7182 = vunpack.c.l.b16 %v7178
        %v7183 = vunpack.c.l.b16 %v7179
        %v7184 = vpack.c.b16 %v7183, %v7182
        %vm7185 = vcmask 64512
        %v7187 = vsel %vm7185, %v7184, 0
        %vm7189 = vcmask 1043456
        %v7191 = vsel %vm7189, %v7177, 0
        %7193 = vmatprep.subr.bf16.mxu0 0
        %7194 = vmatpush1.bf16.msra.mxu0 %v7191
        %7195 = vmatprep.subr.bf16.mxu0 0
        %7196 = vmatpush1.bf16.msra.mxu0 0
        %7197 = vmatprep.subr.bf16.mxu0 0
        %7198 = vmatpush1.bf16.msra.mxu0 0
        %7199 = vmatprep.subr.bf16.mxu0 0
        %7200 = vmatpush1.bf16.msra.mxu0 0
        %7201 = vmatprep.subr.bf16.mxu0 0
        %7202 = vmatpush1.bf16.msra.mxu0 0
        %7203 = vmatprep.subr.bf16.mxu0 0
        %7204 = vmatpush1.bf16.msra.mxu0 0
        %7205 = vmatprep.subr.bf16.mxu0 0
        %7206 = vmatpush1.bf16.msra.mxu0 0
        %7207 = vmatprep.subr.bf16.mxu0 0
        %7208 = vmatpush1.bf16.msra.mxu0 0
        %7209 = vmatprep.subr.bf16.mxu0 0
        %7210 = vmatpush1.bf16.msra.mxu0 0
        %7211 = vmatprep.subr.bf16.mxu0 0
        %7212 = vmatpush1.bf16.msra.mxu0 0
        %7213 = vmatprep.subr.bf16.mxu0 0
        %7214 = vmatpush1.bf16.msra.mxu0 0
        %7215 = vmatprep.subr.bf16.mxu0 0
        %7216 = vmatpush1.bf16.msra.mxu0 0
        %7217 = vmatprep.subr.bf16.mxu0 0
        %7218 = vmatpush1.bf16.msra.mxu0 0
        %7219 = vmatprep.subr.bf16.mxu0 0
        %7220 = vmatpush1.bf16.msra.mxu0 0
        %7221 = vmatprep.subr.bf16.mxu0 0
        %7222 = vmatpush1.bf16.msra.mxu0 0
        %7223 = vmatprep.subr.bf16.mxu0 0
        %7224 = vmatpush1.bf16.msra.mxu0 0
        %7225 = vmatprep.mubr.bf16.mxu0 0
        %7226 = vmatmul.mubr.bf16.gmra.mrb[0].mxu0 %v7187
        %v7227 = vpop.f32.mrb[0].mxu0
        %v7228 = vadd.f32 %v5708, %v7227
        %v7229 = vpop.f32.mrb[0].mxu0
        %v7230 = vpop.f32.mrb[0].mxu0
        %v7231 = vadd.f32 %v5709, %v7230
        %v7232 = vpop.f32.mrb[0].mxu0
        %7233 = vdwg.mxu0
        %v7234 = vpack.c.bf16 %v7231, %v7228
        %s7235 = scalar_lea.vmem [#allocation7], 256
        %v7236 = vld [vmem:[%s7235] sm:$0xf]
        %v7237 = vld [vmem:[%s7235 + $0x4] sm:$0xf]
        %v7238 = vld [vmem:[%s7235 + $0x8] sm:$0xf]
        %v7239 = vld [vmem:[%s7235 + $0xc] sm:$0xf]
        %v7240 = vld [vmem:[%s7235 + $0x10] sm:$0xf]
        %v7241 = vld [vmem:[%s7235 + $0x14] sm:$0xf]
        %v7242 = vld [vmem:[%s7235 + $0x18] sm:$0xf]
        %v7243 = vld [vmem:[%s7235 + $0x1c] sm:$0xf]
        %v7244 = vld [vmem:[%s7235 + $0x20] sm:$0xf]
        %v7245 = vld [vmem:[%s7235 + $0x24] sm:$0xf]
        %v7246 = vld [vmem:[%s7235 + $0x28] sm:$0xf]
        %v7247 = vld [vmem:[%s7235 + $0x2c] sm:$0xf]
        %v7248 = vld [vmem:[%s7235 + $0x30] sm:$0xf]
        %v7249 = vld [vmem:[%s7235 + $0x34] sm:$0xf]
        %v7250 = vld [vmem:[%s7235 + $0x38] sm:$0xf]
        %v7251 = vld [vmem:[%s7235 + $0x3c] sm:$0xf]
        %s7252 = scalar_lea.vmem [#allocation7], 192
        %v7253 = vld [vmem:[%s7252] sm:$0xf]
        %v7254 = vld [vmem:[%s7252 + $0x4] sm:$0xf]
        %v7255 = vld [vmem:[%s7252 + $0x8] sm:$0xf]
        %v7256 = vld [vmem:[%s7252 + $0xc] sm:$0xf]
        %v7257 = vld [vmem:[%s7252 + $0x10] sm:$0xf]
        %v7258 = vld [vmem:[%s7252 + $0x14] sm:$0xf]
        %v7259 = vld [vmem:[%s7252 + $0x18] sm:$0xf]
        %v7260 = vld [vmem:[%s7252 + $0x1c] sm:$0xf]
        %v7261 = vld [vmem:[%s7252 + $0x20] sm:$0xf]
        %v7262 = vld [vmem:[%s7252 + $0x24] sm:$0xf]
        %v7263 = vld [vmem:[%s7252 + $0x28] sm:$0xf]
        %v7264 = vld [vmem:[%s7252 + $0x2c] sm:$0xf]
        %v7265 = vld [vmem:[%s7252 + $0x30] sm:$0xf]
        %v7266 = vld [vmem:[%s7252 + $0x34] sm:$0xf]
        %v7267 = vld [vmem:[%s7252 + $0x38] sm:$0xf]
        %v7268 = vld [vmem:[%s7252 + $0x3c] sm:$0xf]
        %v7285 = vunpack.c.l.b16 %v7253
        %v7286 = vunpack.c.l.b16 %v7254
        %v7287 = vunpack.c.l.b16 %v7255
        %v7288 = vunpack.c.l.b16 %v7256
        %v7289 = vunpack.c.l.b16 %v7257
        %v7290 = vunpack.c.l.b16 %v7258
        %v7291 = vunpack.c.l.b16 %v7259
        %v7292 = vunpack.c.l.b16 %v7260
        %v7293 = vunpack.c.l.b16 %v7261
        %v7294 = vunpack.c.l.b16 %v7262
        %v7295 = vunpack.c.l.b16 %v7263
        %v7296 = vunpack.c.l.b16 %v7264
        %v7297 = vunpack.c.l.b16 %v7265
        %v7298 = vunpack.c.l.b16 %v7266
        %v7299 = vunpack.c.l.b16 %v7267
        %v7300 = vunpack.c.l.b16 %v7268
        %v7301 = vpack.c.b16 %v7286, %v7285
        %v7302 = vpack.c.b16 %v7288, %v7287
        %v7303 = vpack.c.b16 %v7290, %v7289
        %v7304 = vpack.c.b16 %v7292, %v7291
        %v7305 = vpack.c.b16 %v7294, %v7293
        %v7306 = vpack.c.b16 %v7296, %v7295
        %v7307 = vpack.c.b16 %v7298, %v7297
        %v7308 = vpack.c.b16 %v7300, %v7299
        %7317 = vmatprep.subr.bf16.mxu0 0
        %7318 = vmatpush1.bf16.msra.mxu0 %v7301
        %7319 = vmatprep.subr.bf16.mxu0 0
        %7320 = vmatpush1.bf16.msra.mxu0 %v7302
        %7321 = vmatprep.subr.bf16.mxu0 0
        %7322 = vmatpush1.bf16.msra.mxu0 %v7303
        %7323 = vmatprep.subr.bf16.mxu0 0
        %7324 = vmatpush1.bf16.msra.mxu0 %v7304
        %7325 = vmatprep.subr.bf16.mxu0 0
        %7326 = vmatpush1.bf16.msra.mxu0 %v7305
        %7327 = vmatprep.subr.bf16.mxu0 0
        %7328 = vmatpush1.bf16.msra.mxu0 %v7306
        %7329 = vmatprep.subr.bf16.mxu0 0
        %7330 = vmatpush1.bf16.msra.mxu0 %v7307
        %7331 = vmatprep.subr.bf16.mxu0 0
        %7332 = vmatpush1.bf16.msra.mxu0 %v7308
        %7333 = vmatprep.subr.bf16.mxu0 0
        %7334 = vmatpush1.bf16.msra.mxu0 0
        %7335 = vmatprep.subr.bf16.mxu0 0
        %7336 = vmatpush1.bf16.msra.mxu0 0
        %7337 = vmatprep.subr.bf16.mxu0 0
        %7338 = vmatpush1.bf16.msra.mxu0 0
        %7339 = vmatprep.subr.bf16.mxu0 0
        %7340 = vmatpush1.bf16.msra.mxu0 0
        %7341 = vmatprep.subr.bf16.mxu0 0
        %7342 = vmatpush1.bf16.msra.mxu0 0
        %7343 = vmatprep.subr.bf16.mxu0 0
        %7344 = vmatpush1.bf16.msra.mxu0 0
        %7345 = vmatprep.subr.bf16.mxu0 0
        %7346 = vmatpush1.bf16.msra.mxu0 0
        %7347 = vmatprep.subr.bf16.mxu0 0
        %7348 = vmatpush1.bf16.msra.mxu0 0
        %7349 = vmatprep.mubr.bf16.mxu0 0
        %7350 = vmatmul.mubr.bf16.gmra.mrb[0].mxu0 %v7234
        %v7351 = vpop.f32.mrb[0].mxu0
        %v7352 = vadd.f32 0.0, %v7351
        %v7353 = vpop.f32.mrb[0].mxu0
        %v7354 = vpop.f32.mrb[0].mxu0
        %v7355 = vadd.f32 0.0, %v7354
        %v7356 = vpop.f32.mrb[0].mxu0
        %7357 = vdwg.mxu0
        %v7358 = vrot.slane %v7352, 7
        %v7359 = vrot.slane %v7355, 7
        %v7360 = vsel %vm931, %v7358, %v7359
        %v7361 = vsel %vm931, %v7359, %v7358
        %v7362 = vsel %vm5561, 0.0, %v7361
        %v7363 = vsel %vm5562, 0.0, %v7360
        %v7380 = vunpack.c.l.b16 %v7236
        %v7381 = vunpack.c.l.b16 %v7237
        %v7382 = vunpack.c.l.b16 %v7238
        %v7383 = vunpack.c.l.b16 %v7239
        %v7384 = vunpack.c.l.b16 %v7240
        %v7385 = vunpack.c.l.b16 %v7241
        %v7386 = vunpack.c.l.b16 %v7242
        %v7387 = vunpack.c.l.b16 %v7243
        %v7388 = vunpack.c.l.b16 %v7244
        %v7389 = vunpack.c.l.b16 %v7245
        %v7390 = vunpack.c.l.b16 %v7246
        %v7391 = vunpack.c.l.b16 %v7247
        %v7392 = vunpack.c.l.b16 %v7248
        %v7393 = vunpack.c.l.b16 %v7249
        %v7394 = vunpack.c.l.b16 %v7250
        %v7395 = vunpack.c.l.b16 %v7251
        %v7396 = vpack.c.b16 %v7381, %v7380
        %v7397 = vpack.c.b16 %v7383, %v7382
        %v7398 = vpack.c.b16 %v7385, %v7384
        %v7399 = vpack.c.b16 %v7387, %v7386
        %v7400 = vpack.c.b16 %v7389, %v7388
        %v7401 = vpack.c.b16 %v7391, %v7390
        %v7402 = vpack.c.b16 %v7393, %v7392
        %v7403 = vpack.c.b16 %v7395, %v7394
        %7412 = vmatprep.subr.bf16.mxu0 0
        %7413 = vmatpush1.bf16.msra.mxu0 %v7396
        %7414 = vmatprep.subr.bf16.mxu0 0
        %7415 = vmatpush1.bf16.msra.mxu0 %v7397
        %7416 = vmatprep.subr.bf16.mxu0 0
        %7417 = vmatpush1.bf16.msra.mxu0 %v7398
        %7418 = vmatprep.subr.bf16.mxu0 0
        %7419 = vmatpush1.bf16.msra.mxu0 %v7399
        %7420 = vmatprep.subr.bf16.mxu0 0
        %7421 = vmatpush1.bf16.msra.mxu0 %v7400
        %7422 = vmatprep.subr.bf16.mxu0 0
        %7423 = vmatpush1.bf16.msra.mxu0 %v7401
        %7424 = vmatprep.subr.bf16.mxu0 0
        %7425 = vmatpush1.bf16.msra.mxu0 %v7402
        %7426 = vmatprep.subr.bf16.mxu0 0
        %7427 = vmatpush1.bf16.msra.mxu0 %v7403
        %7428 = vmatprep.subr.bf16.mxu0 0
        %7429 = vmatpush1.bf16.msra.mxu0 0
        %7430 = vmatprep.subr.bf16.mxu0 0
        %7431 = vmatpush1.bf16.msra.mxu0 0
        %7432 = vmatprep.subr.bf16.mxu0 0
        %7433 = vmatpush1.bf16.msra.mxu0 0
        %7434 = vmatprep.subr.bf16.mxu0 0
        %7435 = vmatpush1.bf16.msra.mxu0 0
        %7436 = vmatprep.subr.bf16.mxu0 0
        %7437 = vmatpush1.bf16.msra.mxu0 0
        %7438 = vmatprep.subr.bf16.mxu0 0
        %7439 = vmatpush1.bf16.msra.mxu0 0
        %7440 = vmatprep.subr.bf16.mxu0 0
        %7441 = vmatpush1.bf16.msra.mxu0 0
        %7442 = vmatprep.subr.bf16.mxu0 0
        %7443 = vmatpush1.bf16.msra.mxu0 0
        %7444 = vmatprep.mubr.bf16.mxu0 0
        %7445 = vmatmul.mubr.bf16.gmra.mrb[0].mxu0 %v7234
        %v7446 = vpop.f32.mrb[0].mxu0
        %v7447 = vadd.f32 %v7362, %v7446
        %v7448 = vpop.f32.mrb[0].mxu0
        %v7449 = vpop.f32.mrb[0].mxu0
        %v7450 = vadd.f32 %v7363, %v7449
        %v7451 = vpop.f32.mrb[0].mxu0
        %7452 = vdwg.mxu0
        %s7453 = scalar_lea.vmem [#allocation7], 320
        %v7454 = vld [vmem:[%s7453] sm:$0xf]
        %v7455 = vld [vmem:[%s7453 + $0x4] sm:$0xf]
        %v7456 = vld [vmem:[%s7453 + $0x8] sm:$0xf]
        %v7457 = vld [vmem:[%s7453 + $0xc] sm:$0xf]
        %v7458 = vld [vmem:[%s7453 + $0x10] sm:$0xf]
        %v7459 = vld [vmem:[%s7453 + $0x14] sm:$0xf]
        %v7460 = vld [vmem:[%s7453 + $0x18] sm:$0xf]
        %v7461 = vld [vmem:[%s7453 + $0x1c] sm:$0xf]
        %v7462 = vld [vmem:[%s7453 + $0x20] sm:$0xf]
        %v7463 = vld [vmem:[%s7453 + $0x24] sm:$0xf]
        %v7464 = vld [vmem:[%s7453 + $0x28] sm:$0xf]
        %v7465 = vld [vmem:[%s7453 + $0x2c] sm:$0xf]
        %v7466 = vld [vmem:[%s7453 + $0x30] sm:$0xf]
        %v7467 = vld [vmem:[%s7453 + $0x34] sm:$0xf]
        %v7468 = vld [vmem:[%s7453 + $0x38] sm:$0xf]
        %v7469 = vld [vmem:[%s7453 + $0x3c] sm:$0xf]
        %v7486 = vunpack.c.l.b16 %v7454
        %v7487 = vunpack.c.l.b16 %v7455
        %v7488 = vunpack.c.l.b16 %v7456
        %v7489 = vunpack.c.l.b16 %v7457
        %v7490 = vunpack.c.l.b16 %v7458
        %v7491 = vunpack.c.l.b16 %v7459
        %v7492 = vunpack.c.l.b16 %v7460
        %v7493 = vunpack.c.l.b16 %v7461
        %v7494 = vunpack.c.l.b16 %v7462
        %v7495 = vunpack.c.l.b16 %v7463
        %v7496 = vunpack.c.l.b16 %v7464
        %v7497 = vunpack.c.l.b16 %v7465
        %v7498 = vunpack.c.l.b16 %v7466
        %v7499 = vunpack.c.l.b16 %v7467
        %v7500 = vunpack.c.l.b16 %v7468
        %v7501 = vunpack.c.l.b16 %v7469
        %v7502 = vpack.c.b16 %v7487, %v7486
        %v7503 = vpack.c.b16 %v7489, %v7488
        %v7504 = vpack.c.b16 %v7491, %v7490
        %v7505 = vpack.c.b16 %v7493, %v7492
        %v7506 = vpack.c.b16 %v7495, %v7494
        %v7507 = vpack.c.b16 %v7497, %v7496
        %v7508 = vpack.c.b16 %v7499, %v7498
        %v7509 = vpack.c.b16 %v7501, %v7500
        %7518 = vmatprep.subr.bf16.mxu0 0
        %7519 = vmatpush1.bf16.msra.mxu0 %v7502
        %7520 = vmatprep.subr.bf16.mxu0 0
        %7521 = vmatpush1.bf16.msra.mxu0 %v7503
        %7522 = vmatprep.subr.bf16.mxu0 0
        %7523 = vmatpush1.bf16.msra.mxu0 %v7504
        %7524 = vmatprep.subr.bf16.mxu0 0
        %7525 = vmatpush1.bf16.msra.mxu0 %v7505
        %7526 = vmatprep.subr.bf16.mxu0 0
        %7527 = vmatpush1.bf16.msra.mxu0 %v7506
        %7528 = vmatprep.subr.bf16.mxu0 0
        %7529 = vmatpush1.bf16.msra.mxu0 %v7507
        %7530 = vmatprep.subr.bf16.mxu0 0
        %7531 = vmatpush1.bf16.msra.mxu0 %v7508
        %7532 = vmatprep.subr.bf16.mxu0 0
        %7533 = vmatpush1.bf16.msra.mxu0 %v7509
        %7534 = vmatprep.subr.bf16.mxu0 0
        %7535 = vmatpush1.bf16.msra.mxu0 0
        %7536 = vmatprep.subr.bf16.mxu0 0
        %7537 = vmatpush1.bf16.msra.mxu0 0
        %7538 = vmatprep.subr.bf16.mxu0 0
        %7539 = vmatpush1.bf16.msra.mxu0 0
        %7540 = vmatprep.subr.bf16.mxu0 0
        %7541 = vmatpush1.bf16.msra.mxu0 0
        %7542 = vmatprep.subr.bf16.mxu0 0
        %7543 = vmatpush1.bf16.msra.mxu0 0
        %7544 = vmatprep.subr.bf16.mxu0 0
        %7545 = vmatpush1.bf16.msra.mxu0 0
        %7546 = vmatprep.subr.bf16.mxu0 0
        %7547 = vmatpush1.bf16.msra.mxu0 0
        %7548 = vmatprep.subr.bf16.mxu0 0
        %7549 = vmatpush1.bf16.msra.mxu0 0
        %7550 = vmatprep.mubr.bf16.mxu0 0
        %7551 = vmatmul.mubr.bf16.gmra.mrb[0].mxu0 %v7234
        %v7552 = vpop.f32.mrb[0].mxu0
        %v7553 = vadd.f32 0.0, %v7552
        %v7554 = vpop.f32.mrb[0].mxu0
        %v7555 = vpop.f32.mrb[0].mxu0
        %v7556 = vadd.f32 0.0, %v7555
        %v7557 = vpop.f32.mrb[0].mxu0
        %7558 = vdwg.mxu0
        %v7559 = vrot.slane %v7553, 1
        %v7560 = vrot.slane %v7556, 1
        %v7561 = vsel %vm1542, %v7559, %v7560
        %v7562 = vsel %vm1542, %v7560, %v7559
        %v7563 = vsel %vm5681, 0.0, %v7561
        %v7564 = vsel %vm5682, 0.0, %v7562
        %v7565 = vadd.f32 %v7447, %v7563
        %v7566 = vadd.f32 %v7450, %v7564
        %s7567 = scalar_lea.vmem %s9, 2
        %v7568 = vld [vmem:[%s7567] sm:$0x3]
        %v7569 = vlaneseq
        %v7570 = vshrl.u32 %v7569, 7
        %v7571 = vsub.s32 0, %v7570
        %v7572 = vrot.slane %v7568, %v7571
        %v7573 = vmul.f32 %v7565, %v7572
        %v7574 = vmul.f32 %v7566, %v7572
        %v7575 = vlaneseq
        %v7576 = vshrl.u32 %v7575, 7
        %v7577 = vsub.s32 1, %v7576
        %v7578 = vrot.slane %v7568, %v7577
        %v7579 = vadd.f32 %v7573, %v7578
        %v7580 = vadd.f32 %v7574, %v7578
        %vm7581 = vcmp.gt.f32.partialorder %v7579, 0.0
        %vm7582 = vcmp.gt.f32.partialorder %v7580, 0.0
        %v7583 = vmul.f32 %v7579, 0.2
        %v7584 = vmul.f32 %v7580, 0.2
        %v7585 = vsel %vm7581, %v7579, %v7583
        %v7586 = vsel %vm7582, %v7580, %v7584
        %v7587 = vpack.c.bf16 %v7586, %v7585
        %v7588 = vld [vmem:[%s1] sm:$0xf]
        %v7589 = vld [vmem:[%s1 + $0x4] sm:$0xf]
        %v7590 = vld [vmem:[%s1 + $0x8] sm:$0xf]
        %v7591 = vld [vmem:[%s1 + $0xc] sm:$0xf]
        %v7596 = vunpack.c.l.b16 %v7588
        %v7597 = vunpack.c.l.b16 %v7589
        %v7598 = vunpack.c.l.b16 %v7590
        %v7599 = vunpack.c.l.b16 %v7591
        %v7600 = vpack.c.b16 %v7597, %v7596
        %v7601 = vpack.c.b16 %v7599, %v7598
        %vm7602 = vcmask 130048
        %v7604 = vsel %vm7602, %v7600, 0
        %v7607 = vsel %vm7602, %v7601, 0
        %7609 = vmatprep.subr.bf16.mxu0 0
        %7610 = vmatpush1.bf16.msra.mxu0 %v7587
        %7611 = vmatprep.subr.bf16.mxu0 0
        %7612 = vmatpush1.bf16.msra.mxu0 0
        %7613 = vmatprep.subr.bf16.mxu0 0
        %7614 = vmatpush1.bf16.msra.mxu0 0
        %7615 = vmatprep.subr.bf16.mxu0 0
        %7616 = vmatpush1.bf16.msra.mxu0 0
        %7617 = vmatprep.subr.bf16.mxu0 0
        %7618 = vmatpush1.bf16.msra.mxu0 0
        %7619 = vmatprep.subr.bf16.mxu0 0
        %7620 = vmatpush1.bf16.msra.mxu0 0
        %7621 = vmatprep.subr.bf16.mxu0 0
        %7622 = vmatpush1.bf16.msra.mxu0 0
        %7623 = vmatprep.subr.bf16.mxu0 0
        %7624 = vmatpush1.bf16.msra.mxu0 0
        %7625 = vmatprep.subr.bf16.mxu0 0
        %7626 = vmatpush1.bf16.msra.mxu0 0
        %7627 = vmatprep.subr.bf16.mxu0 0
        %7628 = vmatpush1.bf16.msra.mxu0 0
        %7629 = vmatprep.subr.bf16.mxu0 0
        %7630 = vmatpush1.bf16.msra.mxu0 0
        %7631 = vmatprep.subr.bf16.mxu0 0
        %7632 = vmatpush1.bf16.msra.mxu0 0
        %7633 = vmatprep.subr.bf16.mxu0 0
        %7634 = vmatpush1.bf16.msra.mxu0 0
        %7635 = vmatprep.subr.bf16.mxu0 0
        %7636 = vmatpush1.bf16.msra.mxu0 0
        %7637 = vmatprep.subr.bf16.mxu0 0
        %7638 = vmatpush1.bf16.msra.mxu0 0
        %7639 = vmatprep.subr.bf16.mxu0 0
        %7640 = vmatpush1.bf16.msra.mxu0 0
        %7641 = vmatprep.mubr.bf16.mxu0 0
        %7642 = vmatmul.mubr.bf16.gmra.mrb[0].mxu0 %v7604
        %v7643 = vpop.f32.mrb[0].mxu0
        %v7644 = vadd.f32 %v5011, %v7643
        %v7645 = vpop.f32.mrb[0].mxu0
        %v7646 = vpop.f32.mrb[0].mxu0
        %v7647 = vadd.f32 %v5012, %v7646
        %v7648 = vpop.f32.mrb[0].mxu0
        %7649 = vmatprep.mubr.bf16.mxu0 0
        %7650 = vmatmul.mubr.bf16.gmra.mrb[0].mxu0 %v7607
        %v7651 = vpop.f32.mrb[0].mxu0
        %v7652 = vadd.f32 %v5013, %v7651
        %v7653 = vpop.f32.mrb[0].mxu0
        %v7654 = vpop.f32.mrb[0].mxu0
        %v7655 = vadd.f32 %v5014, %v7654
        %v7656 = vpop.f32.mrb[0].mxu0
        %7657 = vdwg.mxu0
        %v7658 = vpack.c.bf16 %v7647, %v7644
        %v7659 = vpack.c.bf16 %v7655, %v7652
        %s7660 = scalar_lea.vmem [#allocation7], 448
        %v7661 = vld [vmem:[%s7660] sm:$0xf]
        %v7662 = vld [vmem:[%s7660 + $0x4] sm:$0xf]
        %v7663 = vld [vmem:[%s7660 + $0x8] sm:$0xf]
        %v7664 = vld [vmem:[%s7660 + $0xc] sm:$0xf]
        %v7665 = vld [vmem:[%s7660 + $0x10] sm:$0xf]
        %v7666 = vld [vmem:[%s7660 + $0x14] sm:$0xf]
        %v7667 = vld [vmem:[%s7660 + $0x18] sm:$0xf]
        %v7668 = vld [vmem:[%s7660 + $0x1c] sm:$0xf]
        %v7669 = vld [vmem:[%s7660 + $0x20] sm:$0xf]
        %v7670 = vld [vmem:[%s7660 + $0x24] sm:$0xf]
        %v7671 = vld [vmem:[%s7660 + $0x28] sm:$0xf]
        %v7672 = vld [vmem:[%s7660 + $0x2c] sm:$0xf]
        %v7673 = vld [vmem:[%s7660 + $0x30] sm:$0xf]
        %v7674 = vld [vmem:[%s7660 + $0x34] sm:$0xf]
        %v7675 = vld [vmem:[%s7660 + $0x38] sm:$0xf]
        %v7676 = vld [vmem:[%s7660 + $0x3c] sm:$0xf]
        %s7677 = scalar_lea.vmem [#allocation7], 384
        %v7678 = vld [vmem:[%s7677] sm:$0xf]
        %v7679 = vld [vmem:[%s7677 + $0x4] sm:$0xf]
        %v7680 = vld [vmem:[%s7677 + $0x8] sm:$0xf]
        %v7681 = vld [vmem:[%s7677 + $0xc] sm:$0xf]
        %v7682 = vld [vmem:[%s7677 + $0x10] sm:$0xf]
        %v7683 = vld [vmem:[%s7677 + $0x14] sm:$0xf]
        %v7684 = vld [vmem:[%s7677 + $0x18] sm:$0xf]
        %v7685 = vld [vmem:[%s7677 + $0x1c] sm:$0xf]
        %v7686 = vld [vmem:[%s7677 + $0x20] sm:$0xf]
        %v7687 = vld [vmem:[%s7677 + $0x24] sm:$0xf]
        %v7688 = vld [vmem:[%s7677 + $0x28] sm:$0xf]
        %v7689 = vld [vmem:[%s7677 + $0x2c] sm:$0xf]
        %v7690 = vld [vmem:[%s7677 + $0x30] sm:$0xf]
        %v7691 = vld [vmem:[%s7677 + $0x34] sm:$0xf]
        %v7692 = vld [vmem:[%s7677 + $0x38] sm:$0xf]
        %v7693 = vld [vmem:[%s7677 + $0x3c] sm:$0xf]
        %v7710 = vunpack.c.l.b16 %v7678
        %v7711 = vunpack.c.l.b16 %v7679
        %v7712 = vunpack.c.l.b16 %v7680
        %v7713 = vunpack.c.l.b16 %v7681
        %v7714 = vunpack.c.l.b16 %v7682
        %v7715 = vunpack.c.l.b16 %v7683
        %v7716 = vunpack.c.l.b16 %v7684
        %v7717 = vunpack.c.l.b16 %v7685
        %v7718 = vunpack.c.l.b16 %v7686
        %v7719 = vunpack.c.l.b16 %v7687
        %v7720 = vunpack.c.l.b16 %v7688
        %v7721 = vunpack.c.l.b16 %v7689
        %v7722 = vunpack.c.l.b16 %v7690
        %v7723 = vunpack.c.l.b16 %v7691
        %v7724 = vunpack.c.l.b16 %v7692
        %v7725 = vunpack.c.l.b16 %v7693
        %v7726 = vpack.c.b16 %v7711, %v7710
        %v7727 = vpack.c.b16 %v7713, %v7712
        %v7728 = vpack.c.b16 %v7715, %v7714
        %v7729 = vpack.c.b16 %v7717, %v7716
        %v7730 = vpack.c.b16 %v7719, %v7718
        %v7731 = vpack.c.b16 %v7721, %v7720
        %v7732 = vpack.c.b16 %v7723, %v7722
        %v7733 = vpack.c.b16 %v7725, %v7724
        %7742 = vmatprep.subr.bf16.mxu0 0
        %7743 = vmatpush1.bf16.msra.mxu0 %v7726
        %7744 = vmatprep.subr.bf16.mxu0 0
        %7745 = vmatpush1.bf16.msra.mxu0 %v7727
        %7746 = vmatprep.subr.bf16.mxu0 0
        %7747 = vmatpush1.bf16.msra.mxu0 %v7728
        %7748 = vmatprep.subr.bf16.mxu0 0
        %7749 = vmatpush1.bf16.msra.mxu0 %v7729
        %7750 = vmatprep.subr.bf16.mxu0 0
        %7751 = vmatpush1.bf16.msra.mxu0 %v7730
        %7752 = vmatprep.subr.bf16.mxu0 0
        %7753 = vmatpush1.bf16.msra.mxu0 %v7731
        %7754 = vmatprep.subr.bf16.mxu0 0
        %7755 = vmatpush1.bf16.msra.mxu0 %v7732
        %7756 = vmatprep.subr.bf16.mxu0 0
        %7757 = vmatpush1.bf16.msra.mxu0 %v7733
        %7758 = vmatprep.subr.bf16.mxu0 0
        %7759 = vmatpush1.bf16.msra.mxu0 0
        %7760 = vmatprep.subr.bf16.mxu0 0
        %7761 = vmatpush1.bf16.msra.mxu0 0
        %7762 = vmatprep.subr.bf16.mxu0 0
        %7763 = vmatpush1.bf16.msra.mxu0 0
        %7764 = vmatprep.subr.bf16.mxu0 0
        %7765 = vmatpush1.bf16.msra.mxu0 0
        %7766 = vmatprep.subr.bf16.mxu0 0
        %7767 = vmatpush1.bf16.msra.mxu0 0
        %7768 = vmatprep.subr.bf16.mxu0 0
        %7769 = vmatpush1.bf16.msra.mxu0 0
        %7770 = vmatprep.subr.bf16.mxu0 0
        %7771 = vmatpush1.bf16.msra.mxu0 0
        %7772 = vmatprep.subr.bf16.mxu0 0
        %7773 = vmatpush1.bf16.msra.mxu0 0
        %7774 = vmatprep.mubr.bf16.mxu0 0
        %7775 = vmatmul.mubr.bf16.gmra.mrb[0].mxu0 %v7658
        %v7776 = vpop.f32.mrb[0].mxu0
        %v7777 = vadd.f32 0.0, %v7776
        %v7778 = vpop.f32.mrb[0].mxu0
        %v7779 = vpop.f32.mrb[0].mxu0
        %v7780 = vadd.f32 0.0, %v7779
        %v7781 = vpop.f32.mrb[0].mxu0
        %7782 = vmatprep.mubr.bf16.mxu0 0
        %7783 = vmatmul.mubr.bf16.gmra.mrb[0].mxu0 %v7659
        %v7784 = vpop.f32.mrb[0].mxu0
        %v7785 = vadd.f32 0.0, %v7784
        %v7786 = vpop.f32.mrb[0].mxu0
        %v7787 = vpop.f32.mrb[0].mxu0
        %v7788 = vadd.f32 0.0, %v7787
        %v7789 = vpop.f32.mrb[0].mxu0
        %7790 = vdwg.mxu0
        %v7791 = vrot.slane %v7777, 7
        %v7792 = vrot.slane %v7780, 7
        %v7793 = vrot.slane %v7785, 7
        %v7794 = vrot.slane %v7788, 7
        %v7795 = vsel %vm931, %v7793, %v7794
        %v7796 = vsel %vm931, %v7792, %v7793
        %v7797 = vsel %vm931, %v7791, %v7792
        %v7798 = vsel %vm931, %v7794, %v7791
        %v7799 = vsel %vm4825, 0.0, %v7798
        %v7800 = vsel %vm4826, 0.0, %v7797
        %v7801 = vsel %vm4827, 0.0, %v7796
        %v7802 = vsel %vm4828, 0.0, %v7795
        %v7819 = vunpack.c.l.b16 %v7661
        %v7820 = vunpack.c.l.b16 %v7662
        %v7821 = vunpack.c.l.b16 %v7663
        %v7822 = vunpack.c.l.b16 %v7664
        %v7823 = vunpack.c.l.b16 %v7665
        %v7824 = vunpack.c.l.b16 %v7666
        %v7825 = vunpack.c.l.b16 %v7667
        %v7826 = vunpack.c.l.b16 %v7668
        %v7827 = vunpack.c.l.b16 %v7669
        %v7828 = vunpack.c.l.b16 %v7670
        %v7829 = vunpack.c.l.b16 %v7671
        %v7830 = vunpack.c.l.b16 %v7672
        %v7831 = vunpack.c.l.b16 %v7673
        %v7832 = vunpack.c.l.b16 %v7674
        %v7833 = vunpack.c.l.b16 %v7675
        %v7834 = vunpack.c.l.b16 %v7676
        %v7835 = vpack.c.b16 %v7820, %v7819
        %v7836 = vpack.c.b16 %v7822, %v7821
        %v7837 = vpack.c.b16 %v7824, %v7823
        %v7838 = vpack.c.b16 %v7826, %v7825
        %v7839 = vpack.c.b16 %v7828, %v7827
        %v7840 = vpack.c.b16 %v7830, %v7829
        %v7841 = vpack.c.b16 %v7832, %v7831
        %v7842 = vpack.c.b16 %v7834, %v7833
        %7851 = vmatprep.subr.bf16.mxu0 0
        %7852 = vmatpush1.bf16.msra.mxu0 %v7835
        %7853 = vmatprep.subr.bf16.mxu0 0
        %7854 = vmatpush1.bf16.msra.mxu0 %v7836
        %7855 = vmatprep.subr.bf16.mxu0 0
        %7856 = vmatpush1.bf16.msra.mxu0 %v7837
        %7857 = vmatprep.subr.bf16.mxu0 0
        %7858 = vmatpush1.bf16.msra.mxu0 %v7838
        %7859 = vmatprep.subr.bf16.mxu0 0
        %7860 = vmatpush1.bf16.msra.mxu0 %v7839
        %7861 = vmatprep.subr.bf16.mxu0 0
        %7862 = vmatpush1.bf16.msra.mxu0 %v7840
        %7863 = vmatprep.subr.bf16.mxu0 0
        %7864 = vmatpush1.bf16.msra.mxu0 %v7841
        %7865 = vmatprep.subr.bf16.mxu0 0
        %7866 = vmatpush1.bf16.msra.mxu0 %v7842
        %7867 = vmatprep.subr.bf16.mxu0 0
        %7868 = vmatpush1.bf16.msra.mxu0 0
        %7869 = vmatprep.subr.bf16.mxu0 0
        %7870 = vmatpush1.bf16.msra.mxu0 0
        %7871 = vmatprep.subr.bf16.mxu0 0
        %7872 = vmatpush1.bf16.msra.mxu0 0
        %7873 = vmatprep.subr.bf16.mxu0 0
        %7874 = vmatpush1.bf16.msra.mxu0 0
        %7875 = vmatprep.subr.bf16.mxu0 0
        %7876 = vmatpush1.bf16.msra.mxu0 0
        %7877 = vmatprep.subr.bf16.mxu0 0
        %7878 = vmatpush1.bf16.msra.mxu0 0
        %7879 = vmatprep.subr.bf16.mxu0 0
        %7880 = vmatpush1.bf16.msra.mxu0 0
        %7881 = vmatprep.subr.bf16.mxu0 0
        %7882 = vmatpush1.bf16.msra.mxu0 0
        %7883 = vmatprep.mubr.bf16.mxu0 0
        %7884 = vmatmul.mubr.bf16.gmra.mrb[0].mxu0 %v7658
        %v7885 = vpop.f32.mrb[0].mxu0
        %v7886 = vadd.f32 %v7799, %v7885
        %v7887 = vpop.f32.mrb[0].mxu0
        %v7888 = vpop.f32.mrb[0].mxu0
        %v7889 = vadd.f32 %v7800, %v7888
        %v7890 = vpop.f32.mrb[0].mxu0
        %7891 = vmatprep.mubr.bf16.mxu0 0
        %7892 = vmatmul.mubr.bf16.gmra.mrb[0].mxu0 %v7659
        %v7893 = vpop.f32.mrb[0].mxu0
        %v7894 = vadd.f32 %v7801, %v7893
        %v7895 = vpop.f32.mrb[0].mxu0
        %v7896 = vpop.f32.mrb[0].mxu0
        %v7897 = vadd.f32 %v7802, %v7896
        %v7898 = vpop.f32.mrb[0].mxu0
        %7899 = vdwg.mxu0
        %s7900 = scalar_lea.vmem [#allocation7], 512
        %v7901 = vld [vmem:[%s7900] sm:$0xf]
        %v7902 = vld [vmem:[%s7900 + $0x4] sm:$0xf]
        %v7903 = vld [vmem:[%s7900 + $0x8] sm:$0xf]
        %v7904 = vld [vmem:[%s7900 + $0xc] sm:$0xf]
        %v7905 = vld [vmem:[%s7900 + $0x10] sm:$0xf]
        %v7906 = vld [vmem:[%s7900 + $0x14] sm:$0xf]
        %v7907 = vld [vmem:[%s7900 + $0x18] sm:$0xf]
        %v7908 = vld [vmem:[%s7900 + $0x1c] sm:$0xf]
        %v7909 = vld [vmem:[%s7900 + $0x20] sm:$0xf]
        %v7910 = vld [vmem:[%s7900 + $0x24] sm:$0xf]
        %v7911 = vld [vmem:[%s7900 + $0x28] sm:$0xf]
        %v7912 = vld [vmem:[%s7900 + $0x2c] sm:$0xf]
        %v7913 = vld [vmem:[%s7900 + $0x30] sm:$0xf]
        %v7914 = vld [vmem:[%s7900 + $0x34] sm:$0xf]
        %v7915 = vld [vmem:[%s7900 + $0x38] sm:$0xf]
        %v7916 = vld [vmem:[%s7900 + $0x3c] sm:$0xf]
        %v7933 = vunpack.c.l.b16 %v7901
        %v7934 = vunpack.c.l.b16 %v7902
        %v7935 = vunpack.c.l.b16 %v7903
        %v7936 = vunpack.c.l.b16 %v7904
        %v7937 = vunpack.c.l.b16 %v7905
        %v7938 = vunpack.c.l.b16 %v7906
        %v7939 = vunpack.c.l.b16 %v7907
        %v7940 = vunpack.c.l.b16 %v7908
        %v7941 = vunpack.c.l.b16 %v7909
        %v7942 = vunpack.c.l.b16 %v7910
        %v7943 = vunpack.c.l.b16 %v7911
        %v7944 = vunpack.c.l.b16 %v7912
        %v7945 = vunpack.c.l.b16 %v7913
        %v7946 = vunpack.c.l.b16 %v7914
        %v7947 = vunpack.c.l.b16 %v7915
        %v7948 = vunpack.c.l.b16 %v7916
        %v7949 = vpack.c.b16 %v7934, %v7933
        %v7950 = vpack.c.b16 %v7936, %v7935
        %v7951 = vpack.c.b16 %v7938, %v7937
        %v7952 = vpack.c.b16 %v7940, %v7939
        %v7953 = vpack.c.b16 %v7942, %v7941
        %v7954 = vpack.c.b16 %v7944, %v7943
        %v7955 = vpack.c.b16 %v7946, %v7945
        %v7956 = vpack.c.b16 %v7948, %v7947
        %7965 = vmatprep.subr.bf16.mxu0 0
        %7966 = vmatpush1.bf16.msra.mxu0 %v7949
        %7967 = vmatprep.subr.bf16.mxu0 0
        %7968 = vmatpush1.bf16.msra.mxu0 %v7950
        %7969 = vmatprep.subr.bf16.mxu0 0
        %7970 = vmatpush1.bf16.msra.mxu0 %v7951
        %7971 = vmatprep.subr.bf16.mxu0 0
        %7972 = vmatpush1.bf16.msra.mxu0 %v7952
        %7973 = vmatprep.subr.bf16.mxu0 0
        %7974 = vmatpush1.bf16.msra.mxu0 %v7953
        %7975 = vmatprep.subr.bf16.mxu0 0
        %7976 = vmatpush1.bf16.msra.mxu0 %v7954
        %7977 = vmatprep.subr.bf16.mxu0 0
        %7978 = vmatpush1.bf16.msra.mxu0 %v7955
        %7979 = vmatprep.subr.bf16.mxu0 0
        %7980 = vmatpush1.bf16.msra.mxu0 %v7956
        %7981 = vmatprep.subr.bf16.mxu0 0
        %7982 = vmatpush1.bf16.msra.mxu0 0
        %7983 = vmatprep.subr.bf16.mxu0 0
        %7984 = vmatpush1.bf16.msra.mxu0 0
        %7985 = vmatprep.subr.bf16.mxu0 0
        %7986 = vmatpush1.bf16.msra.mxu0 0
        %7987 = vmatprep.subr.bf16.mxu0 0
        %7988 = vmatpush1.bf16.msra.mxu0 0
        %7989 = vmatprep.subr.bf16.mxu0 0
        %7990 = vmatpush1.bf16.msra.mxu0 0
        %7991 = vmatprep.subr.bf16.mxu0 0
        %7992 = vmatpush1.bf16.msra.mxu0 0
        %7993 = vmatprep.subr.bf16.mxu0 0
        %7994 = vmatpush1.bf16.msra.mxu0 0
        %7995 = vmatprep.subr.bf16.mxu0 0
        %7996 = vmatpush1.bf16.msra.mxu0 0
        %7997 = vmatprep.mubr.bf16.mxu0 0
        %7998 = vmatmul.mubr.bf16.gmra.mrb[0].mxu0 %v7658
        %v7999 = vpop.f32.mrb[0].mxu0
        %v8000 = vadd.f32 0.0, %v7999
        %v8001 = vpop.f32.mrb[0].mxu0
        %v8002 = vpop.f32.mrb[0].mxu0
        %v8003 = vadd.f32 0.0, %v8002
        %v8004 = vpop.f32.mrb[0].mxu0
        %8005 = vmatprep.mubr.bf16.mxu0 0
        %8006 = vmatmul.mubr.bf16.gmra.mrb[0].mxu0 %v7659
        %v8007 = vpop.f32.mrb[0].mxu0
        %v8008 = vadd.f32 0.0, %v8007
        %v8009 = vpop.f32.mrb[0].mxu0
        %v8010 = vpop.f32.mrb[0].mxu0
        %v8011 = vadd.f32 0.0, %v8010
        %v8012 = vpop.f32.mrb[0].mxu0
        %8013 = vdwg.mxu0
        %v8014 = vrot.slane %v8000, 1
        %v8015 = vrot.slane %v8003, 1
        %v8016 = vrot.slane %v8008, 1
        %v8017 = vrot.slane %v8011, 1
        %v8018 = vsel %vm1542, %v8016, %v8017
        %v8019 = vsel %vm1542, %v8015, %v8016
        %v8020 = vsel %vm1542, %v8014, %v8015
        %v8021 = vsel %vm1542, %v8017, %v8014
        %v8022 = vsel %vm4967, 0.0, %v8020
        %v8023 = vsel %vm4968, 0.0, %v8019
        %v8024 = vsel %vm4969, 0.0, %v8018
        %v8025 = vsel %vm4970, 0.0, %v8021
        %v8026 = vadd.f32 %v7886, %v8022
        %v8027 = vadd.f32 %v7889, %v8023
        %v8028 = vadd.f32 %v7894, %v8024
        %v8029 = vadd.f32 %v7897, %v8025
        %s8030 = scalar_lea.vmem %s9, 4
        %v8031 = vld [vmem:[%s8030] sm:$0x3]
        %v8032 = vlaneseq
        %v8033 = vshrl.u32 %v8032, 7
        %v8034 = vsub.s32 0, %v8033
        %v8035 = vrot.slane %v8031, %v8034
        %v8036 = vmul.f32 %v8026, %v8035
        %v8037 = vmul.f32 %v8027, %v8035
        %v8038 = vmul.f32 %v8028, %v8035
        %v8039 = vmul.f32 %v8029, %v8035
        %v8040 = vlaneseq
        %v8041 = vshrl.u32 %v8040, 7
        %v8042 = vsub.s32 1, %v8041
        %v8043 = vrot.slane %v8031, %v8042
        %v8044 = vadd.f32 %v8036, %v8043
        %v8045 = vadd.f32 %v8037, %v8043
        %v8046 = vadd.f32 %v8038, %v8043
        %v8047 = vadd.f32 %v8039, %v8043
        %vm8048 = vcmp.gt.f32.partialorder %v8044, 0.0
        %vm8049 = vcmp.gt.f32.partialorder %v8045, 0.0
        %vm8050 = vcmp.gt.f32.partialorder %v8046, 0.0
        %vm8051 = vcmp.gt.f32.partialorder %v8047, 0.0
        %v8052 = vmul.f32 %v8044, 0.2
        %v8053 = vmul.f32 %v8045, 0.2
        %v8054 = vmul.f32 %v8046, 0.2
        %v8055 = vmul.f32 %v8047, 0.2
        %v8056 = vsel %vm8048, %v8044, %v8052
        %v8057 = vsel %vm8049, %v8045, %v8053
        %v8058 = vsel %vm8050, %v8046, %v8054
        %v8059 = vsel %vm8051, %v8047, %v8055
        %v8060 = vpack.c.bf16 %v8057, %v8056
        %v8061 = vpack.c.bf16 %v8059, %v8058
        %v8062 = vld [vmem:[%s1] sm:$0xf]
        %v8063 = vld [vmem:[%s1 + $0x4] sm:$0xf]
        %v8064 = vld [vmem:[%s1 + $0x8] sm:$0xf]
        %v8065 = vld [vmem:[%s1 + $0xc] sm:$0xf]
        %v8066 = vld [vmem:[%s1 + $0x10] sm:$0xf]
        %v8067 = vld [vmem:[%s1 + $0x14] sm:$0xf]
        %v8068 = vld [vmem:[%s1 + $0x18] sm:$0xf]
        %v8069 = vld [vmem:[%s1 + $0x1c] sm:$0xf]
        %v8078 = vunpack.c.l.b16 %v8062
        %v8079 = vunpack.c.l.b16 %v8063
        %v8080 = vunpack.c.l.b16 %v8064
        %v8081 = vunpack.c.l.b16 %v8065
        %v8082 = vunpack.c.l.b16 %v8066
        %v8083 = vunpack.c.l.b16 %v8067
        %v8084 = vunpack.c.l.b16 %v8068
        %v8085 = vunpack.c.l.b16 %v8069
        %v8086 = vpack.c.b16 %v8079, %v8078
        %v8087 = vpack.c.b16 %v8081, %v8080
        %v8088 = vpack.c.b16 %v8083, %v8082
        %v8089 = vpack.c.b16 %v8085, %v8084
        %vm8090 = vcmask 261120
        %v8092 = vsel %vm8090, %v8086, 0
        %v8095 = vsel %vm8090, %v8087, 0
        %v8098 = vsel %vm8090, %v8088, 0
        %v8101 = vsel %vm8090, %v8089, 0
        %8103 = vmatprep.subr.bf16.mxu0 0
        %8104 = vmatpush1.bf16.msra.mxu0 %v8060
        %8105 = vmatprep.subr.bf16.mxu0 0
        %8106 = vmatpush1.bf16.msra.mxu0 %v8061
        %8107 = vmatprep.subr.bf16.mxu0 0
        %8108 = vmatpush1.bf16.msra.mxu0 0
        %8109 = vmatprep.subr.bf16.mxu0 0
        %8110 = vmatpush1.bf16.msra.mxu0 0
        %8111 = vmatprep.subr.bf16.mxu0 0
        %8112 = vmatpush1.bf16.msra.mxu0 0
        %8113 = vmatprep.subr.bf16.mxu0 0
        %8114 = vmatpush1.bf16.msra.mxu0 0
        %8115 = vmatprep.subr.bf16.mxu0 0
        %8116 = vmatpush1.bf16.msra.mxu0 0
        %8117 = vmatprep.subr.bf16.mxu0 0
        %8118 = vmatpush1.bf16.msra.mxu0 0
        %8119 = vmatprep.subr.bf16.mxu0 0
        %8120 = vmatpush1.bf16.msra.mxu0 0
        %8121 = vmatprep.subr.bf16.mxu0 0
        %8122 = vmatpush1.bf16.msra.mxu0 0
        %8123 = vmatprep.subr.bf16.mxu0 0
        %8124 = vmatpush1.bf16.msra.mxu0 0
        %8125 = vmatprep.subr.bf16.mxu0 0
        %8126 = vmatpush1.bf16.msra.mxu0 0
        %8127 = vmatprep.subr.bf16.mxu0 0
        %8128 = vmatpush1.bf16.msra.mxu0 0
        %8129 = vmatprep.subr.bf16.mxu0 0
        %8130 = vmatpush1.bf16.msra.mxu0 0
        %8131 = vmatprep.subr.bf16.mxu0 0
        %8132 = vmatpush1.bf16.msra.mxu0 0
        %8133 = vmatprep.subr.bf16.mxu0 0
        %8134 = vmatpush1.bf16.msra.mxu0 0
        %8135 = vmatprep.mubr.bf16.mxu0 0
        %8136 = vmatmul.mubr.bf16.gmra.mrb[0].mxu0 %v8092
        %v8137 = vpop.f32.mrb[0].mxu0
        %v8138 = vadd.f32 %v4019, %v8137
        %v8139 = vpop.f32.mrb[0].mxu0
        %v8140 = vpop.f32.mrb[0].mxu0
        %v8141 = vadd.f32 %v4020, %v8140
        %v8142 = vpop.f32.mrb[0].mxu0
        %8143 = vmatprep.mubr.bf16.mxu0 0
        %8144 = vmatmul.mubr.bf16.gmra.mrb[0].mxu0 %v8095
        %v8145 = vpop.f32.mrb[0].mxu0
        %v8146 = vadd.f32 %v4021, %v8145
        %v8147 = vpop.f32.mrb[0].mxu0
        %v8148 = vpop.f32.mrb[0].mxu0
        %v8149 = vadd.f32 %v4022, %v8148
        %v8150 = vpop.f32.mrb[0].mxu0
        %8151 = vmatprep.mubr.bf16.mxu0 0
        %8152 = vmatmul.mubr.bf16.gmra.mrb[0].mxu0 %v8098
        %v8153 = vpop.f32.mrb[0].mxu0
        %v8154 = vadd.f32 %v4023, %v8153
        %v8155 = vpop.f32.mrb[0].mxu0
        %v8156 = vpop.f32.mrb[0].mxu0
        %v8157 = vadd.f32 %v4024, %v8156
        %v8158 = vpop.f32.mrb[0].mxu0
        %8159 = vmatprep.mubr.bf16.mxu0 0
        %8160 = vmatmul.mubr.bf16.gmra.mrb[0].mxu0 %v8101
        %v8161 = vpop.f32.mrb[0].mxu0
        %v8162 = vadd.f32 %v4025, %v8161
        %v8163 = vpop.f32.mrb[0].mxu0
        %v8164 = vpop.f32.mrb[0].mxu0
        %v8165 = vadd.f32 %v4026, %v8164
        %v8166 = vpop.f32.mrb[0].mxu0
        %8167 = vdwg.mxu0
        %v8168 = vpack.c.bf16 %v8141, %v8138
        %v8169 = vpack.c.bf16 %v8149, %v8146
        %v8170 = vpack.c.bf16 %v8157, %v8154
        %v8171 = vpack.c.bf16 %v8165, %v8162
        %s8172 = scalar_lea.vmem [#allocation7], 640
        %v8173 = vld [vmem:[%s8172] sm:$0xf]
        %v8174 = vld [vmem:[%s8172 + $0x4] sm:$0xf]
        %v8175 = vld [vmem:[%s8172 + $0x8] sm:$0xf]
        %v8176 = vld [vmem:[%s8172 + $0xc] sm:$0xf]
        %v8177 = vld [vmem:[%s8172 + $0x10] sm:$0xf]
        %v8178 = vld [vmem:[%s8172 + $0x14] sm:$0xf]
        %v8179 = vld [vmem:[%s8172 + $0x18] sm:$0xf]
        %v8180 = vld [vmem:[%s8172 + $0x1c] sm:$0xf]
        %v8181 = vld [vmem:[%s8172 + $0x20] sm:$0xf]
        %v8182 = vld [vmem:[%s8172 + $0x24] sm:$0xf]
        %v8183 = vld [vmem:[%s8172 + $0x28] sm:$0xf]
        %v8184 = vld [vmem:[%s8172 + $0x2c] sm:$0xf]
        %v8185 = vld [vmem:[%s8172 + $0x30] sm:$0xf]
        %v8186 = vld [vmem:[%s8172 + $0x34] sm:$0xf]
        %v8187 = vld [vmem:[%s8172 + $0x38] sm:$0xf]
        %v8188 = vld [vmem:[%s8172 + $0x3c] sm:$0xf]
        %s8189 = scalar_lea.vmem [#allocation7], 576
        %v8190 = vld [vmem:[%s8189] sm:$0xf]
        %v8191 = vld [vmem:[%s8189 + $0x4] sm:$0xf]
        %v8192 = vld [vmem:[%s8189 + $0x8] sm:$0xf]
        %v8193 = vld [vmem:[%s8189 + $0xc] sm:$0xf]
        %v8194 = vld [vmem:[%s8189 + $0x10] sm:$0xf]
        %v8195 = vld [vmem:[%s8189 + $0x14] sm:$0xf]
        %v8196 = vld [vmem:[%s8189 + $0x18] sm:$0xf]
        %v8197 = vld [vmem:[%s8189 + $0x1c] sm:$0xf]
        %v8198 = vld [vmem:[%s8189 + $0x20] sm:$0xf]
        %v8199 = vld [vmem:[%s8189 + $0x24] sm:$0xf]
        %v8200 = vld [vmem:[%s8189 + $0x28] sm:$0xf]
        %v8201 = vld [vmem:[%s8189 + $0x2c] sm:$0xf]
        %v8202 = vld [vmem:[%s8189 + $0x30] sm:$0xf]
        %v8203 = vld [vmem:[%s8189 + $0x34] sm:$0xf]
        %v8204 = vld [vmem:[%s8189 + $0x38] sm:$0xf]
        %v8205 = vld [vmem:[%s8189 + $0x3c] sm:$0xf]
        %v8222 = vunpack.c.l.b16 %v8190
        %v8223 = vunpack.c.l.b16 %v8191
        %v8224 = vunpack.c.l.b16 %v8192
        %v8225 = vunpack.c.l.b16 %v8193
        %v8226 = vunpack.c.l.b16 %v8194
        %v8227 = vunpack.c.l.b16 %v8195
        %v8228 = vunpack.c.l.b16 %v8196
        %v8229 = vunpack.c.l.b16 %v8197
        %v8230 = vunpack.c.l.b16 %v8198
        %v8231 = vunpack.c.l.b16 %v8199
        %v8232 = vunpack.c.l.b16 %v8200
        %v8233 = vunpack.c.l.b16 %v8201
        %v8234 = vunpack.c.l.b16 %v8202
        %v8235 = vunpack.c.l.b16 %v8203
        %v8236 = vunpack.c.l.b16 %v8204
        %v8237 = vunpack.c.l.b16 %v8205
        %v8238 = vpack.c.b16 %v8223, %v8222
        %v8239 = vpack.c.b16 %v8225, %v8224
        %v8240 = vpack.c.b16 %v8227, %v8226
        %v8241 = vpack.c.b16 %v8229, %v8228
        %v8242 = vpack.c.b16 %v8231, %v8230
        %v8243 = vpack.c.b16 %v8233, %v8232
        %v8244 = vpack.c.b16 %v8235, %v8234
        %v8245 = vpack.c.b16 %v8237, %v8236
        %8254 = vmatprep.subr.bf16.mxu0 0
        %8255 = vmatpush1.bf16.msra.mxu0 %v8238
        %8256 = vmatprep.subr.bf16.mxu0 0
        %8257 = vmatpush1.bf16.msra.mxu0 %v8239
        %8258 = vmatprep.subr.bf16.mxu0 0
        %8259 = vmatpush1.bf16.msra.mxu0 %v8240
        %8260 = vmatprep.subr.bf16.mxu0 0
        %8261 = vmatpush1.bf16.msra.mxu0 %v8241
        %8262 = vmatprep.subr.bf16.mxu0 0
        %8263 = vmatpush1.bf16.msra.mxu0 %v8242
        %8264 = vmatprep.subr.bf16.mxu0 0
        %8265 = vmatpush1.bf16.msra.mxu0 %v8243
        %8266 = vmatprep.subr.bf16.mxu0 0
        %8267 = vmatpush1.bf16.msra.mxu0 %v8244
        %8268 = vmatprep.subr.bf16.mxu0 0
        %8269 = vmatpush1.bf16.msra.mxu0 %v8245
        %8270 = vmatprep.subr.bf16.mxu0 0
        %8271 = vmatpush1.bf16.msra.mxu0 0
        %8272 = vmatprep.subr.bf16.mxu0 0
        %8273 = vmatpush1.bf16.msra.mxu0 0
        %8274 = vmatprep.subr.bf16.mxu0 0
        %8275 = vmatpush1.bf16.msra.mxu0 0
        %8276 = vmatprep.subr.bf16.mxu0 0
        %8277 = vmatpush1.bf16.msra.mxu0 0
        %8278 = vmatprep.subr.bf16.mxu0 0
        %8279 = vmatpush1.bf16.msra.mxu0 0
        %8280 = vmatprep.subr.bf16.mxu0 0
        %8281 = vmatpush1.bf16.msra.mxu0 0
        %8282 = vmatprep.subr.bf16.mxu0 0
        %8283 = vmatpush1.bf16.msra.mxu0 0
        %8284 = vmatprep.subr.bf16.mxu0 0
        %8285 = vmatpush1.bf16.msra.mxu0 0
        %8286 = vmatprep.mubr.bf16.mxu0 0
        %8287 = vmatmul.mubr.bf16.gmra.mrb[0].mxu0 %v8168
        %v8288 = vpop.f32.mrb[0].mxu0
        %v8289 = vadd.f32 0.0, %v8288
        %v8290 = vpop.f32.mrb[0].mxu0
        %v8291 = vpop.f32.mrb[0].mxu0
        %v8292 = vadd.f32 0.0, %v8291
        %v8293 = vpop.f32.mrb[0].mxu0
        %8294 = vmatprep.mubr.bf16.mxu0 0
        %8295 = vmatmul.mubr.bf16.gmra.mrb[0].mxu0 %v8169
        %v8296 = vpop.f32.mrb[0].mxu0
        %v8297 = vadd.f32 0.0, %v8296
        %v8298 = vpop.f32.mrb[0].mxu0
        %v8299 = vpop.f32.mrb[0].mxu0
        %v8300 = vadd.f32 0.0, %v8299
        %v8301 = vpop.f32.mrb[0].mxu0
        %8302 = vmatprep.mubr.bf16.mxu0 0
        %8303 = vmatmul.mubr.bf16.gmra.mrb[0].mxu0 %v8170
        %v8304 = vpop.f32.mrb[0].mxu0
        %v8305 = vadd.f32 0.0, %v8304
        %v8306 = vpop.f32.mrb[0].mxu0
        %v8307 = vpop.f32.mrb[0].mxu0
        %v8308 = vadd.f32 0.0, %v8307
        %v8309 = vpop.f32.mrb[0].mxu0
        %8310 = vmatprep.mubr.bf16.mxu0 0
        %8311 = vmatmul.mubr.bf16.gmra.mrb[0].mxu0 %v8171
        %v8312 = vpop.f32.mrb[0].mxu0
        %v8313 = vadd.f32 0.0, %v8312
        %v8314 = vpop.f32.mrb[0].mxu0
        %v8315 = vpop.f32.mrb[0].mxu0
        %v8316 = vadd.f32 0.0, %v8315
        %v8317 = vpop.f32.mrb[0].mxu0
        %8318 = vdwg.mxu0
        %v8319 = vrot.slane %v8289, 7
        %v8320 = vrot.slane %v8292, 7
        %v8321 = vrot.slane %v8297, 7
        %v8322 = vrot.slane %v8300, 7
        %v8323 = vrot.slane %v8305, 7
        %v8324 = vrot.slane %v8308, 7
        %v8325 = vrot.slane %v8313, 7
        %v8326 = vrot.slane %v8316, 7
        %v8327 = vsel %vm931, %v8325, %v8326
        %v8328 = vsel %vm931, %v8324, %v8325
        %v8329 = vsel %vm931, %v8323, %v8324
        %v8330 = vsel %vm931, %v8322, %v8323
        %v8331 = vsel %vm931, %v8321, %v8322
        %v8332 = vsel %vm931, %v8320, %v8321
        %v8333 = vsel %vm931, %v8319, %v8320
        %v8334 = vsel %vm931, %v8326, %v8319
        %v8335 = vsel %vm3756, 0.0, %v8334
        %v8336 = vsel %vm3757, 0.0, %v8333
        %v8337 = vsel %vm3758, 0.0, %v8332
        %v8338 = vsel %vm3759, 0.0, %v8331
        %v8339 = vsel %vm3760, 0.0, %v8330
        %v8340 = vsel %vm3761, 0.0, %v8329
        %v8341 = vsel %vm3762, 0.0, %v8328
        %v8342 = vsel %vm3763, 0.0, %v8327
        %v8359 = vunpack.c.l.b16 %v8173
        %v8360 = vunpack.c.l.b16 %v8174
        %v8361 = vunpack.c.l.b16 %v8175
        %v8362 = vunpack.c.l.b16 %v8176
        %v8363 = vunpack.c.l.b16 %v8177
        %v8364 = vunpack.c.l.b16 %v8178
        %v8365 = vunpack.c.l.b16 %v8179
        %v8366 = vunpack.c.l.b16 %v8180
        %v8367 = vunpack.c.l.b16 %v8181
        %v8368 = vunpack.c.l.b16 %v8182
        %v8369 = vunpack.c.l.b16 %v8183
        %v8370 = vunpack.c.l.b16 %v8184
        %v8371 = vunpack.c.l.b16 %v8185
        %v8372 = vunpack.c.l.b16 %v8186
        %v8373 = vunpack.c.l.b16 %v8187
        %v8374 = vunpack.c.l.b16 %v8188
        %v8375 = vpack.c.b16 %v8360, %v8359
        %v8376 = vpack.c.b16 %v8362, %v8361
        %v8377 = vpack.c.b16 %v8364, %v8363
        %v8378 = vpack.c.b16 %v8366, %v8365
        %v8379 = vpack.c.b16 %v8368, %v8367
        %v8380 = vpack.c.b16 %v8370, %v8369
        %v8381 = vpack.c.b16 %v8372, %v8371
        %v8382 = vpack.c.b16 %v8374, %v8373
        %8391 = vmatprep.subr.bf16.mxu0 0
        %8392 = vmatpush1.bf16.msra.mxu0 %v8375
        %8393 = vmatprep.subr.bf16.mxu0 0
        %8394 = vmatpush1.bf16.msra.mxu0 %v8376
        %8395 = vmatprep.subr.bf16.mxu0 0
        %8396 = vmatpush1.bf16.msra.mxu0 %v8377
        %8397 = vmatprep.subr.bf16.mxu0 0
        %8398 = vmatpush1.bf16.msra.mxu0 %v8378
        %8399 = vmatprep.subr.bf16.mxu0 0
        %8400 = vmatpush1.bf16.msra.mxu0 %v8379
        %8401 = vmatprep.subr.bf16.mxu0 0
        %8402 = vmatpush1.bf16.msra.mxu0 %v8380
        %8403 = vmatprep.subr.bf16.mxu0 0
        %8404 = vmatpush1.bf16.msra.mxu0 %v8381
        %8405 = vmatprep.subr.bf16.mxu0 0
        %8406 = vmatpush1.bf16.msra.mxu0 %v8382
        %8407 = vmatprep.subr.bf16.mxu0 0
        %8408 = vmatpush1.bf16.msra.mxu0 0
        %8409 = vmatprep.subr.bf16.mxu0 0
        %8410 = vmatpush1.bf16.msra.mxu0 0
        %8411 = vmatprep.subr.bf16.mxu0 0
        %8412 = vmatpush1.bf16.msra.mxu0 0
        %8413 = vmatprep.subr.bf16.mxu0 0
        %8414 = vmatpush1.bf16.msra.mxu0 0
        %8415 = vmatprep.subr.bf16.mxu0 0
        %8416 = vmatpush1.bf16.msra.mxu0 0
        %8417 = vmatprep.subr.bf16.mxu0 0
        %8418 = vmatpush1.bf16.msra.mxu0 0
        %8419 = vmatprep.subr.bf16.mxu0 0
        %8420 = vmatpush1.bf16.msra.mxu0 0
        %8421 = vmatprep.subr.bf16.mxu0 0
        %8422 = vmatpush1.bf16.msra.mxu0 0
        %8423 = vmatprep.mubr.bf16.mxu0 0
        %8424 = vmatmul.mubr.bf16.gmra.mrb[0].mxu0 %v8168
        %v8425 = vpop.f32.mrb[0].mxu0
        %v8426 = vadd.f32 %v8335, %v8425
        %v8427 = vpop.f32.mrb[0].mxu0
        %v8428 = vpop.f32.mrb[0].mxu0
        %v8429 = vadd.f32 %v8336, %v8428
        %v8430 = vpop.f32.mrb[0].mxu0
        %8431 = vmatprep.mubr.bf16.mxu0 0
        %8432 = vmatmul.mubr.bf16.gmra.mrb[0].mxu0 %v8169
        %v8433 = vpop.f32.mrb[0].mxu0
        %v8434 = vadd.f32 %v8337, %v8433
        %v8435 = vpop.f32.mrb[0].mxu0
        %v8436 = vpop.f32.mrb[0].mxu0
        %v8437 = vadd.f32 %v8338, %v8436
        %v8438 = vpop.f32.mrb[0].mxu0
        %8439 = vmatprep.mubr.bf16.mxu0 0
        %8440 = vmatmul.mubr.bf16.gmra.mrb[0].mxu0 %v8170
        %v8441 = vpop.f32.mrb[0].mxu0
        %v8442 = vadd.f32 %v8339, %v8441
        %v8443 = vpop.f32.mrb[0].mxu0
        %v8444 = vpop.f32.mrb[0].mxu0
        %v8445 = vadd.f32 %v8340, %v8444
        %v8446 = vpop.f32.mrb[0].mxu0
        %8447 = vmatprep.mubr.bf16.mxu0 0
        %8448 = vmatmul.mubr.bf16.gmra.mrb[0].mxu0 %v8171
        %v8449 = vpop.f32.mrb[0].mxu0
        %v8450 = vadd.f32 %v8341, %v8449
        %v8451 = vpop.f32.mrb[0].mxu0
        %v8452 = vpop.f32.mrb[0].mxu0
        %v8453 = vadd.f32 %v8342, %v8452
        %v8454 = vpop.f32.mrb[0].mxu0
        %8455 = vdwg.mxu0
        %s8456 = scalar_lea.vmem [#allocation7], 704
        %v8457 = vld [vmem:[%s8456] sm:$0xf]
        %v8458 = vld [vmem:[%s8456 + $0x4] sm:$0xf]
        %v8459 = vld [vmem:[%s8456 + $0x8] sm:$0xf]
        %v8460 = vld [vmem:[%s8456 + $0xc] sm:$0xf]
        %v8461 = vld [vmem:[%s8456 + $0x10] sm:$0xf]
        %v8462 = vld [vmem:[%s8456 + $0x14] sm:$0xf]
        %v8463 = vld [vmem:[%s8456 + $0x18] sm:$0xf]
        %v8464 = vld [vmem:[%s8456 + $0x1c] sm:$0xf]
        %v8465 = vld [vmem:[%s8456 + $0x20] sm:$0xf]
        %v8466 = vld [vmem:[%s8456 + $0x24] sm:$0xf]
        %v8467 = vld [vmem:[%s8456 + $0x28] sm:$0xf]
        %v8468 = vld [vmem:[%s8456 + $0x2c] sm:$0xf]
        %v8469 = vld [vmem:[%s8456 + $0x30] sm:$0xf]
        %v8470 = vld [vmem:[%s8456 + $0x34] sm:$0xf]
        %v8471 = vld [vmem:[%s8456 + $0x38] sm:$0xf]
        %v8472 = vld [vmem:[%s8456 + $0x3c] sm:$0xf]
        %v8489 = vunpack.c.l.b16 %v8457
        %v8490 = vunpack.c.l.b16 %v8458
        %v8491 = vunpack.c.l.b16 %v8459
        %v8492 = vunpack.c.l.b16 %v8460
        %v8493 = vunpack.c.l.b16 %v8461
        %v8494 = vunpack.c.l.b16 %v8462
        %v8495 = vunpack.c.l.b16 %v8463
        %v8496 = vunpack.c.l.b16 %v8464
        %v8497 = vunpack.c.l.b16 %v8465
        %v8498 = vunpack.c.l.b16 %v8466
        %v8499 = vunpack.c.l.b16 %v8467
        %v8500 = vunpack.c.l.b16 %v8468
        %v8501 = vunpack.c.l.b16 %v8469
        %v8502 = vunpack.c.l.b16 %v8470
        %v8503 = vunpack.c.l.b16 %v8471
        %v8504 = vunpack.c.l.b16 %v8472
        %v8505 = vpack.c.b16 %v8490, %v8489
        %v8506 = vpack.c.b16 %v8492, %v8491
        %v8507 = vpack.c.b16 %v8494, %v8493
        %v8508 = vpack.c.b16 %v8496, %v8495
        %v8509 = vpack.c.b16 %v8498, %v8497
        %v8510 = vpack.c.b16 %v8500, %v8499
        %v8511 = vpack.c.b16 %v8502, %v8501
        %v8512 = vpack.c.b16 %v8504, %v8503
        %8521 = vmatprep.subr.bf16.mxu0 0
        %8522 = vmatpush1.bf16.msra.mxu0 %v8505
        %8523 = vmatprep.subr.bf16.mxu0 0
        %8524 = vmatpush1.bf16.msra.mxu0 %v8506
        %8525 = vmatprep.subr.bf16.mxu0 0
        %8526 = vmatpush1.bf16.msra.mxu0 %v8507
        %8527 = vmatprep.subr.bf16.mxu0 0
        %8528 = vmatpush1.bf16.msra.mxu0 %v8508
        %8529 = vmatprep.subr.bf16.mxu0 0
        %8530 = vmatpush1.bf16.msra.mxu0 %v8509
        %8531 = vmatprep.subr.bf16.mxu0 0
        %8532 = vmatpush1.bf16.msra.mxu0 %v8510
        %8533 = vmatprep.subr.bf16.mxu0 0
        %8534 = vmatpush1.bf16.msra.mxu0 %v8511
        %8535 = vmatprep.subr.bf16.mxu0 0
        %8536 = vmatpush1.bf16.msra.mxu0 %v8512
        %8537 = vmatprep.subr.bf16.mxu0 0
        %8538 = vmatpush1.bf16.msra.mxu0 0
        %8539 = vmatprep.subr.bf16.mxu0 0
        %8540 = vmatpush1.bf16.msra.mxu0 0
        %8541 = vmatprep.subr.bf16.mxu0 0
        %8542 = vmatpush1.bf16.msra.mxu0 0
        %8543 = vmatprep.subr.bf16.mxu0 0
        %8544 = vmatpush1.bf16.msra.mxu0 0
        %8545 = vmatprep.subr.bf16.mxu0 0
        %8546 = vmatpush1.bf16.msra.mxu0 0
        %8547 = vmatprep.subr.bf16.mxu0 0
        %8548 = vmatpush1.bf16.msra.mxu0 0
        %8549 = vmatprep.subr.bf16.mxu0 0
        %8550 = vmatpush1.bf16.msra.mxu0 0
        %8551 = vmatprep.subr.bf16.mxu0 0
        %8552 = vmatpush1.bf16.msra.mxu0 0
        %8553 = vmatprep.mubr.bf16.mxu0 0
        %8554 = vmatmul.mubr.bf16.gmra.mrb[0].mxu0 %v8168
        %v8555 = vpop.f32.mrb[0].mxu0
        %v8556 = vadd.f32 0.0, %v8555
        %v8557 = vpop.f32.mrb[0].mxu0
        %v8558 = vpop.f32.mrb[0].mxu0
        %v8559 = vadd.f32 0.0, %v8558
        %v8560 = vpop.f32.mrb[0].mxu0
        %8561 = vmatprep.mubr.bf16.mxu0 0
        %8562 = vmatmul.mubr.bf16.gmra.mrb[0].mxu0 %v8169
        %v8563 = vpop.f32.mrb[0].mxu0
        %v8564 = vadd.f32 0.0, %v8563
        %v8565 = vpop.f32.mrb[0].mxu0
        %v8566 = vpop.f32.mrb[0].mxu0
        %v8567 = vadd.f32 0.0, %v8566
        %v8568 = vpop.f32.mrb[0].mxu0
        %8569 = vmatprep.mubr.bf16.mxu0 0
        %8570 = vmatmul.mubr.bf16.gmra.mrb[0].mxu0 %v8170
        %v8571 = vpop.f32.mrb[0].mxu0
        %v8572 = vadd.f32 0.0, %v8571
        %v8573 = vpop.f32.mrb[0].mxu0
        %v8574 = vpop.f32.mrb[0].mxu0
        %v8575 = vadd.f32 0.0, %v8574
        %v8576 = vpop.f32.mrb[0].mxu0
        %8577 = vmatprep.mubr.bf16.mxu0 0
        %8578 = vmatmul.mubr.bf16.gmra.mrb[0].mxu0 %v8171
        %v8579 = vpop.f32.mrb[0].mxu0
        %v8580 = vadd.f32 0.0, %v8579
        %v8581 = vpop.f32.mrb[0].mxu0
        %v8582 = vpop.f32.mrb[0].mxu0
        %v8583 = vadd.f32 0.0, %v8582
        %v8584 = vpop.f32.mrb[0].mxu0
        %8585 = vdwg.mxu0
        %v8586 = vrot.slane %v8556, 1
        %v8587 = vrot.slane %v8559, 1
        %v8588 = vrot.slane %v8564, 1
        %v8589 = vrot.slane %v8567, 1
        %v8590 = vrot.slane %v8572, 1
        %v8591 = vrot.slane %v8575, 1
        %v8592 = vrot.slane %v8580, 1
        %v8593 = vrot.slane %v8583, 1
        %v8594 = vsel %vm1542, %v8592, %v8593
        %v8595 = vsel %vm1542, %v8591, %v8592
        %v8596 = vsel %vm1542, %v8590, %v8591
        %v8597 = vsel %vm1542, %v8589, %v8590
        %v8598 = vsel %vm1542, %v8588, %v8589
        %v8599 = vsel %vm1542, %v8587, %v8588
        %v8600 = vsel %vm1542, %v8586, %v8587
        %v8601 = vsel %vm1542, %v8593, %v8586
        %v8602 = vsel %vm3942, 0.0, %v8600
        %v8603 = vsel %vm3943, 0.0, %v8599
        %v8604 = vsel %vm3944, 0.0, %v8598
        %v8605 = vsel %vm3945, 0.0, %v8597
        %v8606 = vsel %vm3946, 0.0, %v8596
        %v8607 = vsel %vm3947, 0.0, %v8595
        %v8608 = vsel %vm3948, 0.0, %v8594
        %v8609 = vsel %vm3949, 0.0, %v8601
        %v8610 = vadd.f32 %v8426, %v8602
        %v8611 = vadd.f32 %v8429, %v8603
        %v8612 = vadd.f32 %v8434, %v8604
        %v8613 = vadd.f32 %v8437, %v8605
        %v8614 = vadd.f32 %v8442, %v8606
        %v8615 = vadd.f32 %v8445, %v8607
        %v8616 = vadd.f32 %v8450, %v8608
        %v8617 = vadd.f32 %v8453, %v8609
        %s8618 = scalar_lea.vmem %s9, 6
        %v8619 = vld [vmem:[%s8618] sm:$0x3]
        %v8620 = vlaneseq
        %v8621 = vshrl.u32 %v8620, 7
        %v8622 = vsub.s32 0, %v8621
        %v8623 = vrot.slane %v8619, %v8622
        %v8624 = vmul.f32 %v8610, %v8623
        %v8625 = vmul.f32 %v8611, %v8623
        %v8626 = vmul.f32 %v8612, %v8623
        %v8627 = vmul.f32 %v8613, %v8623
        %v8628 = vmul.f32 %v8614, %v8623
        %v8629 = vmul.f32 %v8615, %v8623
        %v8630 = vmul.f32 %v8616, %v8623
        %v8631 = vmul.f32 %v8617, %v8623
        %v8632 = vlaneseq
        %v8633 = vshrl.u32 %v8632, 7
        %v8634 = vsub.s32 1, %v8633
        %v8635 = vrot.slane %v8619, %v8634
        %v8636 = vadd.f32 %v8624, %v8635
        %v8637 = vadd.f32 %v8625, %v8635
        %v8638 = vadd.f32 %v8626, %v8635
        %v8639 = vadd.f32 %v8627, %v8635
        %v8640 = vadd.f32 %v8628, %v8635
        %v8641 = vadd.f32 %v8629, %v8635
        %v8642 = vadd.f32 %v8630, %v8635
        %v8643 = vadd.f32 %v8631, %v8635
        %vm8644 = vcmp.gt.f32.partialorder %v8636, 0.0
        %vm8645 = vcmp.gt.f32.partialorder %v8637, 0.0
        %vm8646 = vcmp.gt.f32.partialorder %v8638, 0.0
        %vm8647 = vcmp.gt.f32.partialorder %v8639, 0.0
        %vm8648 = vcmp.gt.f32.partialorder %v8640, 0.0
        %vm8649 = vcmp.gt.f32.partialorder %v8641, 0.0
        %vm8650 = vcmp.gt.f32.partialorder %v8642, 0.0
        %vm8651 = vcmp.gt.f32.partialorder %v8643, 0.0
        %v8652 = vmul.f32 %v8636, 0.2
        %v8653 = vmul.f32 %v8637, 0.2
        %v8654 = vmul.f32 %v8638, 0.2
        %v8655 = vmul.f32 %v8639, 0.2
        %v8656 = vmul.f32 %v8640, 0.2
        %v8657 = vmul.f32 %v8641, 0.2
        %v8658 = vmul.f32 %v8642, 0.2
        %v8659 = vmul.f32 %v8643, 0.2
        %v8660 = vsel %vm8644, %v8636, %v8652
        %v8661 = vsel %vm8645, %v8637, %v8653
        %v8662 = vsel %vm8646, %v8638, %v8654
        %v8663 = vsel %vm8647, %v8639, %v8655
        %v8664 = vsel %vm8648, %v8640, %v8656
        %v8665 = vsel %vm8649, %v8641, %v8657
        %v8666 = vsel %vm8650, %v8642, %v8658
        %v8667 = vsel %vm8651, %v8643, %v8659
        %v8668 = vpack.c.bf16 %v8661, %v8660
        %v8669 = vpack.c.bf16 %v8663, %v8662
        %v8670 = vpack.c.bf16 %v8665, %v8664
        %v8671 = vpack.c.bf16 %v8667, %v8666
        %v8672 = vld [vmem:[%s1] sm:$0xf]
        %v8673 = vld [vmem:[%s1 + $0x4] sm:$0xf]
        %v8674 = vld [vmem:[%s1 + $0x8] sm:$0xf]
        %v8675 = vld [vmem:[%s1 + $0xc] sm:$0xf]
        %v8676 = vld [vmem:[%s1 + $0x10] sm:$0xf]
        %v8677 = vld [vmem:[%s1 + $0x14] sm:$0xf]
        %v8678 = vld [vmem:[%s1 + $0x18] sm:$0xf]
        %v8679 = vld [vmem:[%s1 + $0x1c] sm:$0xf]
        %v8680 = vld [vmem:[%s1 + $0x20] sm:$0xf]
        %v8681 = vld [vmem:[%s1 + $0x24] sm:$0xf]
        %v8682 = vld [vmem:[%s1 + $0x28] sm:$0xf]
        %v8683 = vld [vmem:[%s1 + $0x2c] sm:$0xf]
        %v8684 = vld [vmem:[%s1 + $0x30] sm:$0xf]
        %v8685 = vld [vmem:[%s1 + $0x34] sm:$0xf]
        %v8686 = vld [vmem:[%s1 + $0x38] sm:$0xf]
        %v8687 = vld [vmem:[%s1 + $0x3c] sm:$0xf]
        %v8704 = vunpack.c.l.b16 %v8672
        %v8705 = vunpack.c.l.b16 %v8673
        %v8706 = vunpack.c.l.b16 %v8674
        %v8707 = vunpack.c.l.b16 %v8675
        %v8708 = vunpack.c.l.b16 %v8676
        %v8709 = vunpack.c.l.b16 %v8677
        %v8710 = vunpack.c.l.b16 %v8678
        %v8711 = vunpack.c.l.b16 %v8679
        %v8712 = vunpack.c.l.b16 %v8680
        %v8713 = vunpack.c.l.b16 %v8681
        %v8714 = vunpack.c.l.b16 %v8682
        %v8715 = vunpack.c.l.b16 %v8683
        %v8716 = vunpack.c.l.b16 %v8684
        %v8717 = vunpack.c.l.b16 %v8685
        %v8718 = vunpack.c.l.b16 %v8686
        %v8719 = vunpack.c.l.b16 %v8687
        %v8720 = vpack.c.b16 %v8705, %v8704
        %v8721 = vpack.c.b16 %v8707, %v8706
        %v8722 = vpack.c.b16 %v8709, %v8708
        %v8723 = vpack.c.b16 %v8711, %v8710
        %v8724 = vpack.c.b16 %v8713, %v8712
        %v8725 = vpack.c.b16 %v8715, %v8714
        %v8726 = vpack.c.b16 %v8717, %v8716
        %v8727 = vpack.c.b16 %v8719, %v8718
        %v8729 = vsel %vm516, %v8720, 0
        %v8732 = vsel %vm516, %v8721, 0
        %v8735 = vsel %vm516, %v8722, 0
        %v8738 = vsel %vm516, %v8723, 0
        %v8741 = vsel %vm516, %v8724, 0
        %v8744 = vsel %vm516, %v8725, 0
        %v8747 = vsel %vm516, %v8726, 0
        %v8750 = vsel %vm516, %v8727, 0
        %8752 = vmatprep.subr.bf16.mxu0 0
        %8753 = vmatpush1.bf16.msra.mxu0 %v8668
        %8754 = vmatprep.subr.bf16.mxu0 0
        %8755 = vmatpush1.bf16.msra.mxu0 %v8669
        %8756 = vmatprep.subr.bf16.mxu0 0
        %8757 = vmatpush1.bf16.msra.mxu0 %v8670
        %8758 = vmatprep.subr.bf16.mxu0 0
        %8759 = vmatpush1.bf16.msra.mxu0 %v8671
        %8760 = vmatprep.subr.bf16.mxu0 0
        %8761 = vmatpush1.bf16.msra.mxu0 0
        %8762 = vmatprep.subr.bf16.mxu0 0
        %8763 = vmatpush1.bf16.msra.mxu0 0
        %8764 = vmatprep.subr.bf16.mxu0 0
        %8765 = vmatpush1.bf16.msra.mxu0 0
        %8766 = vmatprep.subr.bf16.mxu0 0
        %8767 = vmatpush1.bf16.msra.mxu0 0
        %8768 = vmatprep.subr.bf16.mxu0 0
        %8769 = vmatpush1.bf16.msra.mxu0 0
        %8770 = vmatprep.subr.bf16.mxu0 0
        %8771 = vmatpush1.bf16.msra.mxu0 0
        %8772 = vmatprep.subr.bf16.mxu0 0
        %8773 = vmatpush1.bf16.msra.mxu0 0
        %8774 = vmatprep.subr.bf16.mxu0 0
        %8775 = vmatpush1.bf16.msra.mxu0 0
        %8776 = vmatprep.subr.bf16.mxu0 0
        %8777 = vmatpush1.bf16.msra.mxu0 0
        %8778 = vmatprep.subr.bf16.mxu0 0
        %8779 = vmatpush1.bf16.msra.mxu0 0
        %8780 = vmatprep.subr.bf16.mxu0 0
        %8781 = vmatpush1.bf16.msra.mxu0 0
        %8782 = vmatprep.subr.bf16.mxu0 0
        %8783 = vmatpush1.bf16.msra.mxu0 0
        %8784 = vmatprep.mubr.bf16.mxu0 0
        %8785 = vmatmul.mubr.bf16.gmra.mrb[0].mxu0 %v8729
        %v8786 = vpop.f32.mrb[0].mxu0
        %v8787 = vadd.f32 %v2432, %v8786
        %v8788 = vpop.f32.mrb[0].mxu0
        %v8789 = vpop.f32.mrb[0].mxu0
        %v8790 = vadd.f32 %v2433, %v8789
        %v8791 = vpop.f32.mrb[0].mxu0
        %8792 = vmatprep.mubr.bf16.mxu0 0
        %8793 = vmatmul.mubr.bf16.gmra.mrb[0].mxu0 %v8732
        %v8794 = vpop.f32.mrb[0].mxu0
        %v8795 = vadd.f32 %v2434, %v8794
        %v8796 = vpop.f32.mrb[0].mxu0
        %v8797 = vpop.f32.mrb[0].mxu0
        %v8798 = vadd.f32 %v2435, %v8797
        %v8799 = vpop.f32.mrb[0].mxu0
        %8800 = vmatprep.mubr.bf16.mxu0 0
        %8801 = vmatmul.mubr.bf16.gmra.mrb[0].mxu0 %v8735
        %v8802 = vpop.f32.mrb[0].mxu0
        %v8803 = vadd.f32 %v2436, %v8802
        %v8804 = vpop.f32.mrb[0].mxu0
        %v8805 = vpop.f32.mrb[0].mxu0
        %v8806 = vadd.f32 %v2437, %v8805
        %v8807 = vpop.f32.mrb[0].mxu0
        %8808 = vmatprep.mubr.bf16.mxu0 0
        %8809 = vmatmul.mubr.bf16.gmra.mrb[0].mxu0 %v8738
        %v8810 = vpop.f32.mrb[0].mxu0
        %v8811 = vadd.f32 %v2438, %v8810
        %v8812 = vpop.f32.mrb[0].mxu0
        %v8813 = vpop.f32.mrb[0].mxu0
        %v8814 = vadd.f32 %v2439, %v8813
        %v8815 = vpop.f32.mrb[0].mxu0
        %8816 = vmatprep.mubr.bf16.mxu0 0
        %8817 = vmatmul.mubr.bf16.gmra.mrb[0].mxu0 %v8741
        %v8818 = vpop.f32.mrb[0].mxu0
        %v8819 = vadd.f32 %v2440, %v8818
        %v8820 = vpop.f32.mrb[0].mxu0
        %v8821 = vpop.f32.mrb[0].mxu0
        %v8822 = vadd.f32 %v2441, %v8821
        %v8823 = vpop.f32.mrb[0].mxu0
        %8824 = vmatprep.mubr.bf16.mxu0 0
        %8825 = vmatmul.mubr.bf16.gmra.mrb[0].mxu0 %v8744
        %v8826 = vpop.f32.mrb[0].mxu0
        %v8827 = vadd.f32 %v2442, %v8826
        %v8828 = vpop.f32.mrb[0].mxu0
        %v8829 = vpop.f32.mrb[0].mxu0
        %v8830 = vadd.f32 %v2443, %v8829
        %v8831 = vpop.f32.mrb[0].mxu0
        %8832 = vmatprep.mubr.bf16.mxu0 0
        %8833 = vmatmul.mubr.bf16.gmra.mrb[0].mxu0 %v8747
        %v8834 = vpop.f32.mrb[0].mxu0
        %v8835 = vadd.f32 %v2444, %v8834
        %v8836 = vpop.f32.mrb[0].mxu0
        %v8837 = vpop.f32.mrb[0].mxu0
        %v8838 = vadd.f32 %v2445, %v8837
        %v8839 = vpop.f32.mrb[0].mxu0
        %8840 = vmatprep.mubr.bf16.mxu0 0
        %8841 = vmatmul.mubr.bf16.gmra.mrb[0].mxu0 %v8750
        %v8842 = vpop.f32.mrb[0].mxu0
        %v8843 = vadd.f32 %v2446, %v8842
        %v8844 = vpop.f32.mrb[0].mxu0
        %v8845 = vpop.f32.mrb[0].mxu0
        %v8846 = vadd.f32 %v2447, %v8845
        %v8847 = vpop.f32.mrb[0].mxu0
        %8848 = vdwg.mxu0
        %v8849 = vpack.c.bf16 %v8790, %v8787
        %v8850 = vpack.c.bf16 %v8798, %v8795
        %v8851 = vpack.c.bf16 %v8806, %v8803
        %v8852 = vpack.c.bf16 %v8814, %v8811
        %v8853 = vpack.c.bf16 %v8822, %v8819
        %v8854 = vpack.c.bf16 %v8830, %v8827
        %v8855 = vpack.c.bf16 %v8838, %v8835
        %v8856 = vpack.c.bf16 %v8846, %v8843
        %s8857 = scalar_lea.vmem [#allocation7], 832
        %v8858 = vld [vmem:[%s8857] sm:$0xf]
        %v8859 = vld [vmem:[%s8857 + $0x4] sm:$0xf]
        %v8860 = vld [vmem:[%s8857 + $0x8] sm:$0xf]
        %v8861 = vld [vmem:[%s8857 + $0xc] sm:$0xf]
        %v8862 = vld [vmem:[%s8857 + $0x10] sm:$0xf]
        %v8863 = vld [vmem:[%s8857 + $0x14] sm:$0xf]
        %v8864 = vld [vmem:[%s8857 + $0x18] sm:$0xf]
        %v8865 = vld [vmem:[%s8857 + $0x1c] sm:$0xf]
        %v8866 = vld [vmem:[%s8857 + $0x20] sm:$0xf]
        %v8867 = vld [vmem:[%s8857 + $0x24] sm:$0xf]
        %v8868 = vld [vmem:[%s8857 + $0x28] sm:$0xf]
        %v8869 = vld [vmem:[%s8857 + $0x2c] sm:$0xf]
        %v8870 = vld [vmem:[%s8857 + $0x30] sm:$0xf]
        %v8871 = vld [vmem:[%s8857 + $0x34] sm:$0xf]
        %v8872 = vld [vmem:[%s8857 + $0x38] sm:$0xf]
        %v8873 = vld [vmem:[%s8857 + $0x3c] sm:$0xf]
        %s8874 = scalar_lea.vmem [#allocation7], 768
        %v8875 = vld [vmem:[%s8874] sm:$0xf]
        %v8876 = vld [vmem:[%s8874 + $0x4] sm:$0xf]
        %v8877 = vld [vmem:[%s8874 + $0x8] sm:$0xf]
        %v8878 = vld [vmem:[%s8874 + $0xc] sm:$0xf]
        %v8879 = vld [vmem:[%s8874 + $0x10] sm:$0xf]
        %v8880 = vld [vmem:[%s8874 + $0x14] sm:$0xf]
        %v8881 = vld [vmem:[%s8874 + $0x18] sm:$0xf]
        %v8882 = vld [vmem:[%s8874 + $0x1c] sm:$0xf]
        %v8883 = vld [vmem:[%s8874 + $0x20] sm:$0xf]
        %v8884 = vld [vmem:[%s8874 + $0x24] sm:$0xf]
        %v8885 = vld [vmem:[%s8874 + $0x28] sm:$0xf]
        %v8886 = vld [vmem:[%s8874 + $0x2c] sm:$0xf]
        %v8887 = vld [vmem:[%s8874 + $0x30] sm:$0xf]
        %v8888 = vld [vmem:[%s8874 + $0x34] sm:$0xf]
        %v8889 = vld [vmem:[%s8874 + $0x38] sm:$0xf]
        %v8890 = vld [vmem:[%s8874 + $0x3c] sm:$0xf]
        %v8907 = vunpack.c.l.b16 %v8875
        %v8908 = vunpack.c.l.b16 %v8876
        %v8909 = vunpack.c.l.b16 %v8877
        %v8910 = vunpack.c.l.b16 %v8878
        %v8911 = vunpack.c.l.b16 %v8879
        %v8912 = vunpack.c.l.b16 %v8880
        %v8913 = vunpack.c.l.b16 %v8881
        %v8914 = vunpack.c.l.b16 %v8882
        %v8915 = vunpack.c.l.b16 %v8883
        %v8916 = vunpack.c.l.b16 %v8884
        %v8917 = vunpack.c.l.b16 %v8885
        %v8918 = vunpack.c.l.b16 %v8886
        %v8919 = vunpack.c.l.b16 %v8887
        %v8920 = vunpack.c.l.b16 %v8888
        %v8921 = vunpack.c.l.b16 %v8889
        %v8922 = vunpack.c.l.b16 %v8890
        %v8923 = vpack.c.b16 %v8908, %v8907
        %v8924 = vpack.c.b16 %v8910, %v8909
        %v8925 = vpack.c.b16 %v8912, %v8911
        %v8926 = vpack.c.b16 %v8914, %v8913
        %v8927 = vpack.c.b16 %v8916, %v8915
        %v8928 = vpack.c.b16 %v8918, %v8917
        %v8929 = vpack.c.b16 %v8920, %v8919
        %v8930 = vpack.c.b16 %v8922, %v8921
        %8939 = vmatprep.subr.bf16.mxu0 0
        %8940 = vmatpush1.bf16.msra.mxu0 %v8923
        %8941 = vmatprep.subr.bf16.mxu0 0
        %8942 = vmatpush1.bf16.msra.mxu0 %v8924
        %8943 = vmatprep.subr.bf16.mxu0 0
        %8944 = vmatpush1.bf16.msra.mxu0 %v8925
        %8945 = vmatprep.subr.bf16.mxu0 0
        %8946 = vmatpush1.bf16.msra.mxu0 %v8926
        %8947 = vmatprep.subr.bf16.mxu0 0
        %8948 = vmatpush1.bf16.msra.mxu0 %v8927
        %8949 = vmatprep.subr.bf16.mxu0 0
        %8950 = vmatpush1.bf16.msra.mxu0 %v8928
        %8951 = vmatprep.subr.bf16.mxu0 0
        %8952 = vmatpush1.bf16.msra.mxu0 %v8929
        %8953 = vmatprep.subr.bf16.mxu0 0
        %8954 = vmatpush1.bf16.msra.mxu0 %v8930
        %8955 = vmatprep.subr.bf16.mxu0 0
        %8956 = vmatpush1.bf16.msra.mxu0 0
        %8957 = vmatprep.subr.bf16.mxu0 0
        %8958 = vmatpush1.bf16.msra.mxu0 0
        %8959 = vmatprep.subr.bf16.mxu0 0
        %8960 = vmatpush1.bf16.msra.mxu0 0
        %8961 = vmatprep.subr.bf16.mxu0 0
        %8962 = vmatpush1.bf16.msra.mxu0 0
        %8963 = vmatprep.subr.bf16.mxu0 0
        %8964 = vmatpush1.bf16.msra.mxu0 0
        %8965 = vmatprep.subr.bf16.mxu0 0
        %8966 = vmatpush1.bf16.msra.mxu0 0
        %8967 = vmatprep.subr.bf16.mxu0 0
        %8968 = vmatpush1.bf16.msra.mxu0 0
        %8969 = vmatprep.subr.bf16.mxu0 0
        %8970 = vmatpush1.bf16.msra.mxu0 0
        %8971 = vmatprep.mubr.bf16.mxu0 0
        %8972 = vmatmul.mubr.bf16.gmra.mrb[0].mxu0 %v8849
        %v8973 = vpop.f32.mrb[0].mxu0
        %v8974 = vadd.f32 0.0, %v8973
        %v8975 = vpop.f32.mrb[0].mxu0
        %v8976 = vpop.f32.mrb[0].mxu0
        %v8977 = vadd.f32 0.0, %v8976
        %v8978 = vpop.f32.mrb[0].mxu0
        %8979 = vmatprep.mubr.bf16.mxu0 0
        %8980 = vmatmul.mubr.bf16.gmra.mrb[0].mxu0 %v8850
        %v8981 = vpop.f32.mrb[0].mxu0
        %v8982 = vadd.f32 0.0, %v8981
        %v8983 = vpop.f32.mrb[0].mxu0
        %v8984 = vpop.f32.mrb[0].mxu0
        %v8985 = vadd.f32 0.0, %v8984
        %v8986 = vpop.f32.mrb[0].mxu0
        %8987 = vmatprep.mubr.bf16.mxu0 0
        %8988 = vmatmul.mubr.bf16.gmra.mrb[0].mxu0 %v8851
        %v8989 = vpop.f32.mrb[0].mxu0
        %v8990 = vadd.f32 0.0, %v8989
        %v8991 = vpop.f32.mrb[0].mxu0
        %v8992 = vpop.f32.mrb[0].mxu0
        %v8993 = vadd.f32 0.0, %v8992
        %v8994 = vpop.f32.mrb[0].mxu0
        %8995 = vmatprep.mubr.bf16.mxu0 0
        %8996 = vmatmul.mubr.bf16.gmra.mrb[0].mxu0 %v8852
        %v8997 = vpop.f32.mrb[0].mxu0
        %v8998 = vadd.f32 0.0, %v8997
        %v8999 = vpop.f32.mrb[0].mxu0
        %v9000 = vpop.f32.mrb[0].mxu0
        %v9001 = vadd.f32 0.0, %v9000
        %v9002 = vpop.f32.mrb[0].mxu0
        %9003 = vmatprep.mubr.bf16.mxu0 0
        %9004 = vmatmul.mubr.bf16.gmra.mrb[0].mxu0 %v8853
        %v9005 = vpop.f32.mrb[0].mxu0
        %v9006 = vadd.f32 0.0, %v9005
        %v9007 = vpop.f32.mrb[0].mxu0
        %v9008 = vpop.f32.mrb[0].mxu0
        %v9009 = vadd.f32 0.0, %v9008
        %v9010 = vpop.f32.mrb[0].mxu0
        %9011 = vmatprep.mubr.bf16.mxu0 0
        %9012 = vmatmul.mubr.bf16.gmra.mrb[0].mxu0 %v8854
        %v9013 = vpop.f32.mrb[0].mxu0
        %v9014 = vadd.f32 0.0, %v9013
        %v9015 = vpop.f32.mrb[0].mxu0
        %v9016 = vpop.f32.mrb[0].mxu0
        %v9017 = vadd.f32 0.0, %v9016
        %v9018 = vpop.f32.mrb[0].mxu0
        %9019 = vmatprep.mubr.bf16.mxu0 0
        %9020 = vmatmul.mubr.bf16.gmra.mrb[0].mxu0 %v8855
        %v9021 = vpop.f32.mrb[0].mxu0
        %v9022 = vadd.f32 0.0, %v9021
        %v9023 = vpop.f32.mrb[0].mxu0
        %v9024 = vpop.f32.mrb[0].mxu0
        %v9025 = vadd.f32 0.0, %v9024
        %v9026 = vpop.f32.mrb[0].mxu0
        %9027 = vmatprep.mubr.bf16.mxu0 0
        %9028 = vmatmul.mubr.bf16.gmra.mrb[0].mxu0 %v8856
        %v9029 = vpop.f32.mrb[0].mxu0
        %v9030 = vadd.f32 0.0, %v9029
        %v9031 = vpop.f32.mrb[0].mxu0
        %v9032 = vpop.f32.mrb[0].mxu0
        %v9033 = vadd.f32 0.0, %v9032
        %v9034 = vpop.f32.mrb[0].mxu0
        %9035 = vdwg.mxu0
        %v9036 = vrot.slane %v8974, 7
        %v9037 = vrot.slane %v8977, 7
        %v9038 = vrot.slane %v8982, 7
        %v9039 = vrot.slane %v8985, 7
        %v9040 = vrot.slane %v8990, 7
        %v9041 = vrot.slane %v8993, 7
        %v9042 = vrot.slane %v8998, 7
        %v9043 = vrot.slane %v9001, 7
        %v9044 = vrot.slane %v9006, 7
        %v9045 = vrot.slane %v9009, 7
        %v9046 = vrot.slane %v9014, 7
        %v9047 = vrot.slane %v9017, 7
        %v9048 = vrot.slane %v9022, 7
        %v9049 = vrot.slane %v9025, 7
        %v9050 = vrot.slane %v9030, 7
        %v9051 = vrot.slane %v9033, 7
        %v9052 = vsel %vm931, %v9050, %v9051
        %v9053 = vsel %vm931, %v9049, %v9050
        %v9054 = vsel %vm931, %v9048, %v9049
        %v9055 = vsel %vm931, %v9047, %v9048
        %v9056 = vsel %vm931, %v9046, %v9047
        %v9057 = vsel %vm931, %v9045, %v9046
        %v9058 = vsel %vm931, %v9044, %v9045
        %v9059 = vsel %vm931, %v9043, %v9044
        %v9060 = vsel %vm931, %v9042, %v9043
        %v9061 = vsel %vm931, %v9041, %v9042
        %v9062 = vsel %vm931, %v9040, %v9041
        %v9063 = vsel %vm931, %v9039, %v9040
        %v9064 = vsel %vm931, %v9038, %v9039
        %v9065 = vsel %vm931, %v9037, %v9038
        %v9066 = vsel %vm931, %v9036, %v9037
        %v9067 = vsel %vm931, %v9051, %v9036
        %v9068 = vsel %vm1187, 0.0, %v9067
        %v9069 = vsel %vm1188, 0.0, %v9066
        %v9070 = vsel %vm1189, 0.0, %v9065
        %v9071 = vsel %vm1190, 0.0, %v9064
        %v9072 = vsel %vm1191, 0.0, %v9063
        %v9073 = vsel %vm1192, 0.0, %v9062
        %v9074 = vsel %vm1193, 0.0, %v9061
        %v9075 = vsel %vm1194, 0.0, %v9060
        %v9076 = vsel %vm1195, 0.0, %v9059
        %v9077 = vsel %vm1196, 0.0, %v9058
        %v9078 = vsel %vm1197, 0.0, %v9057
        %v9079 = vsel %vm1198, 0.0, %v9056
        %v9080 = vsel %vm1199, 0.0, %v9055
        %v9081 = vsel %vm1200, 0.0, %v9054
        %v9082 = vsel %vm1201, 0.0, %v9053
        %v9083 = vsel %vm1202, 0.0, %v9052
        %v9100 = vunpack.c.l.b16 %v8858
        %v9101 = vunpack.c.l.b16 %v8859
        %v9102 = vunpack.c.l.b16 %v8860
        %v9103 = vunpack.c.l.b16 %v8861
        %v9104 = vunpack.c.l.b16 %v8862
        %v9105 = vunpack.c.l.b16 %v8863
        %v9106 = vunpack.c.l.b16 %v8864
        %v9107 = vunpack.c.l.b16 %v8865
        %v9108 = vunpack.c.l.b16 %v8866
        %v9109 = vunpack.c.l.b16 %v8867
        %v9110 = vunpack.c.l.b16 %v8868
        %v9111 = vunpack.c.l.b16 %v8869
        %v9112 = vunpack.c.l.b16 %v8870
        %v9113 = vunpack.c.l.b16 %v8871
        %v9114 = vunpack.c.l.b16 %v8872
        %v9115 = vunpack.c.l.b16 %v8873
        %v9116 = vpack.c.b16 %v9101, %v9100
        %v9117 = vpack.c.b16 %v9103, %v9102
        %v9118 = vpack.c.b16 %v9105, %v9104
        %v9119 = vpack.c.b16 %v9107, %v9106
        %v9120 = vpack.c.b16 %v9109, %v9108
        %v9121 = vpack.c.b16 %v9111, %v9110
        %v9122 = vpack.c.b16 %v9113, %v9112
        %v9123 = vpack.c.b16 %v9115, %v9114
        %9132 = vmatprep.subr.bf16.mxu0 0
        %9133 = vmatpush1.bf16.msra.mxu0 %v9116
        %9134 = vmatprep.subr.bf16.mxu0 0
        %9135 = vmatpush1.bf16.msra.mxu0 %v9117
        %9136 = vmatprep.subr.bf16.mxu0 0
        %9137 = vmatpush1.bf16.msra.mxu0 %v9118
        %9138 = vmatprep.subr.bf16.mxu0 0
        %9139 = vmatpush1.bf16.msra.mxu0 %v9119
        %9140 = vmatprep.subr.bf16.mxu0 0
        %9141 = vmatpush1.bf16.msra.mxu0 %v9120
        %9142 = vmatprep.subr.bf16.mxu0 0
        %9143 = vmatpush1.bf16.msra.mxu0 %v9121
        %9144 = vmatprep.subr.bf16.mxu0 0
        %9145 = vmatpush1.bf16.msra.mxu0 %v9122
        %9146 = vmatprep.subr.bf16.mxu0 0
        %9147 = vmatpush1.bf16.msra.mxu0 %v9123
        %9148 = vmatprep.subr.bf16.mxu0 0
        %9149 = vmatpush1.bf16.msra.mxu0 0
        %9150 = vmatprep.subr.bf16.mxu0 0
        %9151 = vmatpush1.bf16.msra.mxu0 0
        %9152 = vmatprep.subr.bf16.mxu0 0
        %9153 = vmatpush1.bf16.msra.mxu0 0
        %9154 = vmatprep.subr.bf16.mxu0 0
        %9155 = vmatpush1.bf16.msra.mxu0 0
        %9156 = vmatprep.subr.bf16.mxu0 0
        %9157 = vmatpush1.bf16.msra.mxu0 0
        %9158 = vmatprep.subr.bf16.mxu0 0
        %9159 = vmatpush1.bf16.msra.mxu0 0
        %9160 = vmatprep.subr.bf16.mxu0 0
        %9161 = vmatpush1.bf16.msra.mxu0 0
        %9162 = vmatprep.subr.bf16.mxu0 0
        %9163 = vmatpush1.bf16.msra.mxu0 0
        %9164 = vmatprep.mubr.bf16.mxu0 0
        %9165 = vmatmul.mubr.bf16.gmra.mrb[0].mxu0 %v8849
        %v9166 = vpop.f32.mrb[0].mxu0
        %v9167 = vadd.f32 %v9068, %v9166
        %v9168 = vpop.f32.mrb[0].mxu0
        %v9169 = vpop.f32.mrb[0].mxu0
        %v9170 = vadd.f32 %v9069, %v9169
        %v9171 = vpop.f32.mrb[0].mxu0
        %9172 = vmatprep.mubr.bf16.mxu0 0
        %9173 = vmatmul.mubr.bf16.gmra.mrb[0].mxu0 %v8850
        %v9174 = vpop.f32.mrb[0].mxu0
        %v9175 = vadd.f32 %v9070, %v9174
        %v9176 = vpop.f32.mrb[0].mxu0
        %v9177 = vpop.f32.mrb[0].mxu0
        %v9178 = vadd.f32 %v9071, %v9177
        %v9179 = vpop.f32.mrb[0].mxu0
        %9180 = vmatprep.mubr.bf16.mxu0 0
        %9181 = vmatmul.mubr.bf16.gmra.mrb[0].mxu0 %v8851
        %v9182 = vpop.f32.mrb[0].mxu0
        %v9183 = vadd.f32 %v9072, %v9182
        %v9184 = vpop.f32.mrb[0].mxu0
        %v9185 = vpop.f32.mrb[0].mxu0
        %v9186 = vadd.f32 %v9073, %v9185
        %v9187 = vpop.f32.mrb[0].mxu0
        %9188 = vmatprep.mubr.bf16.mxu0 0
        %9189 = vmatmul.mubr.bf16.gmra.mrb[0].mxu0 %v8852
        %v9190 = vpop.f32.mrb[0].mxu0
        %v9191 = vadd.f32 %v9074, %v9190
        %v9192 = vpop.f32.mrb[0].mxu0
        %v9193 = vpop.f32.mrb[0].mxu0
        %v9194 = vadd.f32 %v9075, %v9193
        %v9195 = vpop.f32.mrb[0].mxu0
        %9196 = vmatprep.mubr.bf16.mxu0 0
        %9197 = vmatmul.mubr.bf16.gmra.mrb[0].mxu0 %v8853
        %v9198 = vpop.f32.mrb[0].mxu0
        %v9199 = vadd.f32 %v9076, %v9198
        %v9200 = vpop.f32.mrb[0].mxu0
        %v9201 = vpop.f32.mrb[0].mxu0
        %v9202 = vadd.f32 %v9077, %v9201
        %v9203 = vpop.f32.mrb[0].mxu0
        %9204 = vmatprep.mubr.bf16.mxu0 0
        %9205 = vmatmul.mubr.bf16.gmra.mrb[0].mxu0 %v8854
        %v9206 = vpop.f32.mrb[0].mxu0
        %v9207 = vadd.f32 %v9078, %v9206
        %v9208 = vpop.f32.mrb[0].mxu0
        %v9209 = vpop.f32.mrb[0].mxu0
        %v9210 = vadd.f32 %v9079, %v9209
        %v9211 = vpop.f32.mrb[0].mxu0
        %9212 = vmatprep.mubr.bf16.mxu0 0
        %9213 = vmatmul.mubr.bf16.gmra.mrb[0].mxu0 %v8855
        %v9214 = vpop.f32.mrb[0].mxu0
        %v9215 = vadd.f32 %v9080, %v9214
        %v9216 = vpop.f32.mrb[0].mxu0
        %v9217 = vpop.f32.mrb[0].mxu0
        %v9218 = vadd.f32 %v9081, %v9217
        %v9219 = vpop.f32.mrb[0].mxu0
        %9220 = vmatprep.mubr.bf16.mxu0 0
        %9221 = vmatmul.mubr.bf16.gmra.mrb[0].mxu0 %v8856
        %v9222 = vpop.f32.mrb[0].mxu0
        %v9223 = vadd.f32 %v9082, %v9222
        %v9224 = vpop.f32.mrb[0].mxu0
        %v9225 = vpop.f32.mrb[0].mxu0
        %v9226 = vadd.f32 %v9083, %v9225
        %v9227 = vpop.f32.mrb[0].mxu0
        %9228 = vdwg.mxu0
        %s9229 = scalar_lea.vmem [#allocation7], 896
        %v9230 = vld [vmem:[%s9229] sm:$0xf]
        %v9231 = vld [vmem:[%s9229 + $0x4] sm:$0xf]
        %v9232 = vld [vmem:[%s9229 + $0x8] sm:$0xf]
        %v9233 = vld [vmem:[%s9229 + $0xc] sm:$0xf]
        %v9234 = vld [vmem:[%s9229 + $0x10] sm:$0xf]
        %v9235 = vld [vmem:[%s9229 + $0x14] sm:$0xf]
        %v9236 = vld [vmem:[%s9229 + $0x18] sm:$0xf]
        %v9237 = vld [vmem:[%s9229 + $0x1c] sm:$0xf]
        %v9238 = vld [vmem:[%s9229 + $0x20] sm:$0xf]
        %v9239 = vld [vmem:[%s9229 + $0x24] sm:$0xf]
        %v9240 = vld [vmem:[%s9229 + $0x28] sm:$0xf]
        %v9241 = vld [vmem:[%s9229 + $0x2c] sm:$0xf]
        %v9242 = vld [vmem:[%s9229 + $0x30] sm:$0xf]
        %v9243 = vld [vmem:[%s9229 + $0x34] sm:$0xf]
        %v9244 = vld [vmem:[%s9229 + $0x38] sm:$0xf]
        %v9245 = vld [vmem:[%s9229 + $0x3c] sm:$0xf]
        %v9262 = vunpack.c.l.b16 %v9230
        %v9263 = vunpack.c.l.b16 %v9231
        %v9264 = vunpack.c.l.b16 %v9232
        %v9265 = vunpack.c.l.b16 %v9233
        %v9266 = vunpack.c.l.b16 %v9234
        %v9267 = vunpack.c.l.b16 %v9235
        %v9268 = vunpack.c.l.b16 %v9236
        %v9269 = vunpack.c.l.b16 %v9237
        %v9270 = vunpack.c.l.b16 %v9238
        %v9271 = vunpack.c.l.b16 %v9239
        %v9272 = vunpack.c.l.b16 %v9240
        %v9273 = vunpack.c.l.b16 %v9241
        %v9274 = vunpack.c.l.b16 %v9242
        %v9275 = vunpack.c.l.b16 %v9243
        %v9276 = vunpack.c.l.b16 %v9244
        %v9277 = vunpack.c.l.b16 %v9245
        %v9278 = vpack.c.b16 %v9263, %v9262
        %v9279 = vpack.c.b16 %v9265, %v9264
        %v9280 = vpack.c.b16 %v9267, %v9266
        %v9281 = vpack.c.b16 %v9269, %v9268
        %v9282 = vpack.c.b16 %v9271, %v9270
        %v9283 = vpack.c.b16 %v9273, %v9272
        %v9284 = vpack.c.b16 %v9275, %v9274
        %v9285 = vpack.c.b16 %v9277, %v9276
        %9294 = vmatprep.subr.bf16.mxu0 0
        %9295 = vmatpush1.bf16.msra.mxu0 %v9278
        %9296 = vmatprep.subr.bf16.mxu0 0
        %9297 = vmatpush1.bf16.msra.mxu0 %v9279
        %9298 = vmatprep.subr.bf16.mxu0 0
        %9299 = vmatpush1.bf16.msra.mxu0 %v9280
        %9300 = vmatprep.subr.bf16.mxu0 0
        %9301 = vmatpush1.bf16.msra.mxu0 %v9281
        %9302 = vmatprep.subr.bf16.mxu0 0
        %9303 = vmatpush1.bf16.msra.mxu0 %v9282
        %9304 = vmatprep.subr.bf16.mxu0 0
        %9305 = vmatpush1.bf16.msra.mxu0 %v9283
        %9306 = vmatprep.subr.bf16.mxu0 0
        %9307 = vmatpush1.bf16.msra.mxu0 %v9284
        %9308 = vmatprep.subr.bf16.mxu0 0
        %9309 = vmatpush1.bf16.msra.mxu0 %v9285
        %9310 = vmatprep.subr.bf16.mxu0 0
        %9311 = vmatpush1.bf16.msra.mxu0 0
        %9312 = vmatprep.subr.bf16.mxu0 0
        %9313 = vmatpush1.bf16.msra.mxu0 0
        %9314 = vmatprep.subr.bf16.mxu0 0
        %9315 = vmatpush1.bf16.msra.mxu0 0
        %9316 = vmatprep.subr.bf16.mxu0 0
        %9317 = vmatpush1.bf16.msra.mxu0 0
        %9318 = vmatprep.subr.bf16.mxu0 0
        %9319 = vmatpush1.bf16.msra.mxu0 0
        %9320 = vmatprep.subr.bf16.mxu0 0
        %9321 = vmatpush1.bf16.msra.mxu0 0
        %9322 = vmatprep.subr.bf16.mxu0 0
        %9323 = vmatpush1.bf16.msra.mxu0 0
        %9324 = vmatprep.subr.bf16.mxu0 0
        %9325 = vmatpush1.bf16.msra.mxu0 0
        %9326 = vmatprep.mubr.bf16.mxu0 0
        %9327 = vmatmul.mubr.bf16.gmra.mrb[0].mxu0 %v8849
        %v9328 = vpop.f32.mrb[0].mxu0
        %v9329 = vadd.f32 0.0, %v9328
        %v9330 = vpop.f32.mrb[0].mxu0
        %v9331 = vpop.f32.mrb[0].mxu0
        %v9332 = vadd.f32 0.0, %v9331
        %v9333 = vpop.f32.mrb[0].mxu0
        %9334 = vmatprep.mubr.bf16.mxu0 0
        %9335 = vmatmul.mubr.bf16.gmra.mrb[0].mxu0 %v8850
        %v9336 = vpop.f32.mrb[0].mxu0
        %v9337 = vadd.f32 0.0, %v9336
        %v9338 = vpop.f32.mrb[0].mxu0
        %v9339 = vpop.f32.mrb[0].mxu0
        %v9340 = vadd.f32 0.0, %v9339
        %v9341 = vpop.f32.mrb[0].mxu0
        %9342 = vmatprep.mubr.bf16.mxu0 0
        %9343 = vmatmul.mubr.bf16.gmra.mrb[0].mxu0 %v8851
        %v9344 = vpop.f32.mrb[0].mxu0
        %v9345 = vadd.f32 0.0, %v9344
        %v9346 = vpop.f32.mrb[0].mxu0
        %v9347 = vpop.f32.mrb[0].mxu0
        %v9348 = vadd.f32 0.0, %v9347
        %v9349 = vpop.f32.mrb[0].mxu0
        %9350 = vmatprep.mubr.bf16.mxu0 0
        %9351 = vmatmul.mubr.bf16.gmra.mrb[0].mxu0 %v8852
        %v9352 = vpop.f32.mrb[0].mxu0
        %v9353 = vadd.f32 0.0, %v9352
        %v9354 = vpop.f32.mrb[0].mxu0
        %v9355 = vpop.f32.mrb[0].mxu0
        %v9356 = vadd.f32 0.0, %v9355
        %v9357 = vpop.f32.mrb[0].mxu0
        %9358 = vmatprep.mubr.bf16.mxu0 0
        %9359 = vmatmul.mubr.bf16.gmra.mrb[0].mxu0 %v8853
        %v9360 = vpop.f32.mrb[0].mxu0
        %v9361 = vadd.f32 0.0, %v9360
        %v9362 = vpop.f32.mrb[0].mxu0
        %v9363 = vpop.f32.mrb[0].mxu0
        %v9364 = vadd.f32 0.0, %v9363
        %v9365 = vpop.f32.mrb[0].mxu0
        %9366 = vmatprep.mubr.bf16.mxu0 0
        %9367 = vmatmul.mubr.bf16.gmra.mrb[0].mxu0 %v8854
        %v9368 = vpop.f32.mrb[0].mxu0
        %v9369 = vadd.f32 0.0, %v9368
        %v9370 = vpop.f32.mrb[0].mxu0
        %v9371 = vpop.f32.mrb[0].mxu0
        %v9372 = vadd.f32 0.0, %v9371
        %v9373 = vpop.f32.mrb[0].mxu0
        %9374 = vmatprep.mubr.bf16.mxu0 0
        %9375 = vmatmul.mubr.bf16.gmra.mrb[0].mxu0 %v8855
        %v9376 = vpop.f32.mrb[0].mxu0
        %v9377 = vadd.f32 0.0, %v9376
        %v9378 = vpop.f32.mrb[0].mxu0
        %v9379 = vpop.f32.mrb[0].mxu0
        %v9380 = vadd.f32 0.0, %v9379
        %v9381 = vpop.f32.mrb[0].mxu0
        %9382 = vmatprep.mubr.bf16.mxu0 0
        %9383 = vmatmul.mubr.bf16.gmra.mrb[0].mxu0 %v8856
        %v9384 = vpop.f32.mrb[0].mxu0
        %v9385 = vadd.f32 0.0, %v9384
        %v9386 = vpop.f32.mrb[0].mxu0
        %v9387 = vpop.f32.mrb[0].mxu0
        %v9388 = vadd.f32 0.0, %v9387
        %v9389 = vpop.f32.mrb[0].mxu0
        %9390 = vdwg.mxu0
        %v9391 = vrot.slane %v9329, 1
        %v9392 = vrot.slane %v9332, 1
        %v9393 = vrot.slane %v9337, 1
        %v9394 = vrot.slane %v9340, 1
        %v9395 = vrot.slane %v9345, 1
        %v9396 = vrot.slane %v9348, 1
        %v9397 = vrot.slane %v9353, 1
        %v9398 = vrot.slane %v9356, 1
        %v9399 = vrot.slane %v9361, 1
        %v9400 = vrot.slane %v9364, 1
        %v9401 = vrot.slane %v9369, 1
        %v9402 = vrot.slane %v9372, 1
        %v9403 = vrot.slane %v9377, 1
        %v9404 = vrot.slane %v9380, 1
        %v9405 = vrot.slane %v9385, 1
        %v9406 = vrot.slane %v9388, 1
        %v9407 = vsel %vm1542, %v9405, %v9406
        %v9408 = vsel %vm1542, %v9404, %v9405
        %v9409 = vsel %vm1542, %v9403, %v9404
        %v9410 = vsel %vm1542, %v9402, %v9403
        %v9411 = vsel %vm1542, %v9401, %v9402
        %v9412 = vsel %vm1542, %v9400, %v9401
        %v9413 = vsel %vm1542, %v9399, %v9400
        %v9414 = vsel %vm1542, %v9398, %v9399
        %v9415 = vsel %vm1542, %v9397, %v9398
        %v9416 = vsel %vm1542, %v9396, %v9397
        %v9417 = vsel %vm1542, %v9395, %v9396
        %v9418 = vsel %vm1542, %v9394, %v9395
        %v9419 = vsel %vm1542, %v9393, %v9394
        %v9420 = vsel %vm1542, %v9392, %v9393
        %v9421 = vsel %vm1542, %v9391, %v9392
        %v9422 = vsel %vm1542, %v9406, %v9391
        %v9423 = vsel %vm1591, 0.0, %v9421
        %v9424 = vsel %vm1592, 0.0, %v9420
        %v9425 = vsel %vm1593, 0.0, %v9419
        %v9426 = vsel %vm1594, 0.0, %v9418
        %v9427 = vsel %vm1595, 0.0, %v9417
        %v9428 = vsel %vm1596, 0.0, %v9416
        %v9429 = vsel %vm1597, 0.0, %v9415
        %v9430 = vsel %vm1598, 0.0, %v9414
        %v9431 = vsel %vm1599, 0.0, %v9413
        %v9432 = vsel %vm1600, 0.0, %v9412
        %v9433 = vsel %vm1601, 0.0, %v9411
        %v9434 = vsel %vm1602, 0.0, %v9410
        %v9435 = vsel %vm1603, 0.0, %v9409
        %v9436 = vsel %vm1604, 0.0, %v9408
        %v9437 = vsel %vm1605, 0.0, %v9407
        %v9438 = vsel %vm1606, 0.0, %v9422
        %v9439 = vadd.f32 %v9167, %v9423
        %v9440 = vadd.f32 %v9170, %v9424
        %v9441 = vadd.f32 %v9175, %v9425
        %v9442 = vadd.f32 %v9178, %v9426
        %v9443 = vadd.f32 %v9183, %v9427
        %v9444 = vadd.f32 %v9186, %v9428
        %v9445 = vadd.f32 %v9191, %v9429
        %v9446 = vadd.f32 %v9194, %v9430
        %v9447 = vadd.f32 %v9199, %v9431
        %v9448 = vadd.f32 %v9202, %v9432
        %v9449 = vadd.f32 %v9207, %v9433
        %v9450 = vadd.f32 %v9210, %v9434
        %v9451 = vadd.f32 %v9215, %v9435
        %v9452 = vadd.f32 %v9218, %v9436
        %v9453 = vadd.f32 %v9223, %v9437
        %v9454 = vadd.f32 %v9226, %v9438
        %s9455 = scalar_lea.vmem %s9, 8
        %v9456 = vld [vmem:[%s9455] sm:$0x3]
        %v9457 = vlaneseq
        %v9458 = vshrl.u32 %v9457, 7
        %v9459 = vsub.s32 0, %v9458
        %v9460 = vrot.slane %v9456, %v9459
        %v9461 = vmul.f32 %v9439, %v9460
        %v9462 = vmul.f32 %v9440, %v9460
        %v9463 = vmul.f32 %v9441, %v9460
        %v9464 = vmul.f32 %v9442, %v9460
        %v9465 = vmul.f32 %v9443, %v9460
        %v9466 = vmul.f32 %v9444, %v9460
        %v9467 = vmul.f32 %v9445, %v9460
        %v9468 = vmul.f32 %v9446, %v9460
        %v9469 = vmul.f32 %v9447, %v9460
        %v9470 = vmul.f32 %v9448, %v9460
        %v9471 = vmul.f32 %v9449, %v9460
        %v9472 = vmul.f32 %v9450, %v9460
        %v9473 = vmul.f32 %v9451, %v9460
        %v9474 = vmul.f32 %v9452, %v9460
        %v9475 = vmul.f32 %v9453, %v9460
        %v9476 = vmul.f32 %v9454, %v9460
        %v9477 = vlaneseq
        %v9478 = vshrl.u32 %v9477, 7
        %v9479 = vsub.s32 1, %v9478
        %v9480 = vrot.slane %v9456, %v9479
        %v9481 = vadd.f32 %v9461, %v9480
        %v9482 = vadd.f32 %v9462, %v9480
        %v9483 = vadd.f32 %v9463, %v9480
        %v9484 = vadd.f32 %v9464, %v9480
        %v9485 = vadd.f32 %v9465, %v9480
        %v9486 = vadd.f32 %v9466, %v9480
        %v9487 = vadd.f32 %v9467, %v9480
        %v9488 = vadd.f32 %v9468, %v9480
        %v9489 = vadd.f32 %v9469, %v9480
        %v9490 = vadd.f32 %v9470, %v9480
        %v9491 = vadd.f32 %v9471, %v9480
        %v9492 = vadd.f32 %v9472, %v9480
        %v9493 = vadd.f32 %v9473, %v9480
        %v9494 = vadd.f32 %v9474, %v9480
        %v9495 = vadd.f32 %v9475, %v9480
        %v9496 = vadd.f32 %v9476, %v9480
        %vm9497 = vcmp.gt.f32.partialorder %v9481, 0.0
        %vm9498 = vcmp.gt.f32.partialorder %v9482, 0.0
        %vm9499 = vcmp.gt.f32.partialorder %v9483, 0.0
        %vm9500 = vcmp.gt.f32.partialorder %v9484, 0.0
        %vm9501 = vcmp.gt.f32.partialorder %v9485, 0.0
        %vm9502 = vcmp.gt.f32.partialorder %v9486, 0.0
        %vm9503 = vcmp.gt.f32.partialorder %v9487, 0.0
        %vm9504 = vcmp.gt.f32.partialorder %v9488, 0.0
        %vm9505 = vcmp.gt.f32.partialorder %v9489, 0.0
        %vm9506 = vcmp.gt.f32.partialorder %v9490, 0.0
        %vm9507 = vcmp.gt.f32.partialorder %v9491, 0.0
        %vm9508 = vcmp.gt.f32.partialorder %v9492, 0.0
        %vm9509 = vcmp.gt.f32.partialorder %v9493, 0.0
        %vm9510 = vcmp.gt.f32.partialorder %v9494, 0.0
        %vm9511 = vcmp.gt.f32.partialorder %v9495, 0.0
        %vm9512 = vcmp.gt.f32.partialorder %v9496, 0.0
        %v9513 = vmul.f32 %v9481, 0.2
        %v9514 = vmul.f32 %v9482, 0.2
        %v9515 = vmul.f32 %v9483, 0.2
        %v9516 = vmul.f32 %v9484, 0.2
        %v9517 = vmul.f32 %v9485, 0.2
        %v9518 = vmul.f32 %v9486, 0.2
        %v9519 = vmul.f32 %v9487, 0.2
        %v9520 = vmul.f32 %v9488, 0.2
        %v9521 = vmul.f32 %v9489, 0.2
        %v9522 = vmul.f32 %v9490, 0.2
        %v9523 = vmul.f32 %v9491, 0.2
        %v9524 = vmul.f32 %v9492, 0.2
        %v9525 = vmul.f32 %v9493, 0.2
        %v9526 = vmul.f32 %v9494, 0.2
        %v9527 = vmul.f32 %v9495, 0.2
        %v9528 = vmul.f32 %v9496, 0.2
        %v9529 = vsel %vm9497, %v9481, %v9513
        %v9530 = vsel %vm9498, %v9482, %v9514
        %v9531 = vsel %vm9499, %v9483, %v9515
        %v9532 = vsel %vm9500, %v9484, %v9516
        %v9533 = vsel %vm9501, %v9485, %v9517
        %v9534 = vsel %vm9502, %v9486, %v9518
        %v9535 = vsel %vm9503, %v9487, %v9519
        %v9536 = vsel %vm9504, %v9488, %v9520
        %v9537 = vsel %vm9505, %v9489, %v9521
        %v9538 = vsel %vm9506, %v9490, %v9522
        %v9539 = vsel %vm9507, %v9491, %v9523
        %v9540 = vsel %vm9508, %v9492, %v9524
        %v9541 = vsel %vm9509, %v9493, %v9525
        %v9542 = vsel %vm9510, %v9494, %v9526
        %v9543 = vsel %vm9511, %v9495, %v9527
        %v9544 = vsel %vm9512, %v9496, %v9528
        %v9545 = vpack.c.bf16 %v9530, %v9529
        %v9546 = vpack.c.bf16 %v9532, %v9531
        %v9547 = vpack.c.bf16 %v9534, %v9533
        %v9548 = vpack.c.bf16 %v9536, %v9535
        %v9549 = vpack.c.bf16 %v9538, %v9537
        %v9550 = vpack.c.bf16 %v9540, %v9539
        %v9551 = vpack.c.bf16 %v9542, %v9541
        %v9552 = vpack.c.bf16 %v9544, %v9543
        %v9553 = vld [vmem:[%s10] sm:$0xf]
        %v9554 = vld [vmem:[%s10 + $0x4] sm:$0xf]
        %v9555 = vld [vmem:[%s10 + $0x8] sm:$0xf]
        %v9556 = vld [vmem:[%s10 + $0xc] sm:$0xf]
        %v9557 = vld [vmem:[%s10 + $0x10] sm:$0xf]
        %v9558 = vld [vmem:[%s10 + $0x14] sm:$0xf]
        %v9559 = vld [vmem:[%s10 + $0x18] sm:$0xf]
        %v9560 = vld [vmem:[%s10 + $0x1c] sm:$0xf]
        %v9561 = vld [vmem:[%s10 + $0x20] sm:$0xf]
        %v9562 = vld [vmem:[%s10 + $0x24] sm:$0xf]
        %v9563 = vld [vmem:[%s10 + $0x28] sm:$0xf]
        %v9564 = vld [vmem:[%s10 + $0x2c] sm:$0xf]
        %v9565 = vld [vmem:[%s10 + $0x30] sm:$0xf]
        %v9566 = vld [vmem:[%s10 + $0x34] sm:$0xf]
        %v9567 = vld [vmem:[%s10 + $0x38] sm:$0xf]
        %v9568 = vld [vmem:[%s10 + $0x3c] sm:$0xf]
        %v9585 = vunpack.c.l.b16 %v9553
        %v9586 = vunpack.c.l.b16 %v9554
        %v9587 = vunpack.c.l.b16 %v9555
        %v9588 = vunpack.c.l.b16 %v9556
        %v9589 = vunpack.c.l.b16 %v9557
        %v9590 = vunpack.c.l.b16 %v9558
        %v9591 = vunpack.c.l.b16 %v9559
        %v9592 = vunpack.c.l.b16 %v9560
        %v9593 = vunpack.c.l.b16 %v9561
        %v9594 = vunpack.c.l.b16 %v9562
        %v9595 = vunpack.c.l.b16 %v9563
        %v9596 = vunpack.c.l.b16 %v9564
        %v9597 = vunpack.c.l.b16 %v9565
        %v9598 = vunpack.c.l.b16 %v9566
        %v9599 = vunpack.c.l.b16 %v9567
        %v9600 = vunpack.c.l.b16 %v9568
        %v9601 = vpack.c.b16 %v9586, %v9585
        %v9602 = vpack.c.b16 %v9588, %v9587
        %v9603 = vpack.c.b16 %v9590, %v9589
        %v9604 = vpack.c.b16 %v9592, %v9591
        %v9605 = vpack.c.b16 %v9594, %v9593
        %v9606 = vpack.c.b16 %v9596, %v9595
        %v9607 = vpack.c.b16 %v9598, %v9597
        %v9608 = vpack.c.b16 %v9600, %v9599
        %9617 = vmatprep.subr.bf16.mxu0 0
        %9618 = vmatpush1.bf16.msra.mxu0 %v9601
        %9619 = vmatprep.subr.bf16.mxu0 0
        %9620 = vmatpush1.bf16.msra.mxu0 %v9602
        %9621 = vmatprep.subr.bf16.mxu0 0
        %9622 = vmatpush1.bf16.msra.mxu0 %v9603
        %9623 = vmatprep.subr.bf16.mxu0 0
        %9624 = vmatpush1.bf16.msra.mxu0 %v9604
        %9625 = vmatprep.subr.bf16.mxu0 0
        %9626 = vmatpush1.bf16.msra.mxu0 %v9605
        %9627 = vmatprep.subr.bf16.mxu0 0
        %9628 = vmatpush1.bf16.msra.mxu0 %v9606
        %9629 = vmatprep.subr.bf16.mxu0 0
        %9630 = vmatpush1.bf16.msra.mxu0 %v9607
        %9631 = vmatprep.subr.bf16.mxu0 0
        %9632 = vmatpush1.bf16.msra.mxu0 %v9608
        %9633 = vmatprep.subr.bf16.mxu0 0
        %9634 = vmatpush1.bf16.msra.mxu0 0
        %9635 = vmatprep.subr.bf16.mxu0 0
        %9636 = vmatpush1.bf16.msra.mxu0 0
        %9637 = vmatprep.subr.bf16.mxu0 0
        %9638 = vmatpush1.bf16.msra.mxu0 0
        %9639 = vmatprep.subr.bf16.mxu0 0
        %9640 = vmatpush1.bf16.msra.mxu0 0
        %9641 = vmatprep.subr.bf16.mxu0 0
        %9642 = vmatpush1.bf16.msra.mxu0 0
        %9643 = vmatprep.subr.bf16.mxu0 0
        %9644 = vmatpush1.bf16.msra.mxu0 0
        %9645 = vmatprep.subr.bf16.mxu0 0
        %9646 = vmatpush1.bf16.msra.mxu0 0
        %9647 = vmatprep.subr.bf16.mxu0 0
        %9648 = vmatpush1.bf16.msra.mxu0 0
        %9649 = vmatprep.mubr.bf16.mxu0 0
        %9650 = vmatmul.mubr.bf16.gmra.mrb[0].mxu0 %v9545
        %v9651 = vpop.f32.mrb[0].mxu0
        %v9652 = vadd.f32 0.0, %v9651
        %v9653 = vpop.f32.mrb[0].mxu0
        %v9654 = vpop.f32.mrb[0].mxu0
        %v9655 = vadd.f32 0.0, %v9654
        %v9656 = vpop.f32.mrb[0].mxu0
        %9657 = vmatprep.mubr.bf16.mxu0 0
        %9658 = vmatmul.mubr.bf16.gmra.mrb[0].mxu0 %v9546
        %v9659 = vpop.f32.mrb[0].mxu0
        %v9660 = vadd.f32 0.0, %v9659
        %v9661 = vpop.f32.mrb[0].mxu0
        %v9662 = vpop.f32.mrb[0].mxu0
        %v9663 = vadd.f32 0.0, %v9662
        %v9664 = vpop.f32.mrb[0].mxu0
        %9665 = vmatprep.mubr.bf16.mxu0 0
        %9666 = vmatmul.mubr.bf16.gmra.mrb[0].mxu0 %v9547
        %v9667 = vpop.f32.mrb[0].mxu0
        %v9668 = vadd.f32 0.0, %v9667
        %v9669 = vpop.f32.mrb[0].mxu0
        %v9670 = vpop.f32.mrb[0].mxu0
        %v9671 = vadd.f32 0.0, %v9670
        %v9672 = vpop.f32.mrb[0].mxu0
        %9673 = vmatprep.mubr.bf16.mxu0 0
        %9674 = vmatmul.mubr.bf16.gmra.mrb[0].mxu0 %v9548
        %v9675 = vpop.f32.mrb[0].mxu0
        %v9676 = vadd.f32 0.0, %v9675
        %v9677 = vpop.f32.mrb[0].mxu0
        %v9678 = vpop.f32.mrb[0].mxu0
        %v9679 = vadd.f32 0.0, %v9678
        %v9680 = vpop.f32.mrb[0].mxu0
        %9681 = vmatprep.mubr.bf16.mxu0 0
        %9682 = vmatmul.mubr.bf16.gmra.mrb[0].mxu0 %v9549
        %v9683 = vpop.f32.mrb[0].mxu0
        %v9684 = vadd.f32 0.0, %v9683
        %v9685 = vpop.f32.mrb[0].mxu0
        %v9686 = vpop.f32.mrb[0].mxu0
        %v9687 = vadd.f32 0.0, %v9686
        %v9688 = vpop.f32.mrb[0].mxu0
        %9689 = vmatprep.mubr.bf16.mxu0 0
        %9690 = vmatmul.mubr.bf16.gmra.mrb[0].mxu0 %v9550
        %v9691 = vpop.f32.mrb[0].mxu0
        %v9692 = vadd.f32 0.0, %v9691
        %v9693 = vpop.f32.mrb[0].mxu0
        %v9694 = vpop.f32.mrb[0].mxu0
        %v9695 = vadd.f32 0.0, %v9694
        %v9696 = vpop.f32.mrb[0].mxu0
        %9697 = vmatprep.mubr.bf16.mxu0 0
        %9698 = vmatmul.mubr.bf16.gmra.mrb[0].mxu0 %v9551
        %v9699 = vpop.f32.mrb[0].mxu0
        %v9700 = vadd.f32 0.0, %v9699
        %v9701 = vpop.f32.mrb[0].mxu0
        %v9702 = vpop.f32.mrb[0].mxu0
        %v9703 = vadd.f32 0.0, %v9702
        %v9704 = vpop.f32.mrb[0].mxu0
        %9705 = vmatprep.mubr.bf16.mxu0 0
        %9706 = vmatmul.mubr.bf16.gmra.mrb[0].mxu0 %v9552
        %v9707 = vpop.f32.mrb[0].mxu0
        %v9708 = vadd.f32 0.0, %v9707
        %v9709 = vpop.f32.mrb[0].mxu0
        %v9710 = vpop.f32.mrb[0].mxu0
        %v9711 = vadd.f32 0.0, %v9710
        %v9712 = vpop.f32.mrb[0].mxu0
        %9713 = vdwg.mxu0
        %v9714 = vld [vmem:[%s11] sm:$0x1]
        %v9715 = vlaneseq
        %v9716 = vshrl.u32 %v9715, 7
        %v9717 = vsub.s32 0, %v9716
        %v9718 = vrot.slane %v9714, %v9717
        %v9719 = vmul.f32 %v9652, %v9718
        %v9720 = vmul.f32 %v9655, %v9718
        %v9721 = vmul.f32 %v9660, %v9718
        %v9722 = vmul.f32 %v9663, %v9718
        %v9723 = vmul.f32 %v9668, %v9718
        %v9724 = vmul.f32 %v9671, %v9718
        %v9725 = vmul.f32 %v9676, %v9718
        %v9726 = vmul.f32 %v9679, %v9718
        %v9727 = vmul.f32 %v9684, %v9718
        %v9728 = vmul.f32 %v9687, %v9718
        %v9729 = vmul.f32 %v9692, %v9718
        %v9730 = vmul.f32 %v9695, %v9718
        %v9731 = vmul.f32 %v9700, %v9718
        %v9732 = vmul.f32 %v9703, %v9718
        %v9733 = vmul.f32 %v9708, %v9718
        %v9734 = vmul.f32 %v9711, %v9718
        %v9735 = vld [vmem:[%s11 + $0x1] sm:$0x1]
        %v9736 = vlaneseq
        %v9737 = vshrl.u32 %v9736, 7
        %v9738 = vsub.s32 0, %v9737
        %v9739 = vrot.slane %v9735, %v9738
        %v9740 = vadd.f32 %v9719, %v9739
        %v9741 = vadd.f32 %v9720, %v9739
        %v9742 = vadd.f32 %v9721, %v9739
        %v9743 = vadd.f32 %v9722, %v9739
        %v9744 = vadd.f32 %v9723, %v9739
        %v9745 = vadd.f32 %v9724, %v9739
        %v9746 = vadd.f32 %v9725, %v9739
        %v9747 = vadd.f32 %v9726, %v9739
        %v9748 = vadd.f32 %v9727, %v9739
        %v9749 = vadd.f32 %v9728, %v9739
        %v9750 = vadd.f32 %v9729, %v9739
        %v9751 = vadd.f32 %v9730, %v9739
        %v9752 = vadd.f32 %v9731, %v9739
        %v9753 = vadd.f32 %v9732, %v9739
        %v9754 = vadd.f32 %v9733, %v9739
        %v9755 = vadd.f32 %v9734, %v9739
        %9756 = vst [vmem:[%s451] sm:$0xff] %v9740
        %9757 = vst [vmem:[%s451 + $0x8] sm:$0xff] %v9741
        %9758 = vst [vmem:[%s451 + $0x10] sm:$0xff] %v9742
        %9759 = vst [vmem:[%s451 + $0x18] sm:$0xff] %v9743
        %9760 = vst [vmem:[%s451 + $0x20] sm:$0xff] %v9744
        %9761 = vst [vmem:[%s451 + $0x28] sm:$0xff] %v9745
        %9762 = vst [vmem:[%s451 + $0x30] sm:$0xff] %v9746
        %9763 = vst [vmem:[%s451 + $0x38] sm:$0xff] %v9747
        %9764 = vst [vmem:[%s451 + $0x40] sm:$0xff] %v9748
        %9765 = vst [vmem:[%s451 + $0x48] sm:$0xff] %v9749
        %9766 = vst [vmem:[%s451 + $0x50] sm:$0xff] %v9750
        %9767 = vst [vmem:[%s451 + $0x58] sm:$0xff] %v9751
        %9768 = vst [vmem:[%s451 + $0x60] sm:$0xff] %v9752
        %9769 = vst [vmem:[%s451 + $0x68] sm:$0xff] %v9753
        %9770 = vst [vmem:[%s451 + $0x70] sm:$0xff] %v9754
        %9771 = vst [vmem:[%s451 + $0x78] sm:$0xff] %v9755
        %s9772 = sand.u32 %s293, 1
        %s9773 = scalar_lea.sflag [#allocation4], %s9772
        %s9774 = sand.u32 %s293, 1
        %s9775 = smul.addr %s9774, 128
        %s9776 = scalar_lea.vmem [#allocation8], %s9775
        // Predicated region
        $region81: #{tpu_custom_call.1} parent=67 // pred_check
          %p9777 = pneg %p303
        $region82: #{tpu_custom_call.1} parent=67 // pred_check_branch
          %9779 = sbr.rel (%p9777) target = $region84
        $region83: #{tpu_custom_call.1} parent=67 // pred_region
          %s9780 = smul.u32 16, %s28
          %s9782 = ssub.s32 2048, 2048
          %9783 = vsyncadd %s9773, %s9782
          %s9784 = smul.addr %s9780, 128
          %s9785 = scalar_lea.hbm %s12, %s9784
          %s9786 = sshll.u32 %s9776, 4
          %s9787 = int_to_ptr.vmem [resolvable:$true] %s9786
          %9792 = dma.vmem_to_hbm [thread:$0]  %s9787, 2048, %s9785, %s9773, 128, 128, 8
        $region84: #{tpu_custom_call.1} parent=67 // pred_fallthru
          _
      $region68: #{tpu_custom_call.1} parent=5 // pred_fallthru
        _
      %p9793 = scmp.le.s32.totalorder 2, %s23
      // Predicated region
      $region85: #{tpu_custom_call.1} parent=5 // pred_check
        %p9794 = pneg %p9793
      $region86: #{tpu_custom_call.1} parent=5 // pred_check_branch
        %9796 = sbr.rel (%p9794) target = $region88
      $region87: #{tpu_custom_call.1} parent=5 // pred_region
        %s9797 = ssub.s32 %s23, 2
        // Predicated region
        $region89: #{tpu_custom_call.1} parent=87 // pred_check
          %p9798 = pneg %p309
        $region90: #{tpu_custom_call.1} parent=87 // pred_check_branch
          %9800 = sbr.rel (%p9798) target = $region92
        $region91: #{tpu_custom_call.1} parent=87 // pred_region
          %s9801 = sand.u32 %s294, 1
          %s9802 = scalar_lea.sflag [#allocation4], %s9801
          %s9803 = sand.u32 %s294, 1
          %s9804 = smul.addr %s9803, 128
          %s9805 = scalar_lea.vmem [#allocation8], %s9804
          %9806 = dma.done %s9802, 2048
        $region92: #{tpu_custom_call.1} parent=87 // pred_fallthru
          _
      $region88: #{tpu_custom_call.1} parent=5 // pred_fallthru
        _
    $region6: #{tpu_custom_call.1} parent=1 // loop_footer
      %s27 = sadd.s32 1, %s23
    $region7: #{tpu_custom_call.1} parent=1 // loop_footer_branch
      %22 = sbr.rel target = $region3
    $region8: #{tpu_custom_call.1} parent=1 // loop_exit
      _
    %9807 = vsyncpa [#allocation3], 1
    %s9808 = scalar_lea.sflag [#allocation3], 1
    %9809 = vsyncpa %s9808, 1
    %9810 = vsyncpa [#allocation6], 1
    %9811 = vsyncpa [#allocation4], 1
    %s9812 = scalar_lea.sflag [#allocation4], 1
    %9813 = vsyncpa %s9812, 1

</llo_original>
